<compile_context>
chip_gen: v7x
topology: tpu7x:2x2x1
jax: 0.10.0
libtpu: 0.0.40
codegen_flags: <defaults>
</compile_context>

<pallas_src>
import jax
import jax.numpy as jnp
import numpy as np
from jax.experimental import pallas as pl
from jax.experimental.pallas import tpu as pltpu


def _round_up(n, m):
    return ((n + m - 1) // m) * m


# ---------------- fused Pallas kernel (TB samples per grid step) -------------

def lenet_kernel(x_ref, w1r_ref, b1e_ref, w2r_ref, b2e_ref,
                 fc1s_ref, fc1b_ref, fc2w_ref, fc2b_ref,
                 fc3w_ref, fc3b_ref, out_ref):
    f32 = jnp.float32
    mdt = w1r_ref.dtype                      # matmul operand dtype (f32 or bf16)
    TB = out_ref.shape[1]                    # batch tile

    # Hoisted weight / bias reads (JAX does not CSE broadcasts inside the
    # unrolled loops below).
    w1 = [w1r_ref[i] for i in range(5)]      # each (32, 256)
    w2 = [w2r_ref[i] for i in range(5)]      # each (128, 256)
    fc1 = [fc1s_ref[Y] for Y in range(5)]    # each (128, 128)
    b1e = b1e_ref[...]                       # (1, 128)
    b2e = b2e_ref[...]                       # (1, 128)

    # ---- stage 1: conv1 (5x5, pad=2) + 2x2 maxpool + sigmoid ---------------
    # p1[rho][a*TB + b, W*6 + c] = sigmoid(maxpool(conv1(x_b)))[2a+rho, W, c]
    p1 = []
    for rho in (0, 1):
        m = None
        for qh in (0, 1):                                 # pool row phase
            acc = None
            for i in range(5):                            # kernel row
                t = 2 * rho + qh + i
                q, mu = t % 4, t // 4
                xs = x_ref[0, q, mu * TB:(mu + 7) * TB, :]        # (7*TB, 32)
                d = jnp.dot(xs.astype(mdt), w1[i],
                            preferred_element_type=f32)           # (7*TB, 256)
                acc = d if acc is None else acc + d
            mm = jnp.maximum(acc[:, :128], acc[:, 128:])  # pool col phases
            m = mm if m is None else jnp.maximum(m, mm)
        p1.append(jax.nn.sigmoid(m + b1e))                # (7*TB, 128)

    # ---- stage 2: conv2 (5x5, valid) + 2x2 maxpool + sigmoid ---------------
    m2 = None
    for py in (0, 1):                                     # pool row phase
        acc = None
        for i in range(5):                                # kernel row
            t = py + i
            rho, base = t % 2, t // 2
            ps = p1[rho][base * TB:(base + 5) * TB, :]            # (5*TB, 128)
            d = jnp.dot(ps.astype(mdt), w2[i],
                        preferred_element_type=f32)               # (5*TB, 256)
            acc = d if acc is None else acc + d
        mm = jnp.maximum(acc[:, :128], acc[:, 128:])
        m2 = mm if m2 is None else jnp.maximum(m2, mm)
    p2 = jax.nn.sigmoid(m2 + b2e)                         # (5*TB, 128): Y*TB+b

    # ---- stage 3: fc1 -> sigmoid -> fc2 -> sigmoid -> fc3 ------------------
    h1 = None
    for Y in range(5):
        d = jnp.dot(p2[Y * TB:(Y + 1) * TB, :].astype(mdt), fc1[Y],
                    preferred_element_type=f32)                   # (TB, 128)
        h1 = d if h1 is None else h1 + d
    h1 = jax.nn.sigmoid(h1 + fc1b_ref[...])
    h2 = jax.nn.sigmoid(
        jnp.dot(h1.astype(mdt), fc2w_ref[...], preferred_element_type=f32)
        + fc2b_ref[...])                                          # (TB, 128)
    out = (jnp.dot(h2.astype(mdt), fc3w_ref[...], preferred_element_type=f32)
           + fc3b_ref[...])                                       # (TB, 128)
    out_ref[0] = out                                      # lanes 0..9 valid


# ---------------- host-side parameter repacking -------------------------------

def pack_params(params, matmul_dtype=jnp.float32):
    """Repack PyTorch-style params into banded / pool-phased, 128-lane-aligned
    matrices (done once, outside jit).  Matmul weights may be stored as bf16
    (f32 accumulate in-kernel); biases stay f32."""
    w1 = np.asarray(params['conv1_w'], np.float32)   # (5,5,1,6)  HWIO
    b1 = np.asarray(params['conv1_b'], np.float32)
    w2 = np.asarray(params['conv2_w'], np.float32)   # (5,5,6,16) HWIO
    b2 = np.asarray(params['conv2_b'], np.float32)

    # conv1: per kernel-row banded matrix over the padded width (32).
    # Columns: pool-col-phase qw in 128-lane blocks; inside a block: W*6 + cout.
    w1r = np.zeros((5, 32, 256), np.float32)
    for i in range(5):
        for qw in (0, 1):
            for W in range(14):
                for j in range(5):
                    s = 2 * W + qw + j
                    w1r[i, s, qw * 128 + W * 6: qw * 128 + W * 6 + 6] = w1[i, j, 0, :]
    b1e = np.zeros((1, 128), np.float32)
    b1e[0, :84] = np.tile(b1, 14)

    # conv2: per kernel-row banded matrix. Rows = stage-1 feature lane
    # (W*6 + cin, K padded 84->128, pad rows zero so stage-1 pad lanes are
    # ignored).  Columns: pool-col-phase px in 128-lane blocks of X*16 + cout.
    w2r = np.zeros((5, 128, 256), np.float32)
    for i in range(5):
        for px in (0, 1):
            for X in range(5):
                for j in range(5):
                    xp = 2 * X + px + j
                    w2r[i, xp * 6:(xp + 1) * 6,
                        px * 128 + X * 16: px * 128 + (X + 1) * 16] = w2[i, j]
    b2e = np.zeros((1, 128), np.float32)
    b2e[0, :80] = np.tile(b2, 5)

    # fc1: permute rows from torch's (co, Y, X) flatten order to (Y, X, co),
    # split into 5 per-row slabs, zero-pad K 80->128 and N 120->128.
    fc1 = np.asarray(params['fc1_w'], np.float32)    # (400, 120)
    fc1_yxc = fc1.reshape(16, 5, 5, 120).transpose(1, 2, 0, 3).reshape(5, 80, 120)
    fc1s = np.zeros((5, 128, 128), np.float32)
    fc1s[:, :80, :120] = fc1_yxc
    fc1b = np.zeros((1, 128), np.float32)
    fc1b[0, :120] = np.asarray(params['fc1_b'], np.float32)

    # fc2 / fc3: zero-pad to 128x128 (pad K rows zero so pad lanes of the
    # previous activation never contribute; pad N cols zero -> lane-dense out).
    fc2w = np.zeros((128, 128), np.float32)
    fc2w[:120, :84] = np.asarray(params['fc2_w'], np.float32)
    fc2b = np.zeros((1, 128), np.float32)
    fc2b[0, :84] = np.asarray(params['fc2_b'], np.float32)

    fc3w = np.zeros((128, 128), np.float32)
    fc3w[:84, :10] = np.asarray(params['fc3_w'], np.float32)
    fc3b = np.zeros((1, 128), np.float32)
    fc3b[0, :10] = np.asarray(params['fc3_b'], np.float32)

    mdt = matmul_dtype
    return {
        'w1r': jnp.asarray(w1r, mdt), 'b1e': jnp.asarray(b1e),
        'w2r': jnp.asarray(w2r, mdt), 'b2e': jnp.asarray(b2e),
        'fc1s': jnp.asarray(fc1s, mdt), 'fc1b': jnp.asarray(fc1b),
        'fc2w': jnp.asarray(fc2w, mdt), 'fc2b': jnp.asarray(fc2b),
        'fc3w': jnp.asarray(fc3w, mdt), 'fc3b': jnp.asarray(fc3b),
    }


# ---------------- forward wrapper ---------------------------------------------

def lenet_forward(x_nchw, packed, tb=128):
    """x_nchw: (B, 1, 28, 28).  tb: batch tile per grid step (rounded to a
    multiple of 8; sweep 128-512 for throughput on large batches)."""
    B = x_nchw.shape[0]
    tb = int(min(tb, _round_up(B, 8)))
    tb = _round_up(tb, 8)
    B_pad = _round_up(B, tb)
    nt = B_pad // tb                                    # grid steps (>=2 uses both v7x TCs)

    x = x_nchw.reshape(B, 28, 28).astype(jnp.float32)
    x = jnp.pad(x, ((0, B_pad - B), (2, 2), (2, 2)))    # (B_pad, 32, 32)
    # Split rows by residue mod 4 and pre-fold the batch tile into the sublane
    # dimension so every in-kernel access is a static, 8-aligned 2-D slice:
    #   xr[t, q, a*tb + b, s] = x_pad[t*tb + b, 4a + q, s]
    xr = x.reshape(nt, tb, 8, 4, 32).transpose(0, 3, 2, 1, 4)   # (nt,4,8,tb,32)
    xr = xr.reshape(nt, 4, 8 * tb, 32)

    def const_spec(a):
        shp = a.shape
        return pl.BlockSpec(shp, lambda t: (0,) * len(shp))

    out = pl.pallas_call(
        lenet_kernel,
        out_shape=jax.ShapeDtypeStruct((nt, tb, 128), jnp.float32),
        grid=(nt,),
        in_specs=[
            pl.BlockSpec((1, 4, 8 * tb, 32), lambda t: (t, 0, 0, 0)),
            const_spec(packed['w1r']), const_spec(packed['b1e']),
            const_spec(packed['w2r']), const_spec(packed['b2e']),
            const_spec(packed['fc1s']), const_spec(packed['fc1b']),
            const_spec(packed['fc2w']), const_spec(packed['fc2b']),
            const_spec(packed['fc3w']), const_spec(packed['fc3b']),
        ],
        out_specs=pl.BlockSpec((1, tb, 128), lambda t: (t, 0, 0)),
        compiler_params=pltpu.CompilerParams(
            dimension_semantics=("parallel",),
            vmem_limit_bytes=32 * 1024 * 1024),
    )(xr, packed['w1r'], packed['b1e'], packed['w2r'], packed['b2e'],
      packed['fc1s'], packed['fc1b'], packed['fc2w'], packed['fc2b'],
      packed['fc3w'], packed['fc3b'])
    return out.reshape(B_pad, 128)[:B, :10]


# ---------------- pure-JAX reference (for correctness check) ------------------

def _im2col_ref(x, kh, kw, padding):
    if padding:
        x = jnp.pad(x, ((0, 0), (padding, padding), (padding, padding), (0, 0)))
    B, H, W, C = x.shape
    OH, OW = H - kh + 1, W - kw + 1
    cols = []
    for i in range(kh):
        for j in range(kw):
            cols.append(x[:, i:i + OH, j:j + OW, :])
    patches = jnp.stack(cols, axis=3)
    return patches.reshape(B * OH * OW, kh * kw * C), (B, OH, OW)


def lenet_reference(x_nchw, params):
    x = jnp.transpose(x_nchw, (0, 2, 3, 1))

    def conv(x, w, b, padding):
        kh, kw, cin, cout = w.shape
        patches, (B, OH, OW) = _im2col_ref(x, kh, kw, padding)
        y = patches @ w.reshape(kh * kw * cin, cout) + b
        return y.reshape(B, OH, OW, cout)

    def poolsig(y):
        B, H, W, C = y.shape
        m = jnp.max(y.reshape(B, H // 2, 2, W // 2, 2, C), axis=(2, 4))
        return jax.nn.sigmoid(m)

    y = poolsig(conv(x, params['conv1_w'], params['conv1_b'], 2))
    y = poolsig(conv(y, params['conv2_w'], params['conv2_b'], 0))
    f = jnp.transpose(y, (0, 3, 1, 2)).reshape(y.shape[0], -1)
    h1 = jax.nn.sigmoid(f @ params['fc1_w'] + params['fc1_b'])
    h2 = jax.nn.sigmoid(h1 @ params['fc2_w'] + params['fc2_b'])
    return h2 @ params['fc3_w'] + params['fc3_b']


# ---------------- parameter init ----------------------------------------------

def init_params(key):
    ks = jax.random.split(key, 10)
    s = 0.1

    def rnd(k, shape):
        return (s * jax.random.normal(k, shape)).astype(jnp.float32)

    return {
        'conv1_w': rnd(ks[0], (5, 5, 1, 6)),   'conv1_b': rnd(ks[1], (6,)),
        'conv2_w': rnd(ks[2], (5, 5, 6, 16)),  'conv2_b': rnd(ks[3], (16,)),
        'fc1_w':   rnd(ks[4], (400, 120)),     'fc1_b':   rnd(ks[5], (120,)),
        'fc2_w':   rnd(ks[6], (120, 84)),      'fc2_b':   rnd(ks[7], (84,)),
        'fc3_w':   rnd(ks[8], (84, 10)),       'fc3_b':   rnd(ks[9], (10,)),
    }


if __name__ == "__main__":
    key = jax.random.PRNGKey(0)
    pkey, xkey = jax.random.split(key)
    params = init_params(pkey)

    # LeNet's classifier fixes the spatial size: input must be (B, 1, 28, 28).
    B = 48
    x = jax.random.normal(xkey, (B, 1, 28, 28), dtype=jnp.float32)
    ref = jax.block_until_ready(lenet_reference(x, params))

    # f32 matmul operands (portable across v5e/v6e/v7x; tight tolerance).
    # tb=32 -> 2 grid steps on this small batch (exercises batch tiling + pad).
    packed32 = pack_params(params, jnp.float32)
    out32 = jax.block_until_ready(
        jax.jit(lambda v: lenet_forward(v, packed32, tb=32))(x))
    assert out32.shape == (B, 10)
    assert jnp.all(jnp.isfinite(out32))
    err32 = float(jnp.max(jnp.abs(out32 - ref)))
    assert err32 < 1e-3, ("f32 max abs err", err32)

    # bf16 matmul operands / f32 accumulation (v6e/v7x MXU fast path).
    packed16 = pack_params(params, jnp.bfloat16)
    out16 = jax.block_until_ready(
        jax.jit(lambda v: lenet_forward(v, packed16, tb=32))(x))
    assert jnp.all(jnp.isfinite(out16))
    err16 = float(jnp.max(jnp.abs(out16 - ref)))
    assert err16 < 5e-2, ("bf16 max abs err", err16)

    print("KERNEL_OK")
</pallas_src>

<mosaic_0001>
module attributes {stable_mosaic.version = 11 : i64} {
  func.func @lenet_kernel(%arg0: i32, %arg1: memref<1x4x256x32xf32, #tpu.memory_space<vmem>>, %arg2: memref<5x32x256xf32, #tpu.memory_space<vmem>>, %arg3: memref<1x128xf32, #tpu.memory_space<vmem>>, %arg4: memref<5x128x256xf32, #tpu.memory_space<vmem>>, %arg5: memref<1x128xf32, #tpu.memory_space<vmem>>, %arg6: memref<5x128x128xf32, #tpu.memory_space<vmem>>, %arg7: memref<1x128xf32, #tpu.memory_space<vmem>>, %arg8: memref<128x128xf32, #tpu.memory_space<vmem>>, %arg9: memref<1x128xf32, #tpu.memory_space<vmem>>, %arg10: memref<128x128xf32, #tpu.memory_space<vmem>>, %arg11: memref<1x128xf32, #tpu.memory_space<vmem>>, %arg12: memref<1x32x128xf32, #tpu.memory_space<vmem>>) attributes {dimension_semantics = [#tpu.dimension_semantics<parallel>], iteration_bounds = array<i64: 2>, scalar_prefetch = 0 : i64, scratch_operands = 0 : i64, tpu.core_type = #tpu.core_type<tc>, window_params = [{transform_indices = @transform_0, window_bounds = array<i64: 1, 4, 256, 32>}, {pipeline_mode = #tpu.pipeline_mode<synchronous>, transform_indices = @transform_1, window_bounds = array<i64: 5, 32, 256>}, {pipeline_mode = #tpu.pipeline_mode<synchronous>, transform_indices = @transform_2, window_bounds = array<i64: 1, 128>}, {pipeline_mode = #tpu.pipeline_mode<synchronous>, transform_indices = @transform_3, window_bounds = array<i64: 5, 128, 256>}, {pipeline_mode = #tpu.pipeline_mode<synchronous>, transform_indices = @transform_4, window_bounds = array<i64: 1, 128>}, {pipeline_mode = #tpu.pipeline_mode<synchronous>, transform_indices = @transform_5, window_bounds = array<i64: 5, 128, 128>}, {pipeline_mode = #tpu.pipeline_mode<synchronous>, transform_indices = @transform_6, window_bounds = array<i64: 1, 128>}, {pipeline_mode = #tpu.pipeline_mode<synchronous>, transform_indices = @transform_7, window_bounds = array<i64: 128, 128>}, {pipeline_mode = #tpu.pipeline_mode<synchronous>, transform_indices = @transform_8, window_bounds = array<i64: 1, 128>}, {pipeline_mode = #tpu.pipeline_mode<synchronous>, transform_indices = @transform_9, window_bounds = array<i64: 128, 128>}, {pipeline_mode = #tpu.pipeline_mode<synchronous>, transform_indices = @transform_10, window_bounds = array<i64: 1, 128>}, {transform_indices = @transform_11, window_bounds = array<i64: 1, 32, 128>}]} {
    %c0 = arith.constant 0 : index
    %c0_0 = arith.constant 0 : index
    %c0_1 = arith.constant 0 : index
    %0 = vector.load %arg2[%c0, %c0_0, %c0_1] : memref<5x32x256xf32, #tpu.memory_space<vmem>>, vector<1x32x256xf32>
    %1 = vector.shape_cast %0 : vector<1x32x256xf32> to vector<32x256xf32>
    %c1 = arith.constant 1 : index
    %c0_2 = arith.constant 0 : index
    %c0_3 = arith.constant 0 : index
    %2 = vector.load %arg2[%c1, %c0_2, %c0_3] : memref<5x32x256xf32, #tpu.memory_space<vmem>>, vector<1x32x256xf32>
    %3 = vector.shape_cast %2 : vector<1x32x256xf32> to vector<32x256xf32>
    %c2 = arith.constant 2 : index
    %c0_4 = arith.constant 0 : index
    %c0_5 = arith.constant 0 : index
    %4 = vector.load %arg2[%c2, %c0_4, %c0_5] : memref<5x32x256xf32, #tpu.memory_space<vmem>>, vector<1x32x256xf32>
    %5 = vector.shape_cast %4 : vector<1x32x256xf32> to vector<32x256xf32>
    %c3 = arith.constant 3 : index
    %c0_6 = arith.constant 0 : index
    %c0_7 = arith.constant 0 : index
    %6 = vector.load %arg2[%c3, %c0_6, %c0_7] : memref<5x32x256xf32, #tpu.memory_space<vmem>>, vector<1x32x256xf32>
    %7 = vector.shape_cast %6 : vector<1x32x256xf32> to vector<32x256xf32>
    %c4 = arith.constant 4 : index
    %c0_8 = arith.constant 0 : index
    %c0_9 = arith.constant 0 : index
    %8 = vector.load %arg2[%c4, %c0_8, %c0_9] : memref<5x32x256xf32, #tpu.memory_space<vmem>>, vector<1x32x256xf32>
    %9 = vector.shape_cast %8 : vector<1x32x256xf32> to vector<32x256xf32>
    %c0_10 = arith.constant 0 : index
    %c0_11 = arith.constant 0 : index
    %c0_12 = arith.constant 0 : index
    %10 = vector.load %arg4[%c0_10, %c0_11, %c0_12] : memref<5x128x256xf32, #tpu.memory_space<vmem>>, vector<1x128x256xf32>
    %11 = vector.shape_cast %10 : vector<1x128x256xf32> to vector<128x256xf32>
    %c1_13 = arith.constant 1 : index
    %c0_14 = arith.constant 0 : index
    %c0_15 = arith.constant 0 : index
    %12 = vector.load %arg4[%c1_13, %c0_14, %c0_15] : memref<5x128x256xf32, #tpu.memory_space<vmem>>, vector<1x128x256xf32>
    %13 = vector.shape_cast %12 : vector<1x128x256xf32> to vector<128x256xf32>
    %c2_16 = arith.constant 2 : index
    %c0_17 = arith.constant 0 : index
    %c0_18 = arith.constant 0 : index
    %14 = vector.load %arg4[%c2_16, %c0_17, %c0_18] : memref<5x128x256xf32, #tpu.memory_space<vmem>>, vector<1x128x256xf32>
    %15 = vector.shape_cast %14 : vector<1x128x256xf32> to vector<128x256xf32>
    %c3_19 = arith.constant 3 : index
    %c0_20 = arith.constant 0 : index
    %c0_21 = arith.constant 0 : index
    %16 = vector.load %arg4[%c3_19, %c0_20, %c0_21] : memref<5x128x256xf32, #tpu.memory_space<vmem>>, vector<1x128x256xf32>
    %17 = vector.shape_cast %16 : vector<1x128x256xf32> to vector<128x256xf32>
    %c4_22 = arith.constant 4 : index
    %c0_23 = arith.constant 0 : index
    %c0_24 = arith.constant 0 : index
    %18 = vector.load %arg4[%c4_22, %c0_23, %c0_24] : memref<5x128x256xf32, #tpu.memory_space<vmem>>, vector<1x128x256xf32>
    %19 = vector.shape_cast %18 : vector<1x128x256xf32> to vector<128x256xf32>
    %c0_25 = arith.constant 0 : index
    %c0_26 = arith.constant 0 : index
    %c0_27 = arith.constant 0 : index
    %20 = vector.load %arg6[%c0_25, %c0_26, %c0_27] : memref<5x128x128xf32, #tpu.memory_space<vmem>>, vector<1x128x128xf32>
    %21 = vector.shape_cast %20 : vector<1x128x128xf32> to vector<128x128xf32>
    %c1_28 = arith.constant 1 : index
    %c0_29 = arith.constant 0 : index
    %c0_30 = arith.constant 0 : index
    %22 = vector.load %arg6[%c1_28, %c0_29, %c0_30] : memref<5x128x128xf32, #tpu.memory_space<vmem>>, vector<1x128x128xf32>
    %23 = vector.shape_cast %22 : vector<1x128x128xf32> to vector<128x128xf32>
    %c2_31 = arith.constant 2 : index
    %c0_32 = arith.constant 0 : index
    %c0_33 = arith.constant 0 : index
    %24 = vector.load %arg6[%c2_31, %c0_32, %c0_33] : memref<5x128x128xf32, #tpu.memory_space<vmem>>, vector<1x128x128xf32>
    %25 = vector.shape_cast %24 : vector<1x128x128xf32> to vector<128x128xf32>
    %c3_34 = arith.constant 3 : index
    %c0_35 = arith.constant 0 : index
    %c0_36 = arith.constant 0 : index
    %26 = vector.load %arg6[%c3_34, %c0_35, %c0_36] : memref<5x128x128xf32, #tpu.memory_space<vmem>>, vector<1x128x128xf32>
    %27 = vector.shape_cast %26 : vector<1x128x128xf32> to vector<128x128xf32>
    %c4_37 = arith.constant 4 : index
    %c0_38 = arith.constant 0 : index
    %c0_39 = arith.constant 0 : index
    %28 = vector.load %arg6[%c4_37, %c0_38, %c0_39] : memref<5x128x128xf32, #tpu.memory_space<vmem>>, vector<1x128x128xf32>
    %29 = vector.shape_cast %28 : vector<1x128x128xf32> to vector<128x128xf32>
    %c0_40 = arith.constant 0 : index
    %c0_41 = arith.constant 0 : index
    %30 = vector.load %arg3[%c0_40, %c0_41] : memref<1x128xf32, #tpu.memory_space<vmem>>, vector<1x128xf32>
    %c0_42 = arith.constant 0 : index
    %c0_43 = arith.constant 0 : index
    %31 = vector.load %arg5[%c0_42, %c0_43] : memref<1x128xf32, #tpu.memory_space<vmem>>, vector<1x128xf32>
    %c0_44 = arith.constant 0 : index
    %c0_45 = arith.constant 0 : index
    %c0_46 = arith.constant 0 : index
    %c0_47 = arith.constant 0 : index
    %32 = vector.load %arg1[%c0_44, %c0_45, %c0_46, %c0_47] : memref<1x4x256x32xf32, #tpu.memory_space<vmem>>, vector<1x1x224x32xf32>
    %33 = vector.shape_cast %32 : vector<1x1x224x32xf32> to vector<224x32xf32>
    %cst = arith.constant dense<0.000000e+00> : vector<224x256xf32>
    %34 = tpu.matmul %33, %1, %cst {dimension_numbers = #tpu.dot_dimension_numbers<[1], [0], [0], [1], [0, 0, 1, 1], [], []>} : vector<224x32xf32>, vector<32x256xf32>, vector<224x256xf32> -> vector<224x256xf32>
    %c0_48 = arith.constant 0 : index
    %c1_49 = arith.constant 1 : index
    %c0_50 = arith.constant 0 : index
    %c0_51 = arith.constant 0 : index
    %35 = vector.load %arg1[%c0_48, %c1_49, %c0_50, %c0_51] : memref<1x4x256x32xf32, #tpu.memory_space<vmem>>, vector<1x1x224x32xf32>
    %36 = vector.shape_cast %35 : vector<1x1x224x32xf32> to vector<224x32xf32>
    %cst_52 = arith.constant dense<0.000000e+00> : vector<224x256xf32>
    %37 = tpu.matmul %36, %3, %cst_52 {dimension_numbers = #tpu.dot_dimension_numbers<[1], [0], [0], [1], [0, 0, 1, 1], [], []>} : vector<224x32xf32>, vector<32x256xf32>, vector<224x256xf32> -> vector<224x256xf32>
    %38 = arith.addf %34, %37 : vector<224x256xf32>
    %c0_53 = arith.constant 0 : index
    %c2_54 = arith.constant 2 : index
    %c0_55 = arith.constant 0 : index
    %c0_56 = arith.constant 0 : index
    %39 = vector.load %arg1[%c0_53, %c2_54, %c0_55, %c0_56] : memref<1x4x256x32xf32, #tpu.memory_space<vmem>>, vector<1x1x224x32xf32>
    %40 = vector.shape_cast %39 : vector<1x1x224x32xf32> to vector<224x32xf32>
    %cst_57 = arith.constant dense<0.000000e+00> : vector<224x256xf32>
    %41 = tpu.matmul %40, %5, %cst_57 {dimension_numbers = #tpu.dot_dimension_numbers<[1], [0], [0], [1], [0, 0, 1, 1], [], []>} : vector<224x32xf32>, vector<32x256xf32>, vector<224x256xf32> -> vector<224x256xf32>
    %42 = arith.addf %38, %41 : vector<224x256xf32>
    %c0_58 = arith.constant 0 : index
    %c3_59 = arith.constant 3 : index
    %c0_60 = arith.constant 0 : index
    %c0_61 = arith.constant 0 : index
    %43 = vector.load %arg1[%c0_58, %c3_59, %c0_60, %c0_61] : memref<1x4x256x32xf32, #tpu.memory_space<vmem>>, vector<1x1x224x32xf32>
    %44 = vector.shape_cast %43 : vector<1x1x224x32xf32> to vector<224x32xf32>
    %cst_62 = arith.constant dense<0.000000e+00> : vector<224x256xf32>
    %45 = tpu.matmul %44, %7, %cst_62 {dimension_numbers = #tpu.dot_dimension_numbers<[1], [0], [0], [1], [0, 0, 1, 1], [], []>} : vector<224x32xf32>, vector<32x256xf32>, vector<224x256xf32> -> vector<224x256xf32>
    %46 = arith.addf %42, %45 : vector<224x256xf32>
    %c0_63 = arith.constant 0 : index
    %c0_64 = arith.constant 0 : index
    %c32 = arith.constant 32 : index
    %c0_65 = arith.constant 0 : index
    %47 = vector.load %arg1[%c0_63, %c0_64, %c32, %c0_65] : memref<1x4x256x32xf32, #tpu.memory_space<vmem>>, vector<1x1x224x32xf32>
    %48 = vector.shape_cast %47 : vector<1x1x224x32xf32> to vector<224x32xf32>
    %cst_66 = arith.constant dense<0.000000e+00> : vector<224x256xf32>
    %49 = tpu.matmul %48, %9, %cst_66 {dimension_numbers = #tpu.dot_dimension_numbers<[1], [0], [0], [1], [0, 0, 1, 1], [], []>} : vector<224x32xf32>, vector<32x256xf32>, vector<224x256xf32> -> vector<224x256xf32>
    %50 = arith.addf %46, %49 : vector<224x256xf32>
    %51 = vector.extract_strided_slice %50 {offsets = [0, 0], sizes = [224, 128], strides = [1, 1]} : vector<224x256xf32> to vector<224x128xf32>
    %52 = vector.extract_strided_slice %50 {offsets = [0, 128], sizes = [224, 128], strides = [1, 1]} : vector<224x256xf32> to vector<224x128xf32>
    %53 = arith.maximumf %51, %52 : vector<224x128xf32>
    %c0_67 = arith.constant 0 : index
    %c1_68 = arith.constant 1 : index
    %c0_69 = arith.constant 0 : index
    %c0_70 = arith.constant 0 : index
    %54 = vector.load %arg1[%c0_67, %c1_68, %c0_69, %c0_70] : memref<1x4x256x32xf32, #tpu.memory_space<vmem>>, vector<1x1x224x32xf32>
    %55 = vector.shape_cast %54 : vector<1x1x224x32xf32> to vector<224x32xf32>
    %cst_71 = arith.constant dense<0.000000e+00> : vector<224x256xf32>
    %56 = tpu.matmul %55, %1, %cst_71 {dimension_numbers = #tpu.dot_dimension_numbers<[1], [0], [0], [1], [0, 0, 1, 1], [], []>} : vector<224x32xf32>, vector<32x256xf32>, vector<224x256xf32> -> vector<224x256xf32>
    %c0_72 = arith.constant 0 : index
    %c2_73 = arith.constant 2 : index
    %c0_74 = arith.constant 0 : index
    %c0_75 = arith.constant 0 : index
    %57 = vector.load %arg1[%c0_72, %c2_73, %c0_74, %c0_75] : memref<1x4x256x32xf32, #tpu.memory_space<vmem>>, vector<1x1x224x32xf32>
    %58 = vector.shape_cast %57 : vector<1x1x224x32xf32> to vector<224x32xf32>
    %cst_76 = arith.constant dense<0.000000e+00> : vector<224x256xf32>
    %59 = tpu.matmul %58, %3, %cst_76 {dimension_numbers = #tpu.dot_dimension_numbers<[1], [0], [0], [1], [0, 0, 1, 1], [], []>} : vector<224x32xf32>, vector<32x256xf32>, vector<224x256xf32> -> vector<224x256xf32>
    %60 = arith.addf %56, %59 : vector<224x256xf32>
    %c0_77 = arith.constant 0 : index
    %c3_78 = arith.constant 3 : index
    %c0_79 = arith.constant 0 : index
    %c0_80 = arith.constant 0 : index
    %61 = vector.load %arg1[%c0_77, %c3_78, %c0_79, %c0_80] : memref<1x4x256x32xf32, #tpu.memory_space<vmem>>, vector<1x1x224x32xf32>
    %62 = vector.shape_cast %61 : vector<1x1x224x32xf32> to vector<224x32xf32>
    %cst_81 = arith.constant dense<0.000000e+00> : vector<224x256xf32>
    %63 = tpu.matmul %62, %5, %cst_81 {dimension_numbers = #tpu.dot_dimension_numbers<[1], [0], [0], [1], [0, 0, 1, 1], [], []>} : vector<224x32xf32>, vector<32x256xf32>, vector<224x256xf32> -> vector<224x256xf32>
    %64 = arith.addf %60, %63 : vector<224x256xf32>
    %c0_82 = arith.constant 0 : index
    %c0_83 = arith.constant 0 : index
    %c32_84 = arith.constant 32 : index
    %c0_85 = arith.constant 0 : index
    %65 = vector.load %arg1[%c0_82, %c0_83, %c32_84, %c0_85] : memref<1x4x256x32xf32, #tpu.memory_space<vmem>>, vector<1x1x224x32xf32>
    %66 = vector.shape_cast %65 : vector<1x1x224x32xf32> to vector<224x32xf32>
    %cst_86 = arith.constant dense<0.000000e+00> : vector<224x256xf32>
    %67 = tpu.matmul %66, %7, %cst_86 {dimension_numbers = #tpu.dot_dimension_numbers<[1], [0], [0], [1], [0, 0, 1, 1], [], []>} : vector<224x32xf32>, vector<32x256xf32>, vector<224x256xf32> -> vector<224x256xf32>
    %68 = arith.addf %64, %67 : vector<224x256xf32>
    %c0_87 = arith.constant 0 : index
    %c1_88 = arith.constant 1 : index
    %c32_89 = arith.constant 32 : index
    %c0_90 = arith.constant 0 : index
    %69 = vector.load %arg1[%c0_87, %c1_88, %c32_89, %c0_90] : memref<1x4x256x32xf32, #tpu.memory_space<vmem>>, vector<1x1x224x32xf32>
    %70 = vector.shape_cast %69 : vector<1x1x224x32xf32> to vector<224x32xf32>
    %cst_91 = arith.constant dense<0.000000e+00> : vector<224x256xf32>
    %71 = tpu.matmul %70, %9, %cst_91 {dimension_numbers = #tpu.dot_dimension_numbers<[1], [0], [0], [1], [0, 0, 1, 1], [], []>} : vector<224x32xf32>, vector<32x256xf32>, vector<224x256xf32> -> vector<224x256xf32>
    %72 = arith.addf %68, %71 : vector<224x256xf32>
    %73 = vector.extract_strided_slice %72 {offsets = [0, 0], sizes = [224, 128], strides = [1, 1]} : vector<224x256xf32> to vector<224x128xf32>
    %74 = vector.extract_strided_slice %72 {offsets = [0, 128], sizes = [224, 128], strides = [1, 1]} : vector<224x256xf32> to vector<224x128xf32>
    %75 = arith.maximumf %73, %74 : vector<224x128xf32>
    %76 = arith.maximumf %53, %75 : vector<224x128xf32>
    %77 = vector.broadcast %30 : vector<1x128xf32> to vector<224x128xf32>
    %78 = arith.addf %76, %77 : vector<224x128xf32>
    %79 = arith.negf %78 : vector<224x128xf32>
    %80 = math.exp %79 : vector<224x128xf32>
    %cst_92 = arith.constant 1.000000e+00 : f32
    %81 = vector.broadcast %cst_92 : f32 to vector<224x128xf32>
    %82 = arith.addf %81, %80 : vector<224x128xf32>
    %83 = arith.divf %81, %82 : vector<224x128xf32>
    %c0_93 = arith.constant 0 : index
    %c2_94 = arith.constant 2 : index
    %c0_95 = arith.constant 0 : index
    %c0_96 = arith.constant 0 : index
    %84 = vector.load %arg1[%c0_93, %c2_94, %c0_95, %c0_96] : memref<1x4x256x32xf32, #tpu.memory_space<vmem>>, vector<1x1x224x32xf32>
    %85 = vector.shape_cast %84 : vector<1x1x224x32xf32> to vector<224x32xf32>
    %cst_97 = arith.constant dense<0.000000e+00> : vector<224x256xf32>
    %86 = tpu.matmul %85, %1, %cst_97 {dimension_numbers = #tpu.dot_dimension_numbers<[1], [0], [0], [1], [0, 0, 1, 1], [], []>} : vector<224x32xf32>, vector<32x256xf32>, vector<224x256xf32> -> vector<224x256xf32>
    %c0_98 = arith.constant 0 : index
    %c3_99 = arith.constant 3 : index
    %c0_100 = arith.constant 0 : index
    %c0_101 = arith.constant 0 : index
    %87 = vector.load %arg1[%c0_98, %c3_99, %c0_100, %c0_101] : memref<1x4x256x32xf32, #tpu.memory_space<vmem>>, vector<1x1x224x32xf32>
    %88 = vector.shape_cast %87 : vector<1x1x224x32xf32> to vector<224x32xf32>
    %cst_102 = arith.constant dense<0.000000e+00> : vector<224x256xf32>
    %89 = tpu.matmul %88, %3, %cst_102 {dimension_numbers = #tpu.dot_dimension_numbers<[1], [0], [0], [1], [0, 0, 1, 1], [], []>} : vector<224x32xf32>, vector<32x256xf32>, vector<224x256xf32> -> vector<224x256xf32>
    %90 = arith.addf %86, %89 : vector<224x256xf32>
    %c0_103 = arith.constant 0 : index
    %c0_104 = arith.constant 0 : index
    %c32_105 = arith.constant 32 : index
    %c0_106 = arith.constant 0 : index
    %91 = vector.load %arg1[%c0_103, %c0_104, %c32_105, %c0_106] : memref<1x4x256x32xf32, #tpu.memory_space<vmem>>, vector<1x1x224x32xf32>
    %92 = vector.shape_cast %91 : vector<1x1x224x32xf32> to vector<224x32xf32>
    %cst_107 = arith.constant dense<0.000000e+00> : vector<224x256xf32>
    %93 = tpu.matmul %92, %5, %cst_107 {dimension_numbers = #tpu.dot_dimension_numbers<[1], [0], [0], [1], [0, 0, 1, 1], [], []>} : vector<224x32xf32>, vector<32x256xf32>, vector<224x256xf32> -> vector<224x256xf32>
    %94 = arith.addf %90, %93 : vector<224x256xf32>
    %c0_108 = arith.constant 0 : index
    %c1_109 = arith.constant 1 : index
    %c32_110 = arith.constant 32 : index
    %c0_111 = arith.constant 0 : index
    %95 = vector.load %arg1[%c0_108, %c1_109, %c32_110, %c0_111] : memref<1x4x256x32xf32, #tpu.memory_space<vmem>>, vector<1x1x224x32xf32>
    %96 = vector.shape_cast %95 : vector<1x1x224x32xf32> to vector<224x32xf32>
    %cst_112 = arith.constant dense<0.000000e+00> : vector<224x256xf32>
    %97 = tpu.matmul %96, %7, %cst_112 {dimension_numbers = #tpu.dot_dimension_numbers<[1], [0], [0], [1], [0, 0, 1, 1], [], []>} : vector<224x32xf32>, vector<32x256xf32>, vector<224x256xf32> -> vector<224x256xf32>
    %98 = arith.addf %94, %97 : vector<224x256xf32>
    %c0_113 = arith.constant 0 : index
    %c2_114 = arith.constant 2 : index
    %c32_115 = arith.constant 32 : index
    %c0_116 = arith.constant 0 : index
    %99 = vector.load %arg1[%c0_113, %c2_114, %c32_115, %c0_116] : memref<1x4x256x32xf32, #tpu.memory_space<vmem>>, vector<1x1x224x32xf32>
    %100 = vector.shape_cast %99 : vector<1x1x224x32xf32> to vector<224x32xf32>
    %cst_117 = arith.constant dense<0.000000e+00> : vector<224x256xf32>
    %101 = tpu.matmul %100, %9, %cst_117 {dimension_numbers = #tpu.dot_dimension_numbers<[1], [0], [0], [1], [0, 0, 1, 1], [], []>} : vector<224x32xf32>, vector<32x256xf32>, vector<224x256xf32> -> vector<224x256xf32>
    %102 = arith.addf %98, %101 : vector<224x256xf32>
    %103 = vector.extract_strided_slice %102 {offsets = [0, 0], sizes = [224, 128], strides = [1, 1]} : vector<224x256xf32> to vector<224x128xf32>
    %104 = vector.extract_strided_slice %102 {offsets = [0, 128], sizes = [224, 128], strides = [1, 1]} : vector<224x256xf32> to vector<224x128xf32>
    %105 = arith.maximumf %103, %104 : vector<224x128xf32>
    %c0_118 = arith.constant 0 : index
    %c3_119 = arith.constant 3 : index
    %c0_120 = arith.constant 0 : index
    %c0_121 = arith.constant 0 : index
    %106 = vector.load %arg1[%c0_118, %c3_119, %c0_120, %c0_121] : memref<1x4x256x32xf32, #tpu.memory_space<vmem>>, vector<1x1x224x32xf32>
    %107 = vector.shape_cast %106 : vector<1x1x224x32xf32> to vector<224x32xf32>
    %cst_122 = arith.constant dense<0.000000e+00> : vector<224x256xf32>
    %108 = tpu.matmul %107, %1, %cst_122 {dimension_numbers = #tpu.dot_dimension_numbers<[1], [0], [0], [1], [0, 0, 1, 1], [], []>} : vector<224x32xf32>, vector<32x256xf32>, vector<224x256xf32> -> vector<224x256xf32>
    %c0_123 = arith.constant 0 : index
    %c0_124 = arith.constant 0 : index
    %c32_125 = arith.constant 32 : index
    %c0_126 = arith.constant 0 : index
    %109 = vector.load %arg1[%c0_123, %c0_124, %c32_125, %c0_126] : memref<1x4x256x32xf32, #tpu.memory_space<vmem>>, vector<1x1x224x32xf32>
    %110 = vector.shape_cast %109 : vector<1x1x224x32xf32> to vector<224x32xf32>
    %cst_127 = arith.constant dense<0.000000e+00> : vector<224x256xf32>
    %111 = tpu.matmul %110, %3, %cst_127 {dimension_numbers = #tpu.dot_dimension_numbers<[1], [0], [0], [1], [0, 0, 1, 1], [], []>} : vector<224x32xf32>, vector<32x256xf32>, vector<224x256xf32> -> vector<224x256xf32>
    %112 = arith.addf %108, %111 : vector<224x256xf32>
    %c0_128 = arith.constant 0 : index
    %c1_129 = arith.constant 1 : index
    %c32_130 = arith.constant 32 : index
    %c0_131 = arith.constant 0 : index
    %113 = vector.load %arg1[%c0_128, %c1_129, %c32_130, %c0_131] : memref<1x4x256x32xf32, #tpu.memory_space<vmem>>, vector<1x1x224x32xf32>
    %114 = vector.shape_cast %113 : vector<1x1x224x32xf32> to vector<224x32xf32>
    %cst_132 = arith.constant dense<0.000000e+00> : vector<224x256xf32>
    %115 = tpu.matmul %114, %5, %cst_132 {dimension_numbers = #tpu.dot_dimension_numbers<[1], [0], [0], [1], [0, 0, 1, 1], [], []>} : vector<224x32xf32>, vector<32x256xf32>, vector<224x256xf32> -> vector<224x256xf32>
    %116 = arith.addf %112, %115 : vector<224x256xf32>
    %c0_133 = arith.constant 0 : index
    %c2_134 = arith.constant 2 : index
    %c32_135 = arith.constant 32 : index
    %c0_136 = arith.constant 0 : index
    %117 = vector.load %arg1[%c0_133, %c2_134, %c32_135, %c0_136] : memref<1x4x256x32xf32, #tpu.memory_space<vmem>>, vector<1x1x224x32xf32>
    %118 = vector.shape_cast %117 : vector<1x1x224x32xf32> to vector<224x32xf32>
    %cst_137 = arith.constant dense<0.000000e+00> : vector<224x256xf32>
    %119 = tpu.matmul %118, %7, %cst_137 {dimension_numbers = #tpu.dot_dimension_numbers<[1], [0], [0], [1], [0, 0, 1, 1], [], []>} : vector<224x32xf32>, vector<32x256xf32>, vector<224x256xf32> -> vector<224x256xf32>
    %120 = arith.addf %116, %119 : vector<224x256xf32>
    %c0_138 = arith.constant 0 : index
    %c3_139 = arith.constant 3 : index
    %c32_140 = arith.constant 32 : index
    %c0_141 = arith.constant 0 : index
    %121 = vector.load %arg1[%c0_138, %c3_139, %c32_140, %c0_141] : memref<1x4x256x32xf32, #tpu.memory_space<vmem>>, vector<1x1x224x32xf32>
    %122 = vector.shape_cast %121 : vector<1x1x224x32xf32> to vector<224x32xf32>
    %cst_142 = arith.constant dense<0.000000e+00> : vector<224x256xf32>
    %123 = tpu.matmul %122, %9, %cst_142 {dimension_numbers = #tpu.dot_dimension_numbers<[1], [0], [0], [1], [0, 0, 1, 1], [], []>} : vector<224x32xf32>, vector<32x256xf32>, vector<224x256xf32> -> vector<224x256xf32>
    %124 = arith.addf %120, %123 : vector<224x256xf32>
    %125 = vector.extract_strided_slice %124 {offsets = [0, 0], sizes = [224, 128], strides = [1, 1]} : vector<224x256xf32> to vector<224x128xf32>
    %126 = vector.extract_strided_slice %124 {offsets = [0, 128], sizes = [224, 128], strides = [1, 1]} : vector<224x256xf32> to vector<224x128xf32>
    %127 = arith.maximumf %125, %126 : vector<224x128xf32>
    %128 = arith.maximumf %105, %127 : vector<224x128xf32>
    %129 = vector.broadcast %30 : vector<1x128xf32> to vector<224x128xf32>
    %130 = arith.addf %128, %129 : vector<224x128xf32>
    %131 = arith.negf %130 : vector<224x128xf32>
    %132 = math.exp %131 : vector<224x128xf32>
    %cst_143 = arith.constant 1.000000e+00 : f32
    %133 = vector.broadcast %cst_143 : f32 to vector<224x128xf32>
    %134 = arith.addf %133, %132 : vector<224x128xf32>
    %135 = arith.divf %133, %134 : vector<224x128xf32>
    %136 = vector.extract_strided_slice %83 {offsets = [0, 0], sizes = [160, 128], strides = [1, 1]} : vector<224x128xf32> to vector<160x128xf32>
    %cst_144 = arith.constant dense<0.000000e+00> : vector<160x256xf32>
    %137 = tpu.matmul %136, %11, %cst_144 {dimension_numbers = #tpu.dot_dimension_numbers<[1], [0], [0], [1], [0, 0, 1, 1], [], []>} : vector<160x128xf32>, vector<128x256xf32>, vector<160x256xf32> -> vector<160x256xf32>
    %138 = vector.extract_strided_slice %135 {offsets = [0, 0], sizes = [160, 128], strides = [1, 1]} : vector<224x128xf32> to vector<160x128xf32>
    %cst_145 = arith.constant dense<0.000000e+00> : vector<160x256xf32>
    %139 = tpu.matmul %138, %13, %cst_145 {dimension_numbers = #tpu.dot_dimension_numbers<[1], [0], [0], [1], [0, 0, 1, 1], [], []>} : vector<160x128xf32>, vector<128x256xf32>, vector<160x256xf32> -> vector<160x256xf32>
    %140 = arith.addf %137, %139 : vector<160x256xf32>
    %141 = vector.extract_strided_slice %83 {offsets = [32, 0], sizes = [160, 128], strides = [1, 1]} : vector<224x128xf32> to vector<160x128xf32>
    %cst_146 = arith.constant dense<0.000000e+00> : vector<160x256xf32>
    %142 = tpu.matmul %141, %15, %cst_146 {dimension_numbers = #tpu.dot_dimension_numbers<[1], [0], [0], [1], [0, 0, 1, 1], [], []>} : vector<160x128xf32>, vector<128x256xf32>, vector<160x256xf32> -> vector<160x256xf32>
    %143 = arith.addf %140, %142 : vector<160x256xf32>
    %144 = vector.extract_strided_slice %135 {offsets = [32, 0], sizes = [160, 128], strides = [1, 1]} : vector<224x128xf32> to vector<160x128xf32>
    %cst_147 = arith.constant dense<0.000000e+00> : vector<160x256xf32>
    %145 = tpu.matmul %144, %17, %cst_147 {dimension_numbers = #tpu.dot_dimension_numbers<[1], [0], [0], [1], [0, 0, 1, 1], [], []>} : vector<160x128xf32>, vector<128x256xf32>, vector<160x256xf32> -> vector<160x256xf32>
    %146 = arith.addf %143, %145 : vector<160x256xf32>
    %147 = vector.extract_strided_slice %83 {offsets = [64, 0], sizes = [160, 128], strides = [1, 1]} : vector<224x128xf32> to vector<160x128xf32>
    %cst_148 = arith.constant dense<0.000000e+00> : vector<160x256xf32>
    %148 = tpu.matmul %147, %19, %cst_148 {dimension_numbers = #tpu.dot_dimension_numbers<[1], [0], [0], [1], [0, 0, 1, 1], [], []>} : vector<160x128xf32>, vector<128x256xf32>, vector<160x256xf32> -> vector<160x256xf32>
    %149 = arith.addf %146, %148 : vector<160x256xf32>
    %150 = vector.extract_strided_slice %149 {offsets = [0, 0], sizes = [160, 128], strides = [1, 1]} : vector<160x256xf32> to vector<160x128xf32>
    %151 = vector.extract_strided_slice %149 {offsets = [0, 128], sizes = [160, 128], strides = [1, 1]} : vector<160x256xf32> to vector<160x128xf32>
    %152 = arith.maximumf %150, %151 : vector<160x128xf32>
    %153 = vector.extract_strided_slice %135 {offsets = [0, 0], sizes = [160, 128], strides = [1, 1]} : vector<224x128xf32> to vector<160x128xf32>
    %cst_149 = arith.constant dense<0.000000e+00> : vector<160x256xf32>
    %154 = tpu.matmul %153, %11, %cst_149 {dimension_numbers = #tpu.dot_dimension_numbers<[1], [0], [0], [1], [0, 0, 1, 1], [], []>} : vector<160x128xf32>, vector<128x256xf32>, vector<160x256xf32> -> vector<160x256xf32>
    %155 = vector.extract_strided_slice %83 {offsets = [32, 0], sizes = [160, 128], strides = [1, 1]} : vector<224x128xf32> to vector<160x128xf32>
    %cst_150 = arith.constant dense<0.000000e+00> : vector<160x256xf32>
    %156 = tpu.matmul %155, %13, %cst_150 {dimension_numbers = #tpu.dot_dimension_numbers<[1], [0], [0], [1], [0, 0, 1, 1], [], []>} : vector<160x128xf32>, vector<128x256xf32>, vector<160x256xf32> -> vector<160x256xf32>
    %157 = arith.addf %154, %156 : vector<160x256xf32>
    %158 = vector.extract_strided_slice %135 {offsets = [32, 0], sizes = [160, 128], strides = [1, 1]} : vector<224x128xf32> to vector<160x128xf32>
    %cst_151 = arith.constant dense<0.000000e+00> : vector<160x256xf32>
    %159 = tpu.matmul %158, %15, %cst_151 {dimension_numbers = #tpu.dot_dimension_numbers<[1], [0], [0], [1], [0, 0, 1, 1], [], []>} : vector<160x128xf32>, vector<128x256xf32>, vector<160x256xf32> -> vector<160x256xf32>
    %160 = arith.addf %157, %159 : vector<160x256xf32>
    %161 = vector.extract_strided_slice %83 {offsets = [64, 0], sizes = [160, 128], strides = [1, 1]} : vector<224x128xf32> to vector<160x128xf32>
    %cst_152 = arith.constant dense<0.000000e+00> : vector<160x256xf32>
    %162 = tpu.matmul %161, %17, %cst_152 {dimension_numbers = #tpu.dot_dimension_numbers<[1], [0], [0], [1], [0, 0, 1, 1], [], []>} : vector<160x128xf32>, vector<128x256xf32>, vector<160x256xf32> -> vector<160x256xf32>
    %163 = arith.addf %160, %162 : vector<160x256xf32>
    %164 = vector.extract_strided_slice %135 {offsets = [64, 0], sizes = [160, 128], strides = [1, 1]} : vector<224x128xf32> to vector<160x128xf32>
    %cst_153 = arith.constant dense<0.000000e+00> : vector<160x256xf32>
    %165 = tpu.matmul %164, %19, %cst_153 {dimension_numbers = #tpu.dot_dimension_numbers<[1], [0], [0], [1], [0, 0, 1, 1], [], []>} : vector<160x128xf32>, vector<128x256xf32>, vector<160x256xf32> -> vector<160x256xf32>
    %166 = arith.addf %163, %165 : vector<160x256xf32>
    %167 = vector.extract_strided_slice %166 {offsets = [0, 0], sizes = [160, 128], strides = [1, 1]} : vector<160x256xf32> to vector<160x128xf32>
    %168 = vector.extract_strided_slice %166 {offsets = [0, 128], sizes = [160, 128], strides = [1, 1]} : vector<160x256xf32> to vector<160x128xf32>
    %169 = arith.maximumf %167, %168 : vector<160x128xf32>
    %170 = arith.maximumf %152, %169 : vector<160x128xf32>
    %171 = vector.broadcast %31 : vector<1x128xf32> to vector<160x128xf32>
    %172 = arith.addf %170, %171 : vector<160x128xf32>
    %173 = arith.negf %172 : vector<160x128xf32>
    %174 = math.exp %173 : vector<160x128xf32>
    %cst_154 = arith.constant 1.000000e+00 : f32
    %175 = vector.broadcast %cst_154 : f32 to vector<160x128xf32>
    %176 = arith.addf %175, %174 : vector<160x128xf32>
    %177 = arith.divf %175, %176 : vector<160x128xf32>
    %178 = vector.extract_strided_slice %177 {offsets = [0, 0], sizes = [32, 128], strides = [1, 1]} : vector<160x128xf32> to vector<32x128xf32>
    %cst_155 = arith.constant dense<0.000000e+00> : vector<32x128xf32>
    %179 = tpu.matmul %178, %21, %cst_155 {dimension_numbers = #tpu.dot_dimension_numbers<[1], [0], [0], [1], [0, 0, 1, 1], [], []>} : vector<32x128xf32>, vector<128x128xf32>, vector<32x128xf32> -> vector<32x128xf32>
    %180 = vector.extract_strided_slice %177 {offsets = [32, 0], sizes = [32, 128], strides = [1, 1]} : vector<160x128xf32> to vector<32x128xf32>
    %cst_156 = arith.constant dense<0.000000e+00> : vector<32x128xf32>
    %181 = tpu.matmul %180, %23, %cst_156 {dimension_numbers = #tpu.dot_dimension_numbers<[1], [0], [0], [1], [0, 0, 1, 1], [], []>} : vector<32x128xf32>, vector<128x128xf32>, vector<32x128xf32> -> vector<32x128xf32>
    %182 = arith.addf %179, %181 : vector<32x128xf32>
    %183 = vector.extract_strided_slice %177 {offsets = [64, 0], sizes = [32, 128], strides = [1, 1]} : vector<160x128xf32> to vector<32x128xf32>
    %cst_157 = arith.constant dense<0.000000e+00> : vector<32x128xf32>
    %184 = tpu.matmul %183, %25, %cst_157 {dimension_numbers = #tpu.dot_dimension_numbers<[1], [0], [0], [1], [0, 0, 1, 1], [], []>} : vector<32x128xf32>, vector<128x128xf32>, vector<32x128xf32> -> vector<32x128xf32>
    %185 = arith.addf %182, %184 : vector<32x128xf32>
    %186 = vector.extract_strided_slice %177 {offsets = [96, 0], sizes = [32, 128], strides = [1, 1]} : vector<160x128xf32> to vector<32x128xf32>
    %cst_158 = arith.constant dense<0.000000e+00> : vector<32x128xf32>
    %187 = tpu.matmul %186, %27, %cst_158 {dimension_numbers = #tpu.dot_dimension_numbers<[1], [0], [0], [1], [0, 0, 1, 1], [], []>} : vector<32x128xf32>, vector<128x128xf32>, vector<32x128xf32> -> vector<32x128xf32>
    %188 = arith.addf %185, %187 : vector<32x128xf32>
    %189 = vector.extract_strided_slice %177 {offsets = [128, 0], sizes = [32, 128], strides = [1, 1]} : vector<160x128xf32> to vector<32x128xf32>
    %cst_159 = arith.constant dense<0.000000e+00> : vector<32x128xf32>
    %190 = tpu.matmul %189, %29, %cst_159 {dimension_numbers = #tpu.dot_dimension_numbers<[1], [0], [0], [1], [0, 0, 1, 1], [], []>} : vector<32x128xf32>, vector<128x128xf32>, vector<32x128xf32> -> vector<32x128xf32>
    %191 = arith.addf %188, %190 : vector<32x128xf32>
    %c0_160 = arith.constant 0 : index
    %c0_161 = arith.constant 0 : index
    %192 = vector.load %arg7[%c0_160, %c0_161] : memref<1x128xf32, #tpu.memory_space<vmem>>, vector<1x128xf32>
    %193 = vector.broadcast %192 : vector<1x128xf32> to vector<32x128xf32>
    %194 = arith.addf %191, %193 : vector<32x128xf32>
    %195 = arith.negf %194 : vector<32x128xf32>
    %196 = math.exp %195 : vector<32x128xf32>
    %cst_162 = arith.constant 1.000000e+00 : f32
    %197 = vector.broadcast %cst_162 : f32 to vector<32x128xf32>
    %198 = arith.addf %197, %196 : vector<32x128xf32>
    %199 = arith.divf %197, %198 : vector<32x128xf32>
    %c0_163 = arith.constant 0 : index
    %c0_164 = arith.constant 0 : index
    %200 = vector.load %arg8[%c0_163, %c0_164] : memref<128x128xf32, #tpu.memory_space<vmem>>, vector<128x128xf32>
    %cst_165 = arith.constant dense<0.000000e+00> : vector<32x128xf32>
    %201 = tpu.matmul %199, %200, %cst_165 {dimension_numbers = #tpu.dot_dimension_numbers<[1], [0], [0], [1], [0, 0, 1, 1], [], []>} : vector<32x128xf32>, vector<128x128xf32>, vector<32x128xf32> -> vector<32x128xf32>
    %c0_166 = arith.constant 0 : index
    %c0_167 = arith.constant 0 : index
    %202 = vector.load %arg9[%c0_166, %c0_167] : memref<1x128xf32, #tpu.memory_space<vmem>>, vector<1x128xf32>
    %203 = vector.broadcast %202 : vector<1x128xf32> to vector<32x128xf32>
    %204 = arith.addf %201, %203 : vector<32x128xf32>
    %205 = arith.negf %204 : vector<32x128xf32>
    %206 = math.exp %205 : vector<32x128xf32>
    %cst_168 = arith.constant 1.000000e+00 : f32
    %207 = vector.broadcast %cst_168 : f32 to vector<32x128xf32>
    %208 = arith.addf %207, %206 : vector<32x128xf32>
    %209 = arith.divf %207, %208 : vector<32x128xf32>
    %c0_169 = arith.constant 0 : index
    %c0_170 = arith.constant 0 : index
    %210 = vector.load %arg10[%c0_169, %c0_170] : memref<128x128xf32, #tpu.memory_space<vmem>>, vector<128x128xf32>
    %cst_171 = arith.constant dense<0.000000e+00> : vector<32x128xf32>
    %211 = tpu.matmul %209, %210, %cst_171 {dimension_numbers = #tpu.dot_dimension_numbers<[1], [0], [0], [1], [0, 0, 1, 1], [], []>} : vector<32x128xf32>, vector<128x128xf32>, vector<32x128xf32> -> vector<32x128xf32>
    %c0_172 = arith.constant 0 : index
    %c0_173 = arith.constant 0 : index
    %212 = vector.load %arg11[%c0_172, %c0_173] : memref<1x128xf32, #tpu.memory_space<vmem>>, vector<1x128xf32>
    %213 = vector.broadcast %212 : vector<1x128xf32> to vector<32x128xf32>
    %214 = arith.addf %211, %213 : vector<32x128xf32>
    %c0_174 = arith.constant 0 : index
    %c0_175 = arith.constant 0 : index
    %c0_176 = arith.constant 0 : index
    %215 = vector.load %arg12[%c0_174, %c0_175, %c0_176] : memref<1x32x128xf32, #tpu.memory_space<vmem>>, vector<1x32x128xf32>
    %216 = vector.shape_cast %215 : vector<1x32x128xf32> to vector<32x128xf32>
    %217 = vector.shape_cast %214 : vector<32x128xf32> to vector<1x32x128xf32>
    tpu.vector_store %arg12[%c0_174, %c0_175, %c0_176], %217 {strides = array<i32>} : memref<1x32x128xf32, #tpu.memory_space<vmem>>, vector<1x32x128xf32>,
    return
  }
  func.func @transform_0(%arg0: i32) -> (i32, i32, i32, i32) {
    %c0_i32 = arith.constant 0 : i32
    %c0_i32_0 = arith.constant 0 : i32
    %c0_i32_1 = arith.constant 0 : i32
    %c0_i32_2 = arith.constant 0 : i32
    return %arg0, %c0_i32, %c0_i32_0, %c0_i32_1 : i32, i32, i32, i32
  }
  func.func @transform_1(%arg0: i32) -> (i32, i32, i32) {
    %c0_i32 = arith.constant 0 : i32
    %c0_i32_0 = arith.constant 0 : i32
    %c0_i32_1 = arith.constant 0 : i32
    %c0_i32_2 = arith.constant 0 : i32
    return %c0_i32, %c0_i32_0, %c0_i32_1 : i32, i32, i32
  }
  func.func @transform_2(%arg0: i32) -> (i32, i32) {
    %c0_i32 = arith.constant 0 : i32
    %c0_i32_0 = arith.constant 0 : i32
    %c0_i32_1 = arith.constant 0 : i32
    return %c0_i32, %c0_i32_0 : i32, i32
  }
  func.func @transform_3(%arg0: i32) -> (i32, i32, i32) {
    %c0_i32 = arith.constant 0 : i32
    %c0_i32_0 = arith.constant 0 : i32
    %c0_i32_1 = arith.constant 0 : i32
    %c0_i32_2 = arith.constant 0 : i32
    return %c0_i32, %c0_i32_0, %c0_i32_1 : i32, i32, i32
  }
  func.func @transform_4(%arg0: i32) -> (i32, i32) {
    %c0_i32 = arith.constant 0 : i32
    %c0_i32_0 = arith.constant 0 : i32
    %c0_i32_1 = arith.constant 0 : i32
    return %c0_i32, %c0_i32_0 : i32, i32
  }
  func.func @transform_5(%arg0: i32) -> (i32, i32, i32) {
    %c0_i32 = arith.constant 0 : i32
    %c0_i32_0 = arith.constant 0 : i32
    %c0_i32_1 = arith.constant 0 : i32
    %c0_i32_2 = arith.constant 0 : i32
    return %c0_i32, %c0_i32_0, %c0_i32_1 : i32, i32, i32
  }
  func.func @transform_6(%arg0: i32) -> (i32, i32) {
    %c0_i32 = arith.constant 0 : i32
    %c0_i32_0 = arith.constant 0 : i32
    %c0_i32_1 = arith.constant 0 : i32
    return %c0_i32, %c0_i32_0 : i32, i32
  }
  func.func @transform_7(%arg0: i32) -> (i32, i32) {
    %c0_i32 = arith.constant 0 : i32
    %c0_i32_0 = arith.constant 0 : i32
    %c0_i32_1 = arith.constant 0 : i32
    return %c0_i32, %c0_i32_0 : i32, i32
  }
  func.func @transform_8(%arg0: i32) -> (i32, i32) {
    %c0_i32 = arith.constant 0 : i32
    %c0_i32_0 = arith.constant 0 : i32
    %c0_i32_1 = arith.constant 0 : i32
    return %c0_i32, %c0_i32_0 : i32, i32
  }
  func.func @transform_9(%arg0: i32) -> (i32, i32) {
    %c0_i32 = arith.constant 0 : i32
    %c0_i32_0 = arith.constant 0 : i32
    %c0_i32_1 = arith.constant 0 : i32
    return %c0_i32, %c0_i32_0 : i32, i32
  }
  func.func @transform_10(%arg0: i32) -> (i32, i32) {
    %c0_i32 = arith.constant 0 : i32
    %c0_i32_0 = arith.constant 0 : i32
    %c0_i32_1 = arith.constant 0 : i32
    return %c0_i32, %c0_i32_0 : i32, i32
  }
  func.func @transform_11(%arg0: i32) -> (i32, i32, i32) {
    %c0_i32 = arith.constant 0 : i32
    %c0_i32_0 = arith.constant 0 : i32
    %c0_i32_1 = arith.constant 0 : i32
    return %arg0, %c0_i32, %c0_i32_0 : i32, i32, i32
  }
}

</mosaic_0001>

<llo_original>
// kernel: _lambda_.1
$region0: #{_lambda_.1}
  #allocation0 [shape = 'u32[]', space=smem, size = 0x4, offset = 0x4, fixed_abs, tag = 'smem constant byte address 0x4 - core index']
  #allocation1 [shape = 'u32[144,128]{1,0:T(1,128)}', space=vmem, size = 0x12000, scoped, tag = 'internal scratch']
  %s0 = inlined_call_operand.vmem [shape: f32[2,4,256,32], index: 0, kind: input, shape index: {}]
  %s1 = inlined_call_operand.vmem [shape: f32[5,32,256], index: 1, kind: input, shape index: {}]
  %s2 = inlined_call_operand.vmem [shape: f32[1,128], index: 2, kind: input, shape index: {}]
  %s3 = inlined_call_operand.vmem [shape: f32[5,128,256], index: 3, kind: input, shape index: {}]
  %s4 = inlined_call_operand.vmem [shape: f32[1,128], index: 4, kind: input, shape index: {}]
  %s5 = inlined_call_operand.vmem [shape: f32[5,128,128], index: 5, kind: input, shape index: {}]
  %s6 = inlined_call_operand.vmem [shape: f32[1,128], index: 6, kind: input, shape index: {}]
  %s7 = inlined_call_operand.vmem [shape: f32[128,128], index: 7, kind: input, shape index: {}]
  %s8 = inlined_call_operand.vmem [shape: f32[1,128], index: 8, kind: input, shape index: {}]
  %s9 = inlined_call_operand.vmem [shape: f32[128,128], index: 9, kind: input, shape index: {}]
  %s10 = inlined_call_operand.vmem [shape: f32[1,128], index: 10, kind: input, shape index: {}]
  %s11 = inlined_call_operand.vmem [shape: f32[2,32,128], index: 11, kind: output, shape index: {}]
  %s12 = sld [smem:[#allocation0]]
  $region77: #{_lambda_.1} parent=0
    _
  %s14 = ssub.s32 1, %s12
  %s15 = scalar_select 0, %s14, %s12
  loop: start=0, step=1, limit=4
  $region2: #{_lambda_.1} parent=0 // loop_pre_header
    _
  $region3: #{_lambda_.1} parent=0 // loop_header
    %s17 = sphi 0, %s21
    %p18 = scmp.ge.s32.totalorder %s17, 4
    %s27 = sphi 0, %s29
    %s30 = sphi 0, %s27
    %s31 = sphi 0, %s30
    %s47 = sphi 0, %s31
    %s51 = sphi 0, %s51
    %s53 = sphi 0, %s51
    %s54 = sphi 0, %s53
    %s68 = sphi 0, %s54
    %s72 = sphi 0, %s72
    %s74 = sphi 0, %s72
    %s75 = sphi 0, %s74
    %s89 = sphi 0, %s75
    %s93 = sphi 0, %s93
    %s95 = sphi 0, %s93
    %s96 = sphi 0, %s95
    %s110 = sphi 0, %s96
    %s114 = sphi 0, %s114
    %s116 = sphi 0, %s114
    %s117 = sphi 0, %s116
    %s131 = sphi 0, %s117
    %s135 = sphi 0, %s135
    %s137 = sphi 0, %s135
    %s138 = sphi 0, %s137
    %s152 = sphi 0, %s138
    %s156 = sphi 0, %s156
    %s158 = sphi 0, %s156
    %s159 = sphi 0, %s158
    %s173 = sphi 0, %s159
    %s177 = sphi 0, %s177
    %s179 = sphi 0, %s177
    %s180 = sphi 0, %s179
    %s194 = sphi 0, %s180
    %s198 = sphi 0, %s198
    %s200 = sphi 0, %s198
    %s201 = sphi 0, %s200
    %s215 = sphi 0, %s201
    %s219 = sphi 0, %s219
    %s221 = sphi 0, %s219
    %s222 = sphi 0, %s221
    %s236 = sphi 0, %s222
    %s240 = sphi 0, %s240
    %s242 = sphi 0, %s240
    %s243 = sphi 0, %s242
    %s257 = sphi 0, %s243
    %s263 = sphi 0, %s265
    %s266 = sphi 0, %s263
    %s267 = sphi 0, %s266
    %s283 = sphi 0, %s267
  $region4: #{_lambda_.1} parent=0 // loop_header_branch
    %20 = sbr.rel (%p18) target = $region8
  $region5: #{_lambda_.1} parent=0 // loop_body
    %s22 = ssub.s32 %s17, 1
    %s23 = ssub.s32 %s17, 2
    %s24 = sadd.s32 %s17, 1
    %s25 = ssub.s32 %s17, %s24
    %p26 = scmp.eq.s32.totalorder %s25, 0
    %s28 = sadd.s32 %s27, 1
    %s29 = scalar_select %p26, %s27, %s28
    %p32 = pneg %p26
    %p33 = scmp.eq.s32.totalorder %s17, 1
    %p34 = por %p32, %p33
    %p35 = scmp.ne.s32.totalorder %s27, %s30
    %p36 = scmp.eq.s32.totalorder %s17, 0
    %p37 = por %p35, %p36
    %p38 = scmp.ne.s32.totalorder %s27, %s30
    %p39 = scmp.eq.s32.totalorder %s22, 1
    %p40 = por %p38, %p39
    %p41 = scmp.ne.s32.totalorder %s30, %s31
    %p42 = scmp.eq.s32.totalorder %s22, 0
    %p43 = por %p41, %p42
    %p44 = scmp.ne.s32.totalorder %s30, %s31
    %p45 = scmp.eq.s32.totalorder %s23, 1
    %p46 = por %p44, %p45
    %p48 = scmp.ne.s32.totalorder %s31, %s47
    %p49 = scmp.eq.s32.totalorder %s23, 0
    %p50 = por %p48, %p49
    %s52 = sadd.s32 %s51, 1
    %p55 = scmp.eq.s32.totalorder %s17, 1
    %p56 = scmp.ne.s32.totalorder %s51, %s53
    %p57 = scmp.eq.s32.totalorder %s17, 0
    %p58 = por %p56, %p57
    %p59 = scmp.ne.s32.totalorder %s51, %s53
    %p60 = scmp.eq.s32.totalorder %s22, 1
    %p61 = por %p59, %p60
    %p62 = scmp.ne.s32.totalorder %s53, %s54
    %p63 = scmp.eq.s32.totalorder %s22, 0
    %p64 = por %p62, %p63
    %p65 = scmp.ne.s32.totalorder %s53, %s54
    %p66 = scmp.eq.s32.totalorder %s23, 1
    %p67 = por %p65, %p66
    %p69 = scmp.ne.s32.totalorder %s54, %s68
    %p70 = scmp.eq.s32.totalorder %s23, 0
    %p71 = por %p69, %p70
    %s73 = sadd.s32 %s72, 1
    %p76 = scmp.eq.s32.totalorder %s17, 1
    %p77 = scmp.ne.s32.totalorder %s72, %s74
    %p78 = scmp.eq.s32.totalorder %s17, 0
    %p79 = por %p77, %p78
    %p80 = scmp.ne.s32.totalorder %s72, %s74
    %p81 = scmp.eq.s32.totalorder %s22, 1
    %p82 = por %p80, %p81
    %p83 = scmp.ne.s32.totalorder %s74, %s75
    %p84 = scmp.eq.s32.totalorder %s22, 0
    %p85 = por %p83, %p84
    %p86 = scmp.ne.s32.totalorder %s74, %s75
    %p87 = scmp.eq.s32.totalorder %s23, 1
    %p88 = por %p86, %p87
    %p90 = scmp.ne.s32.totalorder %s75, %s89
    %p91 = scmp.eq.s32.totalorder %s23, 0
    %p92 = por %p90, %p91
    %s94 = sadd.s32 %s93, 1
    %p97 = scmp.eq.s32.totalorder %s17, 1
    %p98 = scmp.ne.s32.totalorder %s93, %s95
    %p99 = scmp.eq.s32.totalorder %s17, 0
    %p100 = por %p98, %p99
    %p101 = scmp.ne.s32.totalorder %s93, %s95
    %p102 = scmp.eq.s32.totalorder %s22, 1
    %p103 = por %p101, %p102
    %p104 = scmp.ne.s32.totalorder %s95, %s96
    %p105 = scmp.eq.s32.totalorder %s22, 0
    %p106 = por %p104, %p105
    %p107 = scmp.ne.s32.totalorder %s95, %s96
    %p108 = scmp.eq.s32.totalorder %s23, 1
    %p109 = por %p107, %p108
    %p111 = scmp.ne.s32.totalorder %s96, %s110
    %p112 = scmp.eq.s32.totalorder %s23, 0
    %p113 = por %p111, %p112
    %s115 = sadd.s32 %s114, 1
    %p118 = scmp.eq.s32.totalorder %s17, 1
    %p119 = scmp.ne.s32.totalorder %s114, %s116
    %p120 = scmp.eq.s32.totalorder %s17, 0
    %p121 = por %p119, %p120
    %p122 = scmp.ne.s32.totalorder %s114, %s116
    %p123 = scmp.eq.s32.totalorder %s22, 1
    %p124 = por %p122, %p123
    %p125 = scmp.ne.s32.totalorder %s116, %s117
    %p126 = scmp.eq.s32.totalorder %s22, 0
    %p127 = por %p125, %p126
    %p128 = scmp.ne.s32.totalorder %s116, %s117
    %p129 = scmp.eq.s32.totalorder %s23, 1
    %p130 = por %p128, %p129
    %p132 = scmp.ne.s32.totalorder %s117, %s131
    %p133 = scmp.eq.s32.totalorder %s23, 0
    %p134 = por %p132, %p133
    %s136 = sadd.s32 %s135, 1
    %p139 = scmp.eq.s32.totalorder %s17, 1
    %p140 = scmp.ne.s32.totalorder %s135, %s137
    %p141 = scmp.eq.s32.totalorder %s17, 0
    %p142 = por %p140, %p141
    %p143 = scmp.ne.s32.totalorder %s135, %s137
    %p144 = scmp.eq.s32.totalorder %s22, 1
    %p145 = por %p143, %p144
    %p146 = scmp.ne.s32.totalorder %s137, %s138
    %p147 = scmp.eq.s32.totalorder %s22, 0
    %p148 = por %p146, %p147
    %p149 = scmp.ne.s32.totalorder %s137, %s138
    %p150 = scmp.eq.s32.totalorder %s23, 1
    %p151 = por %p149, %p150
    %p153 = scmp.ne.s32.totalorder %s138, %s152
    %p154 = scmp.eq.s32.totalorder %s23, 0
    %p155 = por %p153, %p154
    %s157 = sadd.s32 %s156, 1
    %p160 = scmp.eq.s32.totalorder %s17, 1
    %p161 = scmp.ne.s32.totalorder %s156, %s158
    %p162 = scmp.eq.s32.totalorder %s17, 0
    %p163 = por %p161, %p162
    %p164 = scmp.ne.s32.totalorder %s156, %s158
    %p165 = scmp.eq.s32.totalorder %s22, 1
    %p166 = por %p164, %p165
    %p167 = scmp.ne.s32.totalorder %s158, %s159
    %p168 = scmp.eq.s32.totalorder %s22, 0
    %p169 = por %p167, %p168
    %p170 = scmp.ne.s32.totalorder %s158, %s159
    %p171 = scmp.eq.s32.totalorder %s23, 1
    %p172 = por %p170, %p171
    %p174 = scmp.ne.s32.totalorder %s159, %s173
    %p175 = scmp.eq.s32.totalorder %s23, 0
    %p176 = por %p174, %p175
    %s178 = sadd.s32 %s177, 1
    %p181 = scmp.eq.s32.totalorder %s17, 1
    %p182 = scmp.ne.s32.totalorder %s177, %s179
    %p183 = scmp.eq.s32.totalorder %s17, 0
    %p184 = por %p182, %p183
    %p185 = scmp.ne.s32.totalorder %s177, %s179
    %p186 = scmp.eq.s32.totalorder %s22, 1
    %p187 = por %p185, %p186
    %p188 = scmp.ne.s32.totalorder %s179, %s180
    %p189 = scmp.eq.s32.totalorder %s22, 0
    %p190 = por %p188, %p189
    %p191 = scmp.ne.s32.totalorder %s179, %s180
    %p192 = scmp.eq.s32.totalorder %s23, 1
    %p193 = por %p191, %p192
    %p195 = scmp.ne.s32.totalorder %s180, %s194
    %p196 = scmp.eq.s32.totalorder %s23, 0
    %p197 = por %p195, %p196
    %s199 = sadd.s32 %s198, 1
    %p202 = scmp.eq.s32.totalorder %s17, 1
    %p203 = scmp.ne.s32.totalorder %s198, %s200
    %p204 = scmp.eq.s32.totalorder %s17, 0
    %p205 = por %p203, %p204
    %p206 = scmp.ne.s32.totalorder %s198, %s200
    %p207 = scmp.eq.s32.totalorder %s22, 1
    %p208 = por %p206, %p207
    %p209 = scmp.ne.s32.totalorder %s200, %s201
    %p210 = scmp.eq.s32.totalorder %s22, 0
    %p211 = por %p209, %p210
    %p212 = scmp.ne.s32.totalorder %s200, %s201
    %p213 = scmp.eq.s32.totalorder %s23, 1
    %p214 = por %p212, %p213
    %p216 = scmp.ne.s32.totalorder %s201, %s215
    %p217 = scmp.eq.s32.totalorder %s23, 0
    %p218 = por %p216, %p217
    %s220 = sadd.s32 %s219, 1
    %p223 = scmp.eq.s32.totalorder %s17, 1
    %p224 = scmp.ne.s32.totalorder %s219, %s221
    %p225 = scmp.eq.s32.totalorder %s17, 0
    %p226 = por %p224, %p225
    %p227 = scmp.ne.s32.totalorder %s219, %s221
    %p228 = scmp.eq.s32.totalorder %s22, 1
    %p229 = por %p227, %p228
    %p230 = scmp.ne.s32.totalorder %s221, %s222
    %p231 = scmp.eq.s32.totalorder %s22, 0
    %p232 = por %p230, %p231
    %p233 = scmp.ne.s32.totalorder %s221, %s222
    %p234 = scmp.eq.s32.totalorder %s23, 1
    %p235 = por %p233, %p234
    %p237 = scmp.ne.s32.totalorder %s222, %s236
    %p238 = scmp.eq.s32.totalorder %s23, 0
    %p239 = por %p237, %p238
    %s241 = sadd.s32 %s240, 1
    %p244 = scmp.eq.s32.totalorder %s17, 1
    %p245 = scmp.ne.s32.totalorder %s240, %s242
    %p246 = scmp.eq.s32.totalorder %s17, 0
    %p247 = por %p245, %p246
    %p248 = scmp.ne.s32.totalorder %s240, %s242
    %p249 = scmp.eq.s32.totalorder %s22, 1
    %p250 = por %p248, %p249
    %p251 = scmp.ne.s32.totalorder %s242, %s243
    %p252 = scmp.eq.s32.totalorder %s22, 0
    %p253 = por %p251, %p252
    %p254 = scmp.ne.s32.totalorder %s242, %s243
    %p255 = scmp.eq.s32.totalorder %s23, 1
    %p256 = por %p254, %p255
    %p258 = scmp.ne.s32.totalorder %s243, %s257
    %p259 = scmp.eq.s32.totalorder %s23, 0
    %p260 = por %p258, %p259
    %s261 = ssub.s32 %s17, %s24
    %p262 = scmp.eq.s32.totalorder %s261, 0
    %s264 = sadd.s32 %s263, 1
    %s265 = scalar_select %p262, %s263, %s264
    %p268 = pneg %p262
    %p269 = scmp.eq.s32.totalorder %s17, 1
    %p270 = por %p268, %p269
    %p271 = scmp.ne.s32.totalorder %s263, %s266
    %p272 = scmp.eq.s32.totalorder %s17, 0
    %p273 = por %p271, %p272
    %p274 = scmp.ne.s32.totalorder %s263, %s266
    %p275 = scmp.eq.s32.totalorder %s22, 1
    %p276 = por %p274, %p275
    %p277 = scmp.ne.s32.totalorder %s266, %s267
    %p278 = scmp.eq.s32.totalorder %s22, 0
    %p279 = por %p277, %p278
    %p280 = scmp.ne.s32.totalorder %s266, %s267
    %p281 = scmp.eq.s32.totalorder %s23, 1
    %p282 = por %p280, %p281
    %p284 = scmp.ne.s32.totalorder %s267, %s283
    %p285 = scmp.eq.s32.totalorder %s23, 0
    %p286 = por %p284, %p285
    %p287 = scmp.le.s32.totalorder 1, %s17
    %p288 = scmp.lt.s32.totalorder %s17, 3
    %p289 = pnand %p287, %p288
    %p290 = pneg %p289
    // Predicated region
    $region9: #{_lambda_.1} parent=5 // pred_check
      _
    $region10: #{_lambda_.1} parent=5 // pred_check_branch
      %292 = sbr.rel (%p289) target = $region12
    $region11: #{_lambda_.1} parent=5 // pred_region
      %s293 = ssub.s32 %s17, 1
      // Predicated region
      $region13: #{_lambda_.1} parent=11 // pred_check
        %p294 = pneg %p64
      $region14: #{_lambda_.1} parent=11 // pred_check_branch
        %296 = sbr.rel (%p294) target = $region16
      $region15: #{_lambda_.1} parent=11 // pred_region
        _
      $region16: #{_lambda_.1} parent=11 // pred_fallthru
        _
      // Predicated region
      $region17: #{_lambda_.1} parent=11 // pred_check
        %p297 = pneg %p85
      $region18: #{_lambda_.1} parent=11 // pred_check_branch
        %299 = sbr.rel (%p297) target = $region20
      $region19: #{_lambda_.1} parent=11 // pred_region
        _
      $region20: #{_lambda_.1} parent=11 // pred_fallthru
        _
      // Predicated region
      $region21: #{_lambda_.1} parent=11 // pred_check
        %p300 = pneg %p106
      $region22: #{_lambda_.1} parent=11 // pred_check_branch
        %302 = sbr.rel (%p300) target = $region24
      $region23: #{_lambda_.1} parent=11 // pred_region
        _
      $region24: #{_lambda_.1} parent=11 // pred_fallthru
        _
      // Predicated region
      $region25: #{_lambda_.1} parent=11 // pred_check
        %p303 = pneg %p127
      $region26: #{_lambda_.1} parent=11 // pred_check_branch
        %305 = sbr.rel (%p303) target = $region28
      $region27: #{_lambda_.1} parent=11 // pred_region
        _
      $region28: #{_lambda_.1} parent=11 // pred_fallthru
        _
      // Predicated region
      $region29: #{_lambda_.1} parent=11 // pred_check
        %p306 = pneg %p148
      $region30: #{_lambda_.1} parent=11 // pred_check_branch
        %308 = sbr.rel (%p306) target = $region32
      $region31: #{_lambda_.1} parent=11 // pred_region
        _
      $region32: #{_lambda_.1} parent=11 // pred_fallthru
        _
      // Predicated region
      $region33: #{_lambda_.1} parent=11 // pred_check
        %p309 = pneg %p169
      $region34: #{_lambda_.1} parent=11 // pred_check_branch
        %311 = sbr.rel (%p309) target = $region36
      $region35: #{_lambda_.1} parent=11 // pred_region
        _
      $region36: #{_lambda_.1} parent=11 // pred_fallthru
        _
      // Predicated region
      $region37: #{_lambda_.1} parent=11 // pred_check
        %p312 = pneg %p190
      $region38: #{_lambda_.1} parent=11 // pred_check_branch
        %314 = sbr.rel (%p312) target = $region40
      $region39: #{_lambda_.1} parent=11 // pred_region
        _
      $region40: #{_lambda_.1} parent=11 // pred_fallthru
        _
      // Predicated region
      $region41: #{_lambda_.1} parent=11 // pred_check
        %p315 = pneg %p211
      $region42: #{_lambda_.1} parent=11 // pred_check_branch
        %317 = sbr.rel (%p315) target = $region44
      $region43: #{_lambda_.1} parent=11 // pred_region
        _
      $region44: #{_lambda_.1} parent=11 // pred_fallthru
        _
      // Predicated region
      $region45: #{_lambda_.1} parent=11 // pred_check
        %p318 = pneg %p232
      $region46: #{_lambda_.1} parent=11 // pred_check_branch
        %320 = sbr.rel (%p318) target = $region48
      $region47: #{_lambda_.1} parent=11 // pred_region
        _
      $region48: #{_lambda_.1} parent=11 // pred_fallthru
        _
      // Predicated region
      $region49: #{_lambda_.1} parent=11 // pred_check
        %p321 = pneg %p253
      $region50: #{_lambda_.1} parent=11 // pred_check_branch
        %323 = sbr.rel (%p321) target = $region52
      $region51: #{_lambda_.1} parent=11 // pred_region
        _
      $region52: #{_lambda_.1} parent=11 // pred_fallthru
        _
    $region12: #{_lambda_.1} parent=5 // pred_fallthru
      _
    %p324 = scmp.lt.s32.totalorder %s17, 2
    // Predicated region
    $region53: #{_lambda_.1} parent=5 // pred_check
      %p325 = pneg %p324
    $region54: #{_lambda_.1} parent=5 // pred_check_branch
      %327 = sbr.rel (%p325) target = $region56
    $region55: #{_lambda_.1} parent=5 // pred_region
      // Predicated region
      $region57: #{_lambda_.1} parent=55 // pred_check
        %p328 = pneg %p37
      $region58: #{_lambda_.1} parent=55 // pred_check_branch
        %330 = sbr.rel (%p328) target = $region60
      $region59: #{_lambda_.1} parent=55 // pred_region
        %p331 = scmp.lt.s32.totalorder %s17, 1
        %s332 = scalar_select %p331, %s17, 1
        %s333 = smul.addr %s332, 128
        %s334 = smul.addr %s333, 8
        %s335 = scalar_lea.vmem %s0, %s334
      $region60: #{_lambda_.1} parent=55 // pred_fallthru
        _
    $region56: #{_lambda_.1} parent=5 // pred_fallthru
      _
    %p336 = scmp.le.s32.totalorder 1, %s17
    %p337 = scmp.lt.s32.totalorder %s17, 3
    %p338 = pnand %p336, %p337
    %p339 = pneg %p338
    // Predicated region
    $region61: #{_lambda_.1} parent=5 // pred_check
      _
    $region62: #{_lambda_.1} parent=5 // pred_check_branch
      %341 = sbr.rel (%p338) target = $region64
    $region63: #{_lambda_.1} parent=5 // pred_region
      %s342 = ssub.s32 %s17, 1
      %p343 = scmp.lt.s32.totalorder %s22, 1
      %s344 = scalar_select %p343, %s22, 1
      %s345 = smul.addr %s344, 128
      %s346 = smul.addr %s345, 8
      %s347 = scalar_lea.vmem %s0, %s346
      %p348 = pneg %p43
      %p349 = pneg %p40
      %p350 = pneg %p64
      %p351 = pneg %p61
      %p352 = pneg %p85
      %p353 = pneg %p82
      %p354 = pneg %p106
      %p355 = pneg %p103
      %p356 = pneg %p127
      %p357 = pneg %p124
      %p358 = pneg %p148
      %p359 = pneg %p145
      %p360 = pneg %p169
      %p361 = pneg %p166
      %p362 = pneg %p190
      %p363 = pneg %p187
      %p364 = pneg %p211
      %p365 = pneg %p208
      %p366 = pneg %p232
      %p367 = pneg %p229
      %p368 = pneg %p253
      %p369 = pneg %p250
      %p370 = pneg %p279
      %p371 = pneg %p276
      %p372 = scmp.lt.s32.totalorder %s22, 1
      %s373 = scalar_select %p372, %s22, 1
      %s374 = smul.addr %s373, 4
      %s375 = smul.addr %s374, 8
      %s376 = scalar_lea.vmem %s11, %s375
      %p377 = scmp.lt.s32.totalorder %s22, 1
      %s378 = scalar_select %p377, %s22, 1
      %s379 = smul.addr %s378, 128
      %s380 = smul.addr %s379, 8
      %s381 = scalar_lea.vmem %s0, %s380
      %p382 = scmp.lt.s32.totalorder %s22, 1
      %s383 = scalar_select %p382, %s22, 1
      %s384 = smul.addr %s383, 4
      %s385 = smul.addr %s384, 8
      %s386 = scalar_lea.vmem %s11, %s385
      %v387 = vld [vmem:[%s1] sm:$0xff]
      %v388 = vld [vmem:[%s1 + $0x8] sm:$0xff]
      %v389 = vld [vmem:[%s1 + $0x10] sm:$0xff]
      %v390 = vld [vmem:[%s1 + $0x18] sm:$0xff]
      %v391 = vld [vmem:[%s1 + $0x20] sm:$0xff]
      %v392 = vld [vmem:[%s1 + $0x28] sm:$0xff]
      %v393 = vld [vmem:[%s1 + $0x30] sm:$0xff]
      %v394 = vld [vmem:[%s1 + $0x38] sm:$0xff]
      %s395 = scalar_lea.vmem %s1, 64
      %v396 = vld [vmem:[%s395] sm:$0xff]
      %v397 = vld [vmem:[%s395 + $0x8] sm:$0xff]
      %v398 = vld [vmem:[%s395 + $0x10] sm:$0xff]
      %v399 = vld [vmem:[%s395 + $0x18] sm:$0xff]
      %v400 = vld [vmem:[%s395 + $0x20] sm:$0xff]
      %v401 = vld [vmem:[%s395 + $0x28] sm:$0xff]
      %v402 = vld [vmem:[%s395 + $0x30] sm:$0xff]
      %v403 = vld [vmem:[%s395 + $0x38] sm:$0xff]
      %s404 = scalar_lea.vmem %s1, 128
      %v405 = vld [vmem:[%s404] sm:$0xff]
      %v406 = vld [vmem:[%s404 + $0x8] sm:$0xff]
      %v407 = vld [vmem:[%s404 + $0x10] sm:$0xff]
      %v408 = vld [vmem:[%s404 + $0x18] sm:$0xff]
      %v409 = vld [vmem:[%s404 + $0x20] sm:$0xff]
      %v410 = vld [vmem:[%s404 + $0x28] sm:$0xff]
      %v411 = vld [vmem:[%s404 + $0x30] sm:$0xff]
      %v412 = vld [vmem:[%s404 + $0x38] sm:$0xff]
      %s413 = scalar_lea.vmem %s1, 192
      %v414 = vld [vmem:[%s413] sm:$0xff]
      %v415 = vld [vmem:[%s413 + $0x8] sm:$0xff]
      %v416 = vld [vmem:[%s413 + $0x10] sm:$0xff]
      %v417 = vld [vmem:[%s413 + $0x18] sm:$0xff]
      %v418 = vld [vmem:[%s413 + $0x20] sm:$0xff]
      %v419 = vld [vmem:[%s413 + $0x28] sm:$0xff]
      %v420 = vld [vmem:[%s413 + $0x30] sm:$0xff]
      %v421 = vld [vmem:[%s413 + $0x38] sm:$0xff]
      %s422 = scalar_lea.vmem %s1, 256
      %v423 = vld [vmem:[%s422] sm:$0xff]
      %v424 = vld [vmem:[%s422 + $0x8] sm:$0xff]
      %v425 = vld [vmem:[%s422 + $0x10] sm:$0xff]
      %v426 = vld [vmem:[%s422 + $0x18] sm:$0xff]
      %v427 = vld [vmem:[%s422 + $0x20] sm:$0xff]
      %v428 = vld [vmem:[%s422 + $0x28] sm:$0xff]
      %v429 = vld [vmem:[%s422 + $0x30] sm:$0xff]
      %v430 = vld [vmem:[%s422 + $0x38] sm:$0xff]
      %v431 = vld [vmem:[%s3] sm:$0xff]
      %v432 = vld [vmem:[%s3 + $0x8] sm:$0xff]
      %v433 = vld [vmem:[%s3 + $0x10] sm:$0xff]
      %v434 = vld [vmem:[%s3 + $0x18] sm:$0xff]
      %v435 = vld [vmem:[%s3 + $0x20] sm:$0xff]
      %v436 = vld [vmem:[%s3 + $0x28] sm:$0xff]
      %v437 = vld [vmem:[%s3 + $0x30] sm:$0xff]
      %v438 = vld [vmem:[%s3 + $0x38] sm:$0xff]
      %v439 = vld [vmem:[%s3 + $0x40] sm:$0xff]
      %v440 = vld [vmem:[%s3 + $0x48] sm:$0xff]
      %v441 = vld [vmem:[%s3 + $0x50] sm:$0xff]
      %v442 = vld [vmem:[%s3 + $0x58] sm:$0xff]
      %v443 = vld [vmem:[%s3 + $0x60] sm:$0xff]
      %v444 = vld [vmem:[%s3 + $0x68] sm:$0xff]
      %v445 = vld [vmem:[%s3 + $0x70] sm:$0xff]
      %v446 = vld [vmem:[%s3 + $0x78] sm:$0xff]
      %v447 = vld [vmem:[%s3 + $0x80] sm:$0xff]
      %v448 = vld [vmem:[%s3 + $0x88] sm:$0xff]
      %v449 = vld [vmem:[%s3 + $0x90] sm:$0xff]
      %v450 = vld [vmem:[%s3 + $0x98] sm:$0xff]
      %v451 = vld [vmem:[%s3 + $0xa0] sm:$0xff]
      %v452 = vld [vmem:[%s3 + $0xa8] sm:$0xff]
      %v453 = vld [vmem:[%s3 + $0xb0] sm:$0xff]
      %v454 = vld [vmem:[%s3 + $0xb8] sm:$0xff]
      %v455 = vld [vmem:[%s3 + $0xc0] sm:$0xff]
      %v456 = vld [vmem:[%s3 + $0xc8] sm:$0xff]
      %v457 = vld [vmem:[%s3 + $0xd0] sm:$0xff]
      %v458 = vld [vmem:[%s3 + $0xd8] sm:$0xff]
      %v459 = vld [vmem:[%s3 + $0xe0] sm:$0xff]
      %v460 = vld [vmem:[%s3 + $0xe8] sm:$0xff]
      %v461 = vld [vmem:[%s3 + $0xf0] sm:$0xff]
      %v462 = vld [vmem:[%s3 + $0xf8] sm:$0xff]
      %s463 = scalar_lea.vmem %s3, 256
      %v464 = vld [vmem:[%s463] sm:$0xff]
      %v465 = vld [vmem:[%s463 + $0x8] sm:$0xff]
      %v466 = vld [vmem:[%s463 + $0x10] sm:$0xff]
      %v467 = vld [vmem:[%s463 + $0x18] sm:$0xff]
      %v468 = vld [vmem:[%s463 + $0x20] sm:$0xff]
      %v469 = vld [vmem:[%s463 + $0x28] sm:$0xff]
      %v470 = vld [vmem:[%s463 + $0x30] sm:$0xff]
      %v471 = vld [vmem:[%s463 + $0x38] sm:$0xff]
      %v472 = vld [vmem:[%s463 + $0x40] sm:$0xff]
      %v473 = vld [vmem:[%s463 + $0x48] sm:$0xff]
      %v474 = vld [vmem:[%s463 + $0x50] sm:$0xff]
      %v475 = vld [vmem:[%s463 + $0x58] sm:$0xff]
      %v476 = vld [vmem:[%s463 + $0x60] sm:$0xff]
      %v477 = vld [vmem:[%s463 + $0x68] sm:$0xff]
      %v478 = vld [vmem:[%s463 + $0x70] sm:$0xff]
      %v479 = vld [vmem:[%s463 + $0x78] sm:$0xff]
      %v480 = vld [vmem:[%s463 + $0x80] sm:$0xff]
      %v481 = vld [vmem:[%s463 + $0x88] sm:$0xff]
      %v482 = vld [vmem:[%s463 + $0x90] sm:$0xff]
      %v483 = vld [vmem:[%s463 + $0x98] sm:$0xff]
      %v484 = vld [vmem:[%s463 + $0xa0] sm:$0xff]
      %v485 = vld [vmem:[%s463 + $0xa8] sm:$0xff]
      %v486 = vld [vmem:[%s463 + $0xb0] sm:$0xff]
      %v487 = vld [vmem:[%s463 + $0xb8] sm:$0xff]
      %v488 = vld [vmem:[%s463 + $0xc0] sm:$0xff]
      %v489 = vld [vmem:[%s463 + $0xc8] sm:$0xff]
      %v490 = vld [vmem:[%s463 + $0xd0] sm:$0xff]
      %v491 = vld [vmem:[%s463 + $0xd8] sm:$0xff]
      %v492 = vld [vmem:[%s463 + $0xe0] sm:$0xff]
      %v493 = vld [vmem:[%s463 + $0xe8] sm:$0xff]
      %v494 = vld [vmem:[%s463 + $0xf0] sm:$0xff]
      %v495 = vld [vmem:[%s463 + $0xf8] sm:$0xff]
      %s496 = scalar_lea.vmem %s3, 512
      %v497 = vld [vmem:[%s496] sm:$0xff]
      %v498 = vld [vmem:[%s496 + $0x8] sm:$0xff]
      %v499 = vld [vmem:[%s496 + $0x10] sm:$0xff]
      %v500 = vld [vmem:[%s496 + $0x18] sm:$0xff]
      %v501 = vld [vmem:[%s496 + $0x20] sm:$0xff]
      %v502 = vld [vmem:[%s496 + $0x28] sm:$0xff]
      %v503 = vld [vmem:[%s496 + $0x30] sm:$0xff]
      %v504 = vld [vmem:[%s496 + $0x38] sm:$0xff]
      %v505 = vld [vmem:[%s496 + $0x40] sm:$0xff]
      %v506 = vld [vmem:[%s496 + $0x48] sm:$0xff]
      %v507 = vld [vmem:[%s496 + $0x50] sm:$0xff]
      %v508 = vld [vmem:[%s496 + $0x58] sm:$0xff]
      %v509 = vld [vmem:[%s496 + $0x60] sm:$0xff]
      %v510 = vld [vmem:[%s496 + $0x68] sm:$0xff]
      %v511 = vld [vmem:[%s496 + $0x70] sm:$0xff]
      %v512 = vld [vmem:[%s496 + $0x78] sm:$0xff]
      %v513 = vld [vmem:[%s496 + $0x80] sm:$0xff]
      %v514 = vld [vmem:[%s496 + $0x88] sm:$0xff]
      %v515 = vld [vmem:[%s496 + $0x90] sm:$0xff]
      %v516 = vld [vmem:[%s496 + $0x98] sm:$0xff]
      %v517 = vld [vmem:[%s496 + $0xa0] sm:$0xff]
      %v518 = vld [vmem:[%s496 + $0xa8] sm:$0xff]
      %v519 = vld [vmem:[%s496 + $0xb0] sm:$0xff]
      %v520 = vld [vmem:[%s496 + $0xb8] sm:$0xff]
      %v521 = vld [vmem:[%s496 + $0xc0] sm:$0xff]
      %v522 = vld [vmem:[%s496 + $0xc8] sm:$0xff]
      %v523 = vld [vmem:[%s496 + $0xd0] sm:$0xff]
      %v524 = vld [vmem:[%s496 + $0xd8] sm:$0xff]
      %v525 = vld [vmem:[%s496 + $0xe0] sm:$0xff]
      %v526 = vld [vmem:[%s496 + $0xe8] sm:$0xff]
      %v527 = vld [vmem:[%s496 + $0xf0] sm:$0xff]
      %v528 = vld [vmem:[%s496 + $0xf8] sm:$0xff]
      %s529 = scalar_lea.vmem %s3, 768
      %v530 = vld [vmem:[%s529] sm:$0xff]
      %v531 = vld [vmem:[%s529 + $0x8] sm:$0xff]
      %v532 = vld [vmem:[%s529 + $0x10] sm:$0xff]
      %v533 = vld [vmem:[%s529 + $0x18] sm:$0xff]
      %v534 = vld [vmem:[%s529 + $0x20] sm:$0xff]
      %v535 = vld [vmem:[%s529 + $0x28] sm:$0xff]
      %v536 = vld [vmem:[%s529 + $0x30] sm:$0xff]
      %v537 = vld [vmem:[%s529 + $0x38] sm:$0xff]
      %v538 = vld [vmem:[%s529 + $0x40] sm:$0xff]
      %v539 = vld [vmem:[%s529 + $0x48] sm:$0xff]
      %v540 = vld [vmem:[%s529 + $0x50] sm:$0xff]
      %v541 = vld [vmem:[%s529 + $0x58] sm:$0xff]
      %v542 = vld [vmem:[%s529 + $0x60] sm:$0xff]
      %v543 = vld [vmem:[%s529 + $0x68] sm:$0xff]
      %v544 = vld [vmem:[%s529 + $0x70] sm:$0xff]
      %v545 = vld [vmem:[%s529 + $0x78] sm:$0xff]
      %v546 = vld [vmem:[%s529 + $0x80] sm:$0xff]
      %v547 = vld [vmem:[%s529 + $0x88] sm:$0xff]
      %v548 = vld [vmem:[%s529 + $0x90] sm:$0xff]
      %v549 = vld [vmem:[%s529 + $0x98] sm:$0xff]
      %v550 = vld [vmem:[%s529 + $0xa0] sm:$0xff]
      %v551 = vld [vmem:[%s529 + $0xa8] sm:$0xff]
      %v552 = vld [vmem:[%s529 + $0xb0] sm:$0xff]
      %v553 = vld [vmem:[%s529 + $0xb8] sm:$0xff]
      %v554 = vld [vmem:[%s529 + $0xc0] sm:$0xff]
      %v555 = vld [vmem:[%s529 + $0xc8] sm:$0xff]
      %v556 = vld [vmem:[%s529 + $0xd0] sm:$0xff]
      %v557 = vld [vmem:[%s529 + $0xd8] sm:$0xff]
      %v558 = vld [vmem:[%s529 + $0xe0] sm:$0xff]
      %v559 = vld [vmem:[%s529 + $0xe8] sm:$0xff]
      %v560 = vld [vmem:[%s529 + $0xf0] sm:$0xff]
      %v561 = vld [vmem:[%s529 + $0xf8] sm:$0xff]
      %s562 = scalar_lea.vmem %s3, 1024
      %v563 = vld [vmem:[%s562] sm:$0xff]
      %v564 = vld [vmem:[%s562 + $0x8] sm:$0xff]
      %v565 = vld [vmem:[%s562 + $0x10] sm:$0xff]
      %v566 = vld [vmem:[%s562 + $0x18] sm:$0xff]
      %v567 = vld [vmem:[%s562 + $0x20] sm:$0xff]
      %v568 = vld [vmem:[%s562 + $0x28] sm:$0xff]
      %v569 = vld [vmem:[%s562 + $0x30] sm:$0xff]
      %v570 = vld [vmem:[%s562 + $0x38] sm:$0xff]
      %v571 = vld [vmem:[%s562 + $0x40] sm:$0xff]
      %v572 = vld [vmem:[%s562 + $0x48] sm:$0xff]
      %v573 = vld [vmem:[%s562 + $0x50] sm:$0xff]
      %v574 = vld [vmem:[%s562 + $0x58] sm:$0xff]
      %v575 = vld [vmem:[%s562 + $0x60] sm:$0xff]
      %v576 = vld [vmem:[%s562 + $0x68] sm:$0xff]
      %v577 = vld [vmem:[%s562 + $0x70] sm:$0xff]
      %v578 = vld [vmem:[%s562 + $0x78] sm:$0xff]
      %v579 = vld [vmem:[%s562 + $0x80] sm:$0xff]
      %v580 = vld [vmem:[%s562 + $0x88] sm:$0xff]
      %v581 = vld [vmem:[%s562 + $0x90] sm:$0xff]
      %v582 = vld [vmem:[%s562 + $0x98] sm:$0xff]
      %v583 = vld [vmem:[%s562 + $0xa0] sm:$0xff]
      %v584 = vld [vmem:[%s562 + $0xa8] sm:$0xff]
      %v585 = vld [vmem:[%s562 + $0xb0] sm:$0xff]
      %v586 = vld [vmem:[%s562 + $0xb8] sm:$0xff]
      %v587 = vld [vmem:[%s562 + $0xc0] sm:$0xff]
      %v588 = vld [vmem:[%s562 + $0xc8] sm:$0xff]
      %v589 = vld [vmem:[%s562 + $0xd0] sm:$0xff]
      %v590 = vld [vmem:[%s562 + $0xd8] sm:$0xff]
      %v591 = vld [vmem:[%s562 + $0xe0] sm:$0xff]
      %v592 = vld [vmem:[%s562 + $0xe8] sm:$0xff]
      %v593 = vld [vmem:[%s562 + $0xf0] sm:$0xff]
      %v594 = vld [vmem:[%s562 + $0xf8] sm:$0xff]
      %v595 = vld [vmem:[%s5] sm:$0xff]
      %v596 = vld [vmem:[%s5 + $0x8] sm:$0xff]
      %v597 = vld [vmem:[%s5 + $0x10] sm:$0xff]
      %v598 = vld [vmem:[%s5 + $0x18] sm:$0xff]
      %v599 = vld [vmem:[%s5 + $0x20] sm:$0xff]
      %v600 = vld [vmem:[%s5 + $0x28] sm:$0xff]
      %v601 = vld [vmem:[%s5 + $0x30] sm:$0xff]
      %v602 = vld [vmem:[%s5 + $0x38] sm:$0xff]
      %v603 = vld [vmem:[%s5 + $0x40] sm:$0xff]
      %v604 = vld [vmem:[%s5 + $0x48] sm:$0xff]
      %v605 = vld [vmem:[%s5 + $0x50] sm:$0xff]
      %v606 = vld [vmem:[%s5 + $0x58] sm:$0xff]
      %v607 = vld [vmem:[%s5 + $0x60] sm:$0xff]
      %v608 = vld [vmem:[%s5 + $0x68] sm:$0xff]
      %v609 = vld [vmem:[%s5 + $0x70] sm:$0xff]
      %v610 = vld [vmem:[%s5 + $0x78] sm:$0xff]
      %s611 = scalar_lea.vmem %s5, 128
      %v612 = vld [vmem:[%s611] sm:$0xff]
      %v613 = vld [vmem:[%s611 + $0x8] sm:$0xff]
      %v614 = vld [vmem:[%s611 + $0x10] sm:$0xff]
      %v615 = vld [vmem:[%s611 + $0x18] sm:$0xff]
      %v616 = vld [vmem:[%s611 + $0x20] sm:$0xff]
      %v617 = vld [vmem:[%s611 + $0x28] sm:$0xff]
      %v618 = vld [vmem:[%s611 + $0x30] sm:$0xff]
      %v619 = vld [vmem:[%s611 + $0x38] sm:$0xff]
      %v620 = vld [vmem:[%s611 + $0x40] sm:$0xff]
      %v621 = vld [vmem:[%s611 + $0x48] sm:$0xff]
      %v622 = vld [vmem:[%s611 + $0x50] sm:$0xff]
      %v623 = vld [vmem:[%s611 + $0x58] sm:$0xff]
      %v624 = vld [vmem:[%s611 + $0x60] sm:$0xff]
      %v625 = vld [vmem:[%s611 + $0x68] sm:$0xff]
      %v626 = vld [vmem:[%s611 + $0x70] sm:$0xff]
      %v627 = vld [vmem:[%s611 + $0x78] sm:$0xff]
      %s628 = scalar_lea.vmem %s5, 256
      %v629 = vld [vmem:[%s628] sm:$0xff]
      %v630 = vld [vmem:[%s628 + $0x8] sm:$0xff]
      %v631 = vld [vmem:[%s628 + $0x10] sm:$0xff]
      %v632 = vld [vmem:[%s628 + $0x18] sm:$0xff]
      %v633 = vld [vmem:[%s628 + $0x20] sm:$0xff]
      %v634 = vld [vmem:[%s628 + $0x28] sm:$0xff]
      %v635 = vld [vmem:[%s628 + $0x30] sm:$0xff]
      %v636 = vld [vmem:[%s628 + $0x38] sm:$0xff]
      %v637 = vld [vmem:[%s628 + $0x40] sm:$0xff]
      %v638 = vld [vmem:[%s628 + $0x48] sm:$0xff]
      %v639 = vld [vmem:[%s628 + $0x50] sm:$0xff]
      %v640 = vld [vmem:[%s628 + $0x58] sm:$0xff]
      %v641 = vld [vmem:[%s628 + $0x60] sm:$0xff]
      %v642 = vld [vmem:[%s628 + $0x68] sm:$0xff]
      %v643 = vld [vmem:[%s628 + $0x70] sm:$0xff]
      %v644 = vld [vmem:[%s628 + $0x78] sm:$0xff]
      %s645 = scalar_lea.vmem %s5, 384
      %v646 = vld [vmem:[%s645] sm:$0xff]
      %v647 = vld [vmem:[%s645 + $0x8] sm:$0xff]
      %v648 = vld [vmem:[%s645 + $0x10] sm:$0xff]
      %v649 = vld [vmem:[%s645 + $0x18] sm:$0xff]
      %v650 = vld [vmem:[%s645 + $0x20] sm:$0xff]
      %v651 = vld [vmem:[%s645 + $0x28] sm:$0xff]
      %v652 = vld [vmem:[%s645 + $0x30] sm:$0xff]
      %v653 = vld [vmem:[%s645 + $0x38] sm:$0xff]
      %v654 = vld [vmem:[%s645 + $0x40] sm:$0xff]
      %v655 = vld [vmem:[%s645 + $0x48] sm:$0xff]
      %v656 = vld [vmem:[%s645 + $0x50] sm:$0xff]
      %v657 = vld [vmem:[%s645 + $0x58] sm:$0xff]
      %v658 = vld [vmem:[%s645 + $0x60] sm:$0xff]
      %v659 = vld [vmem:[%s645 + $0x68] sm:$0xff]
      %v660 = vld [vmem:[%s645 + $0x70] sm:$0xff]
      %v661 = vld [vmem:[%s645 + $0x78] sm:$0xff]
      %s662 = scalar_lea.vmem %s5, 512
      %v663 = vld [vmem:[%s662] sm:$0xff]
      %v664 = vld [vmem:[%s662 + $0x8] sm:$0xff]
      %v665 = vld [vmem:[%s662 + $0x10] sm:$0xff]
      %v666 = vld [vmem:[%s662 + $0x18] sm:$0xff]
      %v667 = vld [vmem:[%s662 + $0x20] sm:$0xff]
      %v668 = vld [vmem:[%s662 + $0x28] sm:$0xff]
      %v669 = vld [vmem:[%s662 + $0x30] sm:$0xff]
      %v670 = vld [vmem:[%s662 + $0x38] sm:$0xff]
      %v671 = vld [vmem:[%s662 + $0x40] sm:$0xff]
      %v672 = vld [vmem:[%s662 + $0x48] sm:$0xff]
      %v673 = vld [vmem:[%s662 + $0x50] sm:$0xff]
      %v674 = vld [vmem:[%s662 + $0x58] sm:$0xff]
      %v675 = vld [vmem:[%s662 + $0x60] sm:$0xff]
      %v676 = vld [vmem:[%s662 + $0x68] sm:$0xff]
      %v677 = vld [vmem:[%s662 + $0x70] sm:$0xff]
      %v678 = vld [vmem:[%s662 + $0x78] sm:$0xff]
      %v679 = vld [vmem:[%s2] sm:$0x1]
      %v680 = vld [vmem:[%s4] sm:$0x1]
      %v681 = vld [vmem:[%s381] sm:$0xff]
      %v682 = vld [vmem:[%s381 + $0x8] sm:$0xff]
      %v683 = vld [vmem:[%s381 + $0x10] sm:$0xff]
      %v684 = vld [vmem:[%s381 + $0x18] sm:$0xff]
      %v685 = vld [vmem:[%s381 + $0x20] sm:$0xff]
      %v686 = vld [vmem:[%s381 + $0x28] sm:$0xff]
      %v687 = vld [vmem:[%s381 + $0x30] sm:$0xff]
      %v688 = vld [vmem:[%s381 + $0x38] sm:$0xff]
      %v689 = vld [vmem:[%s381 + $0x40] sm:$0xff]
      %v690 = vld [vmem:[%s381 + $0x48] sm:$0xff]
      %v691 = vld [vmem:[%s381 + $0x50] sm:$0xff]
      %v692 = vld [vmem:[%s381 + $0x58] sm:$0xff]
      %v693 = vld [vmem:[%s381 + $0x60] sm:$0xff]
      %v694 = vld [vmem:[%s381 + $0x68] sm:$0xff]
      %v695 = vld [vmem:[%s381 + $0x70] sm:$0xff]
      %v696 = vld [vmem:[%s381 + $0x78] sm:$0xff]
      %v697 = vld [vmem:[%s381 + $0x80] sm:$0xff]
      %v698 = vld [vmem:[%s381 + $0x88] sm:$0xff]
      %v699 = vld [vmem:[%s381 + $0x90] sm:$0xff]
      %v700 = vld [vmem:[%s381 + $0x98] sm:$0xff]
      %v701 = vld [vmem:[%s381 + $0xa0] sm:$0xff]
      %v702 = vld [vmem:[%s381 + $0xa8] sm:$0xff]
      %v703 = vld [vmem:[%s381 + $0xb0] sm:$0xff]
      %v704 = vld [vmem:[%s381 + $0xb8] sm:$0xff]
      %v705 = vld [vmem:[%s381 + $0xc0] sm:$0xff]
      %v706 = vld [vmem:[%s381 + $0xc8] sm:$0xff]
      %v707 = vld [vmem:[%s381 + $0xd0] sm:$0xff]
      %v708 = vld [vmem:[%s381 + $0xd8] sm:$0xff]
      %s709 = scalar_lea.vmem %s381, 256
      %v710 = vld [vmem:[%s709] sm:$0xff]
      %v711 = vld [vmem:[%s709 + $0x8] sm:$0xff]
      %v712 = vld [vmem:[%s709 + $0x10] sm:$0xff]
      %v713 = vld [vmem:[%s709 + $0x18] sm:$0xff]
      %v714 = vld [vmem:[%s709 + $0x20] sm:$0xff]
      %v715 = vld [vmem:[%s709 + $0x28] sm:$0xff]
      %v716 = vld [vmem:[%s709 + $0x30] sm:$0xff]
      %v717 = vld [vmem:[%s709 + $0x38] sm:$0xff]
      %v718 = vld [vmem:[%s709 + $0x40] sm:$0xff]
      %v719 = vld [vmem:[%s709 + $0x48] sm:$0xff]
      %v720 = vld [vmem:[%s709 + $0x50] sm:$0xff]
      %v721 = vld [vmem:[%s709 + $0x58] sm:$0xff]
      %v722 = vld [vmem:[%s709 + $0x60] sm:$0xff]
      %v723 = vld [vmem:[%s709 + $0x68] sm:$0xff]
      %v724 = vld [vmem:[%s709 + $0x70] sm:$0xff]
      %v725 = vld [vmem:[%s709 + $0x78] sm:$0xff]
      %v726 = vld [vmem:[%s709 + $0x80] sm:$0xff]
      %v727 = vld [vmem:[%s709 + $0x88] sm:$0xff]
      %v728 = vld [vmem:[%s709 + $0x90] sm:$0xff]
      %v729 = vld [vmem:[%s709 + $0x98] sm:$0xff]
      %v730 = vld [vmem:[%s709 + $0xa0] sm:$0xff]
      %v731 = vld [vmem:[%s709 + $0xa8] sm:$0xff]
      %v732 = vld [vmem:[%s709 + $0xb0] sm:$0xff]
      %v733 = vld [vmem:[%s709 + $0xb8] sm:$0xff]
      %v734 = vld [vmem:[%s709 + $0xc0] sm:$0xff]
      %v735 = vld [vmem:[%s709 + $0xc8] sm:$0xff]
      %v736 = vld [vmem:[%s709 + $0xd0] sm:$0xff]
      %v737 = vld [vmem:[%s709 + $0xd8] sm:$0xff]
      %vm738 = vcmask 261120
      %v740 = vsel %vm738, %v710, 0
      %v743 = vsel %vm738, %v711, 0
      %v746 = vsel %vm738, %v712, 0
      %v749 = vsel %vm738, %v713, 0
      %v752 = vsel %vm738, %v714, 0
      %v755 = vsel %vm738, %v715, 0
      %v758 = vsel %vm738, %v716, 0
      %v761 = vsel %vm738, %v717, 0
      %v764 = vsel %vm738, %v718, 0
      %v767 = vsel %vm738, %v719, 0
      %v770 = vsel %vm738, %v720, 0
      %v773 = vsel %vm738, %v721, 0
      %v776 = vsel %vm738, %v722, 0
      %v779 = vsel %vm738, %v723, 0
      %v782 = vsel %vm738, %v724, 0
      %v785 = vsel %vm738, %v725, 0
      %v788 = vsel %vm738, %v726, 0
      %v791 = vsel %vm738, %v727, 0
      %v794 = vsel %vm738, %v728, 0
      %v797 = vsel %vm738, %v729, 0
      %v800 = vsel %vm738, %v730, 0
      %v803 = vsel %vm738, %v731, 0
      %v806 = vsel %vm738, %v732, 0
      %v809 = vsel %vm738, %v733, 0
      %v812 = vsel %vm738, %v734, 0
      %v815 = vsel %vm738, %v735, 0
      %v818 = vsel %vm738, %v736, 0
      %v821 = vsel %vm738, %v737, 0
      %823 = vmatprep.subr.mxu0 %v397
      %824 = vmatpush1.msra.mxu0 %v396
      %825 = vmatprep.subr.mxu0 %v399
      %826 = vmatpush1.msra.mxu0 %v398
      %827 = vmatprep.subr.mxu0 %v401
      %828 = vmatpush1.msra.mxu0 %v400
      %829 = vmatprep.subr.mxu0 %v403
      %830 = vmatpush1.msra.mxu0 %v402
      %831 = vmatprep.subr.mxu0 0.0
      %832 = vmatpush1.msra.mxu0 0.0
      %833 = vmatprep.subr.mxu0 0.0
      %834 = vmatpush1.msra.mxu0 0.0
      %835 = vmatprep.subr.mxu0 0.0
      %836 = vmatpush1.msra.mxu0 0.0
      %837 = vmatprep.subr.mxu0 0.0
      %838 = vmatpush1.msra.mxu0 0.0
      %839 = vmatprep.subr.mxu0 0.0
      %840 = vmatpush1.msra.mxu0 0.0
      %841 = vmatprep.subr.mxu0 0.0
      %842 = vmatpush1.msra.mxu0 0.0
      %843 = vmatprep.subr.mxu0 0.0
      %844 = vmatpush1.msra.mxu0 0.0
      %845 = vmatprep.subr.mxu0 0.0
      %846 = vmatpush1.msra.mxu0 0.0
      %847 = vmatprep.subr.mxu0 0.0
      %848 = vmatpush1.msra.mxu0 0.0
      %849 = vmatprep.subr.mxu0 0.0
      %850 = vmatpush1.msra.mxu0 0.0
      %851 = vmatprep.subr.mxu0 0.0
      %852 = vmatpush1.msra.mxu0 0.0
      %853 = vmatprep.subr.mxu0 0.0
      %854 = vmatpush1.msra.mxu0 0.0
      %855 = vmatprep.subr.mxu0 0.0
      %856 = vmatpush1.msra.mxu0 0.0
      %857 = vmatprep.subr.mxu0 0.0
      %858 = vmatpush1.msra.mxu0 0.0
      %859 = vmatprep.subr.mxu0 0.0
      %860 = vmatpush1.msra.mxu0 0.0
      %861 = vmatprep.subr.mxu0 0.0
      %862 = vmatpush1.msra.mxu0 0.0
      %863 = vmatprep.subr.mxu0 0.0
      %864 = vmatpush1.msra.mxu0 0.0
      %865 = vmatprep.subr.mxu0 0.0
      %866 = vmatpush1.msra.mxu0 0.0
      %867 = vmatprep.subr.mxu0 0.0
      %868 = vmatpush1.msra.mxu0 0.0
      %869 = vmatprep.subr.mxu0 0.0
      %870 = vmatpush1.msra.mxu0 0.0
      %871 = vmatprep.subr.mxu0 0.0
      %872 = vmatpush1.msra.mxu0 0.0
      %873 = vmatprep.subr.mxu0 0.0
      %874 = vmatpush1.msra.mxu0 0.0
      %875 = vmatprep.subr.mxu0 0.0
      %876 = vmatpush1.msra.mxu0 0.0
      %877 = vmatprep.subr.mxu0 0.0
      %878 = vmatpush1.msra.mxu0 0.0
      %879 = vmatprep.subr.mxu0 0.0
      %880 = vmatpush1.msra.mxu0 0.0
      %881 = vmatprep.subr.mxu0 0.0
      %882 = vmatpush1.msra.mxu0 0.0
      %883 = vmatprep.subr.mxu0 0.0
      %884 = vmatpush1.msra.mxu0 0.0
      %885 = vmatprep.subr.mxu0 0.0
      %886 = vmatpush1.msra.mxu0 0.0
      %887 = vmatprep.mubr.f32.mxu0 0.0
      %888 = vmatmul.mubr.f32.gmra.mrb[0].mxu0 %v740
      %v889 = vpop.f32.mrb[0].mxu0
      %v890 = vadd.f32 0.0, %v889
      %v891 = vpop.f32.mrb[0].mxu0
      %v892 = vadd.f32 0.0, %v891
      %893 = vmatprep.mubr.f32.mxu0 0.0
      %894 = vmatmul.mubr.f32.gmra.mrb[0].mxu0 %v743
      %v895 = vpop.f32.mrb[0].mxu0
      %v896 = vadd.f32 0.0, %v895
      %v897 = vpop.f32.mrb[0].mxu0
      %v898 = vadd.f32 0.0, %v897
      %899 = vmatprep.mubr.f32.mxu0 0.0
      %900 = vmatmul.mubr.f32.gmra.mrb[0].mxu0 %v746
      %v901 = vpop.f32.mrb[0].mxu0
      %v902 = vadd.f32 0.0, %v901
      %v903 = vpop.f32.mrb[0].mxu0
      %v904 = vadd.f32 0.0, %v903
      %905 = vmatprep.mubr.f32.mxu0 0.0
      %906 = vmatmul.mubr.f32.gmra.mrb[0].mxu0 %v749
      %v907 = vpop.f32.mrb[0].mxu0
      %v908 = vadd.f32 0.0, %v907
      %v909 = vpop.f32.mrb[0].mxu0
      %v910 = vadd.f32 0.0, %v909
      %911 = vmatprep.mubr.f32.mxu0 0.0
      %912 = vmatmul.mubr.f32.gmra.mrb[0].mxu0 %v752
      %v913 = vpop.f32.mrb[0].mxu0
      %v914 = vadd.f32 0.0, %v913
      %v915 = vpop.f32.mrb[0].mxu0
      %v916 = vadd.f32 0.0, %v915
      %917 = vmatprep.mubr.f32.mxu0 0.0
      %918 = vmatmul.mubr.f32.gmra.mrb[0].mxu0 %v755
      %v919 = vpop.f32.mrb[0].mxu0
      %v920 = vadd.f32 0.0, %v919
      %v921 = vpop.f32.mrb[0].mxu0
      %v922 = vadd.f32 0.0, %v921
      %923 = vmatprep.mubr.f32.mxu0 0.0
      %924 = vmatmul.mubr.f32.gmra.mrb[0].mxu0 %v758
      %v925 = vpop.f32.mrb[0].mxu0
      %v926 = vadd.f32 0.0, %v925
      %v927 = vpop.f32.mrb[0].mxu0
      %v928 = vadd.f32 0.0, %v927
      %929 = vmatprep.mubr.f32.mxu0 0.0
      %930 = vmatmul.mubr.f32.gmra.mrb[0].mxu0 %v761
      %v931 = vpop.f32.mrb[0].mxu0
      %v932 = vadd.f32 0.0, %v931
      %v933 = vpop.f32.mrb[0].mxu0
      %v934 = vadd.f32 0.0, %v933
      %935 = vmatprep.mubr.f32.mxu0 0.0
      %936 = vmatmul.mubr.f32.gmra.mrb[0].mxu0 %v764
      %v937 = vpop.f32.mrb[0].mxu0
      %v938 = vadd.f32 0.0, %v937
      %v939 = vpop.f32.mrb[0].mxu0
      %v940 = vadd.f32 0.0, %v939
      %941 = vmatprep.mubr.f32.mxu0 0.0
      %942 = vmatmul.mubr.f32.gmra.mrb[0].mxu0 %v767
      %v943 = vpop.f32.mrb[0].mxu0
      %v944 = vadd.f32 0.0, %v943
      %v945 = vpop.f32.mrb[0].mxu0
      %v946 = vadd.f32 0.0, %v945
      %947 = vmatprep.mubr.f32.mxu0 0.0
      %948 = vmatmul.mubr.f32.gmra.mrb[0].mxu0 %v770
      %v949 = vpop.f32.mrb[0].mxu0
      %v950 = vadd.f32 0.0, %v949
      %v951 = vpop.f32.mrb[0].mxu0
      %v952 = vadd.f32 0.0, %v951
      %953 = vmatprep.mubr.f32.mxu0 0.0
      %954 = vmatmul.mubr.f32.gmra.mrb[0].mxu0 %v773
      %v955 = vpop.f32.mrb[0].mxu0
      %v956 = vadd.f32 0.0, %v955
      %v957 = vpop.f32.mrb[0].mxu0
      %v958 = vadd.f32 0.0, %v957
      %959 = vmatprep.mubr.f32.mxu0 0.0
      %960 = vmatmul.mubr.f32.gmra.mrb[0].mxu0 %v776
      %v961 = vpop.f32.mrb[0].mxu0
      %v962 = vadd.f32 0.0, %v961
      %v963 = vpop.f32.mrb[0].mxu0
      %v964 = vadd.f32 0.0, %v963
      %965 = vmatprep.mubr.f32.mxu0 0.0
      %966 = vmatmul.mubr.f32.gmra.mrb[0].mxu0 %v779
      %v967 = vpop.f32.mrb[0].mxu0
      %v968 = vadd.f32 0.0, %v967
      %v969 = vpop.f32.mrb[0].mxu0
      %v970 = vadd.f32 0.0, %v969
      %971 = vmatprep.mubr.f32.mxu0 0.0
      %972 = vmatmul.mubr.f32.gmra.mrb[0].mxu0 %v782
      %v973 = vpop.f32.mrb[0].mxu0
      %v974 = vadd.f32 0.0, %v973
      %v975 = vpop.f32.mrb[0].mxu0
      %v976 = vadd.f32 0.0, %v975
      %977 = vmatprep.mubr.f32.mxu0 0.0
      %978 = vmatmul.mubr.f32.gmra.mrb[0].mxu0 %v785
      %v979 = vpop.f32.mrb[0].mxu0
      %v980 = vadd.f32 0.0, %v979
      %v981 = vpop.f32.mrb[0].mxu0
      %v982 = vadd.f32 0.0, %v981
      %983 = vmatprep.mubr.f32.mxu0 0.0
      %984 = vmatmul.mubr.f32.gmra.mrb[0].mxu0 %v788
      %v985 = vpop.f32.mrb[0].mxu0
      %v986 = vadd.f32 0.0, %v985
      %v987 = vpop.f32.mrb[0].mxu0
      %v988 = vadd.f32 0.0, %v987
      %989 = vmatprep.mubr.f32.mxu0 0.0
      %990 = vmatmul.mubr.f32.gmra.mrb[0].mxu0 %v791
      %v991 = vpop.f32.mrb[0].mxu0
      %v992 = vadd.f32 0.0, %v991
      %v993 = vpop.f32.mrb[0].mxu0
      %v994 = vadd.f32 0.0, %v993
      %995 = vmatprep.mubr.f32.mxu0 0.0
      %996 = vmatmul.mubr.f32.gmra.mrb[0].mxu0 %v794
      %v997 = vpop.f32.mrb[0].mxu0
      %v998 = vadd.f32 0.0, %v997
      %v999 = vpop.f32.mrb[0].mxu0
      %v1000 = vadd.f32 0.0, %v999
      %1001 = vmatprep.mubr.f32.mxu0 0.0
      %1002 = vmatmul.mubr.f32.gmra.mrb[0].mxu0 %v797
      %v1003 = vpop.f32.mrb[0].mxu0
      %v1004 = vadd.f32 0.0, %v1003
      %v1005 = vpop.f32.mrb[0].mxu0
      %v1006 = vadd.f32 0.0, %v1005
      %1007 = vmatprep.mubr.f32.mxu0 0.0
      %1008 = vmatmul.mubr.f32.gmra.mrb[0].mxu0 %v800
      %v1009 = vpop.f32.mrb[0].mxu0
      %v1010 = vadd.f32 0.0, %v1009
      %v1011 = vpop.f32.mrb[0].mxu0
      %v1012 = vadd.f32 0.0, %v1011
      %1013 = vmatprep.mubr.f32.mxu0 0.0
      %1014 = vmatmul.mubr.f32.gmra.mrb[0].mxu0 %v803
      %v1015 = vpop.f32.mrb[0].mxu0
      %v1016 = vadd.f32 0.0, %v1015
      %v1017 = vpop.f32.mrb[0].mxu0
      %v1018 = vadd.f32 0.0, %v1017
      %1019 = vmatprep.mubr.f32.mxu0 0.0
      %1020 = vmatmul.mubr.f32.gmra.mrb[0].mxu0 %v806
      %v1021 = vpop.f32.mrb[0].mxu0
      %v1022 = vadd.f32 0.0, %v1021
      %v1023 = vpop.f32.mrb[0].mxu0
      %v1024 = vadd.f32 0.0, %v1023
      %1025 = vmatprep.mubr.f32.mxu0 0.0
      %1026 = vmatmul.mubr.f32.gmra.mrb[0].mxu0 %v809
      %v1027 = vpop.f32.mrb[0].mxu0
      %v1028 = vadd.f32 0.0, %v1027
      %v1029 = vpop.f32.mrb[0].mxu0
      %v1030 = vadd.f32 0.0, %v1029
      %1031 = vmatprep.mubr.f32.mxu0 0.0
      %1032 = vmatmul.mubr.f32.gmra.mrb[0].mxu0 %v812
      %v1033 = vpop.f32.mrb[0].mxu0
      %v1034 = vadd.f32 0.0, %v1033
      %v1035 = vpop.f32.mrb[0].mxu0
      %v1036 = vadd.f32 0.0, %v1035
      %1037 = vmatprep.mubr.f32.mxu0 0.0
      %1038 = vmatmul.mubr.f32.gmra.mrb[0].mxu0 %v815
      %v1039 = vpop.f32.mrb[0].mxu0
      %v1040 = vadd.f32 0.0, %v1039
      %v1041 = vpop.f32.mrb[0].mxu0
      %v1042 = vadd.f32 0.0, %v1041
      %1043 = vmatprep.mubr.f32.mxu0 0.0
      %1044 = vmatmul.mubr.f32.gmra.mrb[0].mxu0 %v818
      %v1045 = vpop.f32.mrb[0].mxu0
      %v1046 = vadd.f32 0.0, %v1045
      %v1047 = vpop.f32.mrb[0].mxu0
      %v1048 = vadd.f32 0.0, %v1047
      %1049 = vmatprep.mubr.f32.mxu0 0.0
      %1050 = vmatmul.mubr.f32.gmra.mrb[0].mxu0 %v821
      %v1051 = vpop.f32.mrb[0].mxu0
      %v1052 = vadd.f32 0.0, %v1051
      %v1053 = vpop.f32.mrb[0].mxu0
      %v1054 = vadd.f32 0.0, %v1053
      %1055 = vdwg.mxu0
      %v1057 = vsel %vm738, %v681, 0
      %v1060 = vsel %vm738, %v682, 0
      %v1063 = vsel %vm738, %v683, 0
      %v1066 = vsel %vm738, %v684, 0
      %v1069 = vsel %vm738, %v685, 0
      %v1072 = vsel %vm738, %v686, 0
      %v1075 = vsel %vm738, %v687, 0
      %v1078 = vsel %vm738, %v688, 0
      %v1081 = vsel %vm738, %v689, 0
      %v1084 = vsel %vm738, %v690, 0
      %v1087 = vsel %vm738, %v691, 0
      %v1090 = vsel %vm738, %v692, 0
      %v1093 = vsel %vm738, %v693, 0
      %v1096 = vsel %vm738, %v694, 0
      %v1099 = vsel %vm738, %v695, 0
      %v1102 = vsel %vm738, %v696, 0
      %v1105 = vsel %vm738, %v697, 0
      %v1108 = vsel %vm738, %v698, 0
      %v1111 = vsel %vm738, %v699, 0
      %v1114 = vsel %vm738, %v700, 0
      %v1117 = vsel %vm738, %v701, 0
      %v1120 = vsel %vm738, %v702, 0
      %v1123 = vsel %vm738, %v703, 0
      %v1126 = vsel %vm738, %v704, 0
      %v1129 = vsel %vm738, %v705, 0
      %v1132 = vsel %vm738, %v706, 0
      %v1135 = vsel %vm738, %v707, 0
      %v1138 = vsel %vm738, %v708, 0
      %1140 = vmatprep.subr.mxu0 %v388
      %1141 = vmatpush1.msra.mxu0 %v387
      %1142 = vmatprep.subr.mxu0 %v390
      %1143 = vmatpush1.msra.mxu0 %v389
      %1144 = vmatprep.subr.mxu0 %v392
      %1145 = vmatpush1.msra.mxu0 %v391
      %1146 = vmatprep.subr.mxu0 %v394
      %1147 = vmatpush1.msra.mxu0 %v393
      %1148 = vmatprep.subr.mxu0 0.0
      %1149 = vmatpush1.msra.mxu0 0.0
      %1150 = vmatprep.subr.mxu0 0.0
      %1151 = vmatpush1.msra.mxu0 0.0
      %1152 = vmatprep.subr.mxu0 0.0
      %1153 = vmatpush1.msra.mxu0 0.0
      %1154 = vmatprep.subr.mxu0 0.0
      %1155 = vmatpush1.msra.mxu0 0.0
      %1156 = vmatprep.subr.mxu0 0.0
      %1157 = vmatpush1.msra.mxu0 0.0
      %1158 = vmatprep.subr.mxu0 0.0
      %1159 = vmatpush1.msra.mxu0 0.0
      %1160 = vmatprep.subr.mxu0 0.0
      %1161 = vmatpush1.msra.mxu0 0.0
      %1162 = vmatprep.subr.mxu0 0.0
      %1163 = vmatpush1.msra.mxu0 0.0
      %1164 = vmatprep.subr.mxu0 0.0
      %1165 = vmatpush1.msra.mxu0 0.0
      %1166 = vmatprep.subr.mxu0 0.0
      %1167 = vmatpush1.msra.mxu0 0.0
      %1168 = vmatprep.subr.mxu0 0.0
      %1169 = vmatpush1.msra.mxu0 0.0
      %1170 = vmatprep.subr.mxu0 0.0
      %1171 = vmatpush1.msra.mxu0 0.0
      %1172 = vmatprep.subr.mxu0 0.0
      %1173 = vmatpush1.msra.mxu0 0.0
      %1174 = vmatprep.subr.mxu0 0.0
      %1175 = vmatpush1.msra.mxu0 0.0
      %1176 = vmatprep.subr.mxu0 0.0
      %1177 = vmatpush1.msra.mxu0 0.0
      %1178 = vmatprep.subr.mxu0 0.0
      %1179 = vmatpush1.msra.mxu0 0.0
      %1180 = vmatprep.subr.mxu0 0.0
      %1181 = vmatpush1.msra.mxu0 0.0
      %1182 = vmatprep.subr.mxu0 0.0
      %1183 = vmatpush1.msra.mxu0 0.0
      %1184 = vmatprep.subr.mxu0 0.0
      %1185 = vmatpush1.msra.mxu0 0.0
      %1186 = vmatprep.subr.mxu0 0.0
      %1187 = vmatpush1.msra.mxu0 0.0
      %1188 = vmatprep.subr.mxu0 0.0
      %1189 = vmatpush1.msra.mxu0 0.0
      %1190 = vmatprep.subr.mxu0 0.0
      %1191 = vmatpush1.msra.mxu0 0.0
      %1192 = vmatprep.subr.mxu0 0.0
      %1193 = vmatpush1.msra.mxu0 0.0
      %1194 = vmatprep.subr.mxu0 0.0
      %1195 = vmatpush1.msra.mxu0 0.0
      %1196 = vmatprep.subr.mxu0 0.0
      %1197 = vmatpush1.msra.mxu0 0.0
      %1198 = vmatprep.subr.mxu0 0.0
      %1199 = vmatpush1.msra.mxu0 0.0
      %1200 = vmatprep.subr.mxu0 0.0
      %1201 = vmatpush1.msra.mxu0 0.0
      %1202 = vmatprep.subr.mxu0 0.0
      %1203 = vmatpush1.msra.mxu0 0.0
      %1204 = vmatprep.mubr.f32.mxu0 0.0
      %1205 = vmatmul.mubr.f32.gmra.mrb[0].mxu0 %v1057
      %v1206 = vpop.f32.mrb[0].mxu0
      %v1207 = vadd.f32 %v890, %v1206
      %v1208 = vpop.f32.mrb[0].mxu0
      %v1209 = vadd.f32 %v892, %v1208
      %1210 = vmatprep.mubr.f32.mxu0 0.0
      %1211 = vmatmul.mubr.f32.gmra.mrb[0].mxu0 %v1060
      %v1212 = vpop.f32.mrb[0].mxu0
      %v1213 = vadd.f32 %v896, %v1212
      %v1214 = vpop.f32.mrb[0].mxu0
      %v1215 = vadd.f32 %v898, %v1214
      %1216 = vmatprep.mubr.f32.mxu0 0.0
      %1217 = vmatmul.mubr.f32.gmra.mrb[0].mxu0 %v1063
      %v1218 = vpop.f32.mrb[0].mxu0
      %v1219 = vadd.f32 %v902, %v1218
      %v1220 = vpop.f32.mrb[0].mxu0
      %v1221 = vadd.f32 %v904, %v1220
      %1222 = vmatprep.mubr.f32.mxu0 0.0
      %1223 = vmatmul.mubr.f32.gmra.mrb[0].mxu0 %v1066
      %v1224 = vpop.f32.mrb[0].mxu0
      %v1225 = vadd.f32 %v908, %v1224
      %v1226 = vpop.f32.mrb[0].mxu0
      %v1227 = vadd.f32 %v910, %v1226
      %1228 = vmatprep.mubr.f32.mxu0 0.0
      %1229 = vmatmul.mubr.f32.gmra.mrb[0].mxu0 %v1069
      %v1230 = vpop.f32.mrb[0].mxu0
      %v1231 = vadd.f32 %v914, %v1230
      %v1232 = vpop.f32.mrb[0].mxu0
      %v1233 = vadd.f32 %v916, %v1232
      %1234 = vmatprep.mubr.f32.mxu0 0.0
      %1235 = vmatmul.mubr.f32.gmra.mrb[0].mxu0 %v1072
      %v1236 = vpop.f32.mrb[0].mxu0
      %v1237 = vadd.f32 %v920, %v1236
      %v1238 = vpop.f32.mrb[0].mxu0
      %v1239 = vadd.f32 %v922, %v1238
      %1240 = vmatprep.mubr.f32.mxu0 0.0
      %1241 = vmatmul.mubr.f32.gmra.mrb[0].mxu0 %v1075
      %v1242 = vpop.f32.mrb[0].mxu0
      %v1243 = vadd.f32 %v926, %v1242
      %v1244 = vpop.f32.mrb[0].mxu0
      %v1245 = vadd.f32 %v928, %v1244
      %1246 = vmatprep.mubr.f32.mxu0 0.0
      %1247 = vmatmul.mubr.f32.gmra.mrb[0].mxu0 %v1078
      %v1248 = vpop.f32.mrb[0].mxu0
      %v1249 = vadd.f32 %v932, %v1248
      %v1250 = vpop.f32.mrb[0].mxu0
      %v1251 = vadd.f32 %v934, %v1250
      %1252 = vmatprep.mubr.f32.mxu0 0.0
      %1253 = vmatmul.mubr.f32.gmra.mrb[0].mxu0 %v1081
      %v1254 = vpop.f32.mrb[0].mxu0
      %v1255 = vadd.f32 %v938, %v1254
      %v1256 = vpop.f32.mrb[0].mxu0
      %v1257 = vadd.f32 %v940, %v1256
      %1258 = vmatprep.mubr.f32.mxu0 0.0
      %1259 = vmatmul.mubr.f32.gmra.mrb[0].mxu0 %v1084
      %v1260 = vpop.f32.mrb[0].mxu0
      %v1261 = vadd.f32 %v944, %v1260
      %v1262 = vpop.f32.mrb[0].mxu0
      %v1263 = vadd.f32 %v946, %v1262
      %1264 = vmatprep.mubr.f32.mxu0 0.0
      %1265 = vmatmul.mubr.f32.gmra.mrb[0].mxu0 %v1087
      %v1266 = vpop.f32.mrb[0].mxu0
      %v1267 = vadd.f32 %v950, %v1266
      %v1268 = vpop.f32.mrb[0].mxu0
      %v1269 = vadd.f32 %v952, %v1268
      %1270 = vmatprep.mubr.f32.mxu0 0.0
      %1271 = vmatmul.mubr.f32.gmra.mrb[0].mxu0 %v1090
      %v1272 = vpop.f32.mrb[0].mxu0
      %v1273 = vadd.f32 %v956, %v1272
      %v1274 = vpop.f32.mrb[0].mxu0
      %v1275 = vadd.f32 %v958, %v1274
      %1276 = vmatprep.mubr.f32.mxu0 0.0
      %1277 = vmatmul.mubr.f32.gmra.mrb[0].mxu0 %v1093
      %v1278 = vpop.f32.mrb[0].mxu0
      %v1279 = vadd.f32 %v962, %v1278
      %v1280 = vpop.f32.mrb[0].mxu0
      %v1281 = vadd.f32 %v964, %v1280
      %1282 = vmatprep.mubr.f32.mxu0 0.0
      %1283 = vmatmul.mubr.f32.gmra.mrb[0].mxu0 %v1096
      %v1284 = vpop.f32.mrb[0].mxu0
      %v1285 = vadd.f32 %v968, %v1284
      %v1286 = vpop.f32.mrb[0].mxu0
      %v1287 = vadd.f32 %v970, %v1286
      %1288 = vmatprep.mubr.f32.mxu0 0.0
      %1289 = vmatmul.mubr.f32.gmra.mrb[0].mxu0 %v1099
      %v1290 = vpop.f32.mrb[0].mxu0
      %v1291 = vadd.f32 %v974, %v1290
      %v1292 = vpop.f32.mrb[0].mxu0
      %v1293 = vadd.f32 %v976, %v1292
      %1294 = vmatprep.mubr.f32.mxu0 0.0
      %1295 = vmatmul.mubr.f32.gmra.mrb[0].mxu0 %v1102
      %v1296 = vpop.f32.mrb[0].mxu0
      %v1297 = vadd.f32 %v980, %v1296
      %v1298 = vpop.f32.mrb[0].mxu0
      %v1299 = vadd.f32 %v982, %v1298
      %1300 = vmatprep.mubr.f32.mxu0 0.0
      %1301 = vmatmul.mubr.f32.gmra.mrb[0].mxu0 %v1105
      %v1302 = vpop.f32.mrb[0].mxu0
      %v1303 = vadd.f32 %v986, %v1302
      %v1304 = vpop.f32.mrb[0].mxu0
      %v1305 = vadd.f32 %v988, %v1304
      %1306 = vmatprep.mubr.f32.mxu0 0.0
      %1307 = vmatmul.mubr.f32.gmra.mrb[0].mxu0 %v1108
      %v1308 = vpop.f32.mrb[0].mxu0
      %v1309 = vadd.f32 %v992, %v1308
      %v1310 = vpop.f32.mrb[0].mxu0
      %v1311 = vadd.f32 %v994, %v1310
      %1312 = vmatprep.mubr.f32.mxu0 0.0
      %1313 = vmatmul.mubr.f32.gmra.mrb[0].mxu0 %v1111
      %v1314 = vpop.f32.mrb[0].mxu0
      %v1315 = vadd.f32 %v998, %v1314
      %v1316 = vpop.f32.mrb[0].mxu0
      %v1317 = vadd.f32 %v1000, %v1316
      %1318 = vmatprep.mubr.f32.mxu0 0.0
      %1319 = vmatmul.mubr.f32.gmra.mrb[0].mxu0 %v1114
      %v1320 = vpop.f32.mrb[0].mxu0
      %v1321 = vadd.f32 %v1004, %v1320
      %v1322 = vpop.f32.mrb[0].mxu0
      %v1323 = vadd.f32 %v1006, %v1322
      %1324 = vmatprep.mubr.f32.mxu0 0.0
      %1325 = vmatmul.mubr.f32.gmra.mrb[0].mxu0 %v1117
      %v1326 = vpop.f32.mrb[0].mxu0
      %v1327 = vadd.f32 %v1010, %v1326
      %v1328 = vpop.f32.mrb[0].mxu0
      %v1329 = vadd.f32 %v1012, %v1328
      %1330 = vmatprep.mubr.f32.mxu0 0.0
      %1331 = vmatmul.mubr.f32.gmra.mrb[0].mxu0 %v1120
      %v1332 = vpop.f32.mrb[0].mxu0
      %v1333 = vadd.f32 %v1016, %v1332
      %v1334 = vpop.f32.mrb[0].mxu0
      %v1335 = vadd.f32 %v1018, %v1334
      %1336 = vmatprep.mubr.f32.mxu0 0.0
      %1337 = vmatmul.mubr.f32.gmra.mrb[0].mxu0 %v1123
      %v1338 = vpop.f32.mrb[0].mxu0
      %v1339 = vadd.f32 %v1022, %v1338
      %v1340 = vpop.f32.mrb[0].mxu0
      %v1341 = vadd.f32 %v1024, %v1340
      %1342 = vmatprep.mubr.f32.mxu0 0.0
      %1343 = vmatmul.mubr.f32.gmra.mrb[0].mxu0 %v1126
      %v1344 = vpop.f32.mrb[0].mxu0
      %v1345 = vadd.f32 %v1028, %v1344
      %v1346 = vpop.f32.mrb[0].mxu0
      %v1347 = vadd.f32 %v1030, %v1346
      %1348 = vmatprep.mubr.f32.mxu0 0.0
      %1349 = vmatmul.mubr.f32.gmra.mrb[0].mxu0 %v1129
      %v1350 = vpop.f32.mrb[0].mxu0
      %v1351 = vadd.f32 %v1034, %v1350
      %v1352 = vpop.f32.mrb[0].mxu0
      %v1353 = vadd.f32 %v1036, %v1352
      %1354 = vmatprep.mubr.f32.mxu0 0.0
      %1355 = vmatmul.mubr.f32.gmra.mrb[0].mxu0 %v1132
      %v1356 = vpop.f32.mrb[0].mxu0
      %v1357 = vadd.f32 %v1040, %v1356
      %v1358 = vpop.f32.mrb[0].mxu0
      %v1359 = vadd.f32 %v1042, %v1358
      %1360 = vmatprep.mubr.f32.mxu0 0.0
      %1361 = vmatmul.mubr.f32.gmra.mrb[0].mxu0 %v1135
      %v1362 = vpop.f32.mrb[0].mxu0
      %v1363 = vadd.f32 %v1046, %v1362
      %v1364 = vpop.f32.mrb[0].mxu0
      %v1365 = vadd.f32 %v1048, %v1364
      %1366 = vmatprep.mubr.f32.mxu0 0.0
      %1367 = vmatmul.mubr.f32.gmra.mrb[0].mxu0 %v1138
      %v1368 = vpop.f32.mrb[0].mxu0
      %v1369 = vadd.f32 %v1052, %v1368
      %v1370 = vpop.f32.mrb[0].mxu0
      %v1371 = vadd.f32 %v1054, %v1370
      %1372 = vdwg.mxu0
      %s1373 = scalar_lea.vmem %s381, 512
      %v1374 = vld [vmem:[%s1373] sm:$0xff]
      %v1375 = vld [vmem:[%s1373 + $0x8] sm:$0xff]
      %v1376 = vld [vmem:[%s1373 + $0x10] sm:$0xff]
      %v1377 = vld [vmem:[%s1373 + $0x18] sm:$0xff]
      %v1378 = vld [vmem:[%s1373 + $0x20] sm:$0xff]
      %v1379 = vld [vmem:[%s1373 + $0x28] sm:$0xff]
      %v1380 = vld [vmem:[%s1373 + $0x30] sm:$0xff]
      %v1381 = vld [vmem:[%s1373 + $0x38] sm:$0xff]
      %v1382 = vld [vmem:[%s1373 + $0x40] sm:$0xff]
      %v1383 = vld [vmem:[%s1373 + $0x48] sm:$0xff]
      %v1384 = vld [vmem:[%s1373 + $0x50] sm:$0xff]
      %v1385 = vld [vmem:[%s1373 + $0x58] sm:$0xff]
      %v1386 = vld [vmem:[%s1373 + $0x60] sm:$0xff]
      %v1387 = vld [vmem:[%s1373 + $0x68] sm:$0xff]
      %v1388 = vld [vmem:[%s1373 + $0x70] sm:$0xff]
      %v1389 = vld [vmem:[%s1373 + $0x78] sm:$0xff]
      %v1390 = vld [vmem:[%s1373 + $0x80] sm:$0xff]
      %v1391 = vld [vmem:[%s1373 + $0x88] sm:$0xff]
      %v1392 = vld [vmem:[%s1373 + $0x90] sm:$0xff]
      %v1393 = vld [vmem:[%s1373 + $0x98] sm:$0xff]
      %v1394 = vld [vmem:[%s1373 + $0xa0] sm:$0xff]
      %v1395 = vld [vmem:[%s1373 + $0xa8] sm:$0xff]
      %v1396 = vld [vmem:[%s1373 + $0xb0] sm:$0xff]
      %v1397 = vld [vmem:[%s1373 + $0xb8] sm:$0xff]
      %v1398 = vld [vmem:[%s1373 + $0xc0] sm:$0xff]
      %v1399 = vld [vmem:[%s1373 + $0xc8] sm:$0xff]
      %v1400 = vld [vmem:[%s1373 + $0xd0] sm:$0xff]
      %v1401 = vld [vmem:[%s1373 + $0xd8] sm:$0xff]
      %v1403 = vsel %vm738, %v1374, 0
      %v1406 = vsel %vm738, %v1375, 0
      %v1409 = vsel %vm738, %v1376, 0
      %v1412 = vsel %vm738, %v1377, 0
      %v1415 = vsel %vm738, %v1378, 0
      %v1418 = vsel %vm738, %v1379, 0
      %v1421 = vsel %vm738, %v1380, 0
      %v1424 = vsel %vm738, %v1381, 0
      %v1427 = vsel %vm738, %v1382, 0
      %v1430 = vsel %vm738, %v1383, 0
      %v1433 = vsel %vm738, %v1384, 0
      %v1436 = vsel %vm738, %v1385, 0
      %v1439 = vsel %vm738, %v1386, 0
      %v1442 = vsel %vm738, %v1387, 0
      %v1445 = vsel %vm738, %v1388, 0
      %v1448 = vsel %vm738, %v1389, 0
      %v1451 = vsel %vm738, %v1390, 0
      %v1454 = vsel %vm738, %v1391, 0
      %v1457 = vsel %vm738, %v1392, 0
      %v1460 = vsel %vm738, %v1393, 0
      %v1463 = vsel %vm738, %v1394, 0
      %v1466 = vsel %vm738, %v1395, 0
      %v1469 = vsel %vm738, %v1396, 0
      %v1472 = vsel %vm738, %v1397, 0
      %v1475 = vsel %vm738, %v1398, 0
      %v1478 = vsel %vm738, %v1399, 0
      %v1481 = vsel %vm738, %v1400, 0
      %v1484 = vsel %vm738, %v1401, 0
      %1486 = vmatprep.subr.mxu0 %v406
      %1487 = vmatpush1.msra.mxu0 %v405
      %1488 = vmatprep.subr.mxu0 %v408
      %1489 = vmatpush1.msra.mxu0 %v407
      %1490 = vmatprep.subr.mxu0 %v410
      %1491 = vmatpush1.msra.mxu0 %v409
      %1492 = vmatprep.subr.mxu0 %v412
      %1493 = vmatpush1.msra.mxu0 %v411
      %1494 = vmatprep.subr.mxu0 0.0
      %1495 = vmatpush1.msra.mxu0 0.0
      %1496 = vmatprep.subr.mxu0 0.0
      %1497 = vmatpush1.msra.mxu0 0.0
      %1498 = vmatprep.subr.mxu0 0.0
      %1499 = vmatpush1.msra.mxu0 0.0
      %1500 = vmatprep.subr.mxu0 0.0
      %1501 = vmatpush1.msra.mxu0 0.0
      %1502 = vmatprep.subr.mxu0 0.0
      %1503 = vmatpush1.msra.mxu0 0.0
      %1504 = vmatprep.subr.mxu0 0.0
      %1505 = vmatpush1.msra.mxu0 0.0
      %1506 = vmatprep.subr.mxu0 0.0
      %1507 = vmatpush1.msra.mxu0 0.0
      %1508 = vmatprep.subr.mxu0 0.0
      %1509 = vmatpush1.msra.mxu0 0.0
      %1510 = vmatprep.subr.mxu0 0.0
      %1511 = vmatpush1.msra.mxu0 0.0
      %1512 = vmatprep.subr.mxu0 0.0
      %1513 = vmatpush1.msra.mxu0 0.0
      %1514 = vmatprep.subr.mxu0 0.0
      %1515 = vmatpush1.msra.mxu0 0.0
      %1516 = vmatprep.subr.mxu0 0.0
      %1517 = vmatpush1.msra.mxu0 0.0
      %1518 = vmatprep.subr.mxu0 0.0
      %1519 = vmatpush1.msra.mxu0 0.0
      %1520 = vmatprep.subr.mxu0 0.0
      %1521 = vmatpush1.msra.mxu0 0.0
      %1522 = vmatprep.subr.mxu0 0.0
      %1523 = vmatpush1.msra.mxu0 0.0
      %1524 = vmatprep.subr.mxu0 0.0
      %1525 = vmatpush1.msra.mxu0 0.0
      %1526 = vmatprep.subr.mxu0 0.0
      %1527 = vmatpush1.msra.mxu0 0.0
      %1528 = vmatprep.subr.mxu0 0.0
      %1529 = vmatpush1.msra.mxu0 0.0
      %1530 = vmatprep.subr.mxu0 0.0
      %1531 = vmatpush1.msra.mxu0 0.0
      %1532 = vmatprep.subr.mxu0 0.0
      %1533 = vmatpush1.msra.mxu0 0.0
      %1534 = vmatprep.subr.mxu0 0.0
      %1535 = vmatpush1.msra.mxu0 0.0
      %1536 = vmatprep.subr.mxu0 0.0
      %1537 = vmatpush1.msra.mxu0 0.0
      %1538 = vmatprep.subr.mxu0 0.0
      %1539 = vmatpush1.msra.mxu0 0.0
      %1540 = vmatprep.subr.mxu0 0.0
      %1541 = vmatpush1.msra.mxu0 0.0
      %1542 = vmatprep.subr.mxu0 0.0
      %1543 = vmatpush1.msra.mxu0 0.0
      %1544 = vmatprep.subr.mxu0 0.0
      %1545 = vmatpush1.msra.mxu0 0.0
      %1546 = vmatprep.subr.mxu0 0.0
      %1547 = vmatpush1.msra.mxu0 0.0
      %1548 = vmatprep.subr.mxu0 0.0
      %1549 = vmatpush1.msra.mxu0 0.0
      %1550 = vmatprep.mubr.f32.mxu0 0.0
      %1551 = vmatmul.mubr.f32.gmra.mrb[0].mxu0 %v1403
      %v1552 = vpop.f32.mrb[0].mxu0
      %v1553 = vadd.f32 0.0, %v1552
      %v1554 = vpop.f32.mrb[0].mxu0
      %v1555 = vadd.f32 0.0, %v1554
      %1556 = vmatprep.mubr.f32.mxu0 0.0
      %1557 = vmatmul.mubr.f32.gmra.mrb[0].mxu0 %v1406
      %v1558 = vpop.f32.mrb[0].mxu0
      %v1559 = vadd.f32 0.0, %v1558
      %v1560 = vpop.f32.mrb[0].mxu0
      %v1561 = vadd.f32 0.0, %v1560
      %1562 = vmatprep.mubr.f32.mxu0 0.0
      %1563 = vmatmul.mubr.f32.gmra.mrb[0].mxu0 %v1409
      %v1564 = vpop.f32.mrb[0].mxu0
      %v1565 = vadd.f32 0.0, %v1564
      %v1566 = vpop.f32.mrb[0].mxu0
      %v1567 = vadd.f32 0.0, %v1566
      %1568 = vmatprep.mubr.f32.mxu0 0.0
      %1569 = vmatmul.mubr.f32.gmra.mrb[0].mxu0 %v1412
      %v1570 = vpop.f32.mrb[0].mxu0
      %v1571 = vadd.f32 0.0, %v1570
      %v1572 = vpop.f32.mrb[0].mxu0
      %v1573 = vadd.f32 0.0, %v1572
      %1574 = vmatprep.mubr.f32.mxu0 0.0
      %1575 = vmatmul.mubr.f32.gmra.mrb[0].mxu0 %v1415
      %v1576 = vpop.f32.mrb[0].mxu0
      %v1577 = vadd.f32 0.0, %v1576
      %v1578 = vpop.f32.mrb[0].mxu0
      %v1579 = vadd.f32 0.0, %v1578
      %1580 = vmatprep.mubr.f32.mxu0 0.0
      %1581 = vmatmul.mubr.f32.gmra.mrb[0].mxu0 %v1418
      %v1582 = vpop.f32.mrb[0].mxu0
      %v1583 = vadd.f32 0.0, %v1582
      %v1584 = vpop.f32.mrb[0].mxu0
      %v1585 = vadd.f32 0.0, %v1584
      %1586 = vmatprep.mubr.f32.mxu0 0.0
      %1587 = vmatmul.mubr.f32.gmra.mrb[0].mxu0 %v1421
      %v1588 = vpop.f32.mrb[0].mxu0
      %v1589 = vadd.f32 0.0, %v1588
      %v1590 = vpop.f32.mrb[0].mxu0
      %v1591 = vadd.f32 0.0, %v1590
      %1592 = vmatprep.mubr.f32.mxu0 0.0
      %1593 = vmatmul.mubr.f32.gmra.mrb[0].mxu0 %v1424
      %v1594 = vpop.f32.mrb[0].mxu0
      %v1595 = vadd.f32 0.0, %v1594
      %v1596 = vpop.f32.mrb[0].mxu0
      %v1597 = vadd.f32 0.0, %v1596
      %1598 = vmatprep.mubr.f32.mxu0 0.0
      %1599 = vmatmul.mubr.f32.gmra.mrb[0].mxu0 %v1427
      %v1600 = vpop.f32.mrb[0].mxu0
      %v1601 = vadd.f32 0.0, %v1600
      %v1602 = vpop.f32.mrb[0].mxu0
      %v1603 = vadd.f32 0.0, %v1602
      %1604 = vmatprep.mubr.f32.mxu0 0.0
      %1605 = vmatmul.mubr.f32.gmra.mrb[0].mxu0 %v1430
      %v1606 = vpop.f32.mrb[0].mxu0
      %v1607 = vadd.f32 0.0, %v1606
      %v1608 = vpop.f32.mrb[0].mxu0
      %v1609 = vadd.f32 0.0, %v1608
      %1610 = vmatprep.mubr.f32.mxu0 0.0
      %1611 = vmatmul.mubr.f32.gmra.mrb[0].mxu0 %v1433
      %v1612 = vpop.f32.mrb[0].mxu0
      %v1613 = vadd.f32 0.0, %v1612
      %v1614 = vpop.f32.mrb[0].mxu0
      %v1615 = vadd.f32 0.0, %v1614
      %1616 = vmatprep.mubr.f32.mxu0 0.0
      %1617 = vmatmul.mubr.f32.gmra.mrb[0].mxu0 %v1436
      %v1618 = vpop.f32.mrb[0].mxu0
      %v1619 = vadd.f32 0.0, %v1618
      %v1620 = vpop.f32.mrb[0].mxu0
      %v1621 = vadd.f32 0.0, %v1620
      %1622 = vmatprep.mubr.f32.mxu0 0.0
      %1623 = vmatmul.mubr.f32.gmra.mrb[0].mxu0 %v1439
      %v1624 = vpop.f32.mrb[0].mxu0
      %v1625 = vadd.f32 0.0, %v1624
      %v1626 = vpop.f32.mrb[0].mxu0
      %v1627 = vadd.f32 0.0, %v1626
      %1628 = vmatprep.mubr.f32.mxu0 0.0
      %1629 = vmatmul.mubr.f32.gmra.mrb[0].mxu0 %v1442
      %v1630 = vpop.f32.mrb[0].mxu0
      %v1631 = vadd.f32 0.0, %v1630
      %v1632 = vpop.f32.mrb[0].mxu0
      %v1633 = vadd.f32 0.0, %v1632
      %1634 = vmatprep.mubr.f32.mxu0 0.0
      %1635 = vmatmul.mubr.f32.gmra.mrb[0].mxu0 %v1445
      %v1636 = vpop.f32.mrb[0].mxu0
      %v1637 = vadd.f32 0.0, %v1636
      %v1638 = vpop.f32.mrb[0].mxu0
      %v1639 = vadd.f32 0.0, %v1638
      %1640 = vmatprep.mubr.f32.mxu0 0.0
      %1641 = vmatmul.mubr.f32.gmra.mrb[0].mxu0 %v1448
      %v1642 = vpop.f32.mrb[0].mxu0
      %v1643 = vadd.f32 0.0, %v1642
      %v1644 = vpop.f32.mrb[0].mxu0
      %v1645 = vadd.f32 0.0, %v1644
      %1646 = vmatprep.mubr.f32.mxu0 0.0
      %1647 = vmatmul.mubr.f32.gmra.mrb[0].mxu0 %v1451
      %v1648 = vpop.f32.mrb[0].mxu0
      %v1649 = vadd.f32 0.0, %v1648
      %v1650 = vpop.f32.mrb[0].mxu0
      %v1651 = vadd.f32 0.0, %v1650
      %1652 = vmatprep.mubr.f32.mxu0 0.0
      %1653 = vmatmul.mubr.f32.gmra.mrb[0].mxu0 %v1454
      %v1654 = vpop.f32.mrb[0].mxu0
      %v1655 = vadd.f32 0.0, %v1654
      %v1656 = vpop.f32.mrb[0].mxu0
      %v1657 = vadd.f32 0.0, %v1656
      %1658 = vmatprep.mubr.f32.mxu0 0.0
      %1659 = vmatmul.mubr.f32.gmra.mrb[0].mxu0 %v1457
      %v1660 = vpop.f32.mrb[0].mxu0
      %v1661 = vadd.f32 0.0, %v1660
      %v1662 = vpop.f32.mrb[0].mxu0
      %v1663 = vadd.f32 0.0, %v1662
      %1664 = vmatprep.mubr.f32.mxu0 0.0
      %1665 = vmatmul.mubr.f32.gmra.mrb[0].mxu0 %v1460
      %v1666 = vpop.f32.mrb[0].mxu0
      %v1667 = vadd.f32 0.0, %v1666
      %v1668 = vpop.f32.mrb[0].mxu0
      %v1669 = vadd.f32 0.0, %v1668
      %1670 = vmatprep.mubr.f32.mxu0 0.0
      %1671 = vmatmul.mubr.f32.gmra.mrb[0].mxu0 %v1463
      %v1672 = vpop.f32.mrb[0].mxu0
      %v1673 = vadd.f32 0.0, %v1672
      %v1674 = vpop.f32.mrb[0].mxu0
      %v1675 = vadd.f32 0.0, %v1674
      %1676 = vmatprep.mubr.f32.mxu0 0.0
      %1677 = vmatmul.mubr.f32.gmra.mrb[0].mxu0 %v1466
      %v1678 = vpop.f32.mrb[0].mxu0
      %v1679 = vadd.f32 0.0, %v1678
      %v1680 = vpop.f32.mrb[0].mxu0
      %v1681 = vadd.f32 0.0, %v1680
      %1682 = vmatprep.mubr.f32.mxu0 0.0
      %1683 = vmatmul.mubr.f32.gmra.mrb[0].mxu0 %v1469
      %v1684 = vpop.f32.mrb[0].mxu0
      %v1685 = vadd.f32 0.0, %v1684
      %v1686 = vpop.f32.mrb[0].mxu0
      %v1687 = vadd.f32 0.0, %v1686
      %1688 = vmatprep.mubr.f32.mxu0 0.0
      %1689 = vmatmul.mubr.f32.gmra.mrb[0].mxu0 %v1472
      %v1690 = vpop.f32.mrb[0].mxu0
      %v1691 = vadd.f32 0.0, %v1690
      %v1692 = vpop.f32.mrb[0].mxu0
      %v1693 = vadd.f32 0.0, %v1692
      %1694 = vmatprep.mubr.f32.mxu0 0.0
      %1695 = vmatmul.mubr.f32.gmra.mrb[0].mxu0 %v1475
      %v1696 = vpop.f32.mrb[0].mxu0
      %v1697 = vadd.f32 0.0, %v1696
      %v1698 = vpop.f32.mrb[0].mxu0
      %v1699 = vadd.f32 0.0, %v1698
      %1700 = vmatprep.mubr.f32.mxu0 0.0
      %1701 = vmatmul.mubr.f32.gmra.mrb[0].mxu0 %v1478
      %v1702 = vpop.f32.mrb[0].mxu0
      %v1703 = vadd.f32 0.0, %v1702
      %v1704 = vpop.f32.mrb[0].mxu0
      %v1705 = vadd.f32 0.0, %v1704
      %1706 = vmatprep.mubr.f32.mxu0 0.0
      %1707 = vmatmul.mubr.f32.gmra.mrb[0].mxu0 %v1481
      %v1708 = vpop.f32.mrb[0].mxu0
      %v1709 = vadd.f32 0.0, %v1708
      %v1710 = vpop.f32.mrb[0].mxu0
      %v1711 = vadd.f32 0.0, %v1710
      %1712 = vmatprep.mubr.f32.mxu0 0.0
      %1713 = vmatmul.mubr.f32.gmra.mrb[0].mxu0 %v1484
      %v1714 = vpop.f32.mrb[0].mxu0
      %v1715 = vadd.f32 0.0, %v1714
      %v1716 = vpop.f32.mrb[0].mxu0
      %v1717 = vadd.f32 0.0, %v1716
      %1718 = vdwg.mxu0
      %v1719 = vadd.f32 %v1207, %v1553
      %v1720 = vadd.f32 %v1209, %v1555
      %v1721 = vadd.f32 %v1213, %v1559
      %v1722 = vadd.f32 %v1215, %v1561
      %v1723 = vadd.f32 %v1219, %v1565
      %v1724 = vadd.f32 %v1221, %v1567
      %v1725 = vadd.f32 %v1225, %v1571
      %v1726 = vadd.f32 %v1227, %v1573
      %v1727 = vadd.f32 %v1231, %v1577
      %v1728 = vadd.f32 %v1233, %v1579
      %v1729 = vadd.f32 %v1237, %v1583
      %v1730 = vadd.f32 %v1239, %v1585
      %v1731 = vadd.f32 %v1243, %v1589
      %v1732 = vadd.f32 %v1245, %v1591
      %v1733 = vadd.f32 %v1249, %v1595
      %v1734 = vadd.f32 %v1251, %v1597
      %v1735 = vadd.f32 %v1255, %v1601
      %v1736 = vadd.f32 %v1257, %v1603
      %v1737 = vadd.f32 %v1261, %v1607
      %v1738 = vadd.f32 %v1263, %v1609
      %v1739 = vadd.f32 %v1267, %v1613
      %v1740 = vadd.f32 %v1269, %v1615
      %v1741 = vadd.f32 %v1273, %v1619
      %v1742 = vadd.f32 %v1275, %v1621
      %v1743 = vadd.f32 %v1279, %v1625
      %v1744 = vadd.f32 %v1281, %v1627
      %v1745 = vadd.f32 %v1285, %v1631
      %v1746 = vadd.f32 %v1287, %v1633
      %v1747 = vadd.f32 %v1291, %v1637
      %v1748 = vadd.f32 %v1293, %v1639
      %v1749 = vadd.f32 %v1297, %v1643
      %v1750 = vadd.f32 %v1299, %v1645
      %v1751 = vadd.f32 %v1303, %v1649
      %v1752 = vadd.f32 %v1305, %v1651
      %v1753 = vadd.f32 %v1309, %v1655
      %v1754 = vadd.f32 %v1311, %v1657
      %v1755 = vadd.f32 %v1315, %v1661
      %v1756 = vadd.f32 %v1317, %v1663
      %v1757 = vadd.f32 %v1321, %v1667
      %v1758 = vadd.f32 %v1323, %v1669
      %v1759 = vadd.f32 %v1327, %v1673
      %v1760 = vadd.f32 %v1329, %v1675
      %v1761 = vadd.f32 %v1333, %v1679
      %v1762 = vadd.f32 %v1335, %v1681
      %v1763 = vadd.f32 %v1339, %v1685
      %v1764 = vadd.f32 %v1341, %v1687
      %v1765 = vadd.f32 %v1345, %v1691
      %v1766 = vadd.f32 %v1347, %v1693
      %v1767 = vadd.f32 %v1351, %v1697
      %v1768 = vadd.f32 %v1353, %v1699
      %v1769 = vadd.f32 %v1357, %v1703
      %v1770 = vadd.f32 %v1359, %v1705
      %v1771 = vadd.f32 %v1363, %v1709
      %v1772 = vadd.f32 %v1365, %v1711
      %v1773 = vadd.f32 %v1369, %v1715
      %v1774 = vadd.f32 %v1371, %v1717
      %s1775 = scalar_lea.vmem %s381, 768
      %v1776 = vld [vmem:[%s1775] sm:$0xff]
      %v1777 = vld [vmem:[%s1775 + $0x8] sm:$0xff]
      %v1778 = vld [vmem:[%s1775 + $0x10] sm:$0xff]
      %v1779 = vld [vmem:[%s1775 + $0x18] sm:$0xff]
      %v1780 = vld [vmem:[%s1775 + $0x20] sm:$0xff]
      %v1781 = vld [vmem:[%s1775 + $0x28] sm:$0xff]
      %v1782 = vld [vmem:[%s1775 + $0x30] sm:$0xff]
      %v1783 = vld [vmem:[%s1775 + $0x38] sm:$0xff]
      %v1784 = vld [vmem:[%s1775 + $0x40] sm:$0xff]
      %v1785 = vld [vmem:[%s1775 + $0x48] sm:$0xff]
      %v1786 = vld [vmem:[%s1775 + $0x50] sm:$0xff]
      %v1787 = vld [vmem:[%s1775 + $0x58] sm:$0xff]
      %v1788 = vld [vmem:[%s1775 + $0x60] sm:$0xff]
      %v1789 = vld [vmem:[%s1775 + $0x68] sm:$0xff]
      %v1790 = vld [vmem:[%s1775 + $0x70] sm:$0xff]
      %v1791 = vld [vmem:[%s1775 + $0x78] sm:$0xff]
      %v1792 = vld [vmem:[%s1775 + $0x80] sm:$0xff]
      %v1793 = vld [vmem:[%s1775 + $0x88] sm:$0xff]
      %v1794 = vld [vmem:[%s1775 + $0x90] sm:$0xff]
      %v1795 = vld [vmem:[%s1775 + $0x98] sm:$0xff]
      %v1796 = vld [vmem:[%s1775 + $0xa0] sm:$0xff]
      %v1797 = vld [vmem:[%s1775 + $0xa8] sm:$0xff]
      %v1798 = vld [vmem:[%s1775 + $0xb0] sm:$0xff]
      %v1799 = vld [vmem:[%s1775 + $0xb8] sm:$0xff]
      %v1800 = vld [vmem:[%s1775 + $0xc0] sm:$0xff]
      %v1801 = vld [vmem:[%s1775 + $0xc8] sm:$0xff]
      %v1802 = vld [vmem:[%s1775 + $0xd0] sm:$0xff]
      %v1803 = vld [vmem:[%s1775 + $0xd8] sm:$0xff]
      %v1805 = vsel %vm738, %v1776, 0
      %v1808 = vsel %vm738, %v1777, 0
      %v1811 = vsel %vm738, %v1778, 0
      %v1814 = vsel %vm738, %v1779, 0
      %v1817 = vsel %vm738, %v1780, 0
      %v1820 = vsel %vm738, %v1781, 0
      %v1823 = vsel %vm738, %v1782, 0
      %v1826 = vsel %vm738, %v1783, 0
      %v1829 = vsel %vm738, %v1784, 0
      %v1832 = vsel %vm738, %v1785, 0
      %v1835 = vsel %vm738, %v1786, 0
      %v1838 = vsel %vm738, %v1787, 0
      %v1841 = vsel %vm738, %v1788, 0
      %v1844 = vsel %vm738, %v1789, 0
      %v1847 = vsel %vm738, %v1790, 0
      %v1850 = vsel %vm738, %v1791, 0
      %v1853 = vsel %vm738, %v1792, 0
      %v1856 = vsel %vm738, %v1793, 0
      %v1859 = vsel %vm738, %v1794, 0
      %v1862 = vsel %vm738, %v1795, 0
      %v1865 = vsel %vm738, %v1796, 0
      %v1868 = vsel %vm738, %v1797, 0
      %v1871 = vsel %vm738, %v1798, 0
      %v1874 = vsel %vm738, %v1799, 0
      %v1877 = vsel %vm738, %v1800, 0
      %v1880 = vsel %vm738, %v1801, 0
      %v1883 = vsel %vm738, %v1802, 0
      %v1886 = vsel %vm738, %v1803, 0
      %1888 = vmatprep.subr.mxu0 %v415
      %1889 = vmatpush1.msra.mxu0 %v414
      %1890 = vmatprep.subr.mxu0 %v417
      %1891 = vmatpush1.msra.mxu0 %v416
      %1892 = vmatprep.subr.mxu0 %v419
      %1893 = vmatpush1.msra.mxu0 %v418
      %1894 = vmatprep.subr.mxu0 %v421
      %1895 = vmatpush1.msra.mxu0 %v420
      %1896 = vmatprep.subr.mxu0 0.0
      %1897 = vmatpush1.msra.mxu0 0.0
      %1898 = vmatprep.subr.mxu0 0.0
      %1899 = vmatpush1.msra.mxu0 0.0
      %1900 = vmatprep.subr.mxu0 0.0
      %1901 = vmatpush1.msra.mxu0 0.0
      %1902 = vmatprep.subr.mxu0 0.0
      %1903 = vmatpush1.msra.mxu0 0.0
      %1904 = vmatprep.subr.mxu0 0.0
      %1905 = vmatpush1.msra.mxu0 0.0
      %1906 = vmatprep.subr.mxu0 0.0
      %1907 = vmatpush1.msra.mxu0 0.0
      %1908 = vmatprep.subr.mxu0 0.0
      %1909 = vmatpush1.msra.mxu0 0.0
      %1910 = vmatprep.subr.mxu0 0.0
      %1911 = vmatpush1.msra.mxu0 0.0
      %1912 = vmatprep.subr.mxu0 0.0
      %1913 = vmatpush1.msra.mxu0 0.0
      %1914 = vmatprep.subr.mxu0 0.0
      %1915 = vmatpush1.msra.mxu0 0.0
      %1916 = vmatprep.subr.mxu0 0.0
      %1917 = vmatpush1.msra.mxu0 0.0
      %1918 = vmatprep.subr.mxu0 0.0
      %1919 = vmatpush1.msra.mxu0 0.0
      %1920 = vmatprep.subr.mxu0 0.0
      %1921 = vmatpush1.msra.mxu0 0.0
      %1922 = vmatprep.subr.mxu0 0.0
      %1923 = vmatpush1.msra.mxu0 0.0
      %1924 = vmatprep.subr.mxu0 0.0
      %1925 = vmatpush1.msra.mxu0 0.0
      %1926 = vmatprep.subr.mxu0 0.0
      %1927 = vmatpush1.msra.mxu0 0.0
      %1928 = vmatprep.subr.mxu0 0.0
      %1929 = vmatpush1.msra.mxu0 0.0
      %1930 = vmatprep.subr.mxu0 0.0
      %1931 = vmatpush1.msra.mxu0 0.0
      %1932 = vmatprep.subr.mxu0 0.0
      %1933 = vmatpush1.msra.mxu0 0.0
      %1934 = vmatprep.subr.mxu0 0.0
      %1935 = vmatpush1.msra.mxu0 0.0
      %1936 = vmatprep.subr.mxu0 0.0
      %1937 = vmatpush1.msra.mxu0 0.0
      %1938 = vmatprep.subr.mxu0 0.0
      %1939 = vmatpush1.msra.mxu0 0.0
      %1940 = vmatprep.subr.mxu0 0.0
      %1941 = vmatpush1.msra.mxu0 0.0
      %1942 = vmatprep.subr.mxu0 0.0
      %1943 = vmatpush1.msra.mxu0 0.0
      %1944 = vmatprep.subr.mxu0 0.0
      %1945 = vmatpush1.msra.mxu0 0.0
      %1946 = vmatprep.subr.mxu0 0.0
      %1947 = vmatpush1.msra.mxu0 0.0
      %1948 = vmatprep.subr.mxu0 0.0
      %1949 = vmatpush1.msra.mxu0 0.0
      %1950 = vmatprep.subr.mxu0 0.0
      %1951 = vmatpush1.msra.mxu0 0.0
      %1952 = vmatprep.mubr.f32.mxu0 0.0
      %1953 = vmatmul.mubr.f32.gmra.mrb[0].mxu0 %v1805
      %v1954 = vpop.f32.mrb[0].mxu0
      %v1955 = vadd.f32 0.0, %v1954
      %v1956 = vpop.f32.mrb[0].mxu0
      %v1957 = vadd.f32 0.0, %v1956
      %1958 = vmatprep.mubr.f32.mxu0 0.0
      %1959 = vmatmul.mubr.f32.gmra.mrb[0].mxu0 %v1808
      %v1960 = vpop.f32.mrb[0].mxu0
      %v1961 = vadd.f32 0.0, %v1960
      %v1962 = vpop.f32.mrb[0].mxu0
      %v1963 = vadd.f32 0.0, %v1962
      %1964 = vmatprep.mubr.f32.mxu0 0.0
      %1965 = vmatmul.mubr.f32.gmra.mrb[0].mxu0 %v1811
      %v1966 = vpop.f32.mrb[0].mxu0
      %v1967 = vadd.f32 0.0, %v1966
      %v1968 = vpop.f32.mrb[0].mxu0
      %v1969 = vadd.f32 0.0, %v1968
      %1970 = vmatprep.mubr.f32.mxu0 0.0
      %1971 = vmatmul.mubr.f32.gmra.mrb[0].mxu0 %v1814
      %v1972 = vpop.f32.mrb[0].mxu0
      %v1973 = vadd.f32 0.0, %v1972
      %v1974 = vpop.f32.mrb[0].mxu0
      %v1975 = vadd.f32 0.0, %v1974
      %1976 = vmatprep.mubr.f32.mxu0 0.0
      %1977 = vmatmul.mubr.f32.gmra.mrb[0].mxu0 %v1817
      %v1978 = vpop.f32.mrb[0].mxu0
      %v1979 = vadd.f32 0.0, %v1978
      %v1980 = vpop.f32.mrb[0].mxu0
      %v1981 = vadd.f32 0.0, %v1980
      %1982 = vmatprep.mubr.f32.mxu0 0.0
      %1983 = vmatmul.mubr.f32.gmra.mrb[0].mxu0 %v1820
      %v1984 = vpop.f32.mrb[0].mxu0
      %v1985 = vadd.f32 0.0, %v1984
      %v1986 = vpop.f32.mrb[0].mxu0
      %v1987 = vadd.f32 0.0, %v1986
      %1988 = vmatprep.mubr.f32.mxu0 0.0
      %1989 = vmatmul.mubr.f32.gmra.mrb[0].mxu0 %v1823
      %v1990 = vpop.f32.mrb[0].mxu0
      %v1991 = vadd.f32 0.0, %v1990
      %v1992 = vpop.f32.mrb[0].mxu0
      %v1993 = vadd.f32 0.0, %v1992
      %1994 = vmatprep.mubr.f32.mxu0 0.0
      %1995 = vmatmul.mubr.f32.gmra.mrb[0].mxu0 %v1826
      %v1996 = vpop.f32.mrb[0].mxu0
      %v1997 = vadd.f32 0.0, %v1996
      %v1998 = vpop.f32.mrb[0].mxu0
      %v1999 = vadd.f32 0.0, %v1998
      %2000 = vmatprep.mubr.f32.mxu0 0.0
      %2001 = vmatmul.mubr.f32.gmra.mrb[0].mxu0 %v1829
      %v2002 = vpop.f32.mrb[0].mxu0
      %v2003 = vadd.f32 0.0, %v2002
      %v2004 = vpop.f32.mrb[0].mxu0
      %v2005 = vadd.f32 0.0, %v2004
      %2006 = vmatprep.mubr.f32.mxu0 0.0
      %2007 = vmatmul.mubr.f32.gmra.mrb[0].mxu0 %v1832
      %v2008 = vpop.f32.mrb[0].mxu0
      %v2009 = vadd.f32 0.0, %v2008
      %v2010 = vpop.f32.mrb[0].mxu0
      %v2011 = vadd.f32 0.0, %v2010
      %2012 = vmatprep.mubr.f32.mxu0 0.0
      %2013 = vmatmul.mubr.f32.gmra.mrb[0].mxu0 %v1835
      %v2014 = vpop.f32.mrb[0].mxu0
      %v2015 = vadd.f32 0.0, %v2014
      %v2016 = vpop.f32.mrb[0].mxu0
      %v2017 = vadd.f32 0.0, %v2016
      %2018 = vmatprep.mubr.f32.mxu0 0.0
      %2019 = vmatmul.mubr.f32.gmra.mrb[0].mxu0 %v1838
      %v2020 = vpop.f32.mrb[0].mxu0
      %v2021 = vadd.f32 0.0, %v2020
      %v2022 = vpop.f32.mrb[0].mxu0
      %v2023 = vadd.f32 0.0, %v2022
      %2024 = vmatprep.mubr.f32.mxu0 0.0
      %2025 = vmatmul.mubr.f32.gmra.mrb[0].mxu0 %v1841
      %v2026 = vpop.f32.mrb[0].mxu0
      %v2027 = vadd.f32 0.0, %v2026
      %v2028 = vpop.f32.mrb[0].mxu0
      %v2029 = vadd.f32 0.0, %v2028
      %2030 = vmatprep.mubr.f32.mxu0 0.0
      %2031 = vmatmul.mubr.f32.gmra.mrb[0].mxu0 %v1844
      %v2032 = vpop.f32.mrb[0].mxu0
      %v2033 = vadd.f32 0.0, %v2032
      %v2034 = vpop.f32.mrb[0].mxu0
      %v2035 = vadd.f32 0.0, %v2034
      %2036 = vmatprep.mubr.f32.mxu0 0.0
      %2037 = vmatmul.mubr.f32.gmra.mrb[0].mxu0 %v1847
      %v2038 = vpop.f32.mrb[0].mxu0
      %v2039 = vadd.f32 0.0, %v2038
      %v2040 = vpop.f32.mrb[0].mxu0
      %v2041 = vadd.f32 0.0, %v2040
      %2042 = vmatprep.mubr.f32.mxu0 0.0
      %2043 = vmatmul.mubr.f32.gmra.mrb[0].mxu0 %v1850
      %v2044 = vpop.f32.mrb[0].mxu0
      %v2045 = vadd.f32 0.0, %v2044
      %v2046 = vpop.f32.mrb[0].mxu0
      %v2047 = vadd.f32 0.0, %v2046
      %2048 = vmatprep.mubr.f32.mxu0 0.0
      %2049 = vmatmul.mubr.f32.gmra.mrb[0].mxu0 %v1853
      %v2050 = vpop.f32.mrb[0].mxu0
      %v2051 = vadd.f32 0.0, %v2050
      %v2052 = vpop.f32.mrb[0].mxu0
      %v2053 = vadd.f32 0.0, %v2052
      %2054 = vmatprep.mubr.f32.mxu0 0.0
      %2055 = vmatmul.mubr.f32.gmra.mrb[0].mxu0 %v1856
      %v2056 = vpop.f32.mrb[0].mxu0
      %v2057 = vadd.f32 0.0, %v2056
      %v2058 = vpop.f32.mrb[0].mxu0
      %v2059 = vadd.f32 0.0, %v2058
      %2060 = vmatprep.mubr.f32.mxu0 0.0
      %2061 = vmatmul.mubr.f32.gmra.mrb[0].mxu0 %v1859
      %v2062 = vpop.f32.mrb[0].mxu0
      %v2063 = vadd.f32 0.0, %v2062
      %v2064 = vpop.f32.mrb[0].mxu0
      %v2065 = vadd.f32 0.0, %v2064
      %2066 = vmatprep.mubr.f32.mxu0 0.0
      %2067 = vmatmul.mubr.f32.gmra.mrb[0].mxu0 %v1862
      %v2068 = vpop.f32.mrb[0].mxu0
      %v2069 = vadd.f32 0.0, %v2068
      %v2070 = vpop.f32.mrb[0].mxu0
      %v2071 = vadd.f32 0.0, %v2070
      %2072 = vmatprep.mubr.f32.mxu0 0.0
      %2073 = vmatmul.mubr.f32.gmra.mrb[0].mxu0 %v1865
      %v2074 = vpop.f32.mrb[0].mxu0
      %v2075 = vadd.f32 0.0, %v2074
      %v2076 = vpop.f32.mrb[0].mxu0
      %v2077 = vadd.f32 0.0, %v2076
      %2078 = vmatprep.mubr.f32.mxu0 0.0
      %2079 = vmatmul.mubr.f32.gmra.mrb[0].mxu0 %v1868
      %v2080 = vpop.f32.mrb[0].mxu0
      %v2081 = vadd.f32 0.0, %v2080
      %v2082 = vpop.f32.mrb[0].mxu0
      %v2083 = vadd.f32 0.0, %v2082
      %2084 = vmatprep.mubr.f32.mxu0 0.0
      %2085 = vmatmul.mubr.f32.gmra.mrb[0].mxu0 %v1871
      %v2086 = vpop.f32.mrb[0].mxu0
      %v2087 = vadd.f32 0.0, %v2086
      %v2088 = vpop.f32.mrb[0].mxu0
      %v2089 = vadd.f32 0.0, %v2088
      %2090 = vmatprep.mubr.f32.mxu0 0.0
      %2091 = vmatmul.mubr.f32.gmra.mrb[0].mxu0 %v1874
      %v2092 = vpop.f32.mrb[0].mxu0
      %v2093 = vadd.f32 0.0, %v2092
      %v2094 = vpop.f32.mrb[0].mxu0
      %v2095 = vadd.f32 0.0, %v2094
      %2096 = vmatprep.mubr.f32.mxu0 0.0
      %2097 = vmatmul.mubr.f32.gmra.mrb[0].mxu0 %v1877
      %v2098 = vpop.f32.mrb[0].mxu0
      %v2099 = vadd.f32 0.0, %v2098
      %v2100 = vpop.f32.mrb[0].mxu0
      %v2101 = vadd.f32 0.0, %v2100
      %2102 = vmatprep.mubr.f32.mxu0 0.0
      %2103 = vmatmul.mubr.f32.gmra.mrb[0].mxu0 %v1880
      %v2104 = vpop.f32.mrb[0].mxu0
      %v2105 = vadd.f32 0.0, %v2104
      %v2106 = vpop.f32.mrb[0].mxu0
      %v2107 = vadd.f32 0.0, %v2106
      %2108 = vmatprep.mubr.f32.mxu0 0.0
      %2109 = vmatmul.mubr.f32.gmra.mrb[0].mxu0 %v1883
      %v2110 = vpop.f32.mrb[0].mxu0
      %v2111 = vadd.f32 0.0, %v2110
      %v2112 = vpop.f32.mrb[0].mxu0
      %v2113 = vadd.f32 0.0, %v2112
      %2114 = vmatprep.mubr.f32.mxu0 0.0
      %2115 = vmatmul.mubr.f32.gmra.mrb[0].mxu0 %v1886
      %v2116 = vpop.f32.mrb[0].mxu0
      %v2117 = vadd.f32 0.0, %v2116
      %v2118 = vpop.f32.mrb[0].mxu0
      %v2119 = vadd.f32 0.0, %v2118
      %2120 = vdwg.mxu0
      %v2121 = vadd.f32 %v1719, %v1955
      %v2122 = vadd.f32 %v1720, %v1957
      %v2123 = vadd.f32 %v1721, %v1961
      %v2124 = vadd.f32 %v1722, %v1963
      %v2125 = vadd.f32 %v1723, %v1967
      %v2126 = vadd.f32 %v1724, %v1969
      %v2127 = vadd.f32 %v1725, %v1973
      %v2128 = vadd.f32 %v1726, %v1975
      %v2129 = vadd.f32 %v1727, %v1979
      %v2130 = vadd.f32 %v1728, %v1981
      %v2131 = vadd.f32 %v1729, %v1985
      %v2132 = vadd.f32 %v1730, %v1987
      %v2133 = vadd.f32 %v1731, %v1991
      %v2134 = vadd.f32 %v1732, %v1993
      %v2135 = vadd.f32 %v1733, %v1997
      %v2136 = vadd.f32 %v1734, %v1999
      %v2137 = vadd.f32 %v1735, %v2003
      %v2138 = vadd.f32 %v1736, %v2005
      %v2139 = vadd.f32 %v1737, %v2009
      %v2140 = vadd.f32 %v1738, %v2011
      %v2141 = vadd.f32 %v1739, %v2015
      %v2142 = vadd.f32 %v1740, %v2017
      %v2143 = vadd.f32 %v1741, %v2021
      %v2144 = vadd.f32 %v1742, %v2023
      %v2145 = vadd.f32 %v1743, %v2027
      %v2146 = vadd.f32 %v1744, %v2029
      %v2147 = vadd.f32 %v1745, %v2033
      %v2148 = vadd.f32 %v1746, %v2035
      %v2149 = vadd.f32 %v1747, %v2039
      %v2150 = vadd.f32 %v1748, %v2041
      %v2151 = vadd.f32 %v1749, %v2045
      %v2152 = vadd.f32 %v1750, %v2047
      %v2153 = vadd.f32 %v1751, %v2051
      %v2154 = vadd.f32 %v1752, %v2053
      %v2155 = vadd.f32 %v1753, %v2057
      %v2156 = vadd.f32 %v1754, %v2059
      %v2157 = vadd.f32 %v1755, %v2063
      %v2158 = vadd.f32 %v1756, %v2065
      %v2159 = vadd.f32 %v1757, %v2069
      %v2160 = vadd.f32 %v1758, %v2071
      %v2161 = vadd.f32 %v1759, %v2075
      %v2162 = vadd.f32 %v1760, %v2077
      %v2163 = vadd.f32 %v1761, %v2081
      %v2164 = vadd.f32 %v1762, %v2083
      %v2165 = vadd.f32 %v1763, %v2087
      %v2166 = vadd.f32 %v1764, %v2089
      %v2167 = vadd.f32 %v1765, %v2093
      %v2168 = vadd.f32 %v1766, %v2095
      %v2169 = vadd.f32 %v1767, %v2099
      %v2170 = vadd.f32 %v1768, %v2101
      %v2171 = vadd.f32 %v1769, %v2105
      %v2172 = vadd.f32 %v1770, %v2107
      %v2173 = vadd.f32 %v1771, %v2111
      %v2174 = vadd.f32 %v1772, %v2113
      %v2175 = vadd.f32 %v1773, %v2117
      %v2176 = vadd.f32 %v1774, %v2119
      %v2177 = vld [vmem:[%s381 + $0x20] sm:$0xff]
      %v2178 = vld [vmem:[%s381 + $0x28] sm:$0xff]
      %v2179 = vld [vmem:[%s381 + $0x30] sm:$0xff]
      %v2180 = vld [vmem:[%s381 + $0x38] sm:$0xff]
      %v2181 = vld [vmem:[%s381 + $0x40] sm:$0xff]
      %v2182 = vld [vmem:[%s381 + $0x48] sm:$0xff]
      %v2183 = vld [vmem:[%s381 + $0x50] sm:$0xff]
      %v2184 = vld [vmem:[%s381 + $0x58] sm:$0xff]
      %v2185 = vld [vmem:[%s381 + $0x60] sm:$0xff]
      %v2186 = vld [vmem:[%s381 + $0x68] sm:$0xff]
      %v2187 = vld [vmem:[%s381 + $0x70] sm:$0xff]
      %v2188 = vld [vmem:[%s381 + $0x78] sm:$0xff]
      %v2189 = vld [vmem:[%s381 + $0x80] sm:$0xff]
      %v2190 = vld [vmem:[%s381 + $0x88] sm:$0xff]
      %v2191 = vld [vmem:[%s381 + $0x90] sm:$0xff]
      %v2192 = vld [vmem:[%s381 + $0x98] sm:$0xff]
      %v2193 = vld [vmem:[%s381 + $0xa0] sm:$0xff]
      %v2194 = vld [vmem:[%s381 + $0xa8] sm:$0xff]
      %v2195 = vld [vmem:[%s381 + $0xb0] sm:$0xff]
      %v2196 = vld [vmem:[%s381 + $0xb8] sm:$0xff]
      %v2197 = vld [vmem:[%s381 + $0xc0] sm:$0xff]
      %v2198 = vld [vmem:[%s381 + $0xc8] sm:$0xff]
      %v2199 = vld [vmem:[%s381 + $0xd0] sm:$0xff]
      %v2200 = vld [vmem:[%s381 + $0xd8] sm:$0xff]
      %v2201 = vld [vmem:[%s381 + $0xe0] sm:$0xff]
      %v2202 = vld [vmem:[%s381 + $0xe8] sm:$0xff]
      %v2203 = vld [vmem:[%s381 + $0xf0] sm:$0xff]
      %v2204 = vld [vmem:[%s381 + $0xf8] sm:$0xff]
      %v2206 = vsel %vm738, %v2177, 0
      %v2209 = vsel %vm738, %v2178, 0
      %v2212 = vsel %vm738, %v2179, 0
      %v2215 = vsel %vm738, %v2180, 0
      %v2218 = vsel %vm738, %v2181, 0
      %v2221 = vsel %vm738, %v2182, 0
      %v2224 = vsel %vm738, %v2183, 0
      %v2227 = vsel %vm738, %v2184, 0
      %v2230 = vsel %vm738, %v2185, 0
      %v2233 = vsel %vm738, %v2186, 0
      %v2236 = vsel %vm738, %v2187, 0
      %v2239 = vsel %vm738, %v2188, 0
      %v2242 = vsel %vm738, %v2189, 0
      %v2245 = vsel %vm738, %v2190, 0
      %v2248 = vsel %vm738, %v2191, 0
      %v2251 = vsel %vm738, %v2192, 0
      %v2254 = vsel %vm738, %v2193, 0
      %v2257 = vsel %vm738, %v2194, 0
      %v2260 = vsel %vm738, %v2195, 0
      %v2263 = vsel %vm738, %v2196, 0
      %v2266 = vsel %vm738, %v2197, 0
      %v2269 = vsel %vm738, %v2198, 0
      %v2272 = vsel %vm738, %v2199, 0
      %v2275 = vsel %vm738, %v2200, 0
      %v2278 = vsel %vm738, %v2201, 0
      %v2281 = vsel %vm738, %v2202, 0
      %v2284 = vsel %vm738, %v2203, 0
      %v2287 = vsel %vm738, %v2204, 0
      %2289 = vmatprep.subr.mxu0 %v424
      %2290 = vmatpush1.msra.mxu0 %v423
      %2291 = vmatprep.subr.mxu0 %v426
      %2292 = vmatpush1.msra.mxu0 %v425
      %2293 = vmatprep.subr.mxu0 %v428
      %2294 = vmatpush1.msra.mxu0 %v427
      %2295 = vmatprep.subr.mxu0 %v430
      %2296 = vmatpush1.msra.mxu0 %v429
      %2297 = vmatprep.subr.mxu0 0.0
      %2298 = vmatpush1.msra.mxu0 0.0
      %2299 = vmatprep.subr.mxu0 0.0
      %2300 = vmatpush1.msra.mxu0 0.0
      %2301 = vmatprep.subr.mxu0 0.0
      %2302 = vmatpush1.msra.mxu0 0.0
      %2303 = vmatprep.subr.mxu0 0.0
      %2304 = vmatpush1.msra.mxu0 0.0
      %2305 = vmatprep.subr.mxu0 0.0
      %2306 = vmatpush1.msra.mxu0 0.0
      %2307 = vmatprep.subr.mxu0 0.0
      %2308 = vmatpush1.msra.mxu0 0.0
      %2309 = vmatprep.subr.mxu0 0.0
      %2310 = vmatpush1.msra.mxu0 0.0
      %2311 = vmatprep.subr.mxu0 0.0
      %2312 = vmatpush1.msra.mxu0 0.0
      %2313 = vmatprep.subr.mxu0 0.0
      %2314 = vmatpush1.msra.mxu0 0.0
      %2315 = vmatprep.subr.mxu0 0.0
      %2316 = vmatpush1.msra.mxu0 0.0
      %2317 = vmatprep.subr.mxu0 0.0
      %2318 = vmatpush1.msra.mxu0 0.0
      %2319 = vmatprep.subr.mxu0 0.0
      %2320 = vmatpush1.msra.mxu0 0.0
      %2321 = vmatprep.subr.mxu0 0.0
      %2322 = vmatpush1.msra.mxu0 0.0
      %2323 = vmatprep.subr.mxu0 0.0
      %2324 = vmatpush1.msra.mxu0 0.0
      %2325 = vmatprep.subr.mxu0 0.0
      %2326 = vmatpush1.msra.mxu0 0.0
      %2327 = vmatprep.subr.mxu0 0.0
      %2328 = vmatpush1.msra.mxu0 0.0
      %2329 = vmatprep.subr.mxu0 0.0
      %2330 = vmatpush1.msra.mxu0 0.0
      %2331 = vmatprep.subr.mxu0 0.0
      %2332 = vmatpush1.msra.mxu0 0.0
      %2333 = vmatprep.subr.mxu0 0.0
      %2334 = vmatpush1.msra.mxu0 0.0
      %2335 = vmatprep.subr.mxu0 0.0
      %2336 = vmatpush1.msra.mxu0 0.0
      %2337 = vmatprep.subr.mxu0 0.0
      %2338 = vmatpush1.msra.mxu0 0.0
      %2339 = vmatprep.subr.mxu0 0.0
      %2340 = vmatpush1.msra.mxu0 0.0
      %2341 = vmatprep.subr.mxu0 0.0
      %2342 = vmatpush1.msra.mxu0 0.0
      %2343 = vmatprep.subr.mxu0 0.0
      %2344 = vmatpush1.msra.mxu0 0.0
      %2345 = vmatprep.subr.mxu0 0.0
      %2346 = vmatpush1.msra.mxu0 0.0
      %2347 = vmatprep.subr.mxu0 0.0
      %2348 = vmatpush1.msra.mxu0 0.0
      %2349 = vmatprep.subr.mxu0 0.0
      %2350 = vmatpush1.msra.mxu0 0.0
      %2351 = vmatprep.subr.mxu0 0.0
      %2352 = vmatpush1.msra.mxu0 0.0
      %2353 = vmatprep.mubr.f32.mxu0 0.0
      %2354 = vmatmul.mubr.f32.gmra.mrb[0].mxu0 %v2206
      %v2355 = vpop.f32.mrb[0].mxu0
      %v2356 = vadd.f32 0.0, %v2355
      %v2357 = vpop.f32.mrb[0].mxu0
      %v2358 = vadd.f32 0.0, %v2357
      %2359 = vmatprep.mubr.f32.mxu0 0.0
      %2360 = vmatmul.mubr.f32.gmra.mrb[0].mxu0 %v2209
      %v2361 = vpop.f32.mrb[0].mxu0
      %v2362 = vadd.f32 0.0, %v2361
      %v2363 = vpop.f32.mrb[0].mxu0
      %v2364 = vadd.f32 0.0, %v2363
      %2365 = vmatprep.mubr.f32.mxu0 0.0
      %2366 = vmatmul.mubr.f32.gmra.mrb[0].mxu0 %v2212
      %v2367 = vpop.f32.mrb[0].mxu0
      %v2368 = vadd.f32 0.0, %v2367
      %v2369 = vpop.f32.mrb[0].mxu0
      %v2370 = vadd.f32 0.0, %v2369
      %2371 = vmatprep.mubr.f32.mxu0 0.0
      %2372 = vmatmul.mubr.f32.gmra.mrb[0].mxu0 %v2215
      %v2373 = vpop.f32.mrb[0].mxu0
      %v2374 = vadd.f32 0.0, %v2373
      %v2375 = vpop.f32.mrb[0].mxu0
      %v2376 = vadd.f32 0.0, %v2375
      %2377 = vmatprep.mubr.f32.mxu0 0.0
      %2378 = vmatmul.mubr.f32.gmra.mrb[0].mxu0 %v2218
      %v2379 = vpop.f32.mrb[0].mxu0
      %v2380 = vadd.f32 0.0, %v2379
      %v2381 = vpop.f32.mrb[0].mxu0
      %v2382 = vadd.f32 0.0, %v2381
      %2383 = vmatprep.mubr.f32.mxu0 0.0
      %2384 = vmatmul.mubr.f32.gmra.mrb[0].mxu0 %v2221
      %v2385 = vpop.f32.mrb[0].mxu0
      %v2386 = vadd.f32 0.0, %v2385
      %v2387 = vpop.f32.mrb[0].mxu0
      %v2388 = vadd.f32 0.0, %v2387
      %2389 = vmatprep.mubr.f32.mxu0 0.0
      %2390 = vmatmul.mubr.f32.gmra.mrb[0].mxu0 %v2224
      %v2391 = vpop.f32.mrb[0].mxu0
      %v2392 = vadd.f32 0.0, %v2391
      %v2393 = vpop.f32.mrb[0].mxu0
      %v2394 = vadd.f32 0.0, %v2393
      %2395 = vmatprep.mubr.f32.mxu0 0.0
      %2396 = vmatmul.mubr.f32.gmra.mrb[0].mxu0 %v2227
      %v2397 = vpop.f32.mrb[0].mxu0
      %v2398 = vadd.f32 0.0, %v2397
      %v2399 = vpop.f32.mrb[0].mxu0
      %v2400 = vadd.f32 0.0, %v2399
      %2401 = vmatprep.mubr.f32.mxu0 0.0
      %2402 = vmatmul.mubr.f32.gmra.mrb[0].mxu0 %v2230
      %v2403 = vpop.f32.mrb[0].mxu0
      %v2404 = vadd.f32 0.0, %v2403
      %v2405 = vpop.f32.mrb[0].mxu0
      %v2406 = vadd.f32 0.0, %v2405
      %2407 = vmatprep.mubr.f32.mxu0 0.0
      %2408 = vmatmul.mubr.f32.gmra.mrb[0].mxu0 %v2233
      %v2409 = vpop.f32.mrb[0].mxu0
      %v2410 = vadd.f32 0.0, %v2409
      %v2411 = vpop.f32.mrb[0].mxu0
      %v2412 = vadd.f32 0.0, %v2411
      %2413 = vmatprep.mubr.f32.mxu0 0.0
      %2414 = vmatmul.mubr.f32.gmra.mrb[0].mxu0 %v2236
      %v2415 = vpop.f32.mrb[0].mxu0
      %v2416 = vadd.f32 0.0, %v2415
      %v2417 = vpop.f32.mrb[0].mxu0
      %v2418 = vadd.f32 0.0, %v2417
      %2419 = vmatprep.mubr.f32.mxu0 0.0
      %2420 = vmatmul.mubr.f32.gmra.mrb[0].mxu0 %v2239
      %v2421 = vpop.f32.mrb[0].mxu0
      %v2422 = vadd.f32 0.0, %v2421
      %v2423 = vpop.f32.mrb[0].mxu0
      %v2424 = vadd.f32 0.0, %v2423
      %2425 = vmatprep.mubr.f32.mxu0 0.0
      %2426 = vmatmul.mubr.f32.gmra.mrb[0].mxu0 %v2242
      %v2427 = vpop.f32.mrb[0].mxu0
      %v2428 = vadd.f32 0.0, %v2427
      %v2429 = vpop.f32.mrb[0].mxu0
      %v2430 = vadd.f32 0.0, %v2429
      %2431 = vmatprep.mubr.f32.mxu0 0.0
      %2432 = vmatmul.mubr.f32.gmra.mrb[0].mxu0 %v2245
      %v2433 = vpop.f32.mrb[0].mxu0
      %v2434 = vadd.f32 0.0, %v2433
      %v2435 = vpop.f32.mrb[0].mxu0
      %v2436 = vadd.f32 0.0, %v2435
      %2437 = vmatprep.mubr.f32.mxu0 0.0
      %2438 = vmatmul.mubr.f32.gmra.mrb[0].mxu0 %v2248
      %v2439 = vpop.f32.mrb[0].mxu0
      %v2440 = vadd.f32 0.0, %v2439
      %v2441 = vpop.f32.mrb[0].mxu0
      %v2442 = vadd.f32 0.0, %v2441
      %2443 = vmatprep.mubr.f32.mxu0 0.0
      %2444 = vmatmul.mubr.f32.gmra.mrb[0].mxu0 %v2251
      %v2445 = vpop.f32.mrb[0].mxu0
      %v2446 = vadd.f32 0.0, %v2445
      %v2447 = vpop.f32.mrb[0].mxu0
      %v2448 = vadd.f32 0.0, %v2447
      %2449 = vmatprep.mubr.f32.mxu0 0.0
      %2450 = vmatmul.mubr.f32.gmra.mrb[0].mxu0 %v2254
      %v2451 = vpop.f32.mrb[0].mxu0
      %v2452 = vadd.f32 0.0, %v2451
      %v2453 = vpop.f32.mrb[0].mxu0
      %v2454 = vadd.f32 0.0, %v2453
      %2455 = vmatprep.mubr.f32.mxu0 0.0
      %2456 = vmatmul.mubr.f32.gmra.mrb[0].mxu0 %v2257
      %v2457 = vpop.f32.mrb[0].mxu0
      %v2458 = vadd.f32 0.0, %v2457
      %v2459 = vpop.f32.mrb[0].mxu0
      %v2460 = vadd.f32 0.0, %v2459
      %2461 = vmatprep.mubr.f32.mxu0 0.0
      %2462 = vmatmul.mubr.f32.gmra.mrb[0].mxu0 %v2260
      %v2463 = vpop.f32.mrb[0].mxu0
      %v2464 = vadd.f32 0.0, %v2463
      %v2465 = vpop.f32.mrb[0].mxu0
      %v2466 = vadd.f32 0.0, %v2465
      %2467 = vmatprep.mubr.f32.mxu0 0.0
      %2468 = vmatmul.mubr.f32.gmra.mrb[0].mxu0 %v2263
      %v2469 = vpop.f32.mrb[0].mxu0
      %v2470 = vadd.f32 0.0, %v2469
      %v2471 = vpop.f32.mrb[0].mxu0
      %v2472 = vadd.f32 0.0, %v2471
      %2473 = vmatprep.mubr.f32.mxu0 0.0
      %2474 = vmatmul.mubr.f32.gmra.mrb[0].mxu0 %v2266
      %v2475 = vpop.f32.mrb[0].mxu0
      %v2476 = vadd.f32 0.0, %v2475
      %v2477 = vpop.f32.mrb[0].mxu0
      %v2478 = vadd.f32 0.0, %v2477
      %2479 = vmatprep.mubr.f32.mxu0 0.0
      %2480 = vmatmul.mubr.f32.gmra.mrb[0].mxu0 %v2269
      %v2481 = vpop.f32.mrb[0].mxu0
      %v2482 = vadd.f32 0.0, %v2481
      %v2483 = vpop.f32.mrb[0].mxu0
      %v2484 = vadd.f32 0.0, %v2483
      %2485 = vmatprep.mubr.f32.mxu0 0.0
      %2486 = vmatmul.mubr.f32.gmra.mrb[0].mxu0 %v2272
      %v2487 = vpop.f32.mrb[0].mxu0
      %v2488 = vadd.f32 0.0, %v2487
      %v2489 = vpop.f32.mrb[0].mxu0
      %v2490 = vadd.f32 0.0, %v2489
      %2491 = vmatprep.mubr.f32.mxu0 0.0
      %2492 = vmatmul.mubr.f32.gmra.mrb[0].mxu0 %v2275
      %v2493 = vpop.f32.mrb[0].mxu0
      %v2494 = vadd.f32 0.0, %v2493
      %v2495 = vpop.f32.mrb[0].mxu0
      %v2496 = vadd.f32 0.0, %v2495
      %2497 = vmatprep.mubr.f32.mxu0 0.0
      %2498 = vmatmul.mubr.f32.gmra.mrb[0].mxu0 %v2278
      %v2499 = vpop.f32.mrb[0].mxu0
      %v2500 = vadd.f32 0.0, %v2499
      %v2501 = vpop.f32.mrb[0].mxu0
      %v2502 = vadd.f32 0.0, %v2501
      %2503 = vmatprep.mubr.f32.mxu0 0.0
      %2504 = vmatmul.mubr.f32.gmra.mrb[0].mxu0 %v2281
      %v2505 = vpop.f32.mrb[0].mxu0
      %v2506 = vadd.f32 0.0, %v2505
      %v2507 = vpop.f32.mrb[0].mxu0
      %v2508 = vadd.f32 0.0, %v2507
      %2509 = vmatprep.mubr.f32.mxu0 0.0
      %2510 = vmatmul.mubr.f32.gmra.mrb[0].mxu0 %v2284
      %v2511 = vpop.f32.mrb[0].mxu0
      %v2512 = vadd.f32 0.0, %v2511
      %v2513 = vpop.f32.mrb[0].mxu0
      %v2514 = vadd.f32 0.0, %v2513
      %2515 = vmatprep.mubr.f32.mxu0 0.0
      %2516 = vmatmul.mubr.f32.gmra.mrb[0].mxu0 %v2287
      %v2517 = vpop.f32.mrb[0].mxu0
      %v2518 = vadd.f32 0.0, %v2517
      %v2519 = vpop.f32.mrb[0].mxu0
      %v2520 = vadd.f32 0.0, %v2519
      %2521 = vdwg.mxu0
      %v2522 = vadd.f32 %v2121, %v2356
      %v2523 = vadd.f32 %v2122, %v2358
      %v2524 = vadd.f32 %v2123, %v2362
      %v2525 = vadd.f32 %v2124, %v2364
      %v2526 = vadd.f32 %v2125, %v2368
      %v2527 = vadd.f32 %v2126, %v2370
      %v2528 = vadd.f32 %v2127, %v2374
      %v2529 = vadd.f32 %v2128, %v2376
      %v2530 = vadd.f32 %v2129, %v2380
      %v2531 = vadd.f32 %v2130, %v2382
      %v2532 = vadd.f32 %v2131, %v2386
      %v2533 = vadd.f32 %v2132, %v2388
      %v2534 = vadd.f32 %v2133, %v2392
      %v2535 = vadd.f32 %v2134, %v2394
      %v2536 = vadd.f32 %v2135, %v2398
      %v2537 = vadd.f32 %v2136, %v2400
      %v2538 = vadd.f32 %v2137, %v2404
      %v2539 = vadd.f32 %v2138, %v2406
      %v2540 = vadd.f32 %v2139, %v2410
      %v2541 = vadd.f32 %v2140, %v2412
      %v2542 = vadd.f32 %v2141, %v2416
      %v2543 = vadd.f32 %v2142, %v2418
      %v2544 = vadd.f32 %v2143, %v2422
      %v2545 = vadd.f32 %v2144, %v2424
      %v2546 = vadd.f32 %v2145, %v2428
      %v2547 = vadd.f32 %v2146, %v2430
      %v2548 = vadd.f32 %v2147, %v2434
      %v2549 = vadd.f32 %v2148, %v2436
      %v2550 = vadd.f32 %v2149, %v2440
      %v2551 = vadd.f32 %v2150, %v2442
      %v2552 = vadd.f32 %v2151, %v2446
      %v2553 = vadd.f32 %v2152, %v2448
      %v2554 = vadd.f32 %v2153, %v2452
      %v2555 = vadd.f32 %v2154, %v2454
      %v2556 = vadd.f32 %v2155, %v2458
      %v2557 = vadd.f32 %v2156, %v2460
      %v2558 = vadd.f32 %v2157, %v2464
      %v2559 = vadd.f32 %v2158, %v2466
      %v2560 = vadd.f32 %v2159, %v2470
      %v2561 = vadd.f32 %v2160, %v2472
      %v2562 = vadd.f32 %v2161, %v2476
      %v2563 = vadd.f32 %v2162, %v2478
      %v2564 = vadd.f32 %v2163, %v2482
      %v2565 = vadd.f32 %v2164, %v2484
      %v2566 = vadd.f32 %v2165, %v2488
      %v2567 = vadd.f32 %v2166, %v2490
      %v2568 = vadd.f32 %v2167, %v2494
      %v2569 = vadd.f32 %v2168, %v2496
      %v2570 = vadd.f32 %v2169, %v2500
      %v2571 = vadd.f32 %v2170, %v2502
      %v2572 = vadd.f32 %v2171, %v2506
      %v2573 = vadd.f32 %v2172, %v2508
      %v2574 = vadd.f32 %v2173, %v2512
      %v2575 = vadd.f32 %v2174, %v2514
      %v2576 = vadd.f32 %v2175, %v2518
      %v2577 = vadd.f32 %v2176, %v2520
      %v2578 = vmax.f32 %v2522, %v2523
      %v2579 = vmax.f32 %v2524, %v2525
      %v2580 = vmax.f32 %v2526, %v2527
      %v2581 = vmax.f32 %v2528, %v2529
      %v2582 = vmax.f32 %v2530, %v2531
      %v2583 = vmax.f32 %v2532, %v2533
      %v2584 = vmax.f32 %v2534, %v2535
      %v2585 = vmax.f32 %v2536, %v2537
      %v2586 = vmax.f32 %v2538, %v2539
      %v2587 = vmax.f32 %v2540, %v2541
      %v2588 = vmax.f32 %v2542, %v2543
      %v2589 = vmax.f32 %v2544, %v2545
      %v2590 = vmax.f32 %v2546, %v2547
      %v2591 = vmax.f32 %v2548, %v2549
      %v2592 = vmax.f32 %v2550, %v2551
      %v2593 = vmax.f32 %v2552, %v2553
      %v2594 = vmax.f32 %v2554, %v2555
      %v2595 = vmax.f32 %v2556, %v2557
      %v2596 = vmax.f32 %v2558, %v2559
      %v2597 = vmax.f32 %v2560, %v2561
      %v2598 = vmax.f32 %v2562, %v2563
      %v2599 = vmax.f32 %v2564, %v2565
      %v2600 = vmax.f32 %v2566, %v2567
      %v2601 = vmax.f32 %v2568, %v2569
      %v2602 = vmax.f32 %v2570, %v2571
      %v2603 = vmax.f32 %v2572, %v2573
      %v2604 = vmax.f32 %v2574, %v2575
      %v2605 = vmax.f32 %v2576, %v2577
      %2606 = vmatprep.subr.mxu0 %v397
      %2607 = vmatpush1.msra.mxu0 %v396
      %2608 = vmatprep.subr.mxu0 %v399
      %2609 = vmatpush1.msra.mxu0 %v398
      %2610 = vmatprep.subr.mxu0 %v401
      %2611 = vmatpush1.msra.mxu0 %v400
      %2612 = vmatprep.subr.mxu0 %v403
      %2613 = vmatpush1.msra.mxu0 %v402
      %2614 = vmatprep.subr.mxu0 0.0
      %2615 = vmatpush1.msra.mxu0 0.0
      %2616 = vmatprep.subr.mxu0 0.0
      %2617 = vmatpush1.msra.mxu0 0.0
      %2618 = vmatprep.subr.mxu0 0.0
      %2619 = vmatpush1.msra.mxu0 0.0
      %2620 = vmatprep.subr.mxu0 0.0
      %2621 = vmatpush1.msra.mxu0 0.0
      %2622 = vmatprep.subr.mxu0 0.0
      %2623 = vmatpush1.msra.mxu0 0.0
      %2624 = vmatprep.subr.mxu0 0.0
      %2625 = vmatpush1.msra.mxu0 0.0
      %2626 = vmatprep.subr.mxu0 0.0
      %2627 = vmatpush1.msra.mxu0 0.0
      %2628 = vmatprep.subr.mxu0 0.0
      %2629 = vmatpush1.msra.mxu0 0.0
      %2630 = vmatprep.subr.mxu0 0.0
      %2631 = vmatpush1.msra.mxu0 0.0
      %2632 = vmatprep.subr.mxu0 0.0
      %2633 = vmatpush1.msra.mxu0 0.0
      %2634 = vmatprep.subr.mxu0 0.0
      %2635 = vmatpush1.msra.mxu0 0.0
      %2636 = vmatprep.subr.mxu0 0.0
      %2637 = vmatpush1.msra.mxu0 0.0
      %2638 = vmatprep.subr.mxu0 0.0
      %2639 = vmatpush1.msra.mxu0 0.0
      %2640 = vmatprep.subr.mxu0 0.0
      %2641 = vmatpush1.msra.mxu0 0.0
      %2642 = vmatprep.subr.mxu0 0.0
      %2643 = vmatpush1.msra.mxu0 0.0
      %2644 = vmatprep.subr.mxu0 0.0
      %2645 = vmatpush1.msra.mxu0 0.0
      %2646 = vmatprep.subr.mxu0 0.0
      %2647 = vmatpush1.msra.mxu0 0.0
      %2648 = vmatprep.subr.mxu0 0.0
      %2649 = vmatpush1.msra.mxu0 0.0
      %2650 = vmatprep.subr.mxu0 0.0
      %2651 = vmatpush1.msra.mxu0 0.0
      %2652 = vmatprep.subr.mxu0 0.0
      %2653 = vmatpush1.msra.mxu0 0.0
      %2654 = vmatprep.subr.mxu0 0.0
      %2655 = vmatpush1.msra.mxu0 0.0
      %2656 = vmatprep.subr.mxu0 0.0
      %2657 = vmatpush1.msra.mxu0 0.0
      %2658 = vmatprep.subr.mxu0 0.0
      %2659 = vmatpush1.msra.mxu0 0.0
      %2660 = vmatprep.subr.mxu0 0.0
      %2661 = vmatpush1.msra.mxu0 0.0
      %2662 = vmatprep.subr.mxu0 0.0
      %2663 = vmatpush1.msra.mxu0 0.0
      %2664 = vmatprep.subr.mxu0 0.0
      %2665 = vmatpush1.msra.mxu0 0.0
      %2666 = vmatprep.subr.mxu0 0.0
      %2667 = vmatpush1.msra.mxu0 0.0
      %2668 = vmatprep.subr.mxu0 0.0
      %2669 = vmatpush1.msra.mxu0 0.0
      %2670 = vmatprep.mubr.f32.mxu0 0.0
      %2671 = vmatmul.mubr.f32.gmra.mrb[0].mxu0 %v1403
      %v2672 = vpop.f32.mrb[0].mxu0
      %v2673 = vadd.f32 0.0, %v2672
      %v2674 = vpop.f32.mrb[0].mxu0
      %v2675 = vadd.f32 0.0, %v2674
      %2676 = vmatprep.mubr.f32.mxu0 0.0
      %2677 = vmatmul.mubr.f32.gmra.mrb[0].mxu0 %v1406
      %v2678 = vpop.f32.mrb[0].mxu0
      %v2679 = vadd.f32 0.0, %v2678
      %v2680 = vpop.f32.mrb[0].mxu0
      %v2681 = vadd.f32 0.0, %v2680
      %2682 = vmatprep.mubr.f32.mxu0 0.0
      %2683 = vmatmul.mubr.f32.gmra.mrb[0].mxu0 %v1409
      %v2684 = vpop.f32.mrb[0].mxu0
      %v2685 = vadd.f32 0.0, %v2684
      %v2686 = vpop.f32.mrb[0].mxu0
      %v2687 = vadd.f32 0.0, %v2686
      %2688 = vmatprep.mubr.f32.mxu0 0.0
      %2689 = vmatmul.mubr.f32.gmra.mrb[0].mxu0 %v1412
      %v2690 = vpop.f32.mrb[0].mxu0
      %v2691 = vadd.f32 0.0, %v2690
      %v2692 = vpop.f32.mrb[0].mxu0
      %v2693 = vadd.f32 0.0, %v2692
      %2694 = vmatprep.mubr.f32.mxu0 0.0
      %2695 = vmatmul.mubr.f32.gmra.mrb[0].mxu0 %v1415
      %v2696 = vpop.f32.mrb[0].mxu0
      %v2697 = vadd.f32 0.0, %v2696
      %v2698 = vpop.f32.mrb[0].mxu0
      %v2699 = vadd.f32 0.0, %v2698
      %2700 = vmatprep.mubr.f32.mxu0 0.0
      %2701 = vmatmul.mubr.f32.gmra.mrb[0].mxu0 %v1418
      %v2702 = vpop.f32.mrb[0].mxu0
      %v2703 = vadd.f32 0.0, %v2702
      %v2704 = vpop.f32.mrb[0].mxu0
      %v2705 = vadd.f32 0.0, %v2704
      %2706 = vmatprep.mubr.f32.mxu0 0.0
      %2707 = vmatmul.mubr.f32.gmra.mrb[0].mxu0 %v1421
      %v2708 = vpop.f32.mrb[0].mxu0
      %v2709 = vadd.f32 0.0, %v2708
      %v2710 = vpop.f32.mrb[0].mxu0
      %v2711 = vadd.f32 0.0, %v2710
      %2712 = vmatprep.mubr.f32.mxu0 0.0
      %2713 = vmatmul.mubr.f32.gmra.mrb[0].mxu0 %v1424
      %v2714 = vpop.f32.mrb[0].mxu0
      %v2715 = vadd.f32 0.0, %v2714
      %v2716 = vpop.f32.mrb[0].mxu0
      %v2717 = vadd.f32 0.0, %v2716
      %2718 = vmatprep.mubr.f32.mxu0 0.0
      %2719 = vmatmul.mubr.f32.gmra.mrb[0].mxu0 %v1427
      %v2720 = vpop.f32.mrb[0].mxu0
      %v2721 = vadd.f32 0.0, %v2720
      %v2722 = vpop.f32.mrb[0].mxu0
      %v2723 = vadd.f32 0.0, %v2722
      %2724 = vmatprep.mubr.f32.mxu0 0.0
      %2725 = vmatmul.mubr.f32.gmra.mrb[0].mxu0 %v1430
      %v2726 = vpop.f32.mrb[0].mxu0
      %v2727 = vadd.f32 0.0, %v2726
      %v2728 = vpop.f32.mrb[0].mxu0
      %v2729 = vadd.f32 0.0, %v2728
      %2730 = vmatprep.mubr.f32.mxu0 0.0
      %2731 = vmatmul.mubr.f32.gmra.mrb[0].mxu0 %v1433
      %v2732 = vpop.f32.mrb[0].mxu0
      %v2733 = vadd.f32 0.0, %v2732
      %v2734 = vpop.f32.mrb[0].mxu0
      %v2735 = vadd.f32 0.0, %v2734
      %2736 = vmatprep.mubr.f32.mxu0 0.0
      %2737 = vmatmul.mubr.f32.gmra.mrb[0].mxu0 %v1436
      %v2738 = vpop.f32.mrb[0].mxu0
      %v2739 = vadd.f32 0.0, %v2738
      %v2740 = vpop.f32.mrb[0].mxu0
      %v2741 = vadd.f32 0.0, %v2740
      %2742 = vmatprep.mubr.f32.mxu0 0.0
      %2743 = vmatmul.mubr.f32.gmra.mrb[0].mxu0 %v1439
      %v2744 = vpop.f32.mrb[0].mxu0
      %v2745 = vadd.f32 0.0, %v2744
      %v2746 = vpop.f32.mrb[0].mxu0
      %v2747 = vadd.f32 0.0, %v2746
      %2748 = vmatprep.mubr.f32.mxu0 0.0
      %2749 = vmatmul.mubr.f32.gmra.mrb[0].mxu0 %v1442
      %v2750 = vpop.f32.mrb[0].mxu0
      %v2751 = vadd.f32 0.0, %v2750
      %v2752 = vpop.f32.mrb[0].mxu0
      %v2753 = vadd.f32 0.0, %v2752
      %2754 = vmatprep.mubr.f32.mxu0 0.0
      %2755 = vmatmul.mubr.f32.gmra.mrb[0].mxu0 %v1445
      %v2756 = vpop.f32.mrb[0].mxu0
      %v2757 = vadd.f32 0.0, %v2756
      %v2758 = vpop.f32.mrb[0].mxu0
      %v2759 = vadd.f32 0.0, %v2758
      %2760 = vmatprep.mubr.f32.mxu0 0.0
      %2761 = vmatmul.mubr.f32.gmra.mrb[0].mxu0 %v1448
      %v2762 = vpop.f32.mrb[0].mxu0
      %v2763 = vadd.f32 0.0, %v2762
      %v2764 = vpop.f32.mrb[0].mxu0
      %v2765 = vadd.f32 0.0, %v2764
      %2766 = vmatprep.mubr.f32.mxu0 0.0
      %2767 = vmatmul.mubr.f32.gmra.mrb[0].mxu0 %v1451
      %v2768 = vpop.f32.mrb[0].mxu0
      %v2769 = vadd.f32 0.0, %v2768
      %v2770 = vpop.f32.mrb[0].mxu0
      %v2771 = vadd.f32 0.0, %v2770
      %2772 = vmatprep.mubr.f32.mxu0 0.0
      %2773 = vmatmul.mubr.f32.gmra.mrb[0].mxu0 %v1454
      %v2774 = vpop.f32.mrb[0].mxu0
      %v2775 = vadd.f32 0.0, %v2774
      %v2776 = vpop.f32.mrb[0].mxu0
      %v2777 = vadd.f32 0.0, %v2776
      %2778 = vmatprep.mubr.f32.mxu0 0.0
      %2779 = vmatmul.mubr.f32.gmra.mrb[0].mxu0 %v1457
      %v2780 = vpop.f32.mrb[0].mxu0
      %v2781 = vadd.f32 0.0, %v2780
      %v2782 = vpop.f32.mrb[0].mxu0
      %v2783 = vadd.f32 0.0, %v2782
      %2784 = vmatprep.mubr.f32.mxu0 0.0
      %2785 = vmatmul.mubr.f32.gmra.mrb[0].mxu0 %v1460
      %v2786 = vpop.f32.mrb[0].mxu0
      %v2787 = vadd.f32 0.0, %v2786
      %v2788 = vpop.f32.mrb[0].mxu0
      %v2789 = vadd.f32 0.0, %v2788
      %2790 = vmatprep.mubr.f32.mxu0 0.0
      %2791 = vmatmul.mubr.f32.gmra.mrb[0].mxu0 %v1463
      %v2792 = vpop.f32.mrb[0].mxu0
      %v2793 = vadd.f32 0.0, %v2792
      %v2794 = vpop.f32.mrb[0].mxu0
      %v2795 = vadd.f32 0.0, %v2794
      %2796 = vmatprep.mubr.f32.mxu0 0.0
      %2797 = vmatmul.mubr.f32.gmra.mrb[0].mxu0 %v1466
      %v2798 = vpop.f32.mrb[0].mxu0
      %v2799 = vadd.f32 0.0, %v2798
      %v2800 = vpop.f32.mrb[0].mxu0
      %v2801 = vadd.f32 0.0, %v2800
      %2802 = vmatprep.mubr.f32.mxu0 0.0
      %2803 = vmatmul.mubr.f32.gmra.mrb[0].mxu0 %v1469
      %v2804 = vpop.f32.mrb[0].mxu0
      %v2805 = vadd.f32 0.0, %v2804
      %v2806 = vpop.f32.mrb[0].mxu0
      %v2807 = vadd.f32 0.0, %v2806
      %2808 = vmatprep.mubr.f32.mxu0 0.0
      %2809 = vmatmul.mubr.f32.gmra.mrb[0].mxu0 %v1472
      %v2810 = vpop.f32.mrb[0].mxu0
      %v2811 = vadd.f32 0.0, %v2810
      %v2812 = vpop.f32.mrb[0].mxu0
      %v2813 = vadd.f32 0.0, %v2812
      %2814 = vmatprep.mubr.f32.mxu0 0.0
      %2815 = vmatmul.mubr.f32.gmra.mrb[0].mxu0 %v1475
      %v2816 = vpop.f32.mrb[0].mxu0
      %v2817 = vadd.f32 0.0, %v2816
      %v2818 = vpop.f32.mrb[0].mxu0
      %v2819 = vadd.f32 0.0, %v2818
      %2820 = vmatprep.mubr.f32.mxu0 0.0
      %2821 = vmatmul.mubr.f32.gmra.mrb[0].mxu0 %v1478
      %v2822 = vpop.f32.mrb[0].mxu0
      %v2823 = vadd.f32 0.0, %v2822
      %v2824 = vpop.f32.mrb[0].mxu0
      %v2825 = vadd.f32 0.0, %v2824
      %2826 = vmatprep.mubr.f32.mxu0 0.0
      %2827 = vmatmul.mubr.f32.gmra.mrb[0].mxu0 %v1481
      %v2828 = vpop.f32.mrb[0].mxu0
      %v2829 = vadd.f32 0.0, %v2828
      %v2830 = vpop.f32.mrb[0].mxu0
      %v2831 = vadd.f32 0.0, %v2830
      %2832 = vmatprep.mubr.f32.mxu0 0.0
      %2833 = vmatmul.mubr.f32.gmra.mrb[0].mxu0 %v1484
      %v2834 = vpop.f32.mrb[0].mxu0
      %v2835 = vadd.f32 0.0, %v2834
      %v2836 = vpop.f32.mrb[0].mxu0
      %v2837 = vadd.f32 0.0, %v2836
      %2838 = vdwg.mxu0
      %2839 = vmatprep.subr.mxu0 %v388
      %2840 = vmatpush1.msra.mxu0 %v387
      %2841 = vmatprep.subr.mxu0 %v390
      %2842 = vmatpush1.msra.mxu0 %v389
      %2843 = vmatprep.subr.mxu0 %v392
      %2844 = vmatpush1.msra.mxu0 %v391
      %2845 = vmatprep.subr.mxu0 %v394
      %2846 = vmatpush1.msra.mxu0 %v393
      %2847 = vmatprep.subr.mxu0 0.0
      %2848 = vmatpush1.msra.mxu0 0.0
      %2849 = vmatprep.subr.mxu0 0.0
      %2850 = vmatpush1.msra.mxu0 0.0
      %2851 = vmatprep.subr.mxu0 0.0
      %2852 = vmatpush1.msra.mxu0 0.0
      %2853 = vmatprep.subr.mxu0 0.0
      %2854 = vmatpush1.msra.mxu0 0.0
      %2855 = vmatprep.subr.mxu0 0.0
      %2856 = vmatpush1.msra.mxu0 0.0
      %2857 = vmatprep.subr.mxu0 0.0
      %2858 = vmatpush1.msra.mxu0 0.0
      %2859 = vmatprep.subr.mxu0 0.0
      %2860 = vmatpush1.msra.mxu0 0.0
      %2861 = vmatprep.subr.mxu0 0.0
      %2862 = vmatpush1.msra.mxu0 0.0
      %2863 = vmatprep.subr.mxu0 0.0
      %2864 = vmatpush1.msra.mxu0 0.0
      %2865 = vmatprep.subr.mxu0 0.0
      %2866 = vmatpush1.msra.mxu0 0.0
      %2867 = vmatprep.subr.mxu0 0.0
      %2868 = vmatpush1.msra.mxu0 0.0
      %2869 = vmatprep.subr.mxu0 0.0
      %2870 = vmatpush1.msra.mxu0 0.0
      %2871 = vmatprep.subr.mxu0 0.0
      %2872 = vmatpush1.msra.mxu0 0.0
      %2873 = vmatprep.subr.mxu0 0.0
      %2874 = vmatpush1.msra.mxu0 0.0
      %2875 = vmatprep.subr.mxu0 0.0
      %2876 = vmatpush1.msra.mxu0 0.0
      %2877 = vmatprep.subr.mxu0 0.0
      %2878 = vmatpush1.msra.mxu0 0.0
      %2879 = vmatprep.subr.mxu0 0.0
      %2880 = vmatpush1.msra.mxu0 0.0
      %2881 = vmatprep.subr.mxu0 0.0
      %2882 = vmatpush1.msra.mxu0 0.0
      %2883 = vmatprep.subr.mxu0 0.0
      %2884 = vmatpush1.msra.mxu0 0.0
      %2885 = vmatprep.subr.mxu0 0.0
      %2886 = vmatpush1.msra.mxu0 0.0
      %2887 = vmatprep.subr.mxu0 0.0
      %2888 = vmatpush1.msra.mxu0 0.0
      %2889 = vmatprep.subr.mxu0 0.0
      %2890 = vmatpush1.msra.mxu0 0.0
      %2891 = vmatprep.subr.mxu0 0.0
      %2892 = vmatpush1.msra.mxu0 0.0
      %2893 = vmatprep.subr.mxu0 0.0
      %2894 = vmatpush1.msra.mxu0 0.0
      %2895 = vmatprep.subr.mxu0 0.0
      %2896 = vmatpush1.msra.mxu0 0.0
      %2897 = vmatprep.subr.mxu0 0.0
      %2898 = vmatpush1.msra.mxu0 0.0
      %2899 = vmatprep.subr.mxu0 0.0
      %2900 = vmatpush1.msra.mxu0 0.0
      %2901 = vmatprep.subr.mxu0 0.0
      %2902 = vmatpush1.msra.mxu0 0.0
      %2903 = vmatprep.mubr.f32.mxu0 0.0
      %2904 = vmatmul.mubr.f32.gmra.mrb[0].mxu0 %v740
      %v2905 = vpop.f32.mrb[0].mxu0
      %v2906 = vadd.f32 %v2673, %v2905
      %v2907 = vpop.f32.mrb[0].mxu0
      %v2908 = vadd.f32 %v2675, %v2907
      %2909 = vmatprep.mubr.f32.mxu0 0.0
      %2910 = vmatmul.mubr.f32.gmra.mrb[0].mxu0 %v743
      %v2911 = vpop.f32.mrb[0].mxu0
      %v2912 = vadd.f32 %v2679, %v2911
      %v2913 = vpop.f32.mrb[0].mxu0
      %v2914 = vadd.f32 %v2681, %v2913
      %2915 = vmatprep.mubr.f32.mxu0 0.0
      %2916 = vmatmul.mubr.f32.gmra.mrb[0].mxu0 %v746
      %v2917 = vpop.f32.mrb[0].mxu0
      %v2918 = vadd.f32 %v2685, %v2917
      %v2919 = vpop.f32.mrb[0].mxu0
      %v2920 = vadd.f32 %v2687, %v2919
      %2921 = vmatprep.mubr.f32.mxu0 0.0
      %2922 = vmatmul.mubr.f32.gmra.mrb[0].mxu0 %v749
      %v2923 = vpop.f32.mrb[0].mxu0
      %v2924 = vadd.f32 %v2691, %v2923
      %v2925 = vpop.f32.mrb[0].mxu0
      %v2926 = vadd.f32 %v2693, %v2925
      %2927 = vmatprep.mubr.f32.mxu0 0.0
      %2928 = vmatmul.mubr.f32.gmra.mrb[0].mxu0 %v752
      %v2929 = vpop.f32.mrb[0].mxu0
      %v2930 = vadd.f32 %v2697, %v2929
      %v2931 = vpop.f32.mrb[0].mxu0
      %v2932 = vadd.f32 %v2699, %v2931
      %2933 = vmatprep.mubr.f32.mxu0 0.0
      %2934 = vmatmul.mubr.f32.gmra.mrb[0].mxu0 %v755
      %v2935 = vpop.f32.mrb[0].mxu0
      %v2936 = vadd.f32 %v2703, %v2935
      %v2937 = vpop.f32.mrb[0].mxu0
      %v2938 = vadd.f32 %v2705, %v2937
      %2939 = vmatprep.mubr.f32.mxu0 0.0
      %2940 = vmatmul.mubr.f32.gmra.mrb[0].mxu0 %v758
      %v2941 = vpop.f32.mrb[0].mxu0
      %v2942 = vadd.f32 %v2709, %v2941
      %v2943 = vpop.f32.mrb[0].mxu0
      %v2944 = vadd.f32 %v2711, %v2943
      %2945 = vmatprep.mubr.f32.mxu0 0.0
      %2946 = vmatmul.mubr.f32.gmra.mrb[0].mxu0 %v761
      %v2947 = vpop.f32.mrb[0].mxu0
      %v2948 = vadd.f32 %v2715, %v2947
      %v2949 = vpop.f32.mrb[0].mxu0
      %v2950 = vadd.f32 %v2717, %v2949
      %2951 = vmatprep.mubr.f32.mxu0 0.0
      %2952 = vmatmul.mubr.f32.gmra.mrb[0].mxu0 %v764
      %v2953 = vpop.f32.mrb[0].mxu0
      %v2954 = vadd.f32 %v2721, %v2953
      %v2955 = vpop.f32.mrb[0].mxu0
      %v2956 = vadd.f32 %v2723, %v2955
      %2957 = vmatprep.mubr.f32.mxu0 0.0
      %2958 = vmatmul.mubr.f32.gmra.mrb[0].mxu0 %v767
      %v2959 = vpop.f32.mrb[0].mxu0
      %v2960 = vadd.f32 %v2727, %v2959
      %v2961 = vpop.f32.mrb[0].mxu0
      %v2962 = vadd.f32 %v2729, %v2961
      %2963 = vmatprep.mubr.f32.mxu0 0.0
      %2964 = vmatmul.mubr.f32.gmra.mrb[0].mxu0 %v770
      %v2965 = vpop.f32.mrb[0].mxu0
      %v2966 = vadd.f32 %v2733, %v2965
      %v2967 = vpop.f32.mrb[0].mxu0
      %v2968 = vadd.f32 %v2735, %v2967
      %2969 = vmatprep.mubr.f32.mxu0 0.0
      %2970 = vmatmul.mubr.f32.gmra.mrb[0].mxu0 %v773
      %v2971 = vpop.f32.mrb[0].mxu0
      %v2972 = vadd.f32 %v2739, %v2971
      %v2973 = vpop.f32.mrb[0].mxu0
      %v2974 = vadd.f32 %v2741, %v2973
      %2975 = vmatprep.mubr.f32.mxu0 0.0
      %2976 = vmatmul.mubr.f32.gmra.mrb[0].mxu0 %v776
      %v2977 = vpop.f32.mrb[0].mxu0
      %v2978 = vadd.f32 %v2745, %v2977
      %v2979 = vpop.f32.mrb[0].mxu0
      %v2980 = vadd.f32 %v2747, %v2979
      %2981 = vmatprep.mubr.f32.mxu0 0.0
      %2982 = vmatmul.mubr.f32.gmra.mrb[0].mxu0 %v779
      %v2983 = vpop.f32.mrb[0].mxu0
      %v2984 = vadd.f32 %v2751, %v2983
      %v2985 = vpop.f32.mrb[0].mxu0
      %v2986 = vadd.f32 %v2753, %v2985
      %2987 = vmatprep.mubr.f32.mxu0 0.0
      %2988 = vmatmul.mubr.f32.gmra.mrb[0].mxu0 %v782
      %v2989 = vpop.f32.mrb[0].mxu0
      %v2990 = vadd.f32 %v2757, %v2989
      %v2991 = vpop.f32.mrb[0].mxu0
      %v2992 = vadd.f32 %v2759, %v2991
      %2993 = vmatprep.mubr.f32.mxu0 0.0
      %2994 = vmatmul.mubr.f32.gmra.mrb[0].mxu0 %v785
      %v2995 = vpop.f32.mrb[0].mxu0
      %v2996 = vadd.f32 %v2763, %v2995
      %v2997 = vpop.f32.mrb[0].mxu0
      %v2998 = vadd.f32 %v2765, %v2997
      %2999 = vmatprep.mubr.f32.mxu0 0.0
      %3000 = vmatmul.mubr.f32.gmra.mrb[0].mxu0 %v788
      %v3001 = vpop.f32.mrb[0].mxu0
      %v3002 = vadd.f32 %v2769, %v3001
      %v3003 = vpop.f32.mrb[0].mxu0
      %v3004 = vadd.f32 %v2771, %v3003
      %3005 = vmatprep.mubr.f32.mxu0 0.0
      %3006 = vmatmul.mubr.f32.gmra.mrb[0].mxu0 %v791
      %v3007 = vpop.f32.mrb[0].mxu0
      %v3008 = vadd.f32 %v2775, %v3007
      %v3009 = vpop.f32.mrb[0].mxu0
      %v3010 = vadd.f32 %v2777, %v3009
      %3011 = vmatprep.mubr.f32.mxu0 0.0
      %3012 = vmatmul.mubr.f32.gmra.mrb[0].mxu0 %v794
      %v3013 = vpop.f32.mrb[0].mxu0
      %v3014 = vadd.f32 %v2781, %v3013
      %v3015 = vpop.f32.mrb[0].mxu0
      %v3016 = vadd.f32 %v2783, %v3015
      %3017 = vmatprep.mubr.f32.mxu0 0.0
      %3018 = vmatmul.mubr.f32.gmra.mrb[0].mxu0 %v797
      %v3019 = vpop.f32.mrb[0].mxu0
      %v3020 = vadd.f32 %v2787, %v3019
      %v3021 = vpop.f32.mrb[0].mxu0
      %v3022 = vadd.f32 %v2789, %v3021
      %3023 = vmatprep.mubr.f32.mxu0 0.0
      %3024 = vmatmul.mubr.f32.gmra.mrb[0].mxu0 %v800
      %v3025 = vpop.f32.mrb[0].mxu0
      %v3026 = vadd.f32 %v2793, %v3025
      %v3027 = vpop.f32.mrb[0].mxu0
      %v3028 = vadd.f32 %v2795, %v3027
      %3029 = vmatprep.mubr.f32.mxu0 0.0
      %3030 = vmatmul.mubr.f32.gmra.mrb[0].mxu0 %v803
      %v3031 = vpop.f32.mrb[0].mxu0
      %v3032 = vadd.f32 %v2799, %v3031
      %v3033 = vpop.f32.mrb[0].mxu0
      %v3034 = vadd.f32 %v2801, %v3033
      %3035 = vmatprep.mubr.f32.mxu0 0.0
      %3036 = vmatmul.mubr.f32.gmra.mrb[0].mxu0 %v806
      %v3037 = vpop.f32.mrb[0].mxu0
      %v3038 = vadd.f32 %v2805, %v3037
      %v3039 = vpop.f32.mrb[0].mxu0
      %v3040 = vadd.f32 %v2807, %v3039
      %3041 = vmatprep.mubr.f32.mxu0 0.0
      %3042 = vmatmul.mubr.f32.gmra.mrb[0].mxu0 %v809
      %v3043 = vpop.f32.mrb[0].mxu0
      %v3044 = vadd.f32 %v2811, %v3043
      %v3045 = vpop.f32.mrb[0].mxu0
      %v3046 = vadd.f32 %v2813, %v3045
      %3047 = vmatprep.mubr.f32.mxu0 0.0
      %3048 = vmatmul.mubr.f32.gmra.mrb[0].mxu0 %v812
      %v3049 = vpop.f32.mrb[0].mxu0
      %v3050 = vadd.f32 %v2817, %v3049
      %v3051 = vpop.f32.mrb[0].mxu0
      %v3052 = vadd.f32 %v2819, %v3051
      %3053 = vmatprep.mubr.f32.mxu0 0.0
      %3054 = vmatmul.mubr.f32.gmra.mrb[0].mxu0 %v815
      %v3055 = vpop.f32.mrb[0].mxu0
      %v3056 = vadd.f32 %v2823, %v3055
      %v3057 = vpop.f32.mrb[0].mxu0
      %v3058 = vadd.f32 %v2825, %v3057
      %3059 = vmatprep.mubr.f32.mxu0 0.0
      %3060 = vmatmul.mubr.f32.gmra.mrb[0].mxu0 %v818
      %v3061 = vpop.f32.mrb[0].mxu0
      %v3062 = vadd.f32 %v2829, %v3061
      %v3063 = vpop.f32.mrb[0].mxu0
      %v3064 = vadd.f32 %v2831, %v3063
      %3065 = vmatprep.mubr.f32.mxu0 0.0
      %3066 = vmatmul.mubr.f32.gmra.mrb[0].mxu0 %v821
      %v3067 = vpop.f32.mrb[0].mxu0
      %v3068 = vadd.f32 %v2835, %v3067
      %v3069 = vpop.f32.mrb[0].mxu0
      %v3070 = vadd.f32 %v2837, %v3069
      %3071 = vdwg.mxu0
      %3072 = vmatprep.subr.mxu0 %v406
      %3073 = vmatpush1.msra.mxu0 %v405
      %3074 = vmatprep.subr.mxu0 %v408
      %3075 = vmatpush1.msra.mxu0 %v407
      %3076 = vmatprep.subr.mxu0 %v410
      %3077 = vmatpush1.msra.mxu0 %v409
      %3078 = vmatprep.subr.mxu0 %v412
      %3079 = vmatpush1.msra.mxu0 %v411
      %3080 = vmatprep.subr.mxu0 0.0
      %3081 = vmatpush1.msra.mxu0 0.0
      %3082 = vmatprep.subr.mxu0 0.0
      %3083 = vmatpush1.msra.mxu0 0.0
      %3084 = vmatprep.subr.mxu0 0.0
      %3085 = vmatpush1.msra.mxu0 0.0
      %3086 = vmatprep.subr.mxu0 0.0
      %3087 = vmatpush1.msra.mxu0 0.0
      %3088 = vmatprep.subr.mxu0 0.0
      %3089 = vmatpush1.msra.mxu0 0.0
      %3090 = vmatprep.subr.mxu0 0.0
      %3091 = vmatpush1.msra.mxu0 0.0
      %3092 = vmatprep.subr.mxu0 0.0
      %3093 = vmatpush1.msra.mxu0 0.0
      %3094 = vmatprep.subr.mxu0 0.0
      %3095 = vmatpush1.msra.mxu0 0.0
      %3096 = vmatprep.subr.mxu0 0.0
      %3097 = vmatpush1.msra.mxu0 0.0
      %3098 = vmatprep.subr.mxu0 0.0
      %3099 = vmatpush1.msra.mxu0 0.0
      %3100 = vmatprep.subr.mxu0 0.0
      %3101 = vmatpush1.msra.mxu0 0.0
      %3102 = vmatprep.subr.mxu0 0.0
      %3103 = vmatpush1.msra.mxu0 0.0
      %3104 = vmatprep.subr.mxu0 0.0
      %3105 = vmatpush1.msra.mxu0 0.0
      %3106 = vmatprep.subr.mxu0 0.0
      %3107 = vmatpush1.msra.mxu0 0.0
      %3108 = vmatprep.subr.mxu0 0.0
      %3109 = vmatpush1.msra.mxu0 0.0
      %3110 = vmatprep.subr.mxu0 0.0
      %3111 = vmatpush1.msra.mxu0 0.0
      %3112 = vmatprep.subr.mxu0 0.0
      %3113 = vmatpush1.msra.mxu0 0.0
      %3114 = vmatprep.subr.mxu0 0.0
      %3115 = vmatpush1.msra.mxu0 0.0
      %3116 = vmatprep.subr.mxu0 0.0
      %3117 = vmatpush1.msra.mxu0 0.0
      %3118 = vmatprep.subr.mxu0 0.0
      %3119 = vmatpush1.msra.mxu0 0.0
      %3120 = vmatprep.subr.mxu0 0.0
      %3121 = vmatpush1.msra.mxu0 0.0
      %3122 = vmatprep.subr.mxu0 0.0
      %3123 = vmatpush1.msra.mxu0 0.0
      %3124 = vmatprep.subr.mxu0 0.0
      %3125 = vmatpush1.msra.mxu0 0.0
      %3126 = vmatprep.subr.mxu0 0.0
      %3127 = vmatpush1.msra.mxu0 0.0
      %3128 = vmatprep.subr.mxu0 0.0
      %3129 = vmatpush1.msra.mxu0 0.0
      %3130 = vmatprep.subr.mxu0 0.0
      %3131 = vmatpush1.msra.mxu0 0.0
      %3132 = vmatprep.subr.mxu0 0.0
      %3133 = vmatpush1.msra.mxu0 0.0
      %3134 = vmatprep.subr.mxu0 0.0
      %3135 = vmatpush1.msra.mxu0 0.0
      %3136 = vmatprep.mubr.f32.mxu0 0.0
      %3137 = vmatmul.mubr.f32.gmra.mrb[0].mxu0 %v1805
      %v3138 = vpop.f32.mrb[0].mxu0
      %v3139 = vadd.f32 0.0, %v3138
      %v3140 = vpop.f32.mrb[0].mxu0
      %v3141 = vadd.f32 0.0, %v3140
      %3142 = vmatprep.mubr.f32.mxu0 0.0
      %3143 = vmatmul.mubr.f32.gmra.mrb[0].mxu0 %v1808
      %v3144 = vpop.f32.mrb[0].mxu0
      %v3145 = vadd.f32 0.0, %v3144
      %v3146 = vpop.f32.mrb[0].mxu0
      %v3147 = vadd.f32 0.0, %v3146
      %3148 = vmatprep.mubr.f32.mxu0 0.0
      %3149 = vmatmul.mubr.f32.gmra.mrb[0].mxu0 %v1811
      %v3150 = vpop.f32.mrb[0].mxu0
      %v3151 = vadd.f32 0.0, %v3150
      %v3152 = vpop.f32.mrb[0].mxu0
      %v3153 = vadd.f32 0.0, %v3152
      %3154 = vmatprep.mubr.f32.mxu0 0.0
      %3155 = vmatmul.mubr.f32.gmra.mrb[0].mxu0 %v1814
      %v3156 = vpop.f32.mrb[0].mxu0
      %v3157 = vadd.f32 0.0, %v3156
      %v3158 = vpop.f32.mrb[0].mxu0
      %v3159 = vadd.f32 0.0, %v3158
      %3160 = vmatprep.mubr.f32.mxu0 0.0
      %3161 = vmatmul.mubr.f32.gmra.mrb[0].mxu0 %v1817
      %v3162 = vpop.f32.mrb[0].mxu0
      %v3163 = vadd.f32 0.0, %v3162
      %v3164 = vpop.f32.mrb[0].mxu0
      %v3165 = vadd.f32 0.0, %v3164
      %3166 = vmatprep.mubr.f32.mxu0 0.0
      %3167 = vmatmul.mubr.f32.gmra.mrb[0].mxu0 %v1820
      %v3168 = vpop.f32.mrb[0].mxu0
      %v3169 = vadd.f32 0.0, %v3168
      %v3170 = vpop.f32.mrb[0].mxu0
      %v3171 = vadd.f32 0.0, %v3170
      %3172 = vmatprep.mubr.f32.mxu0 0.0
      %3173 = vmatmul.mubr.f32.gmra.mrb[0].mxu0 %v1823
      %v3174 = vpop.f32.mrb[0].mxu0
      %v3175 = vadd.f32 0.0, %v3174
      %v3176 = vpop.f32.mrb[0].mxu0
      %v3177 = vadd.f32 0.0, %v3176
      %3178 = vmatprep.mubr.f32.mxu0 0.0
      %3179 = vmatmul.mubr.f32.gmra.mrb[0].mxu0 %v1826
      %v3180 = vpop.f32.mrb[0].mxu0
      %v3181 = vadd.f32 0.0, %v3180
      %v3182 = vpop.f32.mrb[0].mxu0
      %v3183 = vadd.f32 0.0, %v3182
      %3184 = vmatprep.mubr.f32.mxu0 0.0
      %3185 = vmatmul.mubr.f32.gmra.mrb[0].mxu0 %v1829
      %v3186 = vpop.f32.mrb[0].mxu0
      %v3187 = vadd.f32 0.0, %v3186
      %v3188 = vpop.f32.mrb[0].mxu0
      %v3189 = vadd.f32 0.0, %v3188
      %3190 = vmatprep.mubr.f32.mxu0 0.0
      %3191 = vmatmul.mubr.f32.gmra.mrb[0].mxu0 %v1832
      %v3192 = vpop.f32.mrb[0].mxu0
      %v3193 = vadd.f32 0.0, %v3192
      %v3194 = vpop.f32.mrb[0].mxu0
      %v3195 = vadd.f32 0.0, %v3194
      %3196 = vmatprep.mubr.f32.mxu0 0.0
      %3197 = vmatmul.mubr.f32.gmra.mrb[0].mxu0 %v1835
      %v3198 = vpop.f32.mrb[0].mxu0
      %v3199 = vadd.f32 0.0, %v3198
      %v3200 = vpop.f32.mrb[0].mxu0
      %v3201 = vadd.f32 0.0, %v3200
      %3202 = vmatprep.mubr.f32.mxu0 0.0
      %3203 = vmatmul.mubr.f32.gmra.mrb[0].mxu0 %v1838
      %v3204 = vpop.f32.mrb[0].mxu0
      %v3205 = vadd.f32 0.0, %v3204
      %v3206 = vpop.f32.mrb[0].mxu0
      %v3207 = vadd.f32 0.0, %v3206
      %3208 = vmatprep.mubr.f32.mxu0 0.0
      %3209 = vmatmul.mubr.f32.gmra.mrb[0].mxu0 %v1841
      %v3210 = vpop.f32.mrb[0].mxu0
      %v3211 = vadd.f32 0.0, %v3210
      %v3212 = vpop.f32.mrb[0].mxu0
      %v3213 = vadd.f32 0.0, %v3212
      %3214 = vmatprep.mubr.f32.mxu0 0.0
      %3215 = vmatmul.mubr.f32.gmra.mrb[0].mxu0 %v1844
      %v3216 = vpop.f32.mrb[0].mxu0
      %v3217 = vadd.f32 0.0, %v3216
      %v3218 = vpop.f32.mrb[0].mxu0
      %v3219 = vadd.f32 0.0, %v3218
      %3220 = vmatprep.mubr.f32.mxu0 0.0
      %3221 = vmatmul.mubr.f32.gmra.mrb[0].mxu0 %v1847
      %v3222 = vpop.f32.mrb[0].mxu0
      %v3223 = vadd.f32 0.0, %v3222
      %v3224 = vpop.f32.mrb[0].mxu0
      %v3225 = vadd.f32 0.0, %v3224
      %3226 = vmatprep.mubr.f32.mxu0 0.0
      %3227 = vmatmul.mubr.f32.gmra.mrb[0].mxu0 %v1850
      %v3228 = vpop.f32.mrb[0].mxu0
      %v3229 = vadd.f32 0.0, %v3228
      %v3230 = vpop.f32.mrb[0].mxu0
      %v3231 = vadd.f32 0.0, %v3230
      %3232 = vmatprep.mubr.f32.mxu0 0.0
      %3233 = vmatmul.mubr.f32.gmra.mrb[0].mxu0 %v1853
      %v3234 = vpop.f32.mrb[0].mxu0
      %v3235 = vadd.f32 0.0, %v3234
      %v3236 = vpop.f32.mrb[0].mxu0
      %v3237 = vadd.f32 0.0, %v3236
      %3238 = vmatprep.mubr.f32.mxu0 0.0
      %3239 = vmatmul.mubr.f32.gmra.mrb[0].mxu0 %v1856
      %v3240 = vpop.f32.mrb[0].mxu0
      %v3241 = vadd.f32 0.0, %v3240
      %v3242 = vpop.f32.mrb[0].mxu0
      %v3243 = vadd.f32 0.0, %v3242
      %3244 = vmatprep.mubr.f32.mxu0 0.0
      %3245 = vmatmul.mubr.f32.gmra.mrb[0].mxu0 %v1859
      %v3246 = vpop.f32.mrb[0].mxu0
      %v3247 = vadd.f32 0.0, %v3246
      %v3248 = vpop.f32.mrb[0].mxu0
      %v3249 = vadd.f32 0.0, %v3248
      %3250 = vmatprep.mubr.f32.mxu0 0.0
      %3251 = vmatmul.mubr.f32.gmra.mrb[0].mxu0 %v1862
      %v3252 = vpop.f32.mrb[0].mxu0
      %v3253 = vadd.f32 0.0, %v3252
      %v3254 = vpop.f32.mrb[0].mxu0
      %v3255 = vadd.f32 0.0, %v3254
      %3256 = vmatprep.mubr.f32.mxu0 0.0
      %3257 = vmatmul.mubr.f32.gmra.mrb[0].mxu0 %v1865
      %v3258 = vpop.f32.mrb[0].mxu0
      %v3259 = vadd.f32 0.0, %v3258
      %v3260 = vpop.f32.mrb[0].mxu0
      %v3261 = vadd.f32 0.0, %v3260
      %3262 = vmatprep.mubr.f32.mxu0 0.0
      %3263 = vmatmul.mubr.f32.gmra.mrb[0].mxu0 %v1868
      %v3264 = vpop.f32.mrb[0].mxu0
      %v3265 = vadd.f32 0.0, %v3264
      %v3266 = vpop.f32.mrb[0].mxu0
      %v3267 = vadd.f32 0.0, %v3266
      %3268 = vmatprep.mubr.f32.mxu0 0.0
      %3269 = vmatmul.mubr.f32.gmra.mrb[0].mxu0 %v1871
      %v3270 = vpop.f32.mrb[0].mxu0
      %v3271 = vadd.f32 0.0, %v3270
      %v3272 = vpop.f32.mrb[0].mxu0
      %v3273 = vadd.f32 0.0, %v3272
      %3274 = vmatprep.mubr.f32.mxu0 0.0
      %3275 = vmatmul.mubr.f32.gmra.mrb[0].mxu0 %v1874
      %v3276 = vpop.f32.mrb[0].mxu0
      %v3277 = vadd.f32 0.0, %v3276
      %v3278 = vpop.f32.mrb[0].mxu0
      %v3279 = vadd.f32 0.0, %v3278
      %3280 = vmatprep.mubr.f32.mxu0 0.0
      %3281 = vmatmul.mubr.f32.gmra.mrb[0].mxu0 %v1877
      %v3282 = vpop.f32.mrb[0].mxu0
      %v3283 = vadd.f32 0.0, %v3282
      %v3284 = vpop.f32.mrb[0].mxu0
      %v3285 = vadd.f32 0.0, %v3284
      %3286 = vmatprep.mubr.f32.mxu0 0.0
      %3287 = vmatmul.mubr.f32.gmra.mrb[0].mxu0 %v1880
      %v3288 = vpop.f32.mrb[0].mxu0
      %v3289 = vadd.f32 0.0, %v3288
      %v3290 = vpop.f32.mrb[0].mxu0
      %v3291 = vadd.f32 0.0, %v3290
      %3292 = vmatprep.mubr.f32.mxu0 0.0
      %3293 = vmatmul.mubr.f32.gmra.mrb[0].mxu0 %v1883
      %v3294 = vpop.f32.mrb[0].mxu0
      %v3295 = vadd.f32 0.0, %v3294
      %v3296 = vpop.f32.mrb[0].mxu0
      %v3297 = vadd.f32 0.0, %v3296
      %3298 = vmatprep.mubr.f32.mxu0 0.0
      %3299 = vmatmul.mubr.f32.gmra.mrb[0].mxu0 %v1886
      %v3300 = vpop.f32.mrb[0].mxu0
      %v3301 = vadd.f32 0.0, %v3300
      %v3302 = vpop.f32.mrb[0].mxu0
      %v3303 = vadd.f32 0.0, %v3302
      %3304 = vdwg.mxu0
      %v3305 = vadd.f32 %v2906, %v3139
      %v3306 = vadd.f32 %v2908, %v3141
      %v3307 = vadd.f32 %v2912, %v3145
      %v3308 = vadd.f32 %v2914, %v3147
      %v3309 = vadd.f32 %v2918, %v3151
      %v3310 = vadd.f32 %v2920, %v3153
      %v3311 = vadd.f32 %v2924, %v3157
      %v3312 = vadd.f32 %v2926, %v3159
      %v3313 = vadd.f32 %v2930, %v3163
      %v3314 = vadd.f32 %v2932, %v3165
      %v3315 = vadd.f32 %v2936, %v3169
      %v3316 = vadd.f32 %v2938, %v3171
      %v3317 = vadd.f32 %v2942, %v3175
      %v3318 = vadd.f32 %v2944, %v3177
      %v3319 = vadd.f32 %v2948, %v3181
      %v3320 = vadd.f32 %v2950, %v3183
      %v3321 = vadd.f32 %v2954, %v3187
      %v3322 = vadd.f32 %v2956, %v3189
      %v3323 = vadd.f32 %v2960, %v3193
      %v3324 = vadd.f32 %v2962, %v3195
      %v3325 = vadd.f32 %v2966, %v3199
      %v3326 = vadd.f32 %v2968, %v3201
      %v3327 = vadd.f32 %v2972, %v3205
      %v3328 = vadd.f32 %v2974, %v3207
      %v3329 = vadd.f32 %v2978, %v3211
      %v3330 = vadd.f32 %v2980, %v3213
      %v3331 = vadd.f32 %v2984, %v3217
      %v3332 = vadd.f32 %v2986, %v3219
      %v3333 = vadd.f32 %v2990, %v3223
      %v3334 = vadd.f32 %v2992, %v3225
      %v3335 = vadd.f32 %v2996, %v3229
      %v3336 = vadd.f32 %v2998, %v3231
      %v3337 = vadd.f32 %v3002, %v3235
      %v3338 = vadd.f32 %v3004, %v3237
      %v3339 = vadd.f32 %v3008, %v3241
      %v3340 = vadd.f32 %v3010, %v3243
      %v3341 = vadd.f32 %v3014, %v3247
      %v3342 = vadd.f32 %v3016, %v3249
      %v3343 = vadd.f32 %v3020, %v3253
      %v3344 = vadd.f32 %v3022, %v3255
      %v3345 = vadd.f32 %v3026, %v3259
      %v3346 = vadd.f32 %v3028, %v3261
      %v3347 = vadd.f32 %v3032, %v3265
      %v3348 = vadd.f32 %v3034, %v3267
      %v3349 = vadd.f32 %v3038, %v3271
      %v3350 = vadd.f32 %v3040, %v3273
      %v3351 = vadd.f32 %v3044, %v3277
      %v3352 = vadd.f32 %v3046, %v3279
      %v3353 = vadd.f32 %v3050, %v3283
      %v3354 = vadd.f32 %v3052, %v3285
      %v3355 = vadd.f32 %v3056, %v3289
      %v3356 = vadd.f32 %v3058, %v3291
      %v3357 = vadd.f32 %v3062, %v3295
      %v3358 = vadd.f32 %v3064, %v3297
      %v3359 = vadd.f32 %v3068, %v3301
      %v3360 = vadd.f32 %v3070, %v3303
      %3361 = vmatprep.subr.mxu0 %v415
      %3362 = vmatpush1.msra.mxu0 %v414
      %3363 = vmatprep.subr.mxu0 %v417
      %3364 = vmatpush1.msra.mxu0 %v416
      %3365 = vmatprep.subr.mxu0 %v419
      %3366 = vmatpush1.msra.mxu0 %v418
      %3367 = vmatprep.subr.mxu0 %v421
      %3368 = vmatpush1.msra.mxu0 %v420
      %3369 = vmatprep.subr.mxu0 0.0
      %3370 = vmatpush1.msra.mxu0 0.0
      %3371 = vmatprep.subr.mxu0 0.0
      %3372 = vmatpush1.msra.mxu0 0.0
      %3373 = vmatprep.subr.mxu0 0.0
      %3374 = vmatpush1.msra.mxu0 0.0
      %3375 = vmatprep.subr.mxu0 0.0
      %3376 = vmatpush1.msra.mxu0 0.0
      %3377 = vmatprep.subr.mxu0 0.0
      %3378 = vmatpush1.msra.mxu0 0.0
      %3379 = vmatprep.subr.mxu0 0.0
      %3380 = vmatpush1.msra.mxu0 0.0
      %3381 = vmatprep.subr.mxu0 0.0
      %3382 = vmatpush1.msra.mxu0 0.0
      %3383 = vmatprep.subr.mxu0 0.0
      %3384 = vmatpush1.msra.mxu0 0.0
      %3385 = vmatprep.subr.mxu0 0.0
      %3386 = vmatpush1.msra.mxu0 0.0
      %3387 = vmatprep.subr.mxu0 0.0
      %3388 = vmatpush1.msra.mxu0 0.0
      %3389 = vmatprep.subr.mxu0 0.0
      %3390 = vmatpush1.msra.mxu0 0.0
      %3391 = vmatprep.subr.mxu0 0.0
      %3392 = vmatpush1.msra.mxu0 0.0
      %3393 = vmatprep.subr.mxu0 0.0
      %3394 = vmatpush1.msra.mxu0 0.0
      %3395 = vmatprep.subr.mxu0 0.0
      %3396 = vmatpush1.msra.mxu0 0.0
      %3397 = vmatprep.subr.mxu0 0.0
      %3398 = vmatpush1.msra.mxu0 0.0
      %3399 = vmatprep.subr.mxu0 0.0
      %3400 = vmatpush1.msra.mxu0 0.0
      %3401 = vmatprep.subr.mxu0 0.0
      %3402 = vmatpush1.msra.mxu0 0.0
      %3403 = vmatprep.subr.mxu0 0.0
      %3404 = vmatpush1.msra.mxu0 0.0
      %3405 = vmatprep.subr.mxu0 0.0
      %3406 = vmatpush1.msra.mxu0 0.0
      %3407 = vmatprep.subr.mxu0 0.0
      %3408 = vmatpush1.msra.mxu0 0.0
      %3409 = vmatprep.subr.mxu0 0.0
      %3410 = vmatpush1.msra.mxu0 0.0
      %3411 = vmatprep.subr.mxu0 0.0
      %3412 = vmatpush1.msra.mxu0 0.0
      %3413 = vmatprep.subr.mxu0 0.0
      %3414 = vmatpush1.msra.mxu0 0.0
      %3415 = vmatprep.subr.mxu0 0.0
      %3416 = vmatpush1.msra.mxu0 0.0
      %3417 = vmatprep.subr.mxu0 0.0
      %3418 = vmatpush1.msra.mxu0 0.0
      %3419 = vmatprep.subr.mxu0 0.0
      %3420 = vmatpush1.msra.mxu0 0.0
      %3421 = vmatprep.subr.mxu0 0.0
      %3422 = vmatpush1.msra.mxu0 0.0
      %3423 = vmatprep.subr.mxu0 0.0
      %3424 = vmatpush1.msra.mxu0 0.0
      %3425 = vmatprep.mubr.f32.mxu0 0.0
      %3426 = vmatmul.mubr.f32.gmra.mrb[0].mxu0 %v2206
      %v3427 = vpop.f32.mrb[0].mxu0
      %v3428 = vadd.f32 0.0, %v3427
      %v3429 = vpop.f32.mrb[0].mxu0
      %v3430 = vadd.f32 0.0, %v3429
      %3431 = vmatprep.mubr.f32.mxu0 0.0
      %3432 = vmatmul.mubr.f32.gmra.mrb[0].mxu0 %v2209
      %v3433 = vpop.f32.mrb[0].mxu0
      %v3434 = vadd.f32 0.0, %v3433
      %v3435 = vpop.f32.mrb[0].mxu0
      %v3436 = vadd.f32 0.0, %v3435
      %3437 = vmatprep.mubr.f32.mxu0 0.0
      %3438 = vmatmul.mubr.f32.gmra.mrb[0].mxu0 %v2212
      %v3439 = vpop.f32.mrb[0].mxu0
      %v3440 = vadd.f32 0.0, %v3439
      %v3441 = vpop.f32.mrb[0].mxu0
      %v3442 = vadd.f32 0.0, %v3441
      %3443 = vmatprep.mubr.f32.mxu0 0.0
      %3444 = vmatmul.mubr.f32.gmra.mrb[0].mxu0 %v2215
      %v3445 = vpop.f32.mrb[0].mxu0
      %v3446 = vadd.f32 0.0, %v3445
      %v3447 = vpop.f32.mrb[0].mxu0
      %v3448 = vadd.f32 0.0, %v3447
      %3449 = vmatprep.mubr.f32.mxu0 0.0
      %3450 = vmatmul.mubr.f32.gmra.mrb[0].mxu0 %v2218
      %v3451 = vpop.f32.mrb[0].mxu0
      %v3452 = vadd.f32 0.0, %v3451
      %v3453 = vpop.f32.mrb[0].mxu0
      %v3454 = vadd.f32 0.0, %v3453
      %3455 = vmatprep.mubr.f32.mxu0 0.0
      %3456 = vmatmul.mubr.f32.gmra.mrb[0].mxu0 %v2221
      %v3457 = vpop.f32.mrb[0].mxu0
      %v3458 = vadd.f32 0.0, %v3457
      %v3459 = vpop.f32.mrb[0].mxu0
      %v3460 = vadd.f32 0.0, %v3459
      %3461 = vmatprep.mubr.f32.mxu0 0.0
      %3462 = vmatmul.mubr.f32.gmra.mrb[0].mxu0 %v2224
      %v3463 = vpop.f32.mrb[0].mxu0
      %v3464 = vadd.f32 0.0, %v3463
      %v3465 = vpop.f32.mrb[0].mxu0
      %v3466 = vadd.f32 0.0, %v3465
      %3467 = vmatprep.mubr.f32.mxu0 0.0
      %3468 = vmatmul.mubr.f32.gmra.mrb[0].mxu0 %v2227
      %v3469 = vpop.f32.mrb[0].mxu0
      %v3470 = vadd.f32 0.0, %v3469
      %v3471 = vpop.f32.mrb[0].mxu0
      %v3472 = vadd.f32 0.0, %v3471
      %3473 = vmatprep.mubr.f32.mxu0 0.0
      %3474 = vmatmul.mubr.f32.gmra.mrb[0].mxu0 %v2230
      %v3475 = vpop.f32.mrb[0].mxu0
      %v3476 = vadd.f32 0.0, %v3475
      %v3477 = vpop.f32.mrb[0].mxu0
      %v3478 = vadd.f32 0.0, %v3477
      %3479 = vmatprep.mubr.f32.mxu0 0.0
      %3480 = vmatmul.mubr.f32.gmra.mrb[0].mxu0 %v2233
      %v3481 = vpop.f32.mrb[0].mxu0
      %v3482 = vadd.f32 0.0, %v3481
      %v3483 = vpop.f32.mrb[0].mxu0
      %v3484 = vadd.f32 0.0, %v3483
      %3485 = vmatprep.mubr.f32.mxu0 0.0
      %3486 = vmatmul.mubr.f32.gmra.mrb[0].mxu0 %v2236
      %v3487 = vpop.f32.mrb[0].mxu0
      %v3488 = vadd.f32 0.0, %v3487
      %v3489 = vpop.f32.mrb[0].mxu0
      %v3490 = vadd.f32 0.0, %v3489
      %3491 = vmatprep.mubr.f32.mxu0 0.0
      %3492 = vmatmul.mubr.f32.gmra.mrb[0].mxu0 %v2239
      %v3493 = vpop.f32.mrb[0].mxu0
      %v3494 = vadd.f32 0.0, %v3493
      %v3495 = vpop.f32.mrb[0].mxu0
      %v3496 = vadd.f32 0.0, %v3495
      %3497 = vmatprep.mubr.f32.mxu0 0.0
      %3498 = vmatmul.mubr.f32.gmra.mrb[0].mxu0 %v2242
      %v3499 = vpop.f32.mrb[0].mxu0
      %v3500 = vadd.f32 0.0, %v3499
      %v3501 = vpop.f32.mrb[0].mxu0
      %v3502 = vadd.f32 0.0, %v3501
      %3503 = vmatprep.mubr.f32.mxu0 0.0
      %3504 = vmatmul.mubr.f32.gmra.mrb[0].mxu0 %v2245
      %v3505 = vpop.f32.mrb[0].mxu0
      %v3506 = vadd.f32 0.0, %v3505
      %v3507 = vpop.f32.mrb[0].mxu0
      %v3508 = vadd.f32 0.0, %v3507
      %3509 = vmatprep.mubr.f32.mxu0 0.0
      %3510 = vmatmul.mubr.f32.gmra.mrb[0].mxu0 %v2248
      %v3511 = vpop.f32.mrb[0].mxu0
      %v3512 = vadd.f32 0.0, %v3511
      %v3513 = vpop.f32.mrb[0].mxu0
      %v3514 = vadd.f32 0.0, %v3513
      %3515 = vmatprep.mubr.f32.mxu0 0.0
      %3516 = vmatmul.mubr.f32.gmra.mrb[0].mxu0 %v2251
      %v3517 = vpop.f32.mrb[0].mxu0
      %v3518 = vadd.f32 0.0, %v3517
      %v3519 = vpop.f32.mrb[0].mxu0
      %v3520 = vadd.f32 0.0, %v3519
      %3521 = vmatprep.mubr.f32.mxu0 0.0
      %3522 = vmatmul.mubr.f32.gmra.mrb[0].mxu0 %v2254
      %v3523 = vpop.f32.mrb[0].mxu0
      %v3524 = vadd.f32 0.0, %v3523
      %v3525 = vpop.f32.mrb[0].mxu0
      %v3526 = vadd.f32 0.0, %v3525
      %3527 = vmatprep.mubr.f32.mxu0 0.0
      %3528 = vmatmul.mubr.f32.gmra.mrb[0].mxu0 %v2257
      %v3529 = vpop.f32.mrb[0].mxu0
      %v3530 = vadd.f32 0.0, %v3529
      %v3531 = vpop.f32.mrb[0].mxu0
      %v3532 = vadd.f32 0.0, %v3531
      %3533 = vmatprep.mubr.f32.mxu0 0.0
      %3534 = vmatmul.mubr.f32.gmra.mrb[0].mxu0 %v2260
      %v3535 = vpop.f32.mrb[0].mxu0
      %v3536 = vadd.f32 0.0, %v3535
      %v3537 = vpop.f32.mrb[0].mxu0
      %v3538 = vadd.f32 0.0, %v3537
      %3539 = vmatprep.mubr.f32.mxu0 0.0
      %3540 = vmatmul.mubr.f32.gmra.mrb[0].mxu0 %v2263
      %v3541 = vpop.f32.mrb[0].mxu0
      %v3542 = vadd.f32 0.0, %v3541
      %v3543 = vpop.f32.mrb[0].mxu0
      %v3544 = vadd.f32 0.0, %v3543
      %3545 = vmatprep.mubr.f32.mxu0 0.0
      %3546 = vmatmul.mubr.f32.gmra.mrb[0].mxu0 %v2266
      %v3547 = vpop.f32.mrb[0].mxu0
      %v3548 = vadd.f32 0.0, %v3547
      %v3549 = vpop.f32.mrb[0].mxu0
      %v3550 = vadd.f32 0.0, %v3549
      %3551 = vmatprep.mubr.f32.mxu0 0.0
      %3552 = vmatmul.mubr.f32.gmra.mrb[0].mxu0 %v2269
      %v3553 = vpop.f32.mrb[0].mxu0
      %v3554 = vadd.f32 0.0, %v3553
      %v3555 = vpop.f32.mrb[0].mxu0
      %v3556 = vadd.f32 0.0, %v3555
      %3557 = vmatprep.mubr.f32.mxu0 0.0
      %3558 = vmatmul.mubr.f32.gmra.mrb[0].mxu0 %v2272
      %v3559 = vpop.f32.mrb[0].mxu0
      %v3560 = vadd.f32 0.0, %v3559
      %v3561 = vpop.f32.mrb[0].mxu0
      %v3562 = vadd.f32 0.0, %v3561
      %3563 = vmatprep.mubr.f32.mxu0 0.0
      %3564 = vmatmul.mubr.f32.gmra.mrb[0].mxu0 %v2275
      %v3565 = vpop.f32.mrb[0].mxu0
      %v3566 = vadd.f32 0.0, %v3565
      %v3567 = vpop.f32.mrb[0].mxu0
      %v3568 = vadd.f32 0.0, %v3567
      %3569 = vmatprep.mubr.f32.mxu0 0.0
      %3570 = vmatmul.mubr.f32.gmra.mrb[0].mxu0 %v2278
      %v3571 = vpop.f32.mrb[0].mxu0
      %v3572 = vadd.f32 0.0, %v3571
      %v3573 = vpop.f32.mrb[0].mxu0
      %v3574 = vadd.f32 0.0, %v3573
      %3575 = vmatprep.mubr.f32.mxu0 0.0
      %3576 = vmatmul.mubr.f32.gmra.mrb[0].mxu0 %v2281
      %v3577 = vpop.f32.mrb[0].mxu0
      %v3578 = vadd.f32 0.0, %v3577
      %v3579 = vpop.f32.mrb[0].mxu0
      %v3580 = vadd.f32 0.0, %v3579
      %3581 = vmatprep.mubr.f32.mxu0 0.0
      %3582 = vmatmul.mubr.f32.gmra.mrb[0].mxu0 %v2284
      %v3583 = vpop.f32.mrb[0].mxu0
      %v3584 = vadd.f32 0.0, %v3583
      %v3585 = vpop.f32.mrb[0].mxu0
      %v3586 = vadd.f32 0.0, %v3585
      %3587 = vmatprep.mubr.f32.mxu0 0.0
      %3588 = vmatmul.mubr.f32.gmra.mrb[0].mxu0 %v2287
      %v3589 = vpop.f32.mrb[0].mxu0
      %v3590 = vadd.f32 0.0, %v3589
      %v3591 = vpop.f32.mrb[0].mxu0
      %v3592 = vadd.f32 0.0, %v3591
      %3593 = vdwg.mxu0
      %v3594 = vadd.f32 %v3305, %v3428
      %v3595 = vadd.f32 %v3306, %v3430
      %v3596 = vadd.f32 %v3307, %v3434
      %v3597 = vadd.f32 %v3308, %v3436
      %v3598 = vadd.f32 %v3309, %v3440
      %v3599 = vadd.f32 %v3310, %v3442
      %v3600 = vadd.f32 %v3311, %v3446
      %v3601 = vadd.f32 %v3312, %v3448
      %v3602 = vadd.f32 %v3313, %v3452
      %v3603 = vadd.f32 %v3314, %v3454
      %v3604 = vadd.f32 %v3315, %v3458
      %v3605 = vadd.f32 %v3316, %v3460
      %v3606 = vadd.f32 %v3317, %v3464
      %v3607 = vadd.f32 %v3318, %v3466
      %v3608 = vadd.f32 %v3319, %v3470
      %v3609 = vadd.f32 %v3320, %v3472
      %v3610 = vadd.f32 %v3321, %v3476
      %v3611 = vadd.f32 %v3322, %v3478
      %v3612 = vadd.f32 %v3323, %v3482
      %v3613 = vadd.f32 %v3324, %v3484
      %v3614 = vadd.f32 %v3325, %v3488
      %v3615 = vadd.f32 %v3326, %v3490
      %v3616 = vadd.f32 %v3327, %v3494
      %v3617 = vadd.f32 %v3328, %v3496
      %v3618 = vadd.f32 %v3329, %v3500
      %v3619 = vadd.f32 %v3330, %v3502
      %v3620 = vadd.f32 %v3331, %v3506
      %v3621 = vadd.f32 %v3332, %v3508
      %v3622 = vadd.f32 %v3333, %v3512
      %v3623 = vadd.f32 %v3334, %v3514
      %v3624 = vadd.f32 %v3335, %v3518
      %v3625 = vadd.f32 %v3336, %v3520
      %v3626 = vadd.f32 %v3337, %v3524
      %v3627 = vadd.f32 %v3338, %v3526
      %v3628 = vadd.f32 %v3339, %v3530
      %v3629 = vadd.f32 %v3340, %v3532
      %v3630 = vadd.f32 %v3341, %v3536
      %v3631 = vadd.f32 %v3342, %v3538
      %v3632 = vadd.f32 %v3343, %v3542
      %v3633 = vadd.f32 %v3344, %v3544
      %v3634 = vadd.f32 %v3345, %v3548
      %v3635 = vadd.f32 %v3346, %v3550
      %v3636 = vadd.f32 %v3347, %v3554
      %v3637 = vadd.f32 %v3348, %v3556
      %v3638 = vadd.f32 %v3349, %v3560
      %v3639 = vadd.f32 %v3350, %v3562
      %v3640 = vadd.f32 %v3351, %v3566
      %v3641 = vadd.f32 %v3352, %v3568
      %v3642 = vadd.f32 %v3353, %v3572
      %v3643 = vadd.f32 %v3354, %v3574
      %v3644 = vadd.f32 %v3355, %v3578
      %v3645 = vadd.f32 %v3356, %v3580
      %v3646 = vadd.f32 %v3357, %v3584
      %v3647 = vadd.f32 %v3358, %v3586
      %v3648 = vadd.f32 %v3359, %v3590
      %v3649 = vadd.f32 %v3360, %v3592
      %v3650 = vld [vmem:[%s709 + $0x20] sm:$0xff]
      %v3651 = vld [vmem:[%s709 + $0x28] sm:$0xff]
      %v3652 = vld [vmem:[%s709 + $0x30] sm:$0xff]
      %v3653 = vld [vmem:[%s709 + $0x38] sm:$0xff]
      %v3654 = vld [vmem:[%s709 + $0x40] sm:$0xff]
      %v3655 = vld [vmem:[%s709 + $0x48] sm:$0xff]
      %v3656 = vld [vmem:[%s709 + $0x50] sm:$0xff]
      %v3657 = vld [vmem:[%s709 + $0x58] sm:$0xff]
      %v3658 = vld [vmem:[%s709 + $0x60] sm:$0xff]
      %v3659 = vld [vmem:[%s709 + $0x68] sm:$0xff]
      %v3660 = vld [vmem:[%s709 + $0x70] sm:$0xff]
      %v3661 = vld [vmem:[%s709 + $0x78] sm:$0xff]
      %v3662 = vld [vmem:[%s709 + $0x80] sm:$0xff]
      %v3663 = vld [vmem:[%s709 + $0x88] sm:$0xff]
      %v3664 = vld [vmem:[%s709 + $0x90] sm:$0xff]
      %v3665 = vld [vmem:[%s709 + $0x98] sm:$0xff]
      %v3666 = vld [vmem:[%s709 + $0xa0] sm:$0xff]
      %v3667 = vld [vmem:[%s709 + $0xa8] sm:$0xff]
      %v3668 = vld [vmem:[%s709 + $0xb0] sm:$0xff]
      %v3669 = vld [vmem:[%s709 + $0xb8] sm:$0xff]
      %v3670 = vld [vmem:[%s709 + $0xc0] sm:$0xff]
      %v3671 = vld [vmem:[%s709 + $0xc8] sm:$0xff]
      %v3672 = vld [vmem:[%s709 + $0xd0] sm:$0xff]
      %v3673 = vld [vmem:[%s709 + $0xd8] sm:$0xff]
      %v3674 = vld [vmem:[%s709 + $0xe0] sm:$0xff]
      %v3675 = vld [vmem:[%s709 + $0xe8] sm:$0xff]
      %v3676 = vld [vmem:[%s709 + $0xf0] sm:$0xff]
      %v3677 = vld [vmem:[%s709 + $0xf8] sm:$0xff]
      %v3679 = vsel %vm738, %v3650, 0
      %v3682 = vsel %vm738, %v3651, 0
      %v3685 = vsel %vm738, %v3652, 0
      %v3688 = vsel %vm738, %v3653, 0
      %v3691 = vsel %vm738, %v3654, 0
      %v3694 = vsel %vm738, %v3655, 0
      %v3697 = vsel %vm738, %v3656, 0
      %v3700 = vsel %vm738, %v3657, 0
      %v3703 = vsel %vm738, %v3658, 0
      %v3706 = vsel %vm738, %v3659, 0
      %v3709 = vsel %vm738, %v3660, 0
      %v3712 = vsel %vm738, %v3661, 0
      %v3715 = vsel %vm738, %v3662, 0
      %v3718 = vsel %vm738, %v3663, 0
      %v3721 = vsel %vm738, %v3664, 0
      %v3724 = vsel %vm738, %v3665, 0
      %v3727 = vsel %vm738, %v3666, 0
      %v3730 = vsel %vm738, %v3667, 0
      %v3733 = vsel %vm738, %v3668, 0
      %v3736 = vsel %vm738, %v3669, 0
      %v3739 = vsel %vm738, %v3670, 0
      %v3742 = vsel %vm738, %v3671, 0
      %v3745 = vsel %vm738, %v3672, 0
      %v3748 = vsel %vm738, %v3673, 0
      %v3751 = vsel %vm738, %v3674, 0
      %v3754 = vsel %vm738, %v3675, 0
      %v3757 = vsel %vm738, %v3676, 0
      %v3760 = vsel %vm738, %v3677, 0
      %3762 = vmatprep.subr.mxu0 %v424
      %3763 = vmatpush1.msra.mxu0 %v423
      %3764 = vmatprep.subr.mxu0 %v426
      %3765 = vmatpush1.msra.mxu0 %v425
      %3766 = vmatprep.subr.mxu0 %v428
      %3767 = vmatpush1.msra.mxu0 %v427
      %3768 = vmatprep.subr.mxu0 %v430
      %3769 = vmatpush1.msra.mxu0 %v429
      %3770 = vmatprep.subr.mxu0 0.0
      %3771 = vmatpush1.msra.mxu0 0.0
      %3772 = vmatprep.subr.mxu0 0.0
      %3773 = vmatpush1.msra.mxu0 0.0
      %3774 = vmatprep.subr.mxu0 0.0
      %3775 = vmatpush1.msra.mxu0 0.0
      %3776 = vmatprep.subr.mxu0 0.0
      %3777 = vmatpush1.msra.mxu0 0.0
      %3778 = vmatprep.subr.mxu0 0.0
      %3779 = vmatpush1.msra.mxu0 0.0
      %3780 = vmatprep.subr.mxu0 0.0
      %3781 = vmatpush1.msra.mxu0 0.0
      %3782 = vmatprep.subr.mxu0 0.0
      %3783 = vmatpush1.msra.mxu0 0.0
      %3784 = vmatprep.subr.mxu0 0.0
      %3785 = vmatpush1.msra.mxu0 0.0
      %3786 = vmatprep.subr.mxu0 0.0
      %3787 = vmatpush1.msra.mxu0 0.0
      %3788 = vmatprep.subr.mxu0 0.0
      %3789 = vmatpush1.msra.mxu0 0.0
      %3790 = vmatprep.subr.mxu0 0.0
      %3791 = vmatpush1.msra.mxu0 0.0
      %3792 = vmatprep.subr.mxu0 0.0
      %3793 = vmatpush1.msra.mxu0 0.0
      %3794 = vmatprep.subr.mxu0 0.0
      %3795 = vmatpush1.msra.mxu0 0.0
      %3796 = vmatprep.subr.mxu0 0.0
      %3797 = vmatpush1.msra.mxu0 0.0
      %3798 = vmatprep.subr.mxu0 0.0
      %3799 = vmatpush1.msra.mxu0 0.0
      %3800 = vmatprep.subr.mxu0 0.0
      %3801 = vmatpush1.msra.mxu0 0.0
      %3802 = vmatprep.subr.mxu0 0.0
      %3803 = vmatpush1.msra.mxu0 0.0
      %3804 = vmatprep.subr.mxu0 0.0
      %3805 = vmatpush1.msra.mxu0 0.0
      %3806 = vmatprep.subr.mxu0 0.0
      %3807 = vmatpush1.msra.mxu0 0.0
      %3808 = vmatprep.subr.mxu0 0.0
      %3809 = vmatpush1.msra.mxu0 0.0
      %3810 = vmatprep.subr.mxu0 0.0
      %3811 = vmatpush1.msra.mxu0 0.0
      %3812 = vmatprep.subr.mxu0 0.0
      %3813 = vmatpush1.msra.mxu0 0.0
      %3814 = vmatprep.subr.mxu0 0.0
      %3815 = vmatpush1.msra.mxu0 0.0
      %3816 = vmatprep.subr.mxu0 0.0
      %3817 = vmatpush1.msra.mxu0 0.0
      %3818 = vmatprep.subr.mxu0 0.0
      %3819 = vmatpush1.msra.mxu0 0.0
      %3820 = vmatprep.subr.mxu0 0.0
      %3821 = vmatpush1.msra.mxu0 0.0
      %3822 = vmatprep.subr.mxu0 0.0
      %3823 = vmatpush1.msra.mxu0 0.0
      %3824 = vmatprep.subr.mxu0 0.0
      %3825 = vmatpush1.msra.mxu0 0.0
      %3826 = vmatprep.mubr.f32.mxu0 0.0
      %3827 = vmatmul.mubr.f32.gmra.mrb[0].mxu0 %v3679
      %v3828 = vpop.f32.mrb[0].mxu0
      %v3829 = vadd.f32 0.0, %v3828
      %v3830 = vpop.f32.mrb[0].mxu0
      %v3831 = vadd.f32 0.0, %v3830
      %3832 = vmatprep.mubr.f32.mxu0 0.0
      %3833 = vmatmul.mubr.f32.gmra.mrb[0].mxu0 %v3682
      %v3834 = vpop.f32.mrb[0].mxu0
      %v3835 = vadd.f32 0.0, %v3834
      %v3836 = vpop.f32.mrb[0].mxu0
      %v3837 = vadd.f32 0.0, %v3836
      %3838 = vmatprep.mubr.f32.mxu0 0.0
      %3839 = vmatmul.mubr.f32.gmra.mrb[0].mxu0 %v3685
      %v3840 = vpop.f32.mrb[0].mxu0
      %v3841 = vadd.f32 0.0, %v3840
      %v3842 = vpop.f32.mrb[0].mxu0
      %v3843 = vadd.f32 0.0, %v3842
      %3844 = vmatprep.mubr.f32.mxu0 0.0
      %3845 = vmatmul.mubr.f32.gmra.mrb[0].mxu0 %v3688
      %v3846 = vpop.f32.mrb[0].mxu0
      %v3847 = vadd.f32 0.0, %v3846
      %v3848 = vpop.f32.mrb[0].mxu0
      %v3849 = vadd.f32 0.0, %v3848
      %3850 = vmatprep.mubr.f32.mxu0 0.0
      %3851 = vmatmul.mubr.f32.gmra.mrb[0].mxu0 %v3691
      %v3852 = vpop.f32.mrb[0].mxu0
      %v3853 = vadd.f32 0.0, %v3852
      %v3854 = vpop.f32.mrb[0].mxu0
      %v3855 = vadd.f32 0.0, %v3854
      %3856 = vmatprep.mubr.f32.mxu0 0.0
      %3857 = vmatmul.mubr.f32.gmra.mrb[0].mxu0 %v3694
      %v3858 = vpop.f32.mrb[0].mxu0
      %v3859 = vadd.f32 0.0, %v3858
      %v3860 = vpop.f32.mrb[0].mxu0
      %v3861 = vadd.f32 0.0, %v3860
      %3862 = vmatprep.mubr.f32.mxu0 0.0
      %3863 = vmatmul.mubr.f32.gmra.mrb[0].mxu0 %v3697
      %v3864 = vpop.f32.mrb[0].mxu0
      %v3865 = vadd.f32 0.0, %v3864
      %v3866 = vpop.f32.mrb[0].mxu0
      %v3867 = vadd.f32 0.0, %v3866
      %3868 = vmatprep.mubr.f32.mxu0 0.0
      %3869 = vmatmul.mubr.f32.gmra.mrb[0].mxu0 %v3700
      %v3870 = vpop.f32.mrb[0].mxu0
      %v3871 = vadd.f32 0.0, %v3870
      %v3872 = vpop.f32.mrb[0].mxu0
      %v3873 = vadd.f32 0.0, %v3872
      %3874 = vmatprep.mubr.f32.mxu0 0.0
      %3875 = vmatmul.mubr.f32.gmra.mrb[0].mxu0 %v3703
      %v3876 = vpop.f32.mrb[0].mxu0
      %v3877 = vadd.f32 0.0, %v3876
      %v3878 = vpop.f32.mrb[0].mxu0
      %v3879 = vadd.f32 0.0, %v3878
      %3880 = vmatprep.mubr.f32.mxu0 0.0
      %3881 = vmatmul.mubr.f32.gmra.mrb[0].mxu0 %v3706
      %v3882 = vpop.f32.mrb[0].mxu0
      %v3883 = vadd.f32 0.0, %v3882
      %v3884 = vpop.f32.mrb[0].mxu0
      %v3885 = vadd.f32 0.0, %v3884
      %3886 = vmatprep.mubr.f32.mxu0 0.0
      %3887 = vmatmul.mubr.f32.gmra.mrb[0].mxu0 %v3709
      %v3888 = vpop.f32.mrb[0].mxu0
      %v3889 = vadd.f32 0.0, %v3888
      %v3890 = vpop.f32.mrb[0].mxu0
      %v3891 = vadd.f32 0.0, %v3890
      %3892 = vmatprep.mubr.f32.mxu0 0.0
      %3893 = vmatmul.mubr.f32.gmra.mrb[0].mxu0 %v3712
      %v3894 = vpop.f32.mrb[0].mxu0
      %v3895 = vadd.f32 0.0, %v3894
      %v3896 = vpop.f32.mrb[0].mxu0
      %v3897 = vadd.f32 0.0, %v3896
      %3898 = vmatprep.mubr.f32.mxu0 0.0
      %3899 = vmatmul.mubr.f32.gmra.mrb[0].mxu0 %v3715
      %v3900 = vpop.f32.mrb[0].mxu0
      %v3901 = vadd.f32 0.0, %v3900
      %v3902 = vpop.f32.mrb[0].mxu0
      %v3903 = vadd.f32 0.0, %v3902
      %3904 = vmatprep.mubr.f32.mxu0 0.0
      %3905 = vmatmul.mubr.f32.gmra.mrb[0].mxu0 %v3718
      %v3906 = vpop.f32.mrb[0].mxu0
      %v3907 = vadd.f32 0.0, %v3906
      %v3908 = vpop.f32.mrb[0].mxu0
      %v3909 = vadd.f32 0.0, %v3908
      %3910 = vmatprep.mubr.f32.mxu0 0.0
      %3911 = vmatmul.mubr.f32.gmra.mrb[0].mxu0 %v3721
      %v3912 = vpop.f32.mrb[0].mxu0
      %v3913 = vadd.f32 0.0, %v3912
      %v3914 = vpop.f32.mrb[0].mxu0
      %v3915 = vadd.f32 0.0, %v3914
      %3916 = vmatprep.mubr.f32.mxu0 0.0
      %3917 = vmatmul.mubr.f32.gmra.mrb[0].mxu0 %v3724
      %v3918 = vpop.f32.mrb[0].mxu0
      %v3919 = vadd.f32 0.0, %v3918
      %v3920 = vpop.f32.mrb[0].mxu0
      %v3921 = vadd.f32 0.0, %v3920
      %3922 = vmatprep.mubr.f32.mxu0 0.0
      %3923 = vmatmul.mubr.f32.gmra.mrb[0].mxu0 %v3727
      %v3924 = vpop.f32.mrb[0].mxu0
      %v3925 = vadd.f32 0.0, %v3924
      %v3926 = vpop.f32.mrb[0].mxu0
      %v3927 = vadd.f32 0.0, %v3926
      %3928 = vmatprep.mubr.f32.mxu0 0.0
      %3929 = vmatmul.mubr.f32.gmra.mrb[0].mxu0 %v3730
      %v3930 = vpop.f32.mrb[0].mxu0
      %v3931 = vadd.f32 0.0, %v3930
      %v3932 = vpop.f32.mrb[0].mxu0
      %v3933 = vadd.f32 0.0, %v3932
      %3934 = vmatprep.mubr.f32.mxu0 0.0
      %3935 = vmatmul.mubr.f32.gmra.mrb[0].mxu0 %v3733
      %v3936 = vpop.f32.mrb[0].mxu0
      %v3937 = vadd.f32 0.0, %v3936
      %v3938 = vpop.f32.mrb[0].mxu0
      %v3939 = vadd.f32 0.0, %v3938
      %3940 = vmatprep.mubr.f32.mxu0 0.0
      %3941 = vmatmul.mubr.f32.gmra.mrb[0].mxu0 %v3736
      %v3942 = vpop.f32.mrb[0].mxu0
      %v3943 = vadd.f32 0.0, %v3942
      %v3944 = vpop.f32.mrb[0].mxu0
      %v3945 = vadd.f32 0.0, %v3944
      %3946 = vmatprep.mubr.f32.mxu0 0.0
      %3947 = vmatmul.mubr.f32.gmra.mrb[0].mxu0 %v3739
      %v3948 = vpop.f32.mrb[0].mxu0
      %v3949 = vadd.f32 0.0, %v3948
      %v3950 = vpop.f32.mrb[0].mxu0
      %v3951 = vadd.f32 0.0, %v3950
      %3952 = vmatprep.mubr.f32.mxu0 0.0
      %3953 = vmatmul.mubr.f32.gmra.mrb[0].mxu0 %v3742
      %v3954 = vpop.f32.mrb[0].mxu0
      %v3955 = vadd.f32 0.0, %v3954
      %v3956 = vpop.f32.mrb[0].mxu0
      %v3957 = vadd.f32 0.0, %v3956
      %3958 = vmatprep.mubr.f32.mxu0 0.0
      %3959 = vmatmul.mubr.f32.gmra.mrb[0].mxu0 %v3745
      %v3960 = vpop.f32.mrb[0].mxu0
      %v3961 = vadd.f32 0.0, %v3960
      %v3962 = vpop.f32.mrb[0].mxu0
      %v3963 = vadd.f32 0.0, %v3962
      %3964 = vmatprep.mubr.f32.mxu0 0.0
      %3965 = vmatmul.mubr.f32.gmra.mrb[0].mxu0 %v3748
      %v3966 = vpop.f32.mrb[0].mxu0
      %v3967 = vadd.f32 0.0, %v3966
      %v3968 = vpop.f32.mrb[0].mxu0
      %v3969 = vadd.f32 0.0, %v3968
      %3970 = vmatprep.mubr.f32.mxu0 0.0
      %3971 = vmatmul.mubr.f32.gmra.mrb[0].mxu0 %v3751
      %v3972 = vpop.f32.mrb[0].mxu0
      %v3973 = vadd.f32 0.0, %v3972
      %v3974 = vpop.f32.mrb[0].mxu0
      %v3975 = vadd.f32 0.0, %v3974
      %3976 = vmatprep.mubr.f32.mxu0 0.0
      %3977 = vmatmul.mubr.f32.gmra.mrb[0].mxu0 %v3754
      %v3978 = vpop.f32.mrb[0].mxu0
      %v3979 = vadd.f32 0.0, %v3978
      %v3980 = vpop.f32.mrb[0].mxu0
      %v3981 = vadd.f32 0.0, %v3980
      %3982 = vmatprep.mubr.f32.mxu0 0.0
      %3983 = vmatmul.mubr.f32.gmra.mrb[0].mxu0 %v3757
      %v3984 = vpop.f32.mrb[0].mxu0
      %v3985 = vadd.f32 0.0, %v3984
      %v3986 = vpop.f32.mrb[0].mxu0
      %v3987 = vadd.f32 0.0, %v3986
      %3988 = vmatprep.mubr.f32.mxu0 0.0
      %3989 = vmatmul.mubr.f32.gmra.mrb[0].mxu0 %v3760
      %v3990 = vpop.f32.mrb[0].mxu0
      %v3991 = vadd.f32 0.0, %v3990
      %v3992 = vpop.f32.mrb[0].mxu0
      %v3993 = vadd.f32 0.0, %v3992
      %3994 = vdwg.mxu0
      %v3995 = vadd.f32 %v3594, %v3829
      %v3996 = vadd.f32 %v3595, %v3831
      %v3997 = vadd.f32 %v3596, %v3835
      %v3998 = vadd.f32 %v3597, %v3837
      %v3999 = vadd.f32 %v3598, %v3841
      %v4000 = vadd.f32 %v3599, %v3843
      %v4001 = vadd.f32 %v3600, %v3847
      %v4002 = vadd.f32 %v3601, %v3849
      %v4003 = vadd.f32 %v3602, %v3853
      %v4004 = vadd.f32 %v3603, %v3855
      %v4005 = vadd.f32 %v3604, %v3859
      %v4006 = vadd.f32 %v3605, %v3861
      %v4007 = vadd.f32 %v3606, %v3865
      %v4008 = vadd.f32 %v3607, %v3867
      %v4009 = vadd.f32 %v3608, %v3871
      %v4010 = vadd.f32 %v3609, %v3873
      %v4011 = vadd.f32 %v3610, %v3877
      %v4012 = vadd.f32 %v3611, %v3879
      %v4013 = vadd.f32 %v3612, %v3883
      %v4014 = vadd.f32 %v3613, %v3885
      %v4015 = vadd.f32 %v3614, %v3889
      %v4016 = vadd.f32 %v3615, %v3891
      %v4017 = vadd.f32 %v3616, %v3895
      %v4018 = vadd.f32 %v3617, %v3897
      %v4019 = vadd.f32 %v3618, %v3901
      %v4020 = vadd.f32 %v3619, %v3903
      %v4021 = vadd.f32 %v3620, %v3907
      %v4022 = vadd.f32 %v3621, %v3909
      %v4023 = vadd.f32 %v3622, %v3913
      %v4024 = vadd.f32 %v3623, %v3915
      %v4025 = vadd.f32 %v3624, %v3919
      %v4026 = vadd.f32 %v3625, %v3921
      %v4027 = vadd.f32 %v3626, %v3925
      %v4028 = vadd.f32 %v3627, %v3927
      %v4029 = vadd.f32 %v3628, %v3931
      %v4030 = vadd.f32 %v3629, %v3933
      %v4031 = vadd.f32 %v3630, %v3937
      %v4032 = vadd.f32 %v3631, %v3939
      %v4033 = vadd.f32 %v3632, %v3943
      %v4034 = vadd.f32 %v3633, %v3945
      %v4035 = vadd.f32 %v3634, %v3949
      %v4036 = vadd.f32 %v3635, %v3951
      %v4037 = vadd.f32 %v3636, %v3955
      %v4038 = vadd.f32 %v3637, %v3957
      %v4039 = vadd.f32 %v3638, %v3961
      %v4040 = vadd.f32 %v3639, %v3963
      %v4041 = vadd.f32 %v3640, %v3967
      %v4042 = vadd.f32 %v3641, %v3969
      %v4043 = vadd.f32 %v3642, %v3973
      %v4044 = vadd.f32 %v3643, %v3975
      %v4045 = vadd.f32 %v3644, %v3979
      %v4046 = vadd.f32 %v3645, %v3981
      %v4047 = vadd.f32 %v3646, %v3985
      %v4048 = vadd.f32 %v3647, %v3987
      %v4049 = vadd.f32 %v3648, %v3991
      %v4050 = vadd.f32 %v3649, %v3993
      %v4051 = vmax.f32 %v3995, %v3996
      %v4052 = vmax.f32 %v3997, %v3998
      %v4053 = vmax.f32 %v3999, %v4000
      %v4054 = vmax.f32 %v4001, %v4002
      %v4055 = vmax.f32 %v4003, %v4004
      %v4056 = vmax.f32 %v4005, %v4006
      %v4057 = vmax.f32 %v4007, %v4008
      %v4058 = vmax.f32 %v4009, %v4010
      %v4059 = vmax.f32 %v4011, %v4012
      %v4060 = vmax.f32 %v4013, %v4014
      %v4061 = vmax.f32 %v4015, %v4016
      %v4062 = vmax.f32 %v4017, %v4018
      %v4063 = vmax.f32 %v4019, %v4020
      %v4064 = vmax.f32 %v4021, %v4022
      %v4065 = vmax.f32 %v4023, %v4024
      %v4066 = vmax.f32 %v4025, %v4026
      %v4067 = vmax.f32 %v4027, %v4028
      %v4068 = vmax.f32 %v4029, %v4030
      %v4069 = vmax.f32 %v4031, %v4032
      %v4070 = vmax.f32 %v4033, %v4034
      %v4071 = vmax.f32 %v4035, %v4036
      %v4072 = vmax.f32 %v4037, %v4038
      %v4073 = vmax.f32 %v4039, %v4040
      %v4074 = vmax.f32 %v4041, %v4042
      %v4075 = vmax.f32 %v4043, %v4044
      %v4076 = vmax.f32 %v4045, %v4046
      %v4077 = vmax.f32 %v4047, %v4048
      %v4078 = vmax.f32 %v4049, %v4050
      %v4079 = vmax.f32 %v2578, %v4051
      %v4080 = vmax.f32 %v2579, %v4052
      %v4081 = vmax.f32 %v2580, %v4053
      %v4082 = vmax.f32 %v2581, %v4054
      %v4083 = vmax.f32 %v2582, %v4055
      %v4084 = vmax.f32 %v2583, %v4056
      %v4085 = vmax.f32 %v2584, %v4057
      %v4086 = vmax.f32 %v2585, %v4058
      %v4087 = vmax.f32 %v2586, %v4059
      %v4088 = vmax.f32 %v2587, %v4060
      %v4089 = vmax.f32 %v2588, %v4061
      %v4090 = vmax.f32 %v2589, %v4062
      %v4091 = vmax.f32 %v2590, %v4063
      %v4092 = vmax.f32 %v2591, %v4064
      %v4093 = vmax.f32 %v2592, %v4065
      %v4094 = vmax.f32 %v2593, %v4066
      %v4095 = vmax.f32 %v2594, %v4067
      %v4096 = vmax.f32 %v2595, %v4068
      %v4097 = vmax.f32 %v2596, %v4069
      %v4098 = vmax.f32 %v2597, %v4070
      %v4099 = vmax.f32 %v2598, %v4071
      %v4100 = vmax.f32 %v2599, %v4072
      %v4101 = vmax.f32 %v2600, %v4073
      %v4102 = vmax.f32 %v2601, %v4074
      %v4103 = vmax.f32 %v2602, %v4075
      %v4104 = vmax.f32 %v2603, %v4076
      %v4105 = vmax.f32 %v2604, %v4077
      %v4106 = vmax.f32 %v2605, %v4078
      %v4108 = vlaneseq
      %v4109 = vshrl.u32 %v4108, 7
      %v4110 = vsub.s32 0, %v4109
      %v4111 = vrot.slane %v679, %v4110
      %v4113 = vadd.f32 %v4079, %v4111
      %v4114 = vadd.f32 %v4080, %v4111
      %v4115 = vadd.f32 %v4081, %v4111
      %v4116 = vadd.f32 %v4082, %v4111
      %v4117 = vadd.f32 %v4083, %v4111
      %v4118 = vadd.f32 %v4084, %v4111
      %v4119 = vadd.f32 %v4085, %v4111
      %v4120 = vadd.f32 %v4086, %v4111
      %v4121 = vadd.f32 %v4087, %v4111
      %v4122 = vadd.f32 %v4088, %v4111
      %v4123 = vadd.f32 %v4089, %v4111
      %v4124 = vadd.f32 %v4090, %v4111
      %v4125 = vadd.f32 %v4091, %v4111
      %v4126 = vadd.f32 %v4092, %v4111
      %v4127 = vadd.f32 %v4093, %v4111
      %v4128 = vadd.f32 %v4094, %v4111
      %v4129 = vadd.f32 %v4095, %v4111
      %v4130 = vadd.f32 %v4096, %v4111
      %v4131 = vadd.f32 %v4097, %v4111
      %v4132 = vadd.f32 %v4098, %v4111
      %v4133 = vadd.f32 %v4099, %v4111
      %v4134 = vadd.f32 %v4100, %v4111
      %v4135 = vadd.f32 %v4101, %v4111
      %v4136 = vadd.f32 %v4102, %v4111
      %v4137 = vadd.f32 %v4103, %v4111
      %v4138 = vadd.f32 %v4104, %v4111
      %v4139 = vadd.f32 %v4105, %v4111
      %v4140 = vadd.f32 %v4106, %v4111
      %v4141 = vxor.u32 %v4113, 2147483648
      %v4142 = vxor.u32 %v4114, 2147483648
      %v4143 = vxor.u32 %v4115, 2147483648
      %v4144 = vxor.u32 %v4116, 2147483648
      %v4145 = vxor.u32 %v4117, 2147483648
      %v4146 = vxor.u32 %v4118, 2147483648
      %v4147 = vxor.u32 %v4119, 2147483648
      %v4148 = vxor.u32 %v4120, 2147483648
      %v4149 = vxor.u32 %v4121, 2147483648
      %v4150 = vxor.u32 %v4122, 2147483648
      %v4151 = vxor.u32 %v4123, 2147483648
      %v4152 = vxor.u32 %v4124, 2147483648
      %v4153 = vxor.u32 %v4125, 2147483648
      %v4154 = vxor.u32 %v4126, 2147483648
      %v4155 = vxor.u32 %v4127, 2147483648
      %v4156 = vxor.u32 %v4128, 2147483648
      %v4157 = vxor.u32 %v4129, 2147483648
      %v4158 = vxor.u32 %v4130, 2147483648
      %v4159 = vxor.u32 %v4131, 2147483648
      %v4160 = vxor.u32 %v4132, 2147483648
      %v4161 = vxor.u32 %v4133, 2147483648
      %v4162 = vxor.u32 %v4134, 2147483648
      %v4163 = vxor.u32 %v4135, 2147483648
      %v4164 = vxor.u32 %v4136, 2147483648
      %v4165 = vxor.u32 %v4137, 2147483648
      %v4166 = vxor.u32 %v4138, 2147483648
      %v4167 = vxor.u32 %v4139, 2147483648
      %v4168 = vxor.u32 %v4140, 2147483648
      %v4169 = vmul.f32 %v4141, 1.442695
      %v4170 = vpow.pop %v4169
      %v4171 = vmul.f32 %v4142, 1.442695
      %v4172 = vpow.pop %v4171
      %v4173 = vmul.f32 %v4143, 1.442695
      %v4174 = vpow.pop %v4173
      %v4175 = vmul.f32 %v4144, 1.442695
      %v4176 = vpow.pop %v4175
      %v4177 = vmul.f32 %v4145, 1.442695
      %v4178 = vpow.pop %v4177
      %v4179 = vmul.f32 %v4146, 1.442695
      %v4180 = vpow.pop %v4179
      %v4181 = vmul.f32 %v4147, 1.442695
      %v4182 = vpow.pop %v4181
      %v4183 = vmul.f32 %v4148, 1.442695
      %v4184 = vpow.pop %v4183
      %v4185 = vmul.f32 %v4149, 1.442695
      %v4186 = vpow.pop %v4185
      %v4187 = vmul.f32 %v4150, 1.442695
      %v4188 = vpow.pop %v4187
      %v4189 = vmul.f32 %v4151, 1.442695
      %v4190 = vpow.pop %v4189
      %v4191 = vmul.f32 %v4152, 1.442695
      %v4192 = vpow.pop %v4191
      %v4193 = vmul.f32 %v4153, 1.442695
      %v4194 = vpow.pop %v4193
      %v4195 = vmul.f32 %v4154, 1.442695
      %v4196 = vpow.pop %v4195
      %v4197 = vmul.f32 %v4155, 1.442695
      %v4198 = vpow.pop %v4197
      %v4199 = vmul.f32 %v4156, 1.442695
      %v4200 = vpow.pop %v4199
      %v4201 = vmul.f32 %v4157, 1.442695
      %v4202 = vpow.pop %v4201
      %v4203 = vmul.f32 %v4158, 1.442695
      %v4204 = vpow.pop %v4203
      %v4205 = vmul.f32 %v4159, 1.442695
      %v4206 = vpow.pop %v4205
      %v4207 = vmul.f32 %v4160, 1.442695
      %v4208 = vpow.pop %v4207
      %v4209 = vmul.f32 %v4161, 1.442695
      %v4210 = vpow.pop %v4209
      %v4211 = vmul.f32 %v4162, 1.442695
      %v4212 = vpow.pop %v4211
      %v4213 = vmul.f32 %v4163, 1.442695
      %v4214 = vpow.pop %v4213
      %v4215 = vmul.f32 %v4164, 1.442695
      %v4216 = vpow.pop %v4215
      %v4217 = vmul.f32 %v4165, 1.442695
      %v4218 = vpow.pop %v4217
      %v4219 = vmul.f32 %v4166, 1.442695
      %v4220 = vpow.pop %v4219
      %v4221 = vmul.f32 %v4167, 1.442695
      %v4222 = vpow.pop %v4221
      %v4223 = vmul.f32 %v4168, 1.442695
      %v4224 = vpow.pop %v4223
      %v4225 = vadd.f32 %v4170, 1.0
      %v4226 = vadd.f32 %v4172, 1.0
      %v4227 = vadd.f32 %v4174, 1.0
      %v4228 = vadd.f32 %v4176, 1.0
      %v4229 = vadd.f32 %v4178, 1.0
      %v4230 = vadd.f32 %v4180, 1.0
      %v4231 = vadd.f32 %v4182, 1.0
      %v4232 = vadd.f32 %v4184, 1.0
      %v4233 = vadd.f32 %v4186, 1.0
      %v4234 = vadd.f32 %v4188, 1.0
      %v4235 = vadd.f32 %v4190, 1.0
      %v4236 = vadd.f32 %v4192, 1.0
      %v4237 = vadd.f32 %v4194, 1.0
      %v4238 = vadd.f32 %v4196, 1.0
      %v4239 = vadd.f32 %v4198, 1.0
      %v4240 = vadd.f32 %v4200, 1.0
      %v4241 = vadd.f32 %v4202, 1.0
      %v4242 = vadd.f32 %v4204, 1.0
      %v4243 = vadd.f32 %v4206, 1.0
      %v4244 = vadd.f32 %v4208, 1.0
      %v4245 = vadd.f32 %v4210, 1.0
      %v4246 = vadd.f32 %v4212, 1.0
      %v4247 = vadd.f32 %v4214, 1.0
      %v4248 = vadd.f32 %v4216, 1.0
      %v4249 = vadd.f32 %v4218, 1.0
      %v4250 = vadd.f32 %v4220, 1.0
      %v4251 = vadd.f32 %v4222, 1.0
      %v4252 = vadd.f32 %v4224, 1.0
      %v4253 = vrcp.pop %v4225
      %v4254 = vmul.f32 1.0, %v4253
      %v4255 = vrcp.pop %v4226
      %v4256 = vmul.f32 1.0, %v4255
      %v4257 = vrcp.pop %v4227
      %v4258 = vmul.f32 1.0, %v4257
      %v4259 = vrcp.pop %v4228
      %v4260 = vmul.f32 1.0, %v4259
      %v4261 = vrcp.pop %v4229
      %v4262 = vmul.f32 1.0, %v4261
      %v4263 = vrcp.pop %v4230
      %v4264 = vmul.f32 1.0, %v4263
      %v4265 = vrcp.pop %v4231
      %v4266 = vmul.f32 1.0, %v4265
      %v4267 = vrcp.pop %v4232
      %v4268 = vmul.f32 1.0, %v4267
      %v4269 = vrcp.pop %v4233
      %v4270 = vmul.f32 1.0, %v4269
      %v4271 = vrcp.pop %v4234
      %v4272 = vmul.f32 1.0, %v4271
      %v4273 = vrcp.pop %v4235
      %v4274 = vmul.f32 1.0, %v4273
      %v4275 = vrcp.pop %v4236
      %v4276 = vmul.f32 1.0, %v4275
      %v4277 = vrcp.pop %v4237
      %v4278 = vmul.f32 1.0, %v4277
      %v4279 = vrcp.pop %v4238
      %v4280 = vmul.f32 1.0, %v4279
      %v4281 = vrcp.pop %v4239
      %v4282 = vmul.f32 1.0, %v4281
      %v4283 = vrcp.pop %v4240
      %v4284 = vmul.f32 1.0, %v4283
      %v4285 = vrcp.pop %v4241
      %v4286 = vmul.f32 1.0, %v4285
      %v4287 = vrcp.pop %v4242
      %v4288 = vmul.f32 1.0, %v4287
      %v4289 = vrcp.pop %v4243
      %v4290 = vmul.f32 1.0, %v4289
      %v4291 = vrcp.pop %v4244
      %v4292 = vmul.f32 1.0, %v4291
      %v4293 = vrcp.pop %v4245
      %v4294 = vmul.f32 1.0, %v4293
      %v4295 = vrcp.pop %v4246
      %v4296 = vmul.f32 1.0, %v4295
      %v4297 = vrcp.pop %v4247
      %v4298 = vmul.f32 1.0, %v4297
      %v4299 = vrcp.pop %v4248
      %v4300 = vmul.f32 1.0, %v4299
      %v4301 = vrcp.pop %v4249
      %v4302 = vmul.f32 1.0, %v4301
      %v4303 = vrcp.pop %v4250
      %v4304 = vmul.f32 1.0, %v4303
      %v4305 = vrcp.pop %v4251
      %v4306 = vmul.f32 1.0, %v4305
      %v4307 = vrcp.pop %v4252
      %v4308 = vmul.f32 1.0, %v4307
      %4309 = vmatprep.subr.mxu0 %v397
      %4310 = vmatpush1.msra.mxu0 %v396
      %4311 = vmatprep.subr.mxu0 %v399
      %4312 = vmatpush1.msra.mxu0 %v398
      %4313 = vmatprep.subr.mxu0 %v401
      %4314 = vmatpush1.msra.mxu0 %v400
      %4315 = vmatprep.subr.mxu0 %v403
      %4316 = vmatpush1.msra.mxu0 %v402
      %4317 = vmatprep.subr.mxu0 0.0
      %4318 = vmatpush1.msra.mxu0 0.0
      %4319 = vmatprep.subr.mxu0 0.0
      %4320 = vmatpush1.msra.mxu0 0.0
      %4321 = vmatprep.subr.mxu0 0.0
      %4322 = vmatpush1.msra.mxu0 0.0
      %4323 = vmatprep.subr.mxu0 0.0
      %4324 = vmatpush1.msra.mxu0 0.0
      %4325 = vmatprep.subr.mxu0 0.0
      %4326 = vmatpush1.msra.mxu0 0.0
      %4327 = vmatprep.subr.mxu0 0.0
      %4328 = vmatpush1.msra.mxu0 0.0
      %4329 = vmatprep.subr.mxu0 0.0
      %4330 = vmatpush1.msra.mxu0 0.0
      %4331 = vmatprep.subr.mxu0 0.0
      %4332 = vmatpush1.msra.mxu0 0.0
      %4333 = vmatprep.subr.mxu0 0.0
      %4334 = vmatpush1.msra.mxu0 0.0
      %4335 = vmatprep.subr.mxu0 0.0
      %4336 = vmatpush1.msra.mxu0 0.0
      %4337 = vmatprep.subr.mxu0 0.0
      %4338 = vmatpush1.msra.mxu0 0.0
      %4339 = vmatprep.subr.mxu0 0.0
      %4340 = vmatpush1.msra.mxu0 0.0
      %4341 = vmatprep.subr.mxu0 0.0
      %4342 = vmatpush1.msra.mxu0 0.0
      %4343 = vmatprep.subr.mxu0 0.0
      %4344 = vmatpush1.msra.mxu0 0.0
      %4345 = vmatprep.subr.mxu0 0.0
      %4346 = vmatpush1.msra.mxu0 0.0
      %4347 = vmatprep.subr.mxu0 0.0
      %4348 = vmatpush1.msra.mxu0 0.0
      %4349 = vmatprep.subr.mxu0 0.0
      %4350 = vmatpush1.msra.mxu0 0.0
      %4351 = vmatprep.subr.mxu0 0.0
      %4352 = vmatpush1.msra.mxu0 0.0
      %4353 = vmatprep.subr.mxu0 0.0
      %4354 = vmatpush1.msra.mxu0 0.0
      %4355 = vmatprep.subr.mxu0 0.0
      %4356 = vmatpush1.msra.mxu0 0.0
      %4357 = vmatprep.subr.mxu0 0.0
      %4358 = vmatpush1.msra.mxu0 0.0
      %4359 = vmatprep.subr.mxu0 0.0
      %4360 = vmatpush1.msra.mxu0 0.0
      %4361 = vmatprep.subr.mxu0 0.0
      %4362 = vmatpush1.msra.mxu0 0.0
      %4363 = vmatprep.subr.mxu0 0.0
      %4364 = vmatpush1.msra.mxu0 0.0
      %4365 = vmatprep.subr.mxu0 0.0
      %4366 = vmatpush1.msra.mxu0 0.0
      %4367 = vmatprep.subr.mxu0 0.0
      %4368 = vmatpush1.msra.mxu0 0.0
      %4369 = vmatprep.subr.mxu0 0.0
      %4370 = vmatpush1.msra.mxu0 0.0
      %4371 = vmatprep.subr.mxu0 0.0
      %4372 = vmatpush1.msra.mxu0 0.0
      %4373 = vmatprep.mubr.f32.mxu0 0.0
      %4374 = vmatmul.mubr.f32.gmra.mrb[0].mxu0 %v1805
      %v4375 = vpop.f32.mrb[0].mxu0
      %v4376 = vadd.f32 0.0, %v4375
      %v4377 = vpop.f32.mrb[0].mxu0
      %v4378 = vadd.f32 0.0, %v4377
      %4379 = vmatprep.mubr.f32.mxu0 0.0
      %4380 = vmatmul.mubr.f32.gmra.mrb[0].mxu0 %v1808
      %v4381 = vpop.f32.mrb[0].mxu0
      %v4382 = vadd.f32 0.0, %v4381
      %v4383 = vpop.f32.mrb[0].mxu0
      %v4384 = vadd.f32 0.0, %v4383
      %4385 = vmatprep.mubr.f32.mxu0 0.0
      %4386 = vmatmul.mubr.f32.gmra.mrb[0].mxu0 %v1811
      %v4387 = vpop.f32.mrb[0].mxu0
      %v4388 = vadd.f32 0.0, %v4387
      %v4389 = vpop.f32.mrb[0].mxu0
      %v4390 = vadd.f32 0.0, %v4389
      %4391 = vmatprep.mubr.f32.mxu0 0.0
      %4392 = vmatmul.mubr.f32.gmra.mrb[0].mxu0 %v1814
      %v4393 = vpop.f32.mrb[0].mxu0
      %v4394 = vadd.f32 0.0, %v4393
      %v4395 = vpop.f32.mrb[0].mxu0
      %v4396 = vadd.f32 0.0, %v4395
      %4397 = vmatprep.mubr.f32.mxu0 0.0
      %4398 = vmatmul.mubr.f32.gmra.mrb[0].mxu0 %v1817
      %v4399 = vpop.f32.mrb[0].mxu0
      %v4400 = vadd.f32 0.0, %v4399
      %v4401 = vpop.f32.mrb[0].mxu0
      %v4402 = vadd.f32 0.0, %v4401
      %4403 = vmatprep.mubr.f32.mxu0 0.0
      %4404 = vmatmul.mubr.f32.gmra.mrb[0].mxu0 %v1820
      %v4405 = vpop.f32.mrb[0].mxu0
      %v4406 = vadd.f32 0.0, %v4405
      %v4407 = vpop.f32.mrb[0].mxu0
      %v4408 = vadd.f32 0.0, %v4407
      %4409 = vmatprep.mubr.f32.mxu0 0.0
      %4410 = vmatmul.mubr.f32.gmra.mrb[0].mxu0 %v1823
      %v4411 = vpop.f32.mrb[0].mxu0
      %v4412 = vadd.f32 0.0, %v4411
      %v4413 = vpop.f32.mrb[0].mxu0
      %v4414 = vadd.f32 0.0, %v4413
      %4415 = vmatprep.mubr.f32.mxu0 0.0
      %4416 = vmatmul.mubr.f32.gmra.mrb[0].mxu0 %v1826
      %v4417 = vpop.f32.mrb[0].mxu0
      %v4418 = vadd.f32 0.0, %v4417
      %v4419 = vpop.f32.mrb[0].mxu0
      %v4420 = vadd.f32 0.0, %v4419
      %4421 = vmatprep.mubr.f32.mxu0 0.0
      %4422 = vmatmul.mubr.f32.gmra.mrb[0].mxu0 %v1829
      %v4423 = vpop.f32.mrb[0].mxu0
      %v4424 = vadd.f32 0.0, %v4423
      %v4425 = vpop.f32.mrb[0].mxu0
      %v4426 = vadd.f32 0.0, %v4425
      %4427 = vmatprep.mubr.f32.mxu0 0.0
      %4428 = vmatmul.mubr.f32.gmra.mrb[0].mxu0 %v1832
      %v4429 = vpop.f32.mrb[0].mxu0
      %v4430 = vadd.f32 0.0, %v4429
      %v4431 = vpop.f32.mrb[0].mxu0
      %v4432 = vadd.f32 0.0, %v4431
      %4433 = vmatprep.mubr.f32.mxu0 0.0
      %4434 = vmatmul.mubr.f32.gmra.mrb[0].mxu0 %v1835
      %v4435 = vpop.f32.mrb[0].mxu0
      %v4436 = vadd.f32 0.0, %v4435
      %v4437 = vpop.f32.mrb[0].mxu0
      %v4438 = vadd.f32 0.0, %v4437
      %4439 = vmatprep.mubr.f32.mxu0 0.0
      %4440 = vmatmul.mubr.f32.gmra.mrb[0].mxu0 %v1838
      %v4441 = vpop.f32.mrb[0].mxu0
      %v4442 = vadd.f32 0.0, %v4441
      %v4443 = vpop.f32.mrb[0].mxu0
      %v4444 = vadd.f32 0.0, %v4443
      %4445 = vmatprep.mubr.f32.mxu0 0.0
      %4446 = vmatmul.mubr.f32.gmra.mrb[0].mxu0 %v1841
      %v4447 = vpop.f32.mrb[0].mxu0
      %v4448 = vadd.f32 0.0, %v4447
      %v4449 = vpop.f32.mrb[0].mxu0
      %v4450 = vadd.f32 0.0, %v4449
      %4451 = vmatprep.mubr.f32.mxu0 0.0
      %4452 = vmatmul.mubr.f32.gmra.mrb[0].mxu0 %v1844
      %v4453 = vpop.f32.mrb[0].mxu0
      %v4454 = vadd.f32 0.0, %v4453
      %v4455 = vpop.f32.mrb[0].mxu0
      %v4456 = vadd.f32 0.0, %v4455
      %4457 = vmatprep.mubr.f32.mxu0 0.0
      %4458 = vmatmul.mubr.f32.gmra.mrb[0].mxu0 %v1847
      %v4459 = vpop.f32.mrb[0].mxu0
      %v4460 = vadd.f32 0.0, %v4459
      %v4461 = vpop.f32.mrb[0].mxu0
      %v4462 = vadd.f32 0.0, %v4461
      %4463 = vmatprep.mubr.f32.mxu0 0.0
      %4464 = vmatmul.mubr.f32.gmra.mrb[0].mxu0 %v1850
      %v4465 = vpop.f32.mrb[0].mxu0
      %v4466 = vadd.f32 0.0, %v4465
      %v4467 = vpop.f32.mrb[0].mxu0
      %v4468 = vadd.f32 0.0, %v4467
      %4469 = vmatprep.mubr.f32.mxu0 0.0
      %4470 = vmatmul.mubr.f32.gmra.mrb[0].mxu0 %v1853
      %v4471 = vpop.f32.mrb[0].mxu0
      %v4472 = vadd.f32 0.0, %v4471
      %v4473 = vpop.f32.mrb[0].mxu0
      %v4474 = vadd.f32 0.0, %v4473
      %4475 = vmatprep.mubr.f32.mxu0 0.0
      %4476 = vmatmul.mubr.f32.gmra.mrb[0].mxu0 %v1856
      %v4477 = vpop.f32.mrb[0].mxu0
      %v4478 = vadd.f32 0.0, %v4477
      %v4479 = vpop.f32.mrb[0].mxu0
      %v4480 = vadd.f32 0.0, %v4479
      %4481 = vmatprep.mubr.f32.mxu0 0.0
      %4482 = vmatmul.mubr.f32.gmra.mrb[0].mxu0 %v1859
      %v4483 = vpop.f32.mrb[0].mxu0
      %v4484 = vadd.f32 0.0, %v4483
      %v4485 = vpop.f32.mrb[0].mxu0
      %v4486 = vadd.f32 0.0, %v4485
      %4487 = vmatprep.mubr.f32.mxu0 0.0
      %4488 = vmatmul.mubr.f32.gmra.mrb[0].mxu0 %v1862
      %v4489 = vpop.f32.mrb[0].mxu0
      %v4490 = vadd.f32 0.0, %v4489
      %v4491 = vpop.f32.mrb[0].mxu0
      %v4492 = vadd.f32 0.0, %v4491
      %4493 = vmatprep.mubr.f32.mxu0 0.0
      %4494 = vmatmul.mubr.f32.gmra.mrb[0].mxu0 %v1865
      %v4495 = vpop.f32.mrb[0].mxu0
      %v4496 = vadd.f32 0.0, %v4495
      %v4497 = vpop.f32.mrb[0].mxu0
      %v4498 = vadd.f32 0.0, %v4497
      %4499 = vmatprep.mubr.f32.mxu0 0.0
      %4500 = vmatmul.mubr.f32.gmra.mrb[0].mxu0 %v1868
      %v4501 = vpop.f32.mrb[0].mxu0
      %v4502 = vadd.f32 0.0, %v4501
      %v4503 = vpop.f32.mrb[0].mxu0
      %v4504 = vadd.f32 0.0, %v4503
      %4505 = vmatprep.mubr.f32.mxu0 0.0
      %4506 = vmatmul.mubr.f32.gmra.mrb[0].mxu0 %v1871
      %v4507 = vpop.f32.mrb[0].mxu0
      %v4508 = vadd.f32 0.0, %v4507
      %v4509 = vpop.f32.mrb[0].mxu0
      %v4510 = vadd.f32 0.0, %v4509
      %4511 = vmatprep.mubr.f32.mxu0 0.0
      %4512 = vmatmul.mubr.f32.gmra.mrb[0].mxu0 %v1874
      %v4513 = vpop.f32.mrb[0].mxu0
      %v4514 = vadd.f32 0.0, %v4513
      %v4515 = vpop.f32.mrb[0].mxu0
      %v4516 = vadd.f32 0.0, %v4515
      %4517 = vmatprep.mubr.f32.mxu0 0.0
      %4518 = vmatmul.mubr.f32.gmra.mrb[0].mxu0 %v1877
      %v4519 = vpop.f32.mrb[0].mxu0
      %v4520 = vadd.f32 0.0, %v4519
      %v4521 = vpop.f32.mrb[0].mxu0
      %v4522 = vadd.f32 0.0, %v4521
      %4523 = vmatprep.mubr.f32.mxu0 0.0
      %4524 = vmatmul.mubr.f32.gmra.mrb[0].mxu0 %v1880
      %v4525 = vpop.f32.mrb[0].mxu0
      %v4526 = vadd.f32 0.0, %v4525
      %v4527 = vpop.f32.mrb[0].mxu0
      %v4528 = vadd.f32 0.0, %v4527
      %4529 = vmatprep.mubr.f32.mxu0 0.0
      %4530 = vmatmul.mubr.f32.gmra.mrb[0].mxu0 %v1883
      %v4531 = vpop.f32.mrb[0].mxu0
      %v4532 = vadd.f32 0.0, %v4531
      %v4533 = vpop.f32.mrb[0].mxu0
      %v4534 = vadd.f32 0.0, %v4533
      %4535 = vmatprep.mubr.f32.mxu0 0.0
      %4536 = vmatmul.mubr.f32.gmra.mrb[0].mxu0 %v1886
      %v4537 = vpop.f32.mrb[0].mxu0
      %v4538 = vadd.f32 0.0, %v4537
      %v4539 = vpop.f32.mrb[0].mxu0
      %v4540 = vadd.f32 0.0, %v4539
      %4541 = vdwg.mxu0
      %4542 = vmatprep.subr.mxu0 %v388
      %4543 = vmatpush1.msra.mxu0 %v387
      %4544 = vmatprep.subr.mxu0 %v390
      %4545 = vmatpush1.msra.mxu0 %v389
      %4546 = vmatprep.subr.mxu0 %v392
      %4547 = vmatpush1.msra.mxu0 %v391
      %4548 = vmatprep.subr.mxu0 %v394
      %4549 = vmatpush1.msra.mxu0 %v393
      %4550 = vmatprep.subr.mxu0 0.0
      %4551 = vmatpush1.msra.mxu0 0.0
      %4552 = vmatprep.subr.mxu0 0.0
      %4553 = vmatpush1.msra.mxu0 0.0
      %4554 = vmatprep.subr.mxu0 0.0
      %4555 = vmatpush1.msra.mxu0 0.0
      %4556 = vmatprep.subr.mxu0 0.0
      %4557 = vmatpush1.msra.mxu0 0.0
      %4558 = vmatprep.subr.mxu0 0.0
      %4559 = vmatpush1.msra.mxu0 0.0
      %4560 = vmatprep.subr.mxu0 0.0
      %4561 = vmatpush1.msra.mxu0 0.0
      %4562 = vmatprep.subr.mxu0 0.0
      %4563 = vmatpush1.msra.mxu0 0.0
      %4564 = vmatprep.subr.mxu0 0.0
      %4565 = vmatpush1.msra.mxu0 0.0
      %4566 = vmatprep.subr.mxu0 0.0
      %4567 = vmatpush1.msra.mxu0 0.0
      %4568 = vmatprep.subr.mxu0 0.0
      %4569 = vmatpush1.msra.mxu0 0.0
      %4570 = vmatprep.subr.mxu0 0.0
      %4571 = vmatpush1.msra.mxu0 0.0
      %4572 = vmatprep.subr.mxu0 0.0
      %4573 = vmatpush1.msra.mxu0 0.0
      %4574 = vmatprep.subr.mxu0 0.0
      %4575 = vmatpush1.msra.mxu0 0.0
      %4576 = vmatprep.subr.mxu0 0.0
      %4577 = vmatpush1.msra.mxu0 0.0
      %4578 = vmatprep.subr.mxu0 0.0
      %4579 = vmatpush1.msra.mxu0 0.0
      %4580 = vmatprep.subr.mxu0 0.0
      %4581 = vmatpush1.msra.mxu0 0.0
      %4582 = vmatprep.subr.mxu0 0.0
      %4583 = vmatpush1.msra.mxu0 0.0
      %4584 = vmatprep.subr.mxu0 0.0
      %4585 = vmatpush1.msra.mxu0 0.0
      %4586 = vmatprep.subr.mxu0 0.0
      %4587 = vmatpush1.msra.mxu0 0.0
      %4588 = vmatprep.subr.mxu0 0.0
      %4589 = vmatpush1.msra.mxu0 0.0
      %4590 = vmatprep.subr.mxu0 0.0
      %4591 = vmatpush1.msra.mxu0 0.0
      %4592 = vmatprep.subr.mxu0 0.0
      %4593 = vmatpush1.msra.mxu0 0.0
      %4594 = vmatprep.subr.mxu0 0.0
      %4595 = vmatpush1.msra.mxu0 0.0
      %4596 = vmatprep.subr.mxu0 0.0
      %4597 = vmatpush1.msra.mxu0 0.0
      %4598 = vmatprep.subr.mxu0 0.0
      %4599 = vmatpush1.msra.mxu0 0.0
      %4600 = vmatprep.subr.mxu0 0.0
      %4601 = vmatpush1.msra.mxu0 0.0
      %4602 = vmatprep.subr.mxu0 0.0
      %4603 = vmatpush1.msra.mxu0 0.0
      %4604 = vmatprep.subr.mxu0 0.0
      %4605 = vmatpush1.msra.mxu0 0.0
      %4606 = vmatprep.mubr.f32.mxu0 0.0
      %4607 = vmatmul.mubr.f32.gmra.mrb[0].mxu0 %v1403
      %v4608 = vpop.f32.mrb[0].mxu0
      %v4609 = vadd.f32 %v4376, %v4608
      %v4610 = vpop.f32.mrb[0].mxu0
      %v4611 = vadd.f32 %v4378, %v4610
      %4612 = vmatprep.mubr.f32.mxu0 0.0
      %4613 = vmatmul.mubr.f32.gmra.mrb[0].mxu0 %v1406
      %v4614 = vpop.f32.mrb[0].mxu0
      %v4615 = vadd.f32 %v4382, %v4614
      %v4616 = vpop.f32.mrb[0].mxu0
      %v4617 = vadd.f32 %v4384, %v4616
      %4618 = vmatprep.mubr.f32.mxu0 0.0
      %4619 = vmatmul.mubr.f32.gmra.mrb[0].mxu0 %v1409
      %v4620 = vpop.f32.mrb[0].mxu0
      %v4621 = vadd.f32 %v4388, %v4620
      %v4622 = vpop.f32.mrb[0].mxu0
      %v4623 = vadd.f32 %v4390, %v4622
      %4624 = vmatprep.mubr.f32.mxu0 0.0
      %4625 = vmatmul.mubr.f32.gmra.mrb[0].mxu0 %v1412
      %v4626 = vpop.f32.mrb[0].mxu0
      %v4627 = vadd.f32 %v4394, %v4626
      %v4628 = vpop.f32.mrb[0].mxu0
      %v4629 = vadd.f32 %v4396, %v4628
      %4630 = vmatprep.mubr.f32.mxu0 0.0
      %4631 = vmatmul.mubr.f32.gmra.mrb[0].mxu0 %v1415
      %v4632 = vpop.f32.mrb[0].mxu0
      %v4633 = vadd.f32 %v4400, %v4632
      %v4634 = vpop.f32.mrb[0].mxu0
      %v4635 = vadd.f32 %v4402, %v4634
      %4636 = vmatprep.mubr.f32.mxu0 0.0
      %4637 = vmatmul.mubr.f32.gmra.mrb[0].mxu0 %v1418
      %v4638 = vpop.f32.mrb[0].mxu0
      %v4639 = vadd.f32 %v4406, %v4638
      %v4640 = vpop.f32.mrb[0].mxu0
      %v4641 = vadd.f32 %v4408, %v4640
      %4642 = vmatprep.mubr.f32.mxu0 0.0
      %4643 = vmatmul.mubr.f32.gmra.mrb[0].mxu0 %v1421
      %v4644 = vpop.f32.mrb[0].mxu0
      %v4645 = vadd.f32 %v4412, %v4644
      %v4646 = vpop.f32.mrb[0].mxu0
      %v4647 = vadd.f32 %v4414, %v4646
      %4648 = vmatprep.mubr.f32.mxu0 0.0
      %4649 = vmatmul.mubr.f32.gmra.mrb[0].mxu0 %v1424
      %v4650 = vpop.f32.mrb[0].mxu0
      %v4651 = vadd.f32 %v4418, %v4650
      %v4652 = vpop.f32.mrb[0].mxu0
      %v4653 = vadd.f32 %v4420, %v4652
      %4654 = vmatprep.mubr.f32.mxu0 0.0
      %4655 = vmatmul.mubr.f32.gmra.mrb[0].mxu0 %v1427
      %v4656 = vpop.f32.mrb[0].mxu0
      %v4657 = vadd.f32 %v4424, %v4656
      %v4658 = vpop.f32.mrb[0].mxu0
      %v4659 = vadd.f32 %v4426, %v4658
      %4660 = vmatprep.mubr.f32.mxu0 0.0
      %4661 = vmatmul.mubr.f32.gmra.mrb[0].mxu0 %v1430
      %v4662 = vpop.f32.mrb[0].mxu0
      %v4663 = vadd.f32 %v4430, %v4662
      %v4664 = vpop.f32.mrb[0].mxu0
      %v4665 = vadd.f32 %v4432, %v4664
      %4666 = vmatprep.mubr.f32.mxu0 0.0
      %4667 = vmatmul.mubr.f32.gmra.mrb[0].mxu0 %v1433
      %v4668 = vpop.f32.mrb[0].mxu0
      %v4669 = vadd.f32 %v4436, %v4668
      %v4670 = vpop.f32.mrb[0].mxu0
      %v4671 = vadd.f32 %v4438, %v4670
      %4672 = vmatprep.mubr.f32.mxu0 0.0
      %4673 = vmatmul.mubr.f32.gmra.mrb[0].mxu0 %v1436
      %v4674 = vpop.f32.mrb[0].mxu0
      %v4675 = vadd.f32 %v4442, %v4674
      %v4676 = vpop.f32.mrb[0].mxu0
      %v4677 = vadd.f32 %v4444, %v4676
      %4678 = vmatprep.mubr.f32.mxu0 0.0
      %4679 = vmatmul.mubr.f32.gmra.mrb[0].mxu0 %v1439
      %v4680 = vpop.f32.mrb[0].mxu0
      %v4681 = vadd.f32 %v4448, %v4680
      %v4682 = vpop.f32.mrb[0].mxu0
      %v4683 = vadd.f32 %v4450, %v4682
      %4684 = vmatprep.mubr.f32.mxu0 0.0
      %4685 = vmatmul.mubr.f32.gmra.mrb[0].mxu0 %v1442
      %v4686 = vpop.f32.mrb[0].mxu0
      %v4687 = vadd.f32 %v4454, %v4686
      %v4688 = vpop.f32.mrb[0].mxu0
      %v4689 = vadd.f32 %v4456, %v4688
      %4690 = vmatprep.mubr.f32.mxu0 0.0
      %4691 = vmatmul.mubr.f32.gmra.mrb[0].mxu0 %v1445
      %v4692 = vpop.f32.mrb[0].mxu0
      %v4693 = vadd.f32 %v4460, %v4692
      %v4694 = vpop.f32.mrb[0].mxu0
      %v4695 = vadd.f32 %v4462, %v4694
      %4696 = vmatprep.mubr.f32.mxu0 0.0
      %4697 = vmatmul.mubr.f32.gmra.mrb[0].mxu0 %v1448
      %v4698 = vpop.f32.mrb[0].mxu0
      %v4699 = vadd.f32 %v4466, %v4698
      %v4700 = vpop.f32.mrb[0].mxu0
      %v4701 = vadd.f32 %v4468, %v4700
      %4702 = vmatprep.mubr.f32.mxu0 0.0
      %4703 = vmatmul.mubr.f32.gmra.mrb[0].mxu0 %v1451
      %v4704 = vpop.f32.mrb[0].mxu0
      %v4705 = vadd.f32 %v4472, %v4704
      %v4706 = vpop.f32.mrb[0].mxu0
      %v4707 = vadd.f32 %v4474, %v4706
      %4708 = vmatprep.mubr.f32.mxu0 0.0
      %4709 = vmatmul.mubr.f32.gmra.mrb[0].mxu0 %v1454
      %v4710 = vpop.f32.mrb[0].mxu0
      %v4711 = vadd.f32 %v4478, %v4710
      %v4712 = vpop.f32.mrb[0].mxu0
      %v4713 = vadd.f32 %v4480, %v4712
      %4714 = vmatprep.mubr.f32.mxu0 0.0
      %4715 = vmatmul.mubr.f32.gmra.mrb[0].mxu0 %v1457
      %v4716 = vpop.f32.mrb[0].mxu0
      %v4717 = vadd.f32 %v4484, %v4716
      %v4718 = vpop.f32.mrb[0].mxu0
      %v4719 = vadd.f32 %v4486, %v4718
      %4720 = vmatprep.mubr.f32.mxu0 0.0
      %4721 = vmatmul.mubr.f32.gmra.mrb[0].mxu0 %v1460
      %v4722 = vpop.f32.mrb[0].mxu0
      %v4723 = vadd.f32 %v4490, %v4722
      %v4724 = vpop.f32.mrb[0].mxu0
      %v4725 = vadd.f32 %v4492, %v4724
      %4726 = vmatprep.mubr.f32.mxu0 0.0
      %4727 = vmatmul.mubr.f32.gmra.mrb[0].mxu0 %v1463
      %v4728 = vpop.f32.mrb[0].mxu0
      %v4729 = vadd.f32 %v4496, %v4728
      %v4730 = vpop.f32.mrb[0].mxu0
      %v4731 = vadd.f32 %v4498, %v4730
      %4732 = vmatprep.mubr.f32.mxu0 0.0
      %4733 = vmatmul.mubr.f32.gmra.mrb[0].mxu0 %v1466
      %v4734 = vpop.f32.mrb[0].mxu0
      %v4735 = vadd.f32 %v4502, %v4734
      %v4736 = vpop.f32.mrb[0].mxu0
      %v4737 = vadd.f32 %v4504, %v4736
      %4738 = vmatprep.mubr.f32.mxu0 0.0
      %4739 = vmatmul.mubr.f32.gmra.mrb[0].mxu0 %v1469
      %v4740 = vpop.f32.mrb[0].mxu0
      %v4741 = vadd.f32 %v4508, %v4740
      %v4742 = vpop.f32.mrb[0].mxu0
      %v4743 = vadd.f32 %v4510, %v4742
      %4744 = vmatprep.mubr.f32.mxu0 0.0
      %4745 = vmatmul.mubr.f32.gmra.mrb[0].mxu0 %v1472
      %v4746 = vpop.f32.mrb[0].mxu0
      %v4747 = vadd.f32 %v4514, %v4746
      %v4748 = vpop.f32.mrb[0].mxu0
      %v4749 = vadd.f32 %v4516, %v4748
      %4750 = vmatprep.mubr.f32.mxu0 0.0
      %4751 = vmatmul.mubr.f32.gmra.mrb[0].mxu0 %v1475
      %v4752 = vpop.f32.mrb[0].mxu0
      %v4753 = vadd.f32 %v4520, %v4752
      %v4754 = vpop.f32.mrb[0].mxu0
      %v4755 = vadd.f32 %v4522, %v4754
      %4756 = vmatprep.mubr.f32.mxu0 0.0
      %4757 = vmatmul.mubr.f32.gmra.mrb[0].mxu0 %v1478
      %v4758 = vpop.f32.mrb[0].mxu0
      %v4759 = vadd.f32 %v4526, %v4758
      %v4760 = vpop.f32.mrb[0].mxu0
      %v4761 = vadd.f32 %v4528, %v4760
      %4762 = vmatprep.mubr.f32.mxu0 0.0
      %4763 = vmatmul.mubr.f32.gmra.mrb[0].mxu0 %v1481
      %v4764 = vpop.f32.mrb[0].mxu0
      %v4765 = vadd.f32 %v4532, %v4764
      %v4766 = vpop.f32.mrb[0].mxu0
      %v4767 = vadd.f32 %v4534, %v4766
      %4768 = vmatprep.mubr.f32.mxu0 0.0
      %4769 = vmatmul.mubr.f32.gmra.mrb[0].mxu0 %v1484
      %v4770 = vpop.f32.mrb[0].mxu0
      %v4771 = vadd.f32 %v4538, %v4770
      %v4772 = vpop.f32.mrb[0].mxu0
      %v4773 = vadd.f32 %v4540, %v4772
      %4774 = vdwg.mxu0
      %4775 = vmatprep.subr.mxu0 %v406
      %4776 = vmatpush1.msra.mxu0 %v405
      %4777 = vmatprep.subr.mxu0 %v408
      %4778 = vmatpush1.msra.mxu0 %v407
      %4779 = vmatprep.subr.mxu0 %v410
      %4780 = vmatpush1.msra.mxu0 %v409
      %4781 = vmatprep.subr.mxu0 %v412
      %4782 = vmatpush1.msra.mxu0 %v411
      %4783 = vmatprep.subr.mxu0 0.0
      %4784 = vmatpush1.msra.mxu0 0.0
      %4785 = vmatprep.subr.mxu0 0.0
      %4786 = vmatpush1.msra.mxu0 0.0
      %4787 = vmatprep.subr.mxu0 0.0
      %4788 = vmatpush1.msra.mxu0 0.0
      %4789 = vmatprep.subr.mxu0 0.0
      %4790 = vmatpush1.msra.mxu0 0.0
      %4791 = vmatprep.subr.mxu0 0.0
      %4792 = vmatpush1.msra.mxu0 0.0
      %4793 = vmatprep.subr.mxu0 0.0
      %4794 = vmatpush1.msra.mxu0 0.0
      %4795 = vmatprep.subr.mxu0 0.0
      %4796 = vmatpush1.msra.mxu0 0.0
      %4797 = vmatprep.subr.mxu0 0.0
      %4798 = vmatpush1.msra.mxu0 0.0
      %4799 = vmatprep.subr.mxu0 0.0
      %4800 = vmatpush1.msra.mxu0 0.0
      %4801 = vmatprep.subr.mxu0 0.0
      %4802 = vmatpush1.msra.mxu0 0.0
      %4803 = vmatprep.subr.mxu0 0.0
      %4804 = vmatpush1.msra.mxu0 0.0
      %4805 = vmatprep.subr.mxu0 0.0
      %4806 = vmatpush1.msra.mxu0 0.0
      %4807 = vmatprep.subr.mxu0 0.0
      %4808 = vmatpush1.msra.mxu0 0.0
      %4809 = vmatprep.subr.mxu0 0.0
      %4810 = vmatpush1.msra.mxu0 0.0
      %4811 = vmatprep.subr.mxu0 0.0
      %4812 = vmatpush1.msra.mxu0 0.0
      %4813 = vmatprep.subr.mxu0 0.0
      %4814 = vmatpush1.msra.mxu0 0.0
      %4815 = vmatprep.subr.mxu0 0.0
      %4816 = vmatpush1.msra.mxu0 0.0
      %4817 = vmatprep.subr.mxu0 0.0
      %4818 = vmatpush1.msra.mxu0 0.0
      %4819 = vmatprep.subr.mxu0 0.0
      %4820 = vmatpush1.msra.mxu0 0.0
      %4821 = vmatprep.subr.mxu0 0.0
      %4822 = vmatpush1.msra.mxu0 0.0
      %4823 = vmatprep.subr.mxu0 0.0
      %4824 = vmatpush1.msra.mxu0 0.0
      %4825 = vmatprep.subr.mxu0 0.0
      %4826 = vmatpush1.msra.mxu0 0.0
      %4827 = vmatprep.subr.mxu0 0.0
      %4828 = vmatpush1.msra.mxu0 0.0
      %4829 = vmatprep.subr.mxu0 0.0
      %4830 = vmatpush1.msra.mxu0 0.0
      %4831 = vmatprep.subr.mxu0 0.0
      %4832 = vmatpush1.msra.mxu0 0.0
      %4833 = vmatprep.subr.mxu0 0.0
      %4834 = vmatpush1.msra.mxu0 0.0
      %4835 = vmatprep.subr.mxu0 0.0
      %4836 = vmatpush1.msra.mxu0 0.0
      %4837 = vmatprep.subr.mxu0 0.0
      %4838 = vmatpush1.msra.mxu0 0.0
      %4839 = vmatprep.mubr.f32.mxu0 0.0
      %4840 = vmatmul.mubr.f32.gmra.mrb[0].mxu0 %v2206
      %v4841 = vpop.f32.mrb[0].mxu0
      %v4842 = vadd.f32 0.0, %v4841
      %v4843 = vpop.f32.mrb[0].mxu0
      %v4844 = vadd.f32 0.0, %v4843
      %4845 = vmatprep.mubr.f32.mxu0 0.0
      %4846 = vmatmul.mubr.f32.gmra.mrb[0].mxu0 %v2209
      %v4847 = vpop.f32.mrb[0].mxu0
      %v4848 = vadd.f32 0.0, %v4847
      %v4849 = vpop.f32.mrb[0].mxu0
      %v4850 = vadd.f32 0.0, %v4849
      %4851 = vmatprep.mubr.f32.mxu0 0.0
      %4852 = vmatmul.mubr.f32.gmra.mrb[0].mxu0 %v2212
      %v4853 = vpop.f32.mrb[0].mxu0
      %v4854 = vadd.f32 0.0, %v4853
      %v4855 = vpop.f32.mrb[0].mxu0
      %v4856 = vadd.f32 0.0, %v4855
      %4857 = vmatprep.mubr.f32.mxu0 0.0
      %4858 = vmatmul.mubr.f32.gmra.mrb[0].mxu0 %v2215
      %v4859 = vpop.f32.mrb[0].mxu0
      %v4860 = vadd.f32 0.0, %v4859
      %v4861 = vpop.f32.mrb[0].mxu0
      %v4862 = vadd.f32 0.0, %v4861
      %4863 = vmatprep.mubr.f32.mxu0 0.0
      %4864 = vmatmul.mubr.f32.gmra.mrb[0].mxu0 %v2218
      %v4865 = vpop.f32.mrb[0].mxu0
      %v4866 = vadd.f32 0.0, %v4865
      %v4867 = vpop.f32.mrb[0].mxu0
      %v4868 = vadd.f32 0.0, %v4867
      %4869 = vmatprep.mubr.f32.mxu0 0.0
      %4870 = vmatmul.mubr.f32.gmra.mrb[0].mxu0 %v2221
      %v4871 = vpop.f32.mrb[0].mxu0
      %v4872 = vadd.f32 0.0, %v4871
      %v4873 = vpop.f32.mrb[0].mxu0
      %v4874 = vadd.f32 0.0, %v4873
      %4875 = vmatprep.mubr.f32.mxu0 0.0
      %4876 = vmatmul.mubr.f32.gmra.mrb[0].mxu0 %v2224
      %v4877 = vpop.f32.mrb[0].mxu0
      %v4878 = vadd.f32 0.0, %v4877
      %v4879 = vpop.f32.mrb[0].mxu0
      %v4880 = vadd.f32 0.0, %v4879
      %4881 = vmatprep.mubr.f32.mxu0 0.0
      %4882 = vmatmul.mubr.f32.gmra.mrb[0].mxu0 %v2227
      %v4883 = vpop.f32.mrb[0].mxu0
      %v4884 = vadd.f32 0.0, %v4883
      %v4885 = vpop.f32.mrb[0].mxu0
      %v4886 = vadd.f32 0.0, %v4885
      %4887 = vmatprep.mubr.f32.mxu0 0.0
      %4888 = vmatmul.mubr.f32.gmra.mrb[0].mxu0 %v2230
      %v4889 = vpop.f32.mrb[0].mxu0
      %v4890 = vadd.f32 0.0, %v4889
      %v4891 = vpop.f32.mrb[0].mxu0
      %v4892 = vadd.f32 0.0, %v4891
      %4893 = vmatprep.mubr.f32.mxu0 0.0
      %4894 = vmatmul.mubr.f32.gmra.mrb[0].mxu0 %v2233
      %v4895 = vpop.f32.mrb[0].mxu0
      %v4896 = vadd.f32 0.0, %v4895
      %v4897 = vpop.f32.mrb[0].mxu0
      %v4898 = vadd.f32 0.0, %v4897
      %4899 = vmatprep.mubr.f32.mxu0 0.0
      %4900 = vmatmul.mubr.f32.gmra.mrb[0].mxu0 %v2236
      %v4901 = vpop.f32.mrb[0].mxu0
      %v4902 = vadd.f32 0.0, %v4901
      %v4903 = vpop.f32.mrb[0].mxu0
      %v4904 = vadd.f32 0.0, %v4903
      %4905 = vmatprep.mubr.f32.mxu0 0.0
      %4906 = vmatmul.mubr.f32.gmra.mrb[0].mxu0 %v2239
      %v4907 = vpop.f32.mrb[0].mxu0
      %v4908 = vadd.f32 0.0, %v4907
      %v4909 = vpop.f32.mrb[0].mxu0
      %v4910 = vadd.f32 0.0, %v4909
      %4911 = vmatprep.mubr.f32.mxu0 0.0
      %4912 = vmatmul.mubr.f32.gmra.mrb[0].mxu0 %v2242
      %v4913 = vpop.f32.mrb[0].mxu0
      %v4914 = vadd.f32 0.0, %v4913
      %v4915 = vpop.f32.mrb[0].mxu0
      %v4916 = vadd.f32 0.0, %v4915
      %4917 = vmatprep.mubr.f32.mxu0 0.0
      %4918 = vmatmul.mubr.f32.gmra.mrb[0].mxu0 %v2245
      %v4919 = vpop.f32.mrb[0].mxu0
      %v4920 = vadd.f32 0.0, %v4919
      %v4921 = vpop.f32.mrb[0].mxu0
      %v4922 = vadd.f32 0.0, %v4921
      %4923 = vmatprep.mubr.f32.mxu0 0.0
      %4924 = vmatmul.mubr.f32.gmra.mrb[0].mxu0 %v2248
      %v4925 = vpop.f32.mrb[0].mxu0
      %v4926 = vadd.f32 0.0, %v4925
      %v4927 = vpop.f32.mrb[0].mxu0
      %v4928 = vadd.f32 0.0, %v4927
      %4929 = vmatprep.mubr.f32.mxu0 0.0
      %4930 = vmatmul.mubr.f32.gmra.mrb[0].mxu0 %v2251
      %v4931 = vpop.f32.mrb[0].mxu0
      %v4932 = vadd.f32 0.0, %v4931
      %v4933 = vpop.f32.mrb[0].mxu0
      %v4934 = vadd.f32 0.0, %v4933
      %4935 = vmatprep.mubr.f32.mxu0 0.0
      %4936 = vmatmul.mubr.f32.gmra.mrb[0].mxu0 %v2254
      %v4937 = vpop.f32.mrb[0].mxu0
      %v4938 = vadd.f32 0.0, %v4937
      %v4939 = vpop.f32.mrb[0].mxu0
      %v4940 = vadd.f32 0.0, %v4939
      %4941 = vmatprep.mubr.f32.mxu0 0.0
      %4942 = vmatmul.mubr.f32.gmra.mrb[0].mxu0 %v2257
      %v4943 = vpop.f32.mrb[0].mxu0
      %v4944 = vadd.f32 0.0, %v4943
      %v4945 = vpop.f32.mrb[0].mxu0
      %v4946 = vadd.f32 0.0, %v4945
      %4947 = vmatprep.mubr.f32.mxu0 0.0
      %4948 = vmatmul.mubr.f32.gmra.mrb[0].mxu0 %v2260
      %v4949 = vpop.f32.mrb[0].mxu0
      %v4950 = vadd.f32 0.0, %v4949
      %v4951 = vpop.f32.mrb[0].mxu0
      %v4952 = vadd.f32 0.0, %v4951
      %4953 = vmatprep.mubr.f32.mxu0 0.0
      %4954 = vmatmul.mubr.f32.gmra.mrb[0].mxu0 %v2263
      %v4955 = vpop.f32.mrb[0].mxu0
      %v4956 = vadd.f32 0.0, %v4955
      %v4957 = vpop.f32.mrb[0].mxu0
      %v4958 = vadd.f32 0.0, %v4957
      %4959 = vmatprep.mubr.f32.mxu0 0.0
      %4960 = vmatmul.mubr.f32.gmra.mrb[0].mxu0 %v2266
      %v4961 = vpop.f32.mrb[0].mxu0
      %v4962 = vadd.f32 0.0, %v4961
      %v4963 = vpop.f32.mrb[0].mxu0
      %v4964 = vadd.f32 0.0, %v4963
      %4965 = vmatprep.mubr.f32.mxu0 0.0
      %4966 = vmatmul.mubr.f32.gmra.mrb[0].mxu0 %v2269
      %v4967 = vpop.f32.mrb[0].mxu0
      %v4968 = vadd.f32 0.0, %v4967
      %v4969 = vpop.f32.mrb[0].mxu0
      %v4970 = vadd.f32 0.0, %v4969
      %4971 = vmatprep.mubr.f32.mxu0 0.0
      %4972 = vmatmul.mubr.f32.gmra.mrb[0].mxu0 %v2272
      %v4973 = vpop.f32.mrb[0].mxu0
      %v4974 = vadd.f32 0.0, %v4973
      %v4975 = vpop.f32.mrb[0].mxu0
      %v4976 = vadd.f32 0.0, %v4975
      %4977 = vmatprep.mubr.f32.mxu0 0.0
      %4978 = vmatmul.mubr.f32.gmra.mrb[0].mxu0 %v2275
      %v4979 = vpop.f32.mrb[0].mxu0
      %v4980 = vadd.f32 0.0, %v4979
      %v4981 = vpop.f32.mrb[0].mxu0
      %v4982 = vadd.f32 0.0, %v4981
      %4983 = vmatprep.mubr.f32.mxu0 0.0
      %4984 = vmatmul.mubr.f32.gmra.mrb[0].mxu0 %v2278
      %v4985 = vpop.f32.mrb[0].mxu0
      %v4986 = vadd.f32 0.0, %v4985
      %v4987 = vpop.f32.mrb[0].mxu0
      %v4988 = vadd.f32 0.0, %v4987
      %4989 = vmatprep.mubr.f32.mxu0 0.0
      %4990 = vmatmul.mubr.f32.gmra.mrb[0].mxu0 %v2281
      %v4991 = vpop.f32.mrb[0].mxu0
      %v4992 = vadd.f32 0.0, %v4991
      %v4993 = vpop.f32.mrb[0].mxu0
      %v4994 = vadd.f32 0.0, %v4993
      %4995 = vmatprep.mubr.f32.mxu0 0.0
      %4996 = vmatmul.mubr.f32.gmra.mrb[0].mxu0 %v2284
      %v4997 = vpop.f32.mrb[0].mxu0
      %v4998 = vadd.f32 0.0, %v4997
      %v4999 = vpop.f32.mrb[0].mxu0
      %v5000 = vadd.f32 0.0, %v4999
      %5001 = vmatprep.mubr.f32.mxu0 0.0
      %5002 = vmatmul.mubr.f32.gmra.mrb[0].mxu0 %v2287
      %v5003 = vpop.f32.mrb[0].mxu0
      %v5004 = vadd.f32 0.0, %v5003
      %v5005 = vpop.f32.mrb[0].mxu0
      %v5006 = vadd.f32 0.0, %v5005
      %5007 = vdwg.mxu0
      %v5008 = vadd.f32 %v4609, %v4842
      %v5009 = vadd.f32 %v4611, %v4844
      %v5010 = vadd.f32 %v4615, %v4848
      %v5011 = vadd.f32 %v4617, %v4850
      %v5012 = vadd.f32 %v4621, %v4854
      %v5013 = vadd.f32 %v4623, %v4856
      %v5014 = vadd.f32 %v4627, %v4860
      %v5015 = vadd.f32 %v4629, %v4862
      %v5016 = vadd.f32 %v4633, %v4866
      %v5017 = vadd.f32 %v4635, %v4868
      %v5018 = vadd.f32 %v4639, %v4872
      %v5019 = vadd.f32 %v4641, %v4874
      %v5020 = vadd.f32 %v4645, %v4878
      %v5021 = vadd.f32 %v4647, %v4880
      %v5022 = vadd.f32 %v4651, %v4884
      %v5023 = vadd.f32 %v4653, %v4886
      %v5024 = vadd.f32 %v4657, %v4890
      %v5025 = vadd.f32 %v4659, %v4892
      %v5026 = vadd.f32 %v4663, %v4896
      %v5027 = vadd.f32 %v4665, %v4898
      %v5028 = vadd.f32 %v4669, %v4902
      %v5029 = vadd.f32 %v4671, %v4904
      %v5030 = vadd.f32 %v4675, %v4908
      %v5031 = vadd.f32 %v4677, %v4910
      %v5032 = vadd.f32 %v4681, %v4914
      %v5033 = vadd.f32 %v4683, %v4916
      %v5034 = vadd.f32 %v4687, %v4920
      %v5035 = vadd.f32 %v4689, %v4922
      %v5036 = vadd.f32 %v4693, %v4926
      %v5037 = vadd.f32 %v4695, %v4928
      %v5038 = vadd.f32 %v4699, %v4932
      %v5039 = vadd.f32 %v4701, %v4934
      %v5040 = vadd.f32 %v4705, %v4938
      %v5041 = vadd.f32 %v4707, %v4940
      %v5042 = vadd.f32 %v4711, %v4944
      %v5043 = vadd.f32 %v4713, %v4946
      %v5044 = vadd.f32 %v4717, %v4950
      %v5045 = vadd.f32 %v4719, %v4952
      %v5046 = vadd.f32 %v4723, %v4956
      %v5047 = vadd.f32 %v4725, %v4958
      %v5048 = vadd.f32 %v4729, %v4962
      %v5049 = vadd.f32 %v4731, %v4964
      %v5050 = vadd.f32 %v4735, %v4968
      %v5051 = vadd.f32 %v4737, %v4970
      %v5052 = vadd.f32 %v4741, %v4974
      %v5053 = vadd.f32 %v4743, %v4976
      %v5054 = vadd.f32 %v4747, %v4980
      %v5055 = vadd.f32 %v4749, %v4982
      %v5056 = vadd.f32 %v4753, %v4986
      %v5057 = vadd.f32 %v4755, %v4988
      %v5058 = vadd.f32 %v4759, %v4992
      %v5059 = vadd.f32 %v4761, %v4994
      %v5060 = vadd.f32 %v4765, %v4998
      %v5061 = vadd.f32 %v4767, %v5000
      %v5062 = vadd.f32 %v4771, %v5004
      %v5063 = vadd.f32 %v4773, %v5006
      %5064 = vmatprep.subr.mxu0 %v415
      %5065 = vmatpush1.msra.mxu0 %v414
      %5066 = vmatprep.subr.mxu0 %v417
      %5067 = vmatpush1.msra.mxu0 %v416
      %5068 = vmatprep.subr.mxu0 %v419
      %5069 = vmatpush1.msra.mxu0 %v418
      %5070 = vmatprep.subr.mxu0 %v421
      %5071 = vmatpush1.msra.mxu0 %v420
      %5072 = vmatprep.subr.mxu0 0.0
      %5073 = vmatpush1.msra.mxu0 0.0
      %5074 = vmatprep.subr.mxu0 0.0
      %5075 = vmatpush1.msra.mxu0 0.0
      %5076 = vmatprep.subr.mxu0 0.0
      %5077 = vmatpush1.msra.mxu0 0.0
      %5078 = vmatprep.subr.mxu0 0.0
      %5079 = vmatpush1.msra.mxu0 0.0
      %5080 = vmatprep.subr.mxu0 0.0
      %5081 = vmatpush1.msra.mxu0 0.0
      %5082 = vmatprep.subr.mxu0 0.0
      %5083 = vmatpush1.msra.mxu0 0.0
      %5084 = vmatprep.subr.mxu0 0.0
      %5085 = vmatpush1.msra.mxu0 0.0
      %5086 = vmatprep.subr.mxu0 0.0
      %5087 = vmatpush1.msra.mxu0 0.0
      %5088 = vmatprep.subr.mxu0 0.0
      %5089 = vmatpush1.msra.mxu0 0.0
      %5090 = vmatprep.subr.mxu0 0.0
      %5091 = vmatpush1.msra.mxu0 0.0
      %5092 = vmatprep.subr.mxu0 0.0
      %5093 = vmatpush1.msra.mxu0 0.0
      %5094 = vmatprep.subr.mxu0 0.0
      %5095 = vmatpush1.msra.mxu0 0.0
      %5096 = vmatprep.subr.mxu0 0.0
      %5097 = vmatpush1.msra.mxu0 0.0
      %5098 = vmatprep.subr.mxu0 0.0
      %5099 = vmatpush1.msra.mxu0 0.0
      %5100 = vmatprep.subr.mxu0 0.0
      %5101 = vmatpush1.msra.mxu0 0.0
      %5102 = vmatprep.subr.mxu0 0.0
      %5103 = vmatpush1.msra.mxu0 0.0
      %5104 = vmatprep.subr.mxu0 0.0
      %5105 = vmatpush1.msra.mxu0 0.0
      %5106 = vmatprep.subr.mxu0 0.0
      %5107 = vmatpush1.msra.mxu0 0.0
      %5108 = vmatprep.subr.mxu0 0.0
      %5109 = vmatpush1.msra.mxu0 0.0
      %5110 = vmatprep.subr.mxu0 0.0
      %5111 = vmatpush1.msra.mxu0 0.0
      %5112 = vmatprep.subr.mxu0 0.0
      %5113 = vmatpush1.msra.mxu0 0.0
      %5114 = vmatprep.subr.mxu0 0.0
      %5115 = vmatpush1.msra.mxu0 0.0
      %5116 = vmatprep.subr.mxu0 0.0
      %5117 = vmatpush1.msra.mxu0 0.0
      %5118 = vmatprep.subr.mxu0 0.0
      %5119 = vmatpush1.msra.mxu0 0.0
      %5120 = vmatprep.subr.mxu0 0.0
      %5121 = vmatpush1.msra.mxu0 0.0
      %5122 = vmatprep.subr.mxu0 0.0
      %5123 = vmatpush1.msra.mxu0 0.0
      %5124 = vmatprep.subr.mxu0 0.0
      %5125 = vmatpush1.msra.mxu0 0.0
      %5126 = vmatprep.subr.mxu0 0.0
      %5127 = vmatpush1.msra.mxu0 0.0
      %5128 = vmatprep.mubr.f32.mxu0 0.0
      %5129 = vmatmul.mubr.f32.gmra.mrb[0].mxu0 %v3679
      %v5130 = vpop.f32.mrb[0].mxu0
      %v5131 = vadd.f32 0.0, %v5130
      %v5132 = vpop.f32.mrb[0].mxu0
      %v5133 = vadd.f32 0.0, %v5132
      %5134 = vmatprep.mubr.f32.mxu0 0.0
      %5135 = vmatmul.mubr.f32.gmra.mrb[0].mxu0 %v3682
      %v5136 = vpop.f32.mrb[0].mxu0
      %v5137 = vadd.f32 0.0, %v5136
      %v5138 = vpop.f32.mrb[0].mxu0
      %v5139 = vadd.f32 0.0, %v5138
      %5140 = vmatprep.mubr.f32.mxu0 0.0
      %5141 = vmatmul.mubr.f32.gmra.mrb[0].mxu0 %v3685
      %v5142 = vpop.f32.mrb[0].mxu0
      %v5143 = vadd.f32 0.0, %v5142
      %v5144 = vpop.f32.mrb[0].mxu0
      %v5145 = vadd.f32 0.0, %v5144
      %5146 = vmatprep.mubr.f32.mxu0 0.0
      %5147 = vmatmul.mubr.f32.gmra.mrb[0].mxu0 %v3688
      %v5148 = vpop.f32.mrb[0].mxu0
      %v5149 = vadd.f32 0.0, %v5148
      %v5150 = vpop.f32.mrb[0].mxu0
      %v5151 = vadd.f32 0.0, %v5150
      %5152 = vmatprep.mubr.f32.mxu0 0.0
      %5153 = vmatmul.mubr.f32.gmra.mrb[0].mxu0 %v3691
      %v5154 = vpop.f32.mrb[0].mxu0
      %v5155 = vadd.f32 0.0, %v5154
      %v5156 = vpop.f32.mrb[0].mxu0
      %v5157 = vadd.f32 0.0, %v5156
      %5158 = vmatprep.mubr.f32.mxu0 0.0
      %5159 = vmatmul.mubr.f32.gmra.mrb[0].mxu0 %v3694
      %v5160 = vpop.f32.mrb[0].mxu0
      %v5161 = vadd.f32 0.0, %v5160
      %v5162 = vpop.f32.mrb[0].mxu0
      %v5163 = vadd.f32 0.0, %v5162
      %5164 = vmatprep.mubr.f32.mxu0 0.0
      %5165 = vmatmul.mubr.f32.gmra.mrb[0].mxu0 %v3697
      %v5166 = vpop.f32.mrb[0].mxu0
      %v5167 = vadd.f32 0.0, %v5166
      %v5168 = vpop.f32.mrb[0].mxu0
      %v5169 = vadd.f32 0.0, %v5168
      %5170 = vmatprep.mubr.f32.mxu0 0.0
      %5171 = vmatmul.mubr.f32.gmra.mrb[0].mxu0 %v3700
      %v5172 = vpop.f32.mrb[0].mxu0
      %v5173 = vadd.f32 0.0, %v5172
      %v5174 = vpop.f32.mrb[0].mxu0
      %v5175 = vadd.f32 0.0, %v5174
      %5176 = vmatprep.mubr.f32.mxu0 0.0
      %5177 = vmatmul.mubr.f32.gmra.mrb[0].mxu0 %v3703
      %v5178 = vpop.f32.mrb[0].mxu0
      %v5179 = vadd.f32 0.0, %v5178
      %v5180 = vpop.f32.mrb[0].mxu0
      %v5181 = vadd.f32 0.0, %v5180
      %5182 = vmatprep.mubr.f32.mxu0 0.0
      %5183 = vmatmul.mubr.f32.gmra.mrb[0].mxu0 %v3706
      %v5184 = vpop.f32.mrb[0].mxu0
      %v5185 = vadd.f32 0.0, %v5184
      %v5186 = vpop.f32.mrb[0].mxu0
      %v5187 = vadd.f32 0.0, %v5186
      %5188 = vmatprep.mubr.f32.mxu0 0.0
      %5189 = vmatmul.mubr.f32.gmra.mrb[0].mxu0 %v3709
      %v5190 = vpop.f32.mrb[0].mxu0
      %v5191 = vadd.f32 0.0, %v5190
      %v5192 = vpop.f32.mrb[0].mxu0
      %v5193 = vadd.f32 0.0, %v5192
      %5194 = vmatprep.mubr.f32.mxu0 0.0
      %5195 = vmatmul.mubr.f32.gmra.mrb[0].mxu0 %v3712
      %v5196 = vpop.f32.mrb[0].mxu0
      %v5197 = vadd.f32 0.0, %v5196
      %v5198 = vpop.f32.mrb[0].mxu0
      %v5199 = vadd.f32 0.0, %v5198
      %5200 = vmatprep.mubr.f32.mxu0 0.0
      %5201 = vmatmul.mubr.f32.gmra.mrb[0].mxu0 %v3715
      %v5202 = vpop.f32.mrb[0].mxu0
      %v5203 = vadd.f32 0.0, %v5202
      %v5204 = vpop.f32.mrb[0].mxu0
      %v5205 = vadd.f32 0.0, %v5204
      %5206 = vmatprep.mubr.f32.mxu0 0.0
      %5207 = vmatmul.mubr.f32.gmra.mrb[0].mxu0 %v3718
      %v5208 = vpop.f32.mrb[0].mxu0
      %v5209 = vadd.f32 0.0, %v5208
      %v5210 = vpop.f32.mrb[0].mxu0
      %v5211 = vadd.f32 0.0, %v5210
      %5212 = vmatprep.mubr.f32.mxu0 0.0
      %5213 = vmatmul.mubr.f32.gmra.mrb[0].mxu0 %v3721
      %v5214 = vpop.f32.mrb[0].mxu0
      %v5215 = vadd.f32 0.0, %v5214
      %v5216 = vpop.f32.mrb[0].mxu0
      %v5217 = vadd.f32 0.0, %v5216
      %5218 = vmatprep.mubr.f32.mxu0 0.0
      %5219 = vmatmul.mubr.f32.gmra.mrb[0].mxu0 %v3724
      %v5220 = vpop.f32.mrb[0].mxu0
      %v5221 = vadd.f32 0.0, %v5220
      %v5222 = vpop.f32.mrb[0].mxu0
      %v5223 = vadd.f32 0.0, %v5222
      %5224 = vmatprep.mubr.f32.mxu0 0.0
      %5225 = vmatmul.mubr.f32.gmra.mrb[0].mxu0 %v3727
      %v5226 = vpop.f32.mrb[0].mxu0
      %v5227 = vadd.f32 0.0, %v5226
      %v5228 = vpop.f32.mrb[0].mxu0
      %v5229 = vadd.f32 0.0, %v5228
      %5230 = vmatprep.mubr.f32.mxu0 0.0
      %5231 = vmatmul.mubr.f32.gmra.mrb[0].mxu0 %v3730
      %v5232 = vpop.f32.mrb[0].mxu0
      %v5233 = vadd.f32 0.0, %v5232
      %v5234 = vpop.f32.mrb[0].mxu0
      %v5235 = vadd.f32 0.0, %v5234
      %5236 = vmatprep.mubr.f32.mxu0 0.0
      %5237 = vmatmul.mubr.f32.gmra.mrb[0].mxu0 %v3733
      %v5238 = vpop.f32.mrb[0].mxu0
      %v5239 = vadd.f32 0.0, %v5238
      %v5240 = vpop.f32.mrb[0].mxu0
      %v5241 = vadd.f32 0.0, %v5240
      %5242 = vmatprep.mubr.f32.mxu0 0.0
      %5243 = vmatmul.mubr.f32.gmra.mrb[0].mxu0 %v3736
      %v5244 = vpop.f32.mrb[0].mxu0
      %v5245 = vadd.f32 0.0, %v5244
      %v5246 = vpop.f32.mrb[0].mxu0
      %v5247 = vadd.f32 0.0, %v5246
      %5248 = vmatprep.mubr.f32.mxu0 0.0
      %5249 = vmatmul.mubr.f32.gmra.mrb[0].mxu0 %v3739
      %v5250 = vpop.f32.mrb[0].mxu0
      %v5251 = vadd.f32 0.0, %v5250
      %v5252 = vpop.f32.mrb[0].mxu0
      %v5253 = vadd.f32 0.0, %v5252
      %5254 = vmatprep.mubr.f32.mxu0 0.0
      %5255 = vmatmul.mubr.f32.gmra.mrb[0].mxu0 %v3742
      %v5256 = vpop.f32.mrb[0].mxu0
      %v5257 = vadd.f32 0.0, %v5256
      %v5258 = vpop.f32.mrb[0].mxu0
      %v5259 = vadd.f32 0.0, %v5258
      %5260 = vmatprep.mubr.f32.mxu0 0.0
      %5261 = vmatmul.mubr.f32.gmra.mrb[0].mxu0 %v3745
      %v5262 = vpop.f32.mrb[0].mxu0
      %v5263 = vadd.f32 0.0, %v5262
      %v5264 = vpop.f32.mrb[0].mxu0
      %v5265 = vadd.f32 0.0, %v5264
      %5266 = vmatprep.mubr.f32.mxu0 0.0
      %5267 = vmatmul.mubr.f32.gmra.mrb[0].mxu0 %v3748
      %v5268 = vpop.f32.mrb[0].mxu0
      %v5269 = vadd.f32 0.0, %v5268
      %v5270 = vpop.f32.mrb[0].mxu0
      %v5271 = vadd.f32 0.0, %v5270
      %5272 = vmatprep.mubr.f32.mxu0 0.0
      %5273 = vmatmul.mubr.f32.gmra.mrb[0].mxu0 %v3751
      %v5274 = vpop.f32.mrb[0].mxu0
      %v5275 = vadd.f32 0.0, %v5274
      %v5276 = vpop.f32.mrb[0].mxu0
      %v5277 = vadd.f32 0.0, %v5276
      %5278 = vmatprep.mubr.f32.mxu0 0.0
      %5279 = vmatmul.mubr.f32.gmra.mrb[0].mxu0 %v3754
      %v5280 = vpop.f32.mrb[0].mxu0
      %v5281 = vadd.f32 0.0, %v5280
      %v5282 = vpop.f32.mrb[0].mxu0
      %v5283 = vadd.f32 0.0, %v5282
      %5284 = vmatprep.mubr.f32.mxu0 0.0
      %5285 = vmatmul.mubr.f32.gmra.mrb[0].mxu0 %v3757
      %v5286 = vpop.f32.mrb[0].mxu0
      %v5287 = vadd.f32 0.0, %v5286
      %v5288 = vpop.f32.mrb[0].mxu0
      %v5289 = vadd.f32 0.0, %v5288
      %5290 = vmatprep.mubr.f32.mxu0 0.0
      %5291 = vmatmul.mubr.f32.gmra.mrb[0].mxu0 %v3760
      %v5292 = vpop.f32.mrb[0].mxu0
      %v5293 = vadd.f32 0.0, %v5292
      %v5294 = vpop.f32.mrb[0].mxu0
      %v5295 = vadd.f32 0.0, %v5294
      %5296 = vdwg.mxu0
      %v5297 = vadd.f32 %v5008, %v5131
      %v5298 = vadd.f32 %v5009, %v5133
      %v5299 = vadd.f32 %v5010, %v5137
      %v5300 = vadd.f32 %v5011, %v5139
      %v5301 = vadd.f32 %v5012, %v5143
      %v5302 = vadd.f32 %v5013, %v5145
      %v5303 = vadd.f32 %v5014, %v5149
      %v5304 = vadd.f32 %v5015, %v5151
      %v5305 = vadd.f32 %v5016, %v5155
      %v5306 = vadd.f32 %v5017, %v5157
      %v5307 = vadd.f32 %v5018, %v5161
      %v5308 = vadd.f32 %v5019, %v5163
      %v5309 = vadd.f32 %v5020, %v5167
      %v5310 = vadd.f32 %v5021, %v5169
      %v5311 = vadd.f32 %v5022, %v5173
      %v5312 = vadd.f32 %v5023, %v5175
      %v5313 = vadd.f32 %v5024, %v5179
      %v5314 = vadd.f32 %v5025, %v5181
      %v5315 = vadd.f32 %v5026, %v5185
      %v5316 = vadd.f32 %v5027, %v5187
      %v5317 = vadd.f32 %v5028, %v5191
      %v5318 = vadd.f32 %v5029, %v5193
      %v5319 = vadd.f32 %v5030, %v5197
      %v5320 = vadd.f32 %v5031, %v5199
      %v5321 = vadd.f32 %v5032, %v5203
      %v5322 = vadd.f32 %v5033, %v5205
      %v5323 = vadd.f32 %v5034, %v5209
      %v5324 = vadd.f32 %v5035, %v5211
      %v5325 = vadd.f32 %v5036, %v5215
      %v5326 = vadd.f32 %v5037, %v5217
      %v5327 = vadd.f32 %v5038, %v5221
      %v5328 = vadd.f32 %v5039, %v5223
      %v5329 = vadd.f32 %v5040, %v5227
      %v5330 = vadd.f32 %v5041, %v5229
      %v5331 = vadd.f32 %v5042, %v5233
      %v5332 = vadd.f32 %v5043, %v5235
      %v5333 = vadd.f32 %v5044, %v5239
      %v5334 = vadd.f32 %v5045, %v5241
      %v5335 = vadd.f32 %v5046, %v5245
      %v5336 = vadd.f32 %v5047, %v5247
      %v5337 = vadd.f32 %v5048, %v5251
      %v5338 = vadd.f32 %v5049, %v5253
      %v5339 = vadd.f32 %v5050, %v5257
      %v5340 = vadd.f32 %v5051, %v5259
      %v5341 = vadd.f32 %v5052, %v5263
      %v5342 = vadd.f32 %v5053, %v5265
      %v5343 = vadd.f32 %v5054, %v5269
      %v5344 = vadd.f32 %v5055, %v5271
      %v5345 = vadd.f32 %v5056, %v5275
      %v5346 = vadd.f32 %v5057, %v5277
      %v5347 = vadd.f32 %v5058, %v5281
      %v5348 = vadd.f32 %v5059, %v5283
      %v5349 = vadd.f32 %v5060, %v5287
      %v5350 = vadd.f32 %v5061, %v5289
      %v5351 = vadd.f32 %v5062, %v5293
      %v5352 = vadd.f32 %v5063, %v5295
      %v5353 = vld [vmem:[%s1373 + $0x20] sm:$0xff]
      %v5354 = vld [vmem:[%s1373 + $0x28] sm:$0xff]
      %v5355 = vld [vmem:[%s1373 + $0x30] sm:$0xff]
      %v5356 = vld [vmem:[%s1373 + $0x38] sm:$0xff]
      %v5357 = vld [vmem:[%s1373 + $0x40] sm:$0xff]
      %v5358 = vld [vmem:[%s1373 + $0x48] sm:$0xff]
      %v5359 = vld [vmem:[%s1373 + $0x50] sm:$0xff]
      %v5360 = vld [vmem:[%s1373 + $0x58] sm:$0xff]
      %v5361 = vld [vmem:[%s1373 + $0x60] sm:$0xff]
      %v5362 = vld [vmem:[%s1373 + $0x68] sm:$0xff]
      %v5363 = vld [vmem:[%s1373 + $0x70] sm:$0xff]
      %v5364 = vld [vmem:[%s1373 + $0x78] sm:$0xff]
      %v5365 = vld [vmem:[%s1373 + $0x80] sm:$0xff]
      %v5366 = vld [vmem:[%s1373 + $0x88] sm:$0xff]
      %v5367 = vld [vmem:[%s1373 + $0x90] sm:$0xff]
      %v5368 = vld [vmem:[%s1373 + $0x98] sm:$0xff]
      %v5369 = vld [vmem:[%s1373 + $0xa0] sm:$0xff]
      %v5370 = vld [vmem:[%s1373 + $0xa8] sm:$0xff]
      %v5371 = vld [vmem:[%s1373 + $0xb0] sm:$0xff]
      %v5372 = vld [vmem:[%s1373 + $0xb8] sm:$0xff]
      %v5373 = vld [vmem:[%s1373 + $0xc0] sm:$0xff]
      %v5374 = vld [vmem:[%s1373 + $0xc8] sm:$0xff]
      %v5375 = vld [vmem:[%s1373 + $0xd0] sm:$0xff]
      %v5376 = vld [vmem:[%s1373 + $0xd8] sm:$0xff]
      %v5377 = vld [vmem:[%s1373 + $0xe0] sm:$0xff]
      %v5378 = vld [vmem:[%s1373 + $0xe8] sm:$0xff]
      %v5379 = vld [vmem:[%s1373 + $0xf0] sm:$0xff]
      %v5380 = vld [vmem:[%s1373 + $0xf8] sm:$0xff]
      %v5382 = vsel %vm738, %v5353, 0
      %v5385 = vsel %vm738, %v5354, 0
      %v5388 = vsel %vm738, %v5355, 0
      %v5391 = vsel %vm738, %v5356, 0
      %v5394 = vsel %vm738, %v5357, 0
      %v5397 = vsel %vm738, %v5358, 0
      %v5400 = vsel %vm738, %v5359, 0
      %v5403 = vsel %vm738, %v5360, 0
      %v5406 = vsel %vm738, %v5361, 0
      %v5409 = vsel %vm738, %v5362, 0
      %v5412 = vsel %vm738, %v5363, 0
      %v5415 = vsel %vm738, %v5364, 0
      %v5418 = vsel %vm738, %v5365, 0
      %v5421 = vsel %vm738, %v5366, 0
      %v5424 = vsel %vm738, %v5367, 0
      %v5427 = vsel %vm738, %v5368, 0
      %v5430 = vsel %vm738, %v5369, 0
      %v5433 = vsel %vm738, %v5370, 0
      %v5436 = vsel %vm738, %v5371, 0
      %v5439 = vsel %vm738, %v5372, 0
      %v5442 = vsel %vm738, %v5373, 0
      %v5445 = vsel %vm738, %v5374, 0
      %v5448 = vsel %vm738, %v5375, 0
      %v5451 = vsel %vm738, %v5376, 0
      %v5454 = vsel %vm738, %v5377, 0
      %v5457 = vsel %vm738, %v5378, 0
      %v5460 = vsel %vm738, %v5379, 0
      %v5463 = vsel %vm738, %v5380, 0
      %5465 = vmatprep.subr.mxu0 %v424
      %5466 = vmatpush1.msra.mxu0 %v423
      %5467 = vmatprep.subr.mxu0 %v426
      %5468 = vmatpush1.msra.mxu0 %v425
      %5469 = vmatprep.subr.mxu0 %v428
      %5470 = vmatpush1.msra.mxu0 %v427
      %5471 = vmatprep.subr.mxu0 %v430
      %5472 = vmatpush1.msra.mxu0 %v429
      %5473 = vmatprep.subr.mxu0 0.0
      %5474 = vmatpush1.msra.mxu0 0.0
      %5475 = vmatprep.subr.mxu0 0.0
      %5476 = vmatpush1.msra.mxu0 0.0
      %5477 = vmatprep.subr.mxu0 0.0
      %5478 = vmatpush1.msra.mxu0 0.0
      %5479 = vmatprep.subr.mxu0 0.0
      %5480 = vmatpush1.msra.mxu0 0.0
      %5481 = vmatprep.subr.mxu0 0.0
      %5482 = vmatpush1.msra.mxu0 0.0
      %5483 = vmatprep.subr.mxu0 0.0
      %5484 = vmatpush1.msra.mxu0 0.0
      %5485 = vmatprep.subr.mxu0 0.0
      %5486 = vmatpush1.msra.mxu0 0.0
      %5487 = vmatprep.subr.mxu0 0.0
      %5488 = vmatpush1.msra.mxu0 0.0
      %5489 = vmatprep.subr.mxu0 0.0
      %5490 = vmatpush1.msra.mxu0 0.0
      %5491 = vmatprep.subr.mxu0 0.0
      %5492 = vmatpush1.msra.mxu0 0.0
      %5493 = vmatprep.subr.mxu0 0.0
      %5494 = vmatpush1.msra.mxu0 0.0
      %5495 = vmatprep.subr.mxu0 0.0
      %5496 = vmatpush1.msra.mxu0 0.0
      %5497 = vmatprep.subr.mxu0 0.0
      %5498 = vmatpush1.msra.mxu0 0.0
      %5499 = vmatprep.subr.mxu0 0.0
      %5500 = vmatpush1.msra.mxu0 0.0
      %5501 = vmatprep.subr.mxu0 0.0
      %5502 = vmatpush1.msra.mxu0 0.0
      %5503 = vmatprep.subr.mxu0 0.0
      %5504 = vmatpush1.msra.mxu0 0.0
      %5505 = vmatprep.subr.mxu0 0.0
      %5506 = vmatpush1.msra.mxu0 0.0
      %5507 = vmatprep.subr.mxu0 0.0
      %5508 = vmatpush1.msra.mxu0 0.0
      %5509 = vmatprep.subr.mxu0 0.0
      %5510 = vmatpush1.msra.mxu0 0.0
      %5511 = vmatprep.subr.mxu0 0.0
      %5512 = vmatpush1.msra.mxu0 0.0
      %5513 = vmatprep.subr.mxu0 0.0
      %5514 = vmatpush1.msra.mxu0 0.0
      %5515 = vmatprep.subr.mxu0 0.0
      %5516 = vmatpush1.msra.mxu0 0.0
      %5517 = vmatprep.subr.mxu0 0.0
      %5518 = vmatpush1.msra.mxu0 0.0
      %5519 = vmatprep.subr.mxu0 0.0
      %5520 = vmatpush1.msra.mxu0 0.0
      %5521 = vmatprep.subr.mxu0 0.0
      %5522 = vmatpush1.msra.mxu0 0.0
      %5523 = vmatprep.subr.mxu0 0.0
      %5524 = vmatpush1.msra.mxu0 0.0
      %5525 = vmatprep.subr.mxu0 0.0
      %5526 = vmatpush1.msra.mxu0 0.0
      %5527 = vmatprep.subr.mxu0 0.0
      %5528 = vmatpush1.msra.mxu0 0.0
      %5529 = vmatprep.mubr.f32.mxu0 0.0
      %5530 = vmatmul.mubr.f32.gmra.mrb[0].mxu0 %v5382
      %v5531 = vpop.f32.mrb[0].mxu0
      %v5532 = vadd.f32 0.0, %v5531
      %v5533 = vpop.f32.mrb[0].mxu0
      %v5534 = vadd.f32 0.0, %v5533
      %5535 = vmatprep.mubr.f32.mxu0 0.0
      %5536 = vmatmul.mubr.f32.gmra.mrb[0].mxu0 %v5385
      %v5537 = vpop.f32.mrb[0].mxu0
      %v5538 = vadd.f32 0.0, %v5537
      %v5539 = vpop.f32.mrb[0].mxu0
      %v5540 = vadd.f32 0.0, %v5539
      %5541 = vmatprep.mubr.f32.mxu0 0.0
      %5542 = vmatmul.mubr.f32.gmra.mrb[0].mxu0 %v5388
      %v5543 = vpop.f32.mrb[0].mxu0
      %v5544 = vadd.f32 0.0, %v5543
      %v5545 = vpop.f32.mrb[0].mxu0
      %v5546 = vadd.f32 0.0, %v5545
      %5547 = vmatprep.mubr.f32.mxu0 0.0
      %5548 = vmatmul.mubr.f32.gmra.mrb[0].mxu0 %v5391
      %v5549 = vpop.f32.mrb[0].mxu0
      %v5550 = vadd.f32 0.0, %v5549
      %v5551 = vpop.f32.mrb[0].mxu0
      %v5552 = vadd.f32 0.0, %v5551
      %5553 = vmatprep.mubr.f32.mxu0 0.0
      %5554 = vmatmul.mubr.f32.gmra.mrb[0].mxu0 %v5394
      %v5555 = vpop.f32.mrb[0].mxu0
      %v5556 = vadd.f32 0.0, %v5555
      %v5557 = vpop.f32.mrb[0].mxu0
      %v5558 = vadd.f32 0.0, %v5557
      %5559 = vmatprep.mubr.f32.mxu0 0.0
      %5560 = vmatmul.mubr.f32.gmra.mrb[0].mxu0 %v5397
      %v5561 = vpop.f32.mrb[0].mxu0
      %v5562 = vadd.f32 0.0, %v5561
      %v5563 = vpop.f32.mrb[0].mxu0
      %v5564 = vadd.f32 0.0, %v5563
      %5565 = vmatprep.mubr.f32.mxu0 0.0
      %5566 = vmatmul.mubr.f32.gmra.mrb[0].mxu0 %v5400
      %v5567 = vpop.f32.mrb[0].mxu0
      %v5568 = vadd.f32 0.0, %v5567
      %v5569 = vpop.f32.mrb[0].mxu0
      %v5570 = vadd.f32 0.0, %v5569
      %5571 = vmatprep.mubr.f32.mxu0 0.0
      %5572 = vmatmul.mubr.f32.gmra.mrb[0].mxu0 %v5403
      %v5573 = vpop.f32.mrb[0].mxu0
      %v5574 = vadd.f32 0.0, %v5573
      %v5575 = vpop.f32.mrb[0].mxu0
      %v5576 = vadd.f32 0.0, %v5575
      %5577 = vmatprep.mubr.f32.mxu0 0.0
      %5578 = vmatmul.mubr.f32.gmra.mrb[0].mxu0 %v5406
      %v5579 = vpop.f32.mrb[0].mxu0
      %v5580 = vadd.f32 0.0, %v5579
      %v5581 = vpop.f32.mrb[0].mxu0
      %v5582 = vadd.f32 0.0, %v5581
      %5583 = vmatprep.mubr.f32.mxu0 0.0
      %5584 = vmatmul.mubr.f32.gmra.mrb[0].mxu0 %v5409
      %v5585 = vpop.f32.mrb[0].mxu0
      %v5586 = vadd.f32 0.0, %v5585
      %v5587 = vpop.f32.mrb[0].mxu0
      %v5588 = vadd.f32 0.0, %v5587
      %5589 = vmatprep.mubr.f32.mxu0 0.0
      %5590 = vmatmul.mubr.f32.gmra.mrb[0].mxu0 %v5412
      %v5591 = vpop.f32.mrb[0].mxu0
      %v5592 = vadd.f32 0.0, %v5591
      %v5593 = vpop.f32.mrb[0].mxu0
      %v5594 = vadd.f32 0.0, %v5593
      %5595 = vmatprep.mubr.f32.mxu0 0.0
      %5596 = vmatmul.mubr.f32.gmra.mrb[0].mxu0 %v5415
      %v5597 = vpop.f32.mrb[0].mxu0
      %v5598 = vadd.f32 0.0, %v5597
      %v5599 = vpop.f32.mrb[0].mxu0
      %v5600 = vadd.f32 0.0, %v5599
      %5601 = vmatprep.mubr.f32.mxu0 0.0
      %5602 = vmatmul.mubr.f32.gmra.mrb[0].mxu0 %v5418
      %v5603 = vpop.f32.mrb[0].mxu0
      %v5604 = vadd.f32 0.0, %v5603
      %v5605 = vpop.f32.mrb[0].mxu0
      %v5606 = vadd.f32 0.0, %v5605
      %5607 = vmatprep.mubr.f32.mxu0 0.0
      %5608 = vmatmul.mubr.f32.gmra.mrb[0].mxu0 %v5421
      %v5609 = vpop.f32.mrb[0].mxu0
      %v5610 = vadd.f32 0.0, %v5609
      %v5611 = vpop.f32.mrb[0].mxu0
      %v5612 = vadd.f32 0.0, %v5611
      %5613 = vmatprep.mubr.f32.mxu0 0.0
      %5614 = vmatmul.mubr.f32.gmra.mrb[0].mxu0 %v5424
      %v5615 = vpop.f32.mrb[0].mxu0
      %v5616 = vadd.f32 0.0, %v5615
      %v5617 = vpop.f32.mrb[0].mxu0
      %v5618 = vadd.f32 0.0, %v5617
      %5619 = vmatprep.mubr.f32.mxu0 0.0
      %5620 = vmatmul.mubr.f32.gmra.mrb[0].mxu0 %v5427
      %v5621 = vpop.f32.mrb[0].mxu0
      %v5622 = vadd.f32 0.0, %v5621
      %v5623 = vpop.f32.mrb[0].mxu0
      %v5624 = vadd.f32 0.0, %v5623
      %5625 = vmatprep.mubr.f32.mxu0 0.0
      %5626 = vmatmul.mubr.f32.gmra.mrb[0].mxu0 %v5430
      %v5627 = vpop.f32.mrb[0].mxu0
      %v5628 = vadd.f32 0.0, %v5627
      %v5629 = vpop.f32.mrb[0].mxu0
      %v5630 = vadd.f32 0.0, %v5629
      %5631 = vmatprep.mubr.f32.mxu0 0.0
      %5632 = vmatmul.mubr.f32.gmra.mrb[0].mxu0 %v5433
      %v5633 = vpop.f32.mrb[0].mxu0
      %v5634 = vadd.f32 0.0, %v5633
      %v5635 = vpop.f32.mrb[0].mxu0
      %v5636 = vadd.f32 0.0, %v5635
      %5637 = vmatprep.mubr.f32.mxu0 0.0
      %5638 = vmatmul.mubr.f32.gmra.mrb[0].mxu0 %v5436
      %v5639 = vpop.f32.mrb[0].mxu0
      %v5640 = vadd.f32 0.0, %v5639
      %v5641 = vpop.f32.mrb[0].mxu0
      %v5642 = vadd.f32 0.0, %v5641
      %5643 = vmatprep.mubr.f32.mxu0 0.0
      %5644 = vmatmul.mubr.f32.gmra.mrb[0].mxu0 %v5439
      %v5645 = vpop.f32.mrb[0].mxu0
      %v5646 = vadd.f32 0.0, %v5645
      %v5647 = vpop.f32.mrb[0].mxu0
      %v5648 = vadd.f32 0.0, %v5647
      %5649 = vmatprep.mubr.f32.mxu0 0.0
      %5650 = vmatmul.mubr.f32.gmra.mrb[0].mxu0 %v5442
      %v5651 = vpop.f32.mrb[0].mxu0
      %v5652 = vadd.f32 0.0, %v5651
      %v5653 = vpop.f32.mrb[0].mxu0
      %v5654 = vadd.f32 0.0, %v5653
      %5655 = vmatprep.mubr.f32.mxu0 0.0
      %5656 = vmatmul.mubr.f32.gmra.mrb[0].mxu0 %v5445
      %v5657 = vpop.f32.mrb[0].mxu0
      %v5658 = vadd.f32 0.0, %v5657
      %v5659 = vpop.f32.mrb[0].mxu0
      %v5660 = vadd.f32 0.0, %v5659
      %5661 = vmatprep.mubr.f32.mxu0 0.0
      %5662 = vmatmul.mubr.f32.gmra.mrb[0].mxu0 %v5448
      %v5663 = vpop.f32.mrb[0].mxu0
      %v5664 = vadd.f32 0.0, %v5663
      %v5665 = vpop.f32.mrb[0].mxu0
      %v5666 = vadd.f32 0.0, %v5665
      %5667 = vmatprep.mubr.f32.mxu0 0.0
      %5668 = vmatmul.mubr.f32.gmra.mrb[0].mxu0 %v5451
      %v5669 = vpop.f32.mrb[0].mxu0
      %v5670 = vadd.f32 0.0, %v5669
      %v5671 = vpop.f32.mrb[0].mxu0
      %v5672 = vadd.f32 0.0, %v5671
      %5673 = vmatprep.mubr.f32.mxu0 0.0
      %5674 = vmatmul.mubr.f32.gmra.mrb[0].mxu0 %v5454
      %v5675 = vpop.f32.mrb[0].mxu0
      %v5676 = vadd.f32 0.0, %v5675
      %v5677 = vpop.f32.mrb[0].mxu0
      %v5678 = vadd.f32 0.0, %v5677
      %5679 = vmatprep.mubr.f32.mxu0 0.0
      %5680 = vmatmul.mubr.f32.gmra.mrb[0].mxu0 %v5457
      %v5681 = vpop.f32.mrb[0].mxu0
      %v5682 = vadd.f32 0.0, %v5681
      %v5683 = vpop.f32.mrb[0].mxu0
      %v5684 = vadd.f32 0.0, %v5683
      %5685 = vmatprep.mubr.f32.mxu0 0.0
      %5686 = vmatmul.mubr.f32.gmra.mrb[0].mxu0 %v5460
      %v5687 = vpop.f32.mrb[0].mxu0
      %v5688 = vadd.f32 0.0, %v5687
      %v5689 = vpop.f32.mrb[0].mxu0
      %v5690 = vadd.f32 0.0, %v5689
      %5691 = vmatprep.mubr.f32.mxu0 0.0
      %5692 = vmatmul.mubr.f32.gmra.mrb[0].mxu0 %v5463
      %v5693 = vpop.f32.mrb[0].mxu0
      %v5694 = vadd.f32 0.0, %v5693
      %v5695 = vpop.f32.mrb[0].mxu0
      %v5696 = vadd.f32 0.0, %v5695
      %5697 = vdwg.mxu0
      %v5698 = vadd.f32 %v5297, %v5532
      %v5699 = vadd.f32 %v5298, %v5534
      %v5700 = vadd.f32 %v5299, %v5538
      %v5701 = vadd.f32 %v5300, %v5540
      %v5702 = vadd.f32 %v5301, %v5544
      %v5703 = vadd.f32 %v5302, %v5546
      %v5704 = vadd.f32 %v5303, %v5550
      %v5705 = vadd.f32 %v5304, %v5552
      %v5706 = vadd.f32 %v5305, %v5556
      %v5707 = vadd.f32 %v5306, %v5558
      %v5708 = vadd.f32 %v5307, %v5562
      %v5709 = vadd.f32 %v5308, %v5564
      %v5710 = vadd.f32 %v5309, %v5568
      %v5711 = vadd.f32 %v5310, %v5570
      %v5712 = vadd.f32 %v5311, %v5574
      %v5713 = vadd.f32 %v5312, %v5576
      %v5714 = vadd.f32 %v5313, %v5580
      %v5715 = vadd.f32 %v5314, %v5582
      %v5716 = vadd.f32 %v5315, %v5586
      %v5717 = vadd.f32 %v5316, %v5588
      %v5718 = vadd.f32 %v5317, %v5592
      %v5719 = vadd.f32 %v5318, %v5594
      %v5720 = vadd.f32 %v5319, %v5598
      %v5721 = vadd.f32 %v5320, %v5600
      %v5722 = vadd.f32 %v5321, %v5604
      %v5723 = vadd.f32 %v5322, %v5606
      %v5724 = vadd.f32 %v5323, %v5610
      %v5725 = vadd.f32 %v5324, %v5612
      %v5726 = vadd.f32 %v5325, %v5616
      %v5727 = vadd.f32 %v5326, %v5618
      %v5728 = vadd.f32 %v5327, %v5622
      %v5729 = vadd.f32 %v5328, %v5624
      %v5730 = vadd.f32 %v5329, %v5628
      %v5731 = vadd.f32 %v5330, %v5630
      %v5732 = vadd.f32 %v5331, %v5634
      %v5733 = vadd.f32 %v5332, %v5636
      %v5734 = vadd.f32 %v5333, %v5640
      %v5735 = vadd.f32 %v5334, %v5642
      %v5736 = vadd.f32 %v5335, %v5646
      %v5737 = vadd.f32 %v5336, %v5648
      %v5738 = vadd.f32 %v5337, %v5652
      %v5739 = vadd.f32 %v5338, %v5654
      %v5740 = vadd.f32 %v5339, %v5658
      %v5741 = vadd.f32 %v5340, %v5660
      %v5742 = vadd.f32 %v5341, %v5664
      %v5743 = vadd.f32 %v5342, %v5666
      %v5744 = vadd.f32 %v5343, %v5670
      %v5745 = vadd.f32 %v5344, %v5672
      %v5746 = vadd.f32 %v5345, %v5676
      %v5747 = vadd.f32 %v5346, %v5678
      %v5748 = vadd.f32 %v5347, %v5682
      %v5749 = vadd.f32 %v5348, %v5684
      %v5750 = vadd.f32 %v5349, %v5688
      %v5751 = vadd.f32 %v5350, %v5690
      %v5752 = vadd.f32 %v5351, %v5694
      %v5753 = vadd.f32 %v5352, %v5696
      %v5754 = vmax.f32 %v5698, %v5699
      %v5755 = vmax.f32 %v5700, %v5701
      %v5756 = vmax.f32 %v5702, %v5703
      %v5757 = vmax.f32 %v5704, %v5705
      %v5758 = vmax.f32 %v5706, %v5707
      %v5759 = vmax.f32 %v5708, %v5709
      %v5760 = vmax.f32 %v5710, %v5711
      %v5761 = vmax.f32 %v5712, %v5713
      %v5762 = vmax.f32 %v5714, %v5715
      %v5763 = vmax.f32 %v5716, %v5717
      %v5764 = vmax.f32 %v5718, %v5719
      %v5765 = vmax.f32 %v5720, %v5721
      %v5766 = vmax.f32 %v5722, %v5723
      %v5767 = vmax.f32 %v5724, %v5725
      %v5768 = vmax.f32 %v5726, %v5727
      %v5769 = vmax.f32 %v5728, %v5729
      %v5770 = vmax.f32 %v5730, %v5731
      %v5771 = vmax.f32 %v5732, %v5733
      %v5772 = vmax.f32 %v5734, %v5735
      %v5773 = vmax.f32 %v5736, %v5737
      %v5774 = vmax.f32 %v5738, %v5739
      %v5775 = vmax.f32 %v5740, %v5741
      %v5776 = vmax.f32 %v5742, %v5743
      %v5777 = vmax.f32 %v5744, %v5745
      %v5778 = vmax.f32 %v5746, %v5747
      %v5779 = vmax.f32 %v5748, %v5749
      %v5780 = vmax.f32 %v5750, %v5751
      %v5781 = vmax.f32 %v5752, %v5753
      %5782 = vmatprep.subr.mxu0 %v397
      %5783 = vmatpush1.msra.mxu0 %v396
      %5784 = vmatprep.subr.mxu0 %v399
      %5785 = vmatpush1.msra.mxu0 %v398
      %5786 = vmatprep.subr.mxu0 %v401
      %5787 = vmatpush1.msra.mxu0 %v400
      %5788 = vmatprep.subr.mxu0 %v403
      %5789 = vmatpush1.msra.mxu0 %v402
      %5790 = vmatprep.subr.mxu0 0.0
      %5791 = vmatpush1.msra.mxu0 0.0
      %5792 = vmatprep.subr.mxu0 0.0
      %5793 = vmatpush1.msra.mxu0 0.0
      %5794 = vmatprep.subr.mxu0 0.0
      %5795 = vmatpush1.msra.mxu0 0.0
      %5796 = vmatprep.subr.mxu0 0.0
      %5797 = vmatpush1.msra.mxu0 0.0
      %5798 = vmatprep.subr.mxu0 0.0
      %5799 = vmatpush1.msra.mxu0 0.0
      %5800 = vmatprep.subr.mxu0 0.0
      %5801 = vmatpush1.msra.mxu0 0.0
      %5802 = vmatprep.subr.mxu0 0.0
      %5803 = vmatpush1.msra.mxu0 0.0
      %5804 = vmatprep.subr.mxu0 0.0
      %5805 = vmatpush1.msra.mxu0 0.0
      %5806 = vmatprep.subr.mxu0 0.0
      %5807 = vmatpush1.msra.mxu0 0.0
      %5808 = vmatprep.subr.mxu0 0.0
      %5809 = vmatpush1.msra.mxu0 0.0
      %5810 = vmatprep.subr.mxu0 0.0
      %5811 = vmatpush1.msra.mxu0 0.0
      %5812 = vmatprep.subr.mxu0 0.0
      %5813 = vmatpush1.msra.mxu0 0.0
      %5814 = vmatprep.subr.mxu0 0.0
      %5815 = vmatpush1.msra.mxu0 0.0
      %5816 = vmatprep.subr.mxu0 0.0
      %5817 = vmatpush1.msra.mxu0 0.0
      %5818 = vmatprep.subr.mxu0 0.0
      %5819 = vmatpush1.msra.mxu0 0.0
      %5820 = vmatprep.subr.mxu0 0.0
      %5821 = vmatpush1.msra.mxu0 0.0
      %5822 = vmatprep.subr.mxu0 0.0
      %5823 = vmatpush1.msra.mxu0 0.0
      %5824 = vmatprep.subr.mxu0 0.0
      %5825 = vmatpush1.msra.mxu0 0.0
      %5826 = vmatprep.subr.mxu0 0.0
      %5827 = vmatpush1.msra.mxu0 0.0
      %5828 = vmatprep.subr.mxu0 0.0
      %5829 = vmatpush1.msra.mxu0 0.0
      %5830 = vmatprep.subr.mxu0 0.0
      %5831 = vmatpush1.msra.mxu0 0.0
      %5832 = vmatprep.subr.mxu0 0.0
      %5833 = vmatpush1.msra.mxu0 0.0
      %5834 = vmatprep.subr.mxu0 0.0
      %5835 = vmatpush1.msra.mxu0 0.0
      %5836 = vmatprep.subr.mxu0 0.0
      %5837 = vmatpush1.msra.mxu0 0.0
      %5838 = vmatprep.subr.mxu0 0.0
      %5839 = vmatpush1.msra.mxu0 0.0
      %5840 = vmatprep.subr.mxu0 0.0
      %5841 = vmatpush1.msra.mxu0 0.0
      %5842 = vmatprep.subr.mxu0 0.0
      %5843 = vmatpush1.msra.mxu0 0.0
      %5844 = vmatprep.subr.mxu0 0.0
      %5845 = vmatpush1.msra.mxu0 0.0
      %5846 = vmatprep.mubr.f32.mxu0 0.0
      %5847 = vmatmul.mubr.f32.gmra.mrb[0].mxu0 %v2206
      %v5848 = vpop.f32.mrb[0].mxu0
      %v5849 = vadd.f32 0.0, %v5848
      %v5850 = vpop.f32.mrb[0].mxu0
      %v5851 = vadd.f32 0.0, %v5850
      %5852 = vmatprep.mubr.f32.mxu0 0.0
      %5853 = vmatmul.mubr.f32.gmra.mrb[0].mxu0 %v2209
      %v5854 = vpop.f32.mrb[0].mxu0
      %v5855 = vadd.f32 0.0, %v5854
      %v5856 = vpop.f32.mrb[0].mxu0
      %v5857 = vadd.f32 0.0, %v5856
      %5858 = vmatprep.mubr.f32.mxu0 0.0
      %5859 = vmatmul.mubr.f32.gmra.mrb[0].mxu0 %v2212
      %v5860 = vpop.f32.mrb[0].mxu0
      %v5861 = vadd.f32 0.0, %v5860
      %v5862 = vpop.f32.mrb[0].mxu0
      %v5863 = vadd.f32 0.0, %v5862
      %5864 = vmatprep.mubr.f32.mxu0 0.0
      %5865 = vmatmul.mubr.f32.gmra.mrb[0].mxu0 %v2215
      %v5866 = vpop.f32.mrb[0].mxu0
      %v5867 = vadd.f32 0.0, %v5866
      %v5868 = vpop.f32.mrb[0].mxu0
      %v5869 = vadd.f32 0.0, %v5868
      %5870 = vmatprep.mubr.f32.mxu0 0.0
      %5871 = vmatmul.mubr.f32.gmra.mrb[0].mxu0 %v2218
      %v5872 = vpop.f32.mrb[0].mxu0
      %v5873 = vadd.f32 0.0, %v5872
      %v5874 = vpop.f32.mrb[0].mxu0
      %v5875 = vadd.f32 0.0, %v5874
      %5876 = vmatprep.mubr.f32.mxu0 0.0
      %5877 = vmatmul.mubr.f32.gmra.mrb[0].mxu0 %v2221
      %v5878 = vpop.f32.mrb[0].mxu0
      %v5879 = vadd.f32 0.0, %v5878
      %v5880 = vpop.f32.mrb[0].mxu0
      %v5881 = vadd.f32 0.0, %v5880
      %5882 = vmatprep.mubr.f32.mxu0 0.0
      %5883 = vmatmul.mubr.f32.gmra.mrb[0].mxu0 %v2224
      %v5884 = vpop.f32.mrb[0].mxu0
      %v5885 = vadd.f32 0.0, %v5884
      %v5886 = vpop.f32.mrb[0].mxu0
      %v5887 = vadd.f32 0.0, %v5886
      %5888 = vmatprep.mubr.f32.mxu0 0.0
      %5889 = vmatmul.mubr.f32.gmra.mrb[0].mxu0 %v2227
      %v5890 = vpop.f32.mrb[0].mxu0
      %v5891 = vadd.f32 0.0, %v5890
      %v5892 = vpop.f32.mrb[0].mxu0
      %v5893 = vadd.f32 0.0, %v5892
      %5894 = vmatprep.mubr.f32.mxu0 0.0
      %5895 = vmatmul.mubr.f32.gmra.mrb[0].mxu0 %v2230
      %v5896 = vpop.f32.mrb[0].mxu0
      %v5897 = vadd.f32 0.0, %v5896
      %v5898 = vpop.f32.mrb[0].mxu0
      %v5899 = vadd.f32 0.0, %v5898
      %5900 = vmatprep.mubr.f32.mxu0 0.0
      %5901 = vmatmul.mubr.f32.gmra.mrb[0].mxu0 %v2233
      %v5902 = vpop.f32.mrb[0].mxu0
      %v5903 = vadd.f32 0.0, %v5902
      %v5904 = vpop.f32.mrb[0].mxu0
      %v5905 = vadd.f32 0.0, %v5904
      %5906 = vmatprep.mubr.f32.mxu0 0.0
      %5907 = vmatmul.mubr.f32.gmra.mrb[0].mxu0 %v2236
      %v5908 = vpop.f32.mrb[0].mxu0
      %v5909 = vadd.f32 0.0, %v5908
      %v5910 = vpop.f32.mrb[0].mxu0
      %v5911 = vadd.f32 0.0, %v5910
      %5912 = vmatprep.mubr.f32.mxu0 0.0
      %5913 = vmatmul.mubr.f32.gmra.mrb[0].mxu0 %v2239
      %v5914 = vpop.f32.mrb[0].mxu0
      %v5915 = vadd.f32 0.0, %v5914
      %v5916 = vpop.f32.mrb[0].mxu0
      %v5917 = vadd.f32 0.0, %v5916
      %5918 = vmatprep.mubr.f32.mxu0 0.0
      %5919 = vmatmul.mubr.f32.gmra.mrb[0].mxu0 %v2242
      %v5920 = vpop.f32.mrb[0].mxu0
      %v5921 = vadd.f32 0.0, %v5920
      %v5922 = vpop.f32.mrb[0].mxu0
      %v5923 = vadd.f32 0.0, %v5922
      %5924 = vmatprep.mubr.f32.mxu0 0.0
      %5925 = vmatmul.mubr.f32.gmra.mrb[0].mxu0 %v2245
      %v5926 = vpop.f32.mrb[0].mxu0
      %v5927 = vadd.f32 0.0, %v5926
      %v5928 = vpop.f32.mrb[0].mxu0
      %v5929 = vadd.f32 0.0, %v5928
      %5930 = vmatprep.mubr.f32.mxu0 0.0
      %5931 = vmatmul.mubr.f32.gmra.mrb[0].mxu0 %v2248
      %v5932 = vpop.f32.mrb[0].mxu0
      %v5933 = vadd.f32 0.0, %v5932
      %v5934 = vpop.f32.mrb[0].mxu0
      %v5935 = vadd.f32 0.0, %v5934
      %5936 = vmatprep.mubr.f32.mxu0 0.0
      %5937 = vmatmul.mubr.f32.gmra.mrb[0].mxu0 %v2251
      %v5938 = vpop.f32.mrb[0].mxu0
      %v5939 = vadd.f32 0.0, %v5938
      %v5940 = vpop.f32.mrb[0].mxu0
      %v5941 = vadd.f32 0.0, %v5940
      %5942 = vmatprep.mubr.f32.mxu0 0.0
      %5943 = vmatmul.mubr.f32.gmra.mrb[0].mxu0 %v2254
      %v5944 = vpop.f32.mrb[0].mxu0
      %v5945 = vadd.f32 0.0, %v5944
      %v5946 = vpop.f32.mrb[0].mxu0
      %v5947 = vadd.f32 0.0, %v5946
      %5948 = vmatprep.mubr.f32.mxu0 0.0
      %5949 = vmatmul.mubr.f32.gmra.mrb[0].mxu0 %v2257
      %v5950 = vpop.f32.mrb[0].mxu0
      %v5951 = vadd.f32 0.0, %v5950
      %v5952 = vpop.f32.mrb[0].mxu0
      %v5953 = vadd.f32 0.0, %v5952
      %5954 = vmatprep.mubr.f32.mxu0 0.0
      %5955 = vmatmul.mubr.f32.gmra.mrb[0].mxu0 %v2260
      %v5956 = vpop.f32.mrb[0].mxu0
      %v5957 = vadd.f32 0.0, %v5956
      %v5958 = vpop.f32.mrb[0].mxu0
      %v5959 = vadd.f32 0.0, %v5958
      %5960 = vmatprep.mubr.f32.mxu0 0.0
      %5961 = vmatmul.mubr.f32.gmra.mrb[0].mxu0 %v2263
      %v5962 = vpop.f32.mrb[0].mxu0
      %v5963 = vadd.f32 0.0, %v5962
      %v5964 = vpop.f32.mrb[0].mxu0
      %v5965 = vadd.f32 0.0, %v5964
      %5966 = vmatprep.mubr.f32.mxu0 0.0
      %5967 = vmatmul.mubr.f32.gmra.mrb[0].mxu0 %v2266
      %v5968 = vpop.f32.mrb[0].mxu0
      %v5969 = vadd.f32 0.0, %v5968
      %v5970 = vpop.f32.mrb[0].mxu0
      %v5971 = vadd.f32 0.0, %v5970
      %5972 = vmatprep.mubr.f32.mxu0 0.0
      %5973 = vmatmul.mubr.f32.gmra.mrb[0].mxu0 %v2269
      %v5974 = vpop.f32.mrb[0].mxu0
      %v5975 = vadd.f32 0.0, %v5974
      %v5976 = vpop.f32.mrb[0].mxu0
      %v5977 = vadd.f32 0.0, %v5976
      %5978 = vmatprep.mubr.f32.mxu0 0.0
      %5979 = vmatmul.mubr.f32.gmra.mrb[0].mxu0 %v2272
      %v5980 = vpop.f32.mrb[0].mxu0
      %v5981 = vadd.f32 0.0, %v5980
      %v5982 = vpop.f32.mrb[0].mxu0
      %v5983 = vadd.f32 0.0, %v5982
      %5984 = vmatprep.mubr.f32.mxu0 0.0
      %5985 = vmatmul.mubr.f32.gmra.mrb[0].mxu0 %v2275
      %v5986 = vpop.f32.mrb[0].mxu0
      %v5987 = vadd.f32 0.0, %v5986
      %v5988 = vpop.f32.mrb[0].mxu0
      %v5989 = vadd.f32 0.0, %v5988
      %5990 = vmatprep.mubr.f32.mxu0 0.0
      %5991 = vmatmul.mubr.f32.gmra.mrb[0].mxu0 %v2278
      %v5992 = vpop.f32.mrb[0].mxu0
      %v5993 = vadd.f32 0.0, %v5992
      %v5994 = vpop.f32.mrb[0].mxu0
      %v5995 = vadd.f32 0.0, %v5994
      %5996 = vmatprep.mubr.f32.mxu0 0.0
      %5997 = vmatmul.mubr.f32.gmra.mrb[0].mxu0 %v2281
      %v5998 = vpop.f32.mrb[0].mxu0
      %v5999 = vadd.f32 0.0, %v5998
      %v6000 = vpop.f32.mrb[0].mxu0
      %v6001 = vadd.f32 0.0, %v6000
      %6002 = vmatprep.mubr.f32.mxu0 0.0
      %6003 = vmatmul.mubr.f32.gmra.mrb[0].mxu0 %v2284
      %v6004 = vpop.f32.mrb[0].mxu0
      %v6005 = vadd.f32 0.0, %v6004
      %v6006 = vpop.f32.mrb[0].mxu0
      %v6007 = vadd.f32 0.0, %v6006
      %6008 = vmatprep.mubr.f32.mxu0 0.0
      %6009 = vmatmul.mubr.f32.gmra.mrb[0].mxu0 %v2287
      %v6010 = vpop.f32.mrb[0].mxu0
      %v6011 = vadd.f32 0.0, %v6010
      %v6012 = vpop.f32.mrb[0].mxu0
      %v6013 = vadd.f32 0.0, %v6012
      %6014 = vdwg.mxu0
      %6015 = vmatprep.subr.mxu0 %v388
      %6016 = vmatpush1.msra.mxu0 %v387
      %6017 = vmatprep.subr.mxu0 %v390
      %6018 = vmatpush1.msra.mxu0 %v389
      %6019 = vmatprep.subr.mxu0 %v392
      %6020 = vmatpush1.msra.mxu0 %v391
      %6021 = vmatprep.subr.mxu0 %v394
      %6022 = vmatpush1.msra.mxu0 %v393
      %6023 = vmatprep.subr.mxu0 0.0
      %6024 = vmatpush1.msra.mxu0 0.0
      %6025 = vmatprep.subr.mxu0 0.0
      %6026 = vmatpush1.msra.mxu0 0.0
      %6027 = vmatprep.subr.mxu0 0.0
      %6028 = vmatpush1.msra.mxu0 0.0
      %6029 = vmatprep.subr.mxu0 0.0
      %6030 = vmatpush1.msra.mxu0 0.0
      %6031 = vmatprep.subr.mxu0 0.0
      %6032 = vmatpush1.msra.mxu0 0.0
      %6033 = vmatprep.subr.mxu0 0.0
      %6034 = vmatpush1.msra.mxu0 0.0
      %6035 = vmatprep.subr.mxu0 0.0
      %6036 = vmatpush1.msra.mxu0 0.0
      %6037 = vmatprep.subr.mxu0 0.0
      %6038 = vmatpush1.msra.mxu0 0.0
      %6039 = vmatprep.subr.mxu0 0.0
      %6040 = vmatpush1.msra.mxu0 0.0
      %6041 = vmatprep.subr.mxu0 0.0
      %6042 = vmatpush1.msra.mxu0 0.0
      %6043 = vmatprep.subr.mxu0 0.0
      %6044 = vmatpush1.msra.mxu0 0.0
      %6045 = vmatprep.subr.mxu0 0.0
      %6046 = vmatpush1.msra.mxu0 0.0
      %6047 = vmatprep.subr.mxu0 0.0
      %6048 = vmatpush1.msra.mxu0 0.0
      %6049 = vmatprep.subr.mxu0 0.0
      %6050 = vmatpush1.msra.mxu0 0.0
      %6051 = vmatprep.subr.mxu0 0.0
      %6052 = vmatpush1.msra.mxu0 0.0
      %6053 = vmatprep.subr.mxu0 0.0
      %6054 = vmatpush1.msra.mxu0 0.0
      %6055 = vmatprep.subr.mxu0 0.0
      %6056 = vmatpush1.msra.mxu0 0.0
      %6057 = vmatprep.subr.mxu0 0.0
      %6058 = vmatpush1.msra.mxu0 0.0
      %6059 = vmatprep.subr.mxu0 0.0
      %6060 = vmatpush1.msra.mxu0 0.0
      %6061 = vmatprep.subr.mxu0 0.0
      %6062 = vmatpush1.msra.mxu0 0.0
      %6063 = vmatprep.subr.mxu0 0.0
      %6064 = vmatpush1.msra.mxu0 0.0
      %6065 = vmatprep.subr.mxu0 0.0
      %6066 = vmatpush1.msra.mxu0 0.0
      %6067 = vmatprep.subr.mxu0 0.0
      %6068 = vmatpush1.msra.mxu0 0.0
      %6069 = vmatprep.subr.mxu0 0.0
      %6070 = vmatpush1.msra.mxu0 0.0
      %6071 = vmatprep.subr.mxu0 0.0
      %6072 = vmatpush1.msra.mxu0 0.0
      %6073 = vmatprep.subr.mxu0 0.0
      %6074 = vmatpush1.msra.mxu0 0.0
      %6075 = vmatprep.subr.mxu0 0.0
      %6076 = vmatpush1.msra.mxu0 0.0
      %6077 = vmatprep.subr.mxu0 0.0
      %6078 = vmatpush1.msra.mxu0 0.0
      %6079 = vmatprep.mubr.f32.mxu0 0.0
      %6080 = vmatmul.mubr.f32.gmra.mrb[0].mxu0 %v1805
      %v6081 = vpop.f32.mrb[0].mxu0
      %v6082 = vadd.f32 %v5849, %v6081
      %v6083 = vpop.f32.mrb[0].mxu0
      %v6084 = vadd.f32 %v5851, %v6083
      %6085 = vmatprep.mubr.f32.mxu0 0.0
      %6086 = vmatmul.mubr.f32.gmra.mrb[0].mxu0 %v1808
      %v6087 = vpop.f32.mrb[0].mxu0
      %v6088 = vadd.f32 %v5855, %v6087
      %v6089 = vpop.f32.mrb[0].mxu0
      %v6090 = vadd.f32 %v5857, %v6089
      %6091 = vmatprep.mubr.f32.mxu0 0.0
      %6092 = vmatmul.mubr.f32.gmra.mrb[0].mxu0 %v1811
      %v6093 = vpop.f32.mrb[0].mxu0
      %v6094 = vadd.f32 %v5861, %v6093
      %v6095 = vpop.f32.mrb[0].mxu0
      %v6096 = vadd.f32 %v5863, %v6095
      %6097 = vmatprep.mubr.f32.mxu0 0.0
      %6098 = vmatmul.mubr.f32.gmra.mrb[0].mxu0 %v1814
      %v6099 = vpop.f32.mrb[0].mxu0
      %v6100 = vadd.f32 %v5867, %v6099
      %v6101 = vpop.f32.mrb[0].mxu0
      %v6102 = vadd.f32 %v5869, %v6101
      %6103 = vmatprep.mubr.f32.mxu0 0.0
      %6104 = vmatmul.mubr.f32.gmra.mrb[0].mxu0 %v1817
      %v6105 = vpop.f32.mrb[0].mxu0
      %v6106 = vadd.f32 %v5873, %v6105
      %v6107 = vpop.f32.mrb[0].mxu0
      %v6108 = vadd.f32 %v5875, %v6107
      %6109 = vmatprep.mubr.f32.mxu0 0.0
      %6110 = vmatmul.mubr.f32.gmra.mrb[0].mxu0 %v1820
      %v6111 = vpop.f32.mrb[0].mxu0
      %v6112 = vadd.f32 %v5879, %v6111
      %v6113 = vpop.f32.mrb[0].mxu0
      %v6114 = vadd.f32 %v5881, %v6113
      %6115 = vmatprep.mubr.f32.mxu0 0.0
      %6116 = vmatmul.mubr.f32.gmra.mrb[0].mxu0 %v1823
      %v6117 = vpop.f32.mrb[0].mxu0
      %v6118 = vadd.f32 %v5885, %v6117
      %v6119 = vpop.f32.mrb[0].mxu0
      %v6120 = vadd.f32 %v5887, %v6119
      %6121 = vmatprep.mubr.f32.mxu0 0.0
      %6122 = vmatmul.mubr.f32.gmra.mrb[0].mxu0 %v1826
      %v6123 = vpop.f32.mrb[0].mxu0
      %v6124 = vadd.f32 %v5891, %v6123
      %v6125 = vpop.f32.mrb[0].mxu0
      %v6126 = vadd.f32 %v5893, %v6125
      %6127 = vmatprep.mubr.f32.mxu0 0.0
      %6128 = vmatmul.mubr.f32.gmra.mrb[0].mxu0 %v1829
      %v6129 = vpop.f32.mrb[0].mxu0
      %v6130 = vadd.f32 %v5897, %v6129
      %v6131 = vpop.f32.mrb[0].mxu0
      %v6132 = vadd.f32 %v5899, %v6131
      %6133 = vmatprep.mubr.f32.mxu0 0.0
      %6134 = vmatmul.mubr.f32.gmra.mrb[0].mxu0 %v1832
      %v6135 = vpop.f32.mrb[0].mxu0
      %v6136 = vadd.f32 %v5903, %v6135
      %v6137 = vpop.f32.mrb[0].mxu0
      %v6138 = vadd.f32 %v5905, %v6137
      %6139 = vmatprep.mubr.f32.mxu0 0.0
      %6140 = vmatmul.mubr.f32.gmra.mrb[0].mxu0 %v1835
      %v6141 = vpop.f32.mrb[0].mxu0
      %v6142 = vadd.f32 %v5909, %v6141
      %v6143 = vpop.f32.mrb[0].mxu0
      %v6144 = vadd.f32 %v5911, %v6143
      %6145 = vmatprep.mubr.f32.mxu0 0.0
      %6146 = vmatmul.mubr.f32.gmra.mrb[0].mxu0 %v1838
      %v6147 = vpop.f32.mrb[0].mxu0
      %v6148 = vadd.f32 %v5915, %v6147
      %v6149 = vpop.f32.mrb[0].mxu0
      %v6150 = vadd.f32 %v5917, %v6149
      %6151 = vmatprep.mubr.f32.mxu0 0.0
      %6152 = vmatmul.mubr.f32.gmra.mrb[0].mxu0 %v1841
      %v6153 = vpop.f32.mrb[0].mxu0
      %v6154 = vadd.f32 %v5921, %v6153
      %v6155 = vpop.f32.mrb[0].mxu0
      %v6156 = vadd.f32 %v5923, %v6155
      %6157 = vmatprep.mubr.f32.mxu0 0.0
      %6158 = vmatmul.mubr.f32.gmra.mrb[0].mxu0 %v1844
      %v6159 = vpop.f32.mrb[0].mxu0
      %v6160 = vadd.f32 %v5927, %v6159
      %v6161 = vpop.f32.mrb[0].mxu0
      %v6162 = vadd.f32 %v5929, %v6161
      %6163 = vmatprep.mubr.f32.mxu0 0.0
      %6164 = vmatmul.mubr.f32.gmra.mrb[0].mxu0 %v1847
      %v6165 = vpop.f32.mrb[0].mxu0
      %v6166 = vadd.f32 %v5933, %v6165
      %v6167 = vpop.f32.mrb[0].mxu0
      %v6168 = vadd.f32 %v5935, %v6167
      %6169 = vmatprep.mubr.f32.mxu0 0.0
      %6170 = vmatmul.mubr.f32.gmra.mrb[0].mxu0 %v1850
      %v6171 = vpop.f32.mrb[0].mxu0
      %v6172 = vadd.f32 %v5939, %v6171
      %v6173 = vpop.f32.mrb[0].mxu0
      %v6174 = vadd.f32 %v5941, %v6173
      %6175 = vmatprep.mubr.f32.mxu0 0.0
      %6176 = vmatmul.mubr.f32.gmra.mrb[0].mxu0 %v1853
      %v6177 = vpop.f32.mrb[0].mxu0
      %v6178 = vadd.f32 %v5945, %v6177
      %v6179 = vpop.f32.mrb[0].mxu0
      %v6180 = vadd.f32 %v5947, %v6179
      %6181 = vmatprep.mubr.f32.mxu0 0.0
      %6182 = vmatmul.mubr.f32.gmra.mrb[0].mxu0 %v1856
      %v6183 = vpop.f32.mrb[0].mxu0
      %v6184 = vadd.f32 %v5951, %v6183
      %v6185 = vpop.f32.mrb[0].mxu0
      %v6186 = vadd.f32 %v5953, %v6185
      %6187 = vmatprep.mubr.f32.mxu0 0.0
      %6188 = vmatmul.mubr.f32.gmra.mrb[0].mxu0 %v1859
      %v6189 = vpop.f32.mrb[0].mxu0
      %v6190 = vadd.f32 %v5957, %v6189
      %v6191 = vpop.f32.mrb[0].mxu0
      %v6192 = vadd.f32 %v5959, %v6191
      %6193 = vmatprep.mubr.f32.mxu0 0.0
      %6194 = vmatmul.mubr.f32.gmra.mrb[0].mxu0 %v1862
      %v6195 = vpop.f32.mrb[0].mxu0
      %v6196 = vadd.f32 %v5963, %v6195
      %v6197 = vpop.f32.mrb[0].mxu0
      %v6198 = vadd.f32 %v5965, %v6197
      %6199 = vmatprep.mubr.f32.mxu0 0.0
      %6200 = vmatmul.mubr.f32.gmra.mrb[0].mxu0 %v1865
      %v6201 = vpop.f32.mrb[0].mxu0
      %v6202 = vadd.f32 %v5969, %v6201
      %v6203 = vpop.f32.mrb[0].mxu0
      %v6204 = vadd.f32 %v5971, %v6203
      %6205 = vmatprep.mubr.f32.mxu0 0.0
      %6206 = vmatmul.mubr.f32.gmra.mrb[0].mxu0 %v1868
      %v6207 = vpop.f32.mrb[0].mxu0
      %v6208 = vadd.f32 %v5975, %v6207
      %v6209 = vpop.f32.mrb[0].mxu0
      %v6210 = vadd.f32 %v5977, %v6209
      %6211 = vmatprep.mubr.f32.mxu0 0.0
      %6212 = vmatmul.mubr.f32.gmra.mrb[0].mxu0 %v1871
      %v6213 = vpop.f32.mrb[0].mxu0
      %v6214 = vadd.f32 %v5981, %v6213
      %v6215 = vpop.f32.mrb[0].mxu0
      %v6216 = vadd.f32 %v5983, %v6215
      %6217 = vmatprep.mubr.f32.mxu0 0.0
      %6218 = vmatmul.mubr.f32.gmra.mrb[0].mxu0 %v1874
      %v6219 = vpop.f32.mrb[0].mxu0
      %v6220 = vadd.f32 %v5987, %v6219
      %v6221 = vpop.f32.mrb[0].mxu0
      %v6222 = vadd.f32 %v5989, %v6221
      %6223 = vmatprep.mubr.f32.mxu0 0.0
      %6224 = vmatmul.mubr.f32.gmra.mrb[0].mxu0 %v1877
      %v6225 = vpop.f32.mrb[0].mxu0
      %v6226 = vadd.f32 %v5993, %v6225
      %v6227 = vpop.f32.mrb[0].mxu0
      %v6228 = vadd.f32 %v5995, %v6227
      %6229 = vmatprep.mubr.f32.mxu0 0.0
      %6230 = vmatmul.mubr.f32.gmra.mrb[0].mxu0 %v1880
      %v6231 = vpop.f32.mrb[0].mxu0
      %v6232 = vadd.f32 %v5999, %v6231
      %v6233 = vpop.f32.mrb[0].mxu0
      %v6234 = vadd.f32 %v6001, %v6233
      %6235 = vmatprep.mubr.f32.mxu0 0.0
      %6236 = vmatmul.mubr.f32.gmra.mrb[0].mxu0 %v1883
      %v6237 = vpop.f32.mrb[0].mxu0
      %v6238 = vadd.f32 %v6005, %v6237
      %v6239 = vpop.f32.mrb[0].mxu0
      %v6240 = vadd.f32 %v6007, %v6239
      %6241 = vmatprep.mubr.f32.mxu0 0.0
      %6242 = vmatmul.mubr.f32.gmra.mrb[0].mxu0 %v1886
      %v6243 = vpop.f32.mrb[0].mxu0
      %v6244 = vadd.f32 %v6011, %v6243
      %v6245 = vpop.f32.mrb[0].mxu0
      %v6246 = vadd.f32 %v6013, %v6245
      %6247 = vdwg.mxu0
      %6248 = vmatprep.subr.mxu0 %v406
      %6249 = vmatpush1.msra.mxu0 %v405
      %6250 = vmatprep.subr.mxu0 %v408
      %6251 = vmatpush1.msra.mxu0 %v407
      %6252 = vmatprep.subr.mxu0 %v410
      %6253 = vmatpush1.msra.mxu0 %v409
      %6254 = vmatprep.subr.mxu0 %v412
      %6255 = vmatpush1.msra.mxu0 %v411
      %6256 = vmatprep.subr.mxu0 0.0
      %6257 = vmatpush1.msra.mxu0 0.0
      %6258 = vmatprep.subr.mxu0 0.0
      %6259 = vmatpush1.msra.mxu0 0.0
      %6260 = vmatprep.subr.mxu0 0.0
      %6261 = vmatpush1.msra.mxu0 0.0
      %6262 = vmatprep.subr.mxu0 0.0
      %6263 = vmatpush1.msra.mxu0 0.0
      %6264 = vmatprep.subr.mxu0 0.0
      %6265 = vmatpush1.msra.mxu0 0.0
      %6266 = vmatprep.subr.mxu0 0.0
      %6267 = vmatpush1.msra.mxu0 0.0
      %6268 = vmatprep.subr.mxu0 0.0
      %6269 = vmatpush1.msra.mxu0 0.0
      %6270 = vmatprep.subr.mxu0 0.0
      %6271 = vmatpush1.msra.mxu0 0.0
      %6272 = vmatprep.subr.mxu0 0.0
      %6273 = vmatpush1.msra.mxu0 0.0
      %6274 = vmatprep.subr.mxu0 0.0
      %6275 = vmatpush1.msra.mxu0 0.0
      %6276 = vmatprep.subr.mxu0 0.0
      %6277 = vmatpush1.msra.mxu0 0.0
      %6278 = vmatprep.subr.mxu0 0.0
      %6279 = vmatpush1.msra.mxu0 0.0
      %6280 = vmatprep.subr.mxu0 0.0
      %6281 = vmatpush1.msra.mxu0 0.0
      %6282 = vmatprep.subr.mxu0 0.0
      %6283 = vmatpush1.msra.mxu0 0.0
      %6284 = vmatprep.subr.mxu0 0.0
      %6285 = vmatpush1.msra.mxu0 0.0
      %6286 = vmatprep.subr.mxu0 0.0
      %6287 = vmatpush1.msra.mxu0 0.0
      %6288 = vmatprep.subr.mxu0 0.0
      %6289 = vmatpush1.msra.mxu0 0.0
      %6290 = vmatprep.subr.mxu0 0.0
      %6291 = vmatpush1.msra.mxu0 0.0
      %6292 = vmatprep.subr.mxu0 0.0
      %6293 = vmatpush1.msra.mxu0 0.0
      %6294 = vmatprep.subr.mxu0 0.0
      %6295 = vmatpush1.msra.mxu0 0.0
      %6296 = vmatprep.subr.mxu0 0.0
      %6297 = vmatpush1.msra.mxu0 0.0
      %6298 = vmatprep.subr.mxu0 0.0
      %6299 = vmatpush1.msra.mxu0 0.0
      %6300 = vmatprep.subr.mxu0 0.0
      %6301 = vmatpush1.msra.mxu0 0.0
      %6302 = vmatprep.subr.mxu0 0.0
      %6303 = vmatpush1.msra.mxu0 0.0
      %6304 = vmatprep.subr.mxu0 0.0
      %6305 = vmatpush1.msra.mxu0 0.0
      %6306 = vmatprep.subr.mxu0 0.0
      %6307 = vmatpush1.msra.mxu0 0.0
      %6308 = vmatprep.subr.mxu0 0.0
      %6309 = vmatpush1.msra.mxu0 0.0
      %6310 = vmatprep.subr.mxu0 0.0
      %6311 = vmatpush1.msra.mxu0 0.0
      %6312 = vmatprep.mubr.f32.mxu0 0.0
      %6313 = vmatmul.mubr.f32.gmra.mrb[0].mxu0 %v3679
      %v6314 = vpop.f32.mrb[0].mxu0
      %v6315 = vadd.f32 0.0, %v6314
      %v6316 = vpop.f32.mrb[0].mxu0
      %v6317 = vadd.f32 0.0, %v6316
      %6318 = vmatprep.mubr.f32.mxu0 0.0
      %6319 = vmatmul.mubr.f32.gmra.mrb[0].mxu0 %v3682
      %v6320 = vpop.f32.mrb[0].mxu0
      %v6321 = vadd.f32 0.0, %v6320
      %v6322 = vpop.f32.mrb[0].mxu0
      %v6323 = vadd.f32 0.0, %v6322
      %6324 = vmatprep.mubr.f32.mxu0 0.0
      %6325 = vmatmul.mubr.f32.gmra.mrb[0].mxu0 %v3685
      %v6326 = vpop.f32.mrb[0].mxu0
      %v6327 = vadd.f32 0.0, %v6326
      %v6328 = vpop.f32.mrb[0].mxu0
      %v6329 = vadd.f32 0.0, %v6328
      %6330 = vmatprep.mubr.f32.mxu0 0.0
      %6331 = vmatmul.mubr.f32.gmra.mrb[0].mxu0 %v3688
      %v6332 = vpop.f32.mrb[0].mxu0
      %v6333 = vadd.f32 0.0, %v6332
      %v6334 = vpop.f32.mrb[0].mxu0
      %v6335 = vadd.f32 0.0, %v6334
      %6336 = vmatprep.mubr.f32.mxu0 0.0
      %6337 = vmatmul.mubr.f32.gmra.mrb[0].mxu0 %v3691
      %v6338 = vpop.f32.mrb[0].mxu0
      %v6339 = vadd.f32 0.0, %v6338
      %v6340 = vpop.f32.mrb[0].mxu0
      %v6341 = vadd.f32 0.0, %v6340
      %6342 = vmatprep.mubr.f32.mxu0 0.0
      %6343 = vmatmul.mubr.f32.gmra.mrb[0].mxu0 %v3694
      %v6344 = vpop.f32.mrb[0].mxu0
      %v6345 = vadd.f32 0.0, %v6344
      %v6346 = vpop.f32.mrb[0].mxu0
      %v6347 = vadd.f32 0.0, %v6346
      %6348 = vmatprep.mubr.f32.mxu0 0.0
      %6349 = vmatmul.mubr.f32.gmra.mrb[0].mxu0 %v3697
      %v6350 = vpop.f32.mrb[0].mxu0
      %v6351 = vadd.f32 0.0, %v6350
      %v6352 = vpop.f32.mrb[0].mxu0
      %v6353 = vadd.f32 0.0, %v6352
      %6354 = vmatprep.mubr.f32.mxu0 0.0
      %6355 = vmatmul.mubr.f32.gmra.mrb[0].mxu0 %v3700
      %v6356 = vpop.f32.mrb[0].mxu0
      %v6357 = vadd.f32 0.0, %v6356
      %v6358 = vpop.f32.mrb[0].mxu0
      %v6359 = vadd.f32 0.0, %v6358
      %6360 = vmatprep.mubr.f32.mxu0 0.0
      %6361 = vmatmul.mubr.f32.gmra.mrb[0].mxu0 %v3703
      %v6362 = vpop.f32.mrb[0].mxu0
      %v6363 = vadd.f32 0.0, %v6362
      %v6364 = vpop.f32.mrb[0].mxu0
      %v6365 = vadd.f32 0.0, %v6364
      %6366 = vmatprep.mubr.f32.mxu0 0.0
      %6367 = vmatmul.mubr.f32.gmra.mrb[0].mxu0 %v3706
      %v6368 = vpop.f32.mrb[0].mxu0
      %v6369 = vadd.f32 0.0, %v6368
      %v6370 = vpop.f32.mrb[0].mxu0
      %v6371 = vadd.f32 0.0, %v6370
      %6372 = vmatprep.mubr.f32.mxu0 0.0
      %6373 = vmatmul.mubr.f32.gmra.mrb[0].mxu0 %v3709
      %v6374 = vpop.f32.mrb[0].mxu0
      %v6375 = vadd.f32 0.0, %v6374
      %v6376 = vpop.f32.mrb[0].mxu0
      %v6377 = vadd.f32 0.0, %v6376
      %6378 = vmatprep.mubr.f32.mxu0 0.0
      %6379 = vmatmul.mubr.f32.gmra.mrb[0].mxu0 %v3712
      %v6380 = vpop.f32.mrb[0].mxu0
      %v6381 = vadd.f32 0.0, %v6380
      %v6382 = vpop.f32.mrb[0].mxu0
      %v6383 = vadd.f32 0.0, %v6382
      %6384 = vmatprep.mubr.f32.mxu0 0.0
      %6385 = vmatmul.mubr.f32.gmra.mrb[0].mxu0 %v3715
      %v6386 = vpop.f32.mrb[0].mxu0
      %v6387 = vadd.f32 0.0, %v6386
      %v6388 = vpop.f32.mrb[0].mxu0
      %v6389 = vadd.f32 0.0, %v6388
      %6390 = vmatprep.mubr.f32.mxu0 0.0
      %6391 = vmatmul.mubr.f32.gmra.mrb[0].mxu0 %v3718
      %v6392 = vpop.f32.mrb[0].mxu0
      %v6393 = vadd.f32 0.0, %v6392
      %v6394 = vpop.f32.mrb[0].mxu0
      %v6395 = vadd.f32 0.0, %v6394
      %6396 = vmatprep.mubr.f32.mxu0 0.0
      %6397 = vmatmul.mubr.f32.gmra.mrb[0].mxu0 %v3721
      %v6398 = vpop.f32.mrb[0].mxu0
      %v6399 = vadd.f32 0.0, %v6398
      %v6400 = vpop.f32.mrb[0].mxu0
      %v6401 = vadd.f32 0.0, %v6400
      %6402 = vmatprep.mubr.f32.mxu0 0.0
      %6403 = vmatmul.mubr.f32.gmra.mrb[0].mxu0 %v3724
      %v6404 = vpop.f32.mrb[0].mxu0
      %v6405 = vadd.f32 0.0, %v6404
      %v6406 = vpop.f32.mrb[0].mxu0
      %v6407 = vadd.f32 0.0, %v6406
      %6408 = vmatprep.mubr.f32.mxu0 0.0
      %6409 = vmatmul.mubr.f32.gmra.mrb[0].mxu0 %v3727
      %v6410 = vpop.f32.mrb[0].mxu0
      %v6411 = vadd.f32 0.0, %v6410
      %v6412 = vpop.f32.mrb[0].mxu0
      %v6413 = vadd.f32 0.0, %v6412
      %6414 = vmatprep.mubr.f32.mxu0 0.0
      %6415 = vmatmul.mubr.f32.gmra.mrb[0].mxu0 %v3730
      %v6416 = vpop.f32.mrb[0].mxu0
      %v6417 = vadd.f32 0.0, %v6416
      %v6418 = vpop.f32.mrb[0].mxu0
      %v6419 = vadd.f32 0.0, %v6418
      %6420 = vmatprep.mubr.f32.mxu0 0.0
      %6421 = vmatmul.mubr.f32.gmra.mrb[0].mxu0 %v3733
      %v6422 = vpop.f32.mrb[0].mxu0
      %v6423 = vadd.f32 0.0, %v6422
      %v6424 = vpop.f32.mrb[0].mxu0
      %v6425 = vadd.f32 0.0, %v6424
      %6426 = vmatprep.mubr.f32.mxu0 0.0
      %6427 = vmatmul.mubr.f32.gmra.mrb[0].mxu0 %v3736
      %v6428 = vpop.f32.mrb[0].mxu0
      %v6429 = vadd.f32 0.0, %v6428
      %v6430 = vpop.f32.mrb[0].mxu0
      %v6431 = vadd.f32 0.0, %v6430
      %6432 = vmatprep.mubr.f32.mxu0 0.0
      %6433 = vmatmul.mubr.f32.gmra.mrb[0].mxu0 %v3739
      %v6434 = vpop.f32.mrb[0].mxu0
      %v6435 = vadd.f32 0.0, %v6434
      %v6436 = vpop.f32.mrb[0].mxu0
      %v6437 = vadd.f32 0.0, %v6436
      %6438 = vmatprep.mubr.f32.mxu0 0.0
      %6439 = vmatmul.mubr.f32.gmra.mrb[0].mxu0 %v3742
      %v6440 = vpop.f32.mrb[0].mxu0
      %v6441 = vadd.f32 0.0, %v6440
      %v6442 = vpop.f32.mrb[0].mxu0
      %v6443 = vadd.f32 0.0, %v6442
      %6444 = vmatprep.mubr.f32.mxu0 0.0
      %6445 = vmatmul.mubr.f32.gmra.mrb[0].mxu0 %v3745
      %v6446 = vpop.f32.mrb[0].mxu0
      %v6447 = vadd.f32 0.0, %v6446
      %v6448 = vpop.f32.mrb[0].mxu0
      %v6449 = vadd.f32 0.0, %v6448
      %6450 = vmatprep.mubr.f32.mxu0 0.0
      %6451 = vmatmul.mubr.f32.gmra.mrb[0].mxu0 %v3748
      %v6452 = vpop.f32.mrb[0].mxu0
      %v6453 = vadd.f32 0.0, %v6452
      %v6454 = vpop.f32.mrb[0].mxu0
      %v6455 = vadd.f32 0.0, %v6454
      %6456 = vmatprep.mubr.f32.mxu0 0.0
      %6457 = vmatmul.mubr.f32.gmra.mrb[0].mxu0 %v3751
      %v6458 = vpop.f32.mrb[0].mxu0
      %v6459 = vadd.f32 0.0, %v6458
      %v6460 = vpop.f32.mrb[0].mxu0
      %v6461 = vadd.f32 0.0, %v6460
      %6462 = vmatprep.mubr.f32.mxu0 0.0
      %6463 = vmatmul.mubr.f32.gmra.mrb[0].mxu0 %v3754
      %v6464 = vpop.f32.mrb[0].mxu0
      %v6465 = vadd.f32 0.0, %v6464
      %v6466 = vpop.f32.mrb[0].mxu0
      %v6467 = vadd.f32 0.0, %v6466
      %6468 = vmatprep.mubr.f32.mxu0 0.0
      %6469 = vmatmul.mubr.f32.gmra.mrb[0].mxu0 %v3757
      %v6470 = vpop.f32.mrb[0].mxu0
      %v6471 = vadd.f32 0.0, %v6470
      %v6472 = vpop.f32.mrb[0].mxu0
      %v6473 = vadd.f32 0.0, %v6472
      %6474 = vmatprep.mubr.f32.mxu0 0.0
      %6475 = vmatmul.mubr.f32.gmra.mrb[0].mxu0 %v3760
      %v6476 = vpop.f32.mrb[0].mxu0
      %v6477 = vadd.f32 0.0, %v6476
      %v6478 = vpop.f32.mrb[0].mxu0
      %v6479 = vadd.f32 0.0, %v6478
      %6480 = vdwg.mxu0
      %v6481 = vadd.f32 %v6082, %v6315
      %v6482 = vadd.f32 %v6084, %v6317
      %v6483 = vadd.f32 %v6088, %v6321
      %v6484 = vadd.f32 %v6090, %v6323
      %v6485 = vadd.f32 %v6094, %v6327
      %v6486 = vadd.f32 %v6096, %v6329
      %v6487 = vadd.f32 %v6100, %v6333
      %v6488 = vadd.f32 %v6102, %v6335
      %v6489 = vadd.f32 %v6106, %v6339
      %v6490 = vadd.f32 %v6108, %v6341
      %v6491 = vadd.f32 %v6112, %v6345
      %v6492 = vadd.f32 %v6114, %v6347
      %v6493 = vadd.f32 %v6118, %v6351
      %v6494 = vadd.f32 %v6120, %v6353
      %v6495 = vadd.f32 %v6124, %v6357
      %v6496 = vadd.f32 %v6126, %v6359
      %v6497 = vadd.f32 %v6130, %v6363
      %v6498 = vadd.f32 %v6132, %v6365
      %v6499 = vadd.f32 %v6136, %v6369
      %v6500 = vadd.f32 %v6138, %v6371
      %v6501 = vadd.f32 %v6142, %v6375
      %v6502 = vadd.f32 %v6144, %v6377
      %v6503 = vadd.f32 %v6148, %v6381
      %v6504 = vadd.f32 %v6150, %v6383
      %v6505 = vadd.f32 %v6154, %v6387
      %v6506 = vadd.f32 %v6156, %v6389
      %v6507 = vadd.f32 %v6160, %v6393
      %v6508 = vadd.f32 %v6162, %v6395
      %v6509 = vadd.f32 %v6166, %v6399
      %v6510 = vadd.f32 %v6168, %v6401
      %v6511 = vadd.f32 %v6172, %v6405
      %v6512 = vadd.f32 %v6174, %v6407
      %v6513 = vadd.f32 %v6178, %v6411
      %v6514 = vadd.f32 %v6180, %v6413
      %v6515 = vadd.f32 %v6184, %v6417
      %v6516 = vadd.f32 %v6186, %v6419
      %v6517 = vadd.f32 %v6190, %v6423
      %v6518 = vadd.f32 %v6192, %v6425
      %v6519 = vadd.f32 %v6196, %v6429
      %v6520 = vadd.f32 %v6198, %v6431
      %v6521 = vadd.f32 %v6202, %v6435
      %v6522 = vadd.f32 %v6204, %v6437
      %v6523 = vadd.f32 %v6208, %v6441
      %v6524 = vadd.f32 %v6210, %v6443
      %v6525 = vadd.f32 %v6214, %v6447
      %v6526 = vadd.f32 %v6216, %v6449
      %v6527 = vadd.f32 %v6220, %v6453
      %v6528 = vadd.f32 %v6222, %v6455
      %v6529 = vadd.f32 %v6226, %v6459
      %v6530 = vadd.f32 %v6228, %v6461
      %v6531 = vadd.f32 %v6232, %v6465
      %v6532 = vadd.f32 %v6234, %v6467
      %v6533 = vadd.f32 %v6238, %v6471
      %v6534 = vadd.f32 %v6240, %v6473
      %v6535 = vadd.f32 %v6244, %v6477
      %v6536 = vadd.f32 %v6246, %v6479
      %6537 = vmatprep.subr.mxu0 %v415
      %6538 = vmatpush1.msra.mxu0 %v414
      %6539 = vmatprep.subr.mxu0 %v417
      %6540 = vmatpush1.msra.mxu0 %v416
      %6541 = vmatprep.subr.mxu0 %v419
      %6542 = vmatpush1.msra.mxu0 %v418
      %6543 = vmatprep.subr.mxu0 %v421
      %6544 = vmatpush1.msra.mxu0 %v420
      %6545 = vmatprep.subr.mxu0 0.0
      %6546 = vmatpush1.msra.mxu0 0.0
      %6547 = vmatprep.subr.mxu0 0.0
      %6548 = vmatpush1.msra.mxu0 0.0
      %6549 = vmatprep.subr.mxu0 0.0
      %6550 = vmatpush1.msra.mxu0 0.0
      %6551 = vmatprep.subr.mxu0 0.0
      %6552 = vmatpush1.msra.mxu0 0.0
      %6553 = vmatprep.subr.mxu0 0.0
      %6554 = vmatpush1.msra.mxu0 0.0
      %6555 = vmatprep.subr.mxu0 0.0
      %6556 = vmatpush1.msra.mxu0 0.0
      %6557 = vmatprep.subr.mxu0 0.0
      %6558 = vmatpush1.msra.mxu0 0.0
      %6559 = vmatprep.subr.mxu0 0.0
      %6560 = vmatpush1.msra.mxu0 0.0
      %6561 = vmatprep.subr.mxu0 0.0
      %6562 = vmatpush1.msra.mxu0 0.0
      %6563 = vmatprep.subr.mxu0 0.0
      %6564 = vmatpush1.msra.mxu0 0.0
      %6565 = vmatprep.subr.mxu0 0.0
      %6566 = vmatpush1.msra.mxu0 0.0
      %6567 = vmatprep.subr.mxu0 0.0
      %6568 = vmatpush1.msra.mxu0 0.0
      %6569 = vmatprep.subr.mxu0 0.0
      %6570 = vmatpush1.msra.mxu0 0.0
      %6571 = vmatprep.subr.mxu0 0.0
      %6572 = vmatpush1.msra.mxu0 0.0
      %6573 = vmatprep.subr.mxu0 0.0
      %6574 = vmatpush1.msra.mxu0 0.0
      %6575 = vmatprep.subr.mxu0 0.0
      %6576 = vmatpush1.msra.mxu0 0.0
      %6577 = vmatprep.subr.mxu0 0.0
      %6578 = vmatpush1.msra.mxu0 0.0
      %6579 = vmatprep.subr.mxu0 0.0
      %6580 = vmatpush1.msra.mxu0 0.0
      %6581 = vmatprep.subr.mxu0 0.0
      %6582 = vmatpush1.msra.mxu0 0.0
      %6583 = vmatprep.subr.mxu0 0.0
      %6584 = vmatpush1.msra.mxu0 0.0
      %6585 = vmatprep.subr.mxu0 0.0
      %6586 = vmatpush1.msra.mxu0 0.0
      %6587 = vmatprep.subr.mxu0 0.0
      %6588 = vmatpush1.msra.mxu0 0.0
      %6589 = vmatprep.subr.mxu0 0.0
      %6590 = vmatpush1.msra.mxu0 0.0
      %6591 = vmatprep.subr.mxu0 0.0
      %6592 = vmatpush1.msra.mxu0 0.0
      %6593 = vmatprep.subr.mxu0 0.0
      %6594 = vmatpush1.msra.mxu0 0.0
      %6595 = vmatprep.subr.mxu0 0.0
      %6596 = vmatpush1.msra.mxu0 0.0
      %6597 = vmatprep.subr.mxu0 0.0
      %6598 = vmatpush1.msra.mxu0 0.0
      %6599 = vmatprep.subr.mxu0 0.0
      %6600 = vmatpush1.msra.mxu0 0.0
      %6601 = vmatprep.mubr.f32.mxu0 0.0
      %6602 = vmatmul.mubr.f32.gmra.mrb[0].mxu0 %v5382
      %v6603 = vpop.f32.mrb[0].mxu0
      %v6604 = vadd.f32 0.0, %v6603
      %v6605 = vpop.f32.mrb[0].mxu0
      %v6606 = vadd.f32 0.0, %v6605
      %6607 = vmatprep.mubr.f32.mxu0 0.0
      %6608 = vmatmul.mubr.f32.gmra.mrb[0].mxu0 %v5385
      %v6609 = vpop.f32.mrb[0].mxu0
      %v6610 = vadd.f32 0.0, %v6609
      %v6611 = vpop.f32.mrb[0].mxu0
      %v6612 = vadd.f32 0.0, %v6611
      %6613 = vmatprep.mubr.f32.mxu0 0.0
      %6614 = vmatmul.mubr.f32.gmra.mrb[0].mxu0 %v5388
      %v6615 = vpop.f32.mrb[0].mxu0
      %v6616 = vadd.f32 0.0, %v6615
      %v6617 = vpop.f32.mrb[0].mxu0
      %v6618 = vadd.f32 0.0, %v6617
      %6619 = vmatprep.mubr.f32.mxu0 0.0
      %6620 = vmatmul.mubr.f32.gmra.mrb[0].mxu0 %v5391
      %v6621 = vpop.f32.mrb[0].mxu0
      %v6622 = vadd.f32 0.0, %v6621
      %v6623 = vpop.f32.mrb[0].mxu0
      %v6624 = vadd.f32 0.0, %v6623
      %6625 = vmatprep.mubr.f32.mxu0 0.0
      %6626 = vmatmul.mubr.f32.gmra.mrb[0].mxu0 %v5394
      %v6627 = vpop.f32.mrb[0].mxu0
      %v6628 = vadd.f32 0.0, %v6627
      %v6629 = vpop.f32.mrb[0].mxu0
      %v6630 = vadd.f32 0.0, %v6629
      %6631 = vmatprep.mubr.f32.mxu0 0.0
      %6632 = vmatmul.mubr.f32.gmra.mrb[0].mxu0 %v5397
      %v6633 = vpop.f32.mrb[0].mxu0
      %v6634 = vadd.f32 0.0, %v6633
      %v6635 = vpop.f32.mrb[0].mxu0
      %v6636 = vadd.f32 0.0, %v6635
      %6637 = vmatprep.mubr.f32.mxu0 0.0
      %6638 = vmatmul.mubr.f32.gmra.mrb[0].mxu0 %v5400
      %v6639 = vpop.f32.mrb[0].mxu0
      %v6640 = vadd.f32 0.0, %v6639
      %v6641 = vpop.f32.mrb[0].mxu0
      %v6642 = vadd.f32 0.0, %v6641
      %6643 = vmatprep.mubr.f32.mxu0 0.0
      %6644 = vmatmul.mubr.f32.gmra.mrb[0].mxu0 %v5403
      %v6645 = vpop.f32.mrb[0].mxu0
      %v6646 = vadd.f32 0.0, %v6645
      %v6647 = vpop.f32.mrb[0].mxu0
      %v6648 = vadd.f32 0.0, %v6647
      %6649 = vmatprep.mubr.f32.mxu0 0.0
      %6650 = vmatmul.mubr.f32.gmra.mrb[0].mxu0 %v5406
      %v6651 = vpop.f32.mrb[0].mxu0
      %v6652 = vadd.f32 0.0, %v6651
      %v6653 = vpop.f32.mrb[0].mxu0
      %v6654 = vadd.f32 0.0, %v6653
      %6655 = vmatprep.mubr.f32.mxu0 0.0
      %6656 = vmatmul.mubr.f32.gmra.mrb[0].mxu0 %v5409
      %v6657 = vpop.f32.mrb[0].mxu0
      %v6658 = vadd.f32 0.0, %v6657
      %v6659 = vpop.f32.mrb[0].mxu0
      %v6660 = vadd.f32 0.0, %v6659
      %6661 = vmatprep.mubr.f32.mxu0 0.0
      %6662 = vmatmul.mubr.f32.gmra.mrb[0].mxu0 %v5412
      %v6663 = vpop.f32.mrb[0].mxu0
      %v6664 = vadd.f32 0.0, %v6663
      %v6665 = vpop.f32.mrb[0].mxu0
      %v6666 = vadd.f32 0.0, %v6665
      %6667 = vmatprep.mubr.f32.mxu0 0.0
      %6668 = vmatmul.mubr.f32.gmra.mrb[0].mxu0 %v5415
      %v6669 = vpop.f32.mrb[0].mxu0
      %v6670 = vadd.f32 0.0, %v6669
      %v6671 = vpop.f32.mrb[0].mxu0
      %v6672 = vadd.f32 0.0, %v6671
      %6673 = vmatprep.mubr.f32.mxu0 0.0
      %6674 = vmatmul.mubr.f32.gmra.mrb[0].mxu0 %v5418
      %v6675 = vpop.f32.mrb[0].mxu0
      %v6676 = vadd.f32 0.0, %v6675
      %v6677 = vpop.f32.mrb[0].mxu0
      %v6678 = vadd.f32 0.0, %v6677
      %6679 = vmatprep.mubr.f32.mxu0 0.0
      %6680 = vmatmul.mubr.f32.gmra.mrb[0].mxu0 %v5421
      %v6681 = vpop.f32.mrb[0].mxu0
      %v6682 = vadd.f32 0.0, %v6681
      %v6683 = vpop.f32.mrb[0].mxu0
      %v6684 = vadd.f32 0.0, %v6683
      %6685 = vmatprep.mubr.f32.mxu0 0.0
      %6686 = vmatmul.mubr.f32.gmra.mrb[0].mxu0 %v5424
      %v6687 = vpop.f32.mrb[0].mxu0
      %v6688 = vadd.f32 0.0, %v6687
      %v6689 = vpop.f32.mrb[0].mxu0
      %v6690 = vadd.f32 0.0, %v6689
      %6691 = vmatprep.mubr.f32.mxu0 0.0
      %6692 = vmatmul.mubr.f32.gmra.mrb[0].mxu0 %v5427
      %v6693 = vpop.f32.mrb[0].mxu0
      %v6694 = vadd.f32 0.0, %v6693
      %v6695 = vpop.f32.mrb[0].mxu0
      %v6696 = vadd.f32 0.0, %v6695
      %6697 = vmatprep.mubr.f32.mxu0 0.0
      %6698 = vmatmul.mubr.f32.gmra.mrb[0].mxu0 %v5430
      %v6699 = vpop.f32.mrb[0].mxu0
      %v6700 = vadd.f32 0.0, %v6699
      %v6701 = vpop.f32.mrb[0].mxu0
      %v6702 = vadd.f32 0.0, %v6701
      %6703 = vmatprep.mubr.f32.mxu0 0.0
      %6704 = vmatmul.mubr.f32.gmra.mrb[0].mxu0 %v5433
      %v6705 = vpop.f32.mrb[0].mxu0
      %v6706 = vadd.f32 0.0, %v6705
      %v6707 = vpop.f32.mrb[0].mxu0
      %v6708 = vadd.f32 0.0, %v6707
      %6709 = vmatprep.mubr.f32.mxu0 0.0
      %6710 = vmatmul.mubr.f32.gmra.mrb[0].mxu0 %v5436
      %v6711 = vpop.f32.mrb[0].mxu0
      %v6712 = vadd.f32 0.0, %v6711
      %v6713 = vpop.f32.mrb[0].mxu0
      %v6714 = vadd.f32 0.0, %v6713
      %6715 = vmatprep.mubr.f32.mxu0 0.0
      %6716 = vmatmul.mubr.f32.gmra.mrb[0].mxu0 %v5439
      %v6717 = vpop.f32.mrb[0].mxu0
      %v6718 = vadd.f32 0.0, %v6717
      %v6719 = vpop.f32.mrb[0].mxu0
      %v6720 = vadd.f32 0.0, %v6719
      %6721 = vmatprep.mubr.f32.mxu0 0.0
      %6722 = vmatmul.mubr.f32.gmra.mrb[0].mxu0 %v5442
      %v6723 = vpop.f32.mrb[0].mxu0
      %v6724 = vadd.f32 0.0, %v6723
      %v6725 = vpop.f32.mrb[0].mxu0
      %v6726 = vadd.f32 0.0, %v6725
      %6727 = vmatprep.mubr.f32.mxu0 0.0
      %6728 = vmatmul.mubr.f32.gmra.mrb[0].mxu0 %v5445
      %v6729 = vpop.f32.mrb[0].mxu0
      %v6730 = vadd.f32 0.0, %v6729
      %v6731 = vpop.f32.mrb[0].mxu0
      %v6732 = vadd.f32 0.0, %v6731
      %6733 = vmatprep.mubr.f32.mxu0 0.0
      %6734 = vmatmul.mubr.f32.gmra.mrb[0].mxu0 %v5448
      %v6735 = vpop.f32.mrb[0].mxu0
      %v6736 = vadd.f32 0.0, %v6735
      %v6737 = vpop.f32.mrb[0].mxu0
      %v6738 = vadd.f32 0.0, %v6737
      %6739 = vmatprep.mubr.f32.mxu0 0.0
      %6740 = vmatmul.mubr.f32.gmra.mrb[0].mxu0 %v5451
      %v6741 = vpop.f32.mrb[0].mxu0
      %v6742 = vadd.f32 0.0, %v6741
      %v6743 = vpop.f32.mrb[0].mxu0
      %v6744 = vadd.f32 0.0, %v6743
      %6745 = vmatprep.mubr.f32.mxu0 0.0
      %6746 = vmatmul.mubr.f32.gmra.mrb[0].mxu0 %v5454
      %v6747 = vpop.f32.mrb[0].mxu0
      %v6748 = vadd.f32 0.0, %v6747
      %v6749 = vpop.f32.mrb[0].mxu0
      %v6750 = vadd.f32 0.0, %v6749
      %6751 = vmatprep.mubr.f32.mxu0 0.0
      %6752 = vmatmul.mubr.f32.gmra.mrb[0].mxu0 %v5457
      %v6753 = vpop.f32.mrb[0].mxu0
      %v6754 = vadd.f32 0.0, %v6753
      %v6755 = vpop.f32.mrb[0].mxu0
      %v6756 = vadd.f32 0.0, %v6755
      %6757 = vmatprep.mubr.f32.mxu0 0.0
      %6758 = vmatmul.mubr.f32.gmra.mrb[0].mxu0 %v5460
      %v6759 = vpop.f32.mrb[0].mxu0
      %v6760 = vadd.f32 0.0, %v6759
      %v6761 = vpop.f32.mrb[0].mxu0
      %v6762 = vadd.f32 0.0, %v6761
      %6763 = vmatprep.mubr.f32.mxu0 0.0
      %6764 = vmatmul.mubr.f32.gmra.mrb[0].mxu0 %v5463
      %v6765 = vpop.f32.mrb[0].mxu0
      %v6766 = vadd.f32 0.0, %v6765
      %v6767 = vpop.f32.mrb[0].mxu0
      %v6768 = vadd.f32 0.0, %v6767
      %6769 = vdwg.mxu0
      %v6770 = vadd.f32 %v6481, %v6604
      %v6771 = vadd.f32 %v6482, %v6606
      %v6772 = vadd.f32 %v6483, %v6610
      %v6773 = vadd.f32 %v6484, %v6612
      %v6774 = vadd.f32 %v6485, %v6616
      %v6775 = vadd.f32 %v6486, %v6618
      %v6776 = vadd.f32 %v6487, %v6622
      %v6777 = vadd.f32 %v6488, %v6624
      %v6778 = vadd.f32 %v6489, %v6628
      %v6779 = vadd.f32 %v6490, %v6630
      %v6780 = vadd.f32 %v6491, %v6634
      %v6781 = vadd.f32 %v6492, %v6636
      %v6782 = vadd.f32 %v6493, %v6640
      %v6783 = vadd.f32 %v6494, %v6642
      %v6784 = vadd.f32 %v6495, %v6646
      %v6785 = vadd.f32 %v6496, %v6648
      %v6786 = vadd.f32 %v6497, %v6652
      %v6787 = vadd.f32 %v6498, %v6654
      %v6788 = vadd.f32 %v6499, %v6658
      %v6789 = vadd.f32 %v6500, %v6660
      %v6790 = vadd.f32 %v6501, %v6664
      %v6791 = vadd.f32 %v6502, %v6666
      %v6792 = vadd.f32 %v6503, %v6670
      %v6793 = vadd.f32 %v6504, %v6672
      %v6794 = vadd.f32 %v6505, %v6676
      %v6795 = vadd.f32 %v6506, %v6678
      %v6796 = vadd.f32 %v6507, %v6682
      %v6797 = vadd.f32 %v6508, %v6684
      %v6798 = vadd.f32 %v6509, %v6688
      %v6799 = vadd.f32 %v6510, %v6690
      %v6800 = vadd.f32 %v6511, %v6694
      %v6801 = vadd.f32 %v6512, %v6696
      %v6802 = vadd.f32 %v6513, %v6700
      %v6803 = vadd.f32 %v6514, %v6702
      %v6804 = vadd.f32 %v6515, %v6706
      %v6805 = vadd.f32 %v6516, %v6708
      %v6806 = vadd.f32 %v6517, %v6712
      %v6807 = vadd.f32 %v6518, %v6714
      %v6808 = vadd.f32 %v6519, %v6718
      %v6809 = vadd.f32 %v6520, %v6720
      %v6810 = vadd.f32 %v6521, %v6724
      %v6811 = vadd.f32 %v6522, %v6726
      %v6812 = vadd.f32 %v6523, %v6730
      %v6813 = vadd.f32 %v6524, %v6732
      %v6814 = vadd.f32 %v6525, %v6736
      %v6815 = vadd.f32 %v6526, %v6738
      %v6816 = vadd.f32 %v6527, %v6742
      %v6817 = vadd.f32 %v6528, %v6744
      %v6818 = vadd.f32 %v6529, %v6748
      %v6819 = vadd.f32 %v6530, %v6750
      %v6820 = vadd.f32 %v6531, %v6754
      %v6821 = vadd.f32 %v6532, %v6756
      %v6822 = vadd.f32 %v6533, %v6760
      %v6823 = vadd.f32 %v6534, %v6762
      %v6824 = vadd.f32 %v6535, %v6766
      %v6825 = vadd.f32 %v6536, %v6768
      %v6826 = vld [vmem:[%s1775 + $0x20] sm:$0xff]
      %v6827 = vld [vmem:[%s1775 + $0x28] sm:$0xff]
      %v6828 = vld [vmem:[%s1775 + $0x30] sm:$0xff]
      %v6829 = vld [vmem:[%s1775 + $0x38] sm:$0xff]
      %v6830 = vld [vmem:[%s1775 + $0x40] sm:$0xff]
      %v6831 = vld [vmem:[%s1775 + $0x48] sm:$0xff]
      %v6832 = vld [vmem:[%s1775 + $0x50] sm:$0xff]
      %v6833 = vld [vmem:[%s1775 + $0x58] sm:$0xff]
      %v6834 = vld [vmem:[%s1775 + $0x60] sm:$0xff]
      %v6835 = vld [vmem:[%s1775 + $0x68] sm:$0xff]
      %v6836 = vld [vmem:[%s1775 + $0x70] sm:$0xff]
      %v6837 = vld [vmem:[%s1775 + $0x78] sm:$0xff]
      %v6838 = vld [vmem:[%s1775 + $0x80] sm:$0xff]
      %v6839 = vld [vmem:[%s1775 + $0x88] sm:$0xff]
      %v6840 = vld [vmem:[%s1775 + $0x90] sm:$0xff]
      %v6841 = vld [vmem:[%s1775 + $0x98] sm:$0xff]
      %v6842 = vld [vmem:[%s1775 + $0xa0] sm:$0xff]
      %v6843 = vld [vmem:[%s1775 + $0xa8] sm:$0xff]
      %v6844 = vld [vmem:[%s1775 + $0xb0] sm:$0xff]
      %v6845 = vld [vmem:[%s1775 + $0xb8] sm:$0xff]
      %v6846 = vld [vmem:[%s1775 + $0xc0] sm:$0xff]
      %v6847 = vld [vmem:[%s1775 + $0xc8] sm:$0xff]
      %v6848 = vld [vmem:[%s1775 + $0xd0] sm:$0xff]
      %v6849 = vld [vmem:[%s1775 + $0xd8] sm:$0xff]
      %v6850 = vld [vmem:[%s1775 + $0xe0] sm:$0xff]
      %v6851 = vld [vmem:[%s1775 + $0xe8] sm:$0xff]
      %v6852 = vld [vmem:[%s1775 + $0xf0] sm:$0xff]
      %v6853 = vld [vmem:[%s1775 + $0xf8] sm:$0xff]
      %v6855 = vsel %vm738, %v6826, 0
      %v6858 = vsel %vm738, %v6827, 0
      %v6861 = vsel %vm738, %v6828, 0
      %v6864 = vsel %vm738, %v6829, 0
      %v6867 = vsel %vm738, %v6830, 0
      %v6870 = vsel %vm738, %v6831, 0
      %v6873 = vsel %vm738, %v6832, 0
      %v6876 = vsel %vm738, %v6833, 0
      %v6879 = vsel %vm738, %v6834, 0
      %v6882 = vsel %vm738, %v6835, 0
      %v6885 = vsel %vm738, %v6836, 0
      %v6888 = vsel %vm738, %v6837, 0
      %v6891 = vsel %vm738, %v6838, 0
      %v6894 = vsel %vm738, %v6839, 0
      %v6897 = vsel %vm738, %v6840, 0
      %v6900 = vsel %vm738, %v6841, 0
      %v6903 = vsel %vm738, %v6842, 0
      %v6906 = vsel %vm738, %v6843, 0
      %v6909 = vsel %vm738, %v6844, 0
      %v6912 = vsel %vm738, %v6845, 0
      %v6915 = vsel %vm738, %v6846, 0
      %v6918 = vsel %vm738, %v6847, 0
      %v6921 = vsel %vm738, %v6848, 0
      %v6924 = vsel %vm738, %v6849, 0
      %v6927 = vsel %vm738, %v6850, 0
      %v6930 = vsel %vm738, %v6851, 0
      %v6933 = vsel %vm738, %v6852, 0
      %v6936 = vsel %vm738, %v6853, 0
      %6938 = vmatprep.subr.mxu0 %v424
      %6939 = vmatpush1.msra.mxu0 %v423
      %6940 = vmatprep.subr.mxu0 %v426
      %6941 = vmatpush1.msra.mxu0 %v425
      %6942 = vmatprep.subr.mxu0 %v428
      %6943 = vmatpush1.msra.mxu0 %v427
      %6944 = vmatprep.subr.mxu0 %v430
      %6945 = vmatpush1.msra.mxu0 %v429
      %6946 = vmatprep.subr.mxu0 0.0
      %6947 = vmatpush1.msra.mxu0 0.0
      %6948 = vmatprep.subr.mxu0 0.0
      %6949 = vmatpush1.msra.mxu0 0.0
      %6950 = vmatprep.subr.mxu0 0.0
      %6951 = vmatpush1.msra.mxu0 0.0
      %6952 = vmatprep.subr.mxu0 0.0
      %6953 = vmatpush1.msra.mxu0 0.0
      %6954 = vmatprep.subr.mxu0 0.0
      %6955 = vmatpush1.msra.mxu0 0.0
      %6956 = vmatprep.subr.mxu0 0.0
      %6957 = vmatpush1.msra.mxu0 0.0
      %6958 = vmatprep.subr.mxu0 0.0
      %6959 = vmatpush1.msra.mxu0 0.0
      %6960 = vmatprep.subr.mxu0 0.0
      %6961 = vmatpush1.msra.mxu0 0.0
      %6962 = vmatprep.subr.mxu0 0.0
      %6963 = vmatpush1.msra.mxu0 0.0
      %6964 = vmatprep.subr.mxu0 0.0
      %6965 = vmatpush1.msra.mxu0 0.0
      %6966 = vmatprep.subr.mxu0 0.0
      %6967 = vmatpush1.msra.mxu0 0.0
      %6968 = vmatprep.subr.mxu0 0.0
      %6969 = vmatpush1.msra.mxu0 0.0
      %6970 = vmatprep.subr.mxu0 0.0
      %6971 = vmatpush1.msra.mxu0 0.0
      %6972 = vmatprep.subr.mxu0 0.0
      %6973 = vmatpush1.msra.mxu0 0.0
      %6974 = vmatprep.subr.mxu0 0.0
      %6975 = vmatpush1.msra.mxu0 0.0
      %6976 = vmatprep.subr.mxu0 0.0
      %6977 = vmatpush1.msra.mxu0 0.0
      %6978 = vmatprep.subr.mxu0 0.0
      %6979 = vmatpush1.msra.mxu0 0.0
      %6980 = vmatprep.subr.mxu0 0.0
      %6981 = vmatpush1.msra.mxu0 0.0
      %6982 = vmatprep.subr.mxu0 0.0
      %6983 = vmatpush1.msra.mxu0 0.0
      %6984 = vmatprep.subr.mxu0 0.0
      %6985 = vmatpush1.msra.mxu0 0.0
      %6986 = vmatprep.subr.mxu0 0.0
      %6987 = vmatpush1.msra.mxu0 0.0
      %6988 = vmatprep.subr.mxu0 0.0
      %6989 = vmatpush1.msra.mxu0 0.0
      %6990 = vmatprep.subr.mxu0 0.0
      %6991 = vmatpush1.msra.mxu0 0.0
      %6992 = vmatprep.subr.mxu0 0.0
      %6993 = vmatpush1.msra.mxu0 0.0
      %6994 = vmatprep.subr.mxu0 0.0
      %6995 = vmatpush1.msra.mxu0 0.0
      %6996 = vmatprep.subr.mxu0 0.0
      %6997 = vmatpush1.msra.mxu0 0.0
      %6998 = vmatprep.subr.mxu0 0.0
      %6999 = vmatpush1.msra.mxu0 0.0
      %7000 = vmatprep.subr.mxu0 0.0
      %7001 = vmatpush1.msra.mxu0 0.0
      %7002 = vmatprep.mubr.f32.mxu0 0.0
      %7003 = vmatmul.mubr.f32.gmra.mrb[0].mxu0 %v6855
      %v7004 = vpop.f32.mrb[0].mxu0
      %v7005 = vadd.f32 0.0, %v7004
      %v7006 = vpop.f32.mrb[0].mxu0
      %v7007 = vadd.f32 0.0, %v7006
      %7008 = vmatprep.mubr.f32.mxu0 0.0
      %7009 = vmatmul.mubr.f32.gmra.mrb[0].mxu0 %v6858
      %v7010 = vpop.f32.mrb[0].mxu0
      %v7011 = vadd.f32 0.0, %v7010
      %v7012 = vpop.f32.mrb[0].mxu0
      %v7013 = vadd.f32 0.0, %v7012
      %7014 = vmatprep.mubr.f32.mxu0 0.0
      %7015 = vmatmul.mubr.f32.gmra.mrb[0].mxu0 %v6861
      %v7016 = vpop.f32.mrb[0].mxu0
      %v7017 = vadd.f32 0.0, %v7016
      %v7018 = vpop.f32.mrb[0].mxu0
      %v7019 = vadd.f32 0.0, %v7018
      %7020 = vmatprep.mubr.f32.mxu0 0.0
      %7021 = vmatmul.mubr.f32.gmra.mrb[0].mxu0 %v6864
      %v7022 = vpop.f32.mrb[0].mxu0
      %v7023 = vadd.f32 0.0, %v7022
      %v7024 = vpop.f32.mrb[0].mxu0
      %v7025 = vadd.f32 0.0, %v7024
      %7026 = vmatprep.mubr.f32.mxu0 0.0
      %7027 = vmatmul.mubr.f32.gmra.mrb[0].mxu0 %v6867
      %v7028 = vpop.f32.mrb[0].mxu0
      %v7029 = vadd.f32 0.0, %v7028
      %v7030 = vpop.f32.mrb[0].mxu0
      %v7031 = vadd.f32 0.0, %v7030
      %7032 = vmatprep.mubr.f32.mxu0 0.0
      %7033 = vmatmul.mubr.f32.gmra.mrb[0].mxu0 %v6870
      %v7034 = vpop.f32.mrb[0].mxu0
      %v7035 = vadd.f32 0.0, %v7034
      %v7036 = vpop.f32.mrb[0].mxu0
      %v7037 = vadd.f32 0.0, %v7036
      %7038 = vmatprep.mubr.f32.mxu0 0.0
      %7039 = vmatmul.mubr.f32.gmra.mrb[0].mxu0 %v6873
      %v7040 = vpop.f32.mrb[0].mxu0
      %v7041 = vadd.f32 0.0, %v7040
      %v7042 = vpop.f32.mrb[0].mxu0
      %v7043 = vadd.f32 0.0, %v7042
      %7044 = vmatprep.mubr.f32.mxu0 0.0
      %7045 = vmatmul.mubr.f32.gmra.mrb[0].mxu0 %v6876
      %v7046 = vpop.f32.mrb[0].mxu0
      %v7047 = vadd.f32 0.0, %v7046
      %v7048 = vpop.f32.mrb[0].mxu0
      %v7049 = vadd.f32 0.0, %v7048
      %7050 = vmatprep.mubr.f32.mxu0 0.0
      %7051 = vmatmul.mubr.f32.gmra.mrb[0].mxu0 %v6879
      %v7052 = vpop.f32.mrb[0].mxu0
      %v7053 = vadd.f32 0.0, %v7052
      %v7054 = vpop.f32.mrb[0].mxu0
      %v7055 = vadd.f32 0.0, %v7054
      %7056 = vmatprep.mubr.f32.mxu0 0.0
      %7057 = vmatmul.mubr.f32.gmra.mrb[0].mxu0 %v6882
      %v7058 = vpop.f32.mrb[0].mxu0
      %v7059 = vadd.f32 0.0, %v7058
      %v7060 = vpop.f32.mrb[0].mxu0
      %v7061 = vadd.f32 0.0, %v7060
      %7062 = vmatprep.mubr.f32.mxu0 0.0
      %7063 = vmatmul.mubr.f32.gmra.mrb[0].mxu0 %v6885
      %v7064 = vpop.f32.mrb[0].mxu0
      %v7065 = vadd.f32 0.0, %v7064
      %v7066 = vpop.f32.mrb[0].mxu0
      %v7067 = vadd.f32 0.0, %v7066
      %7068 = vmatprep.mubr.f32.mxu0 0.0
      %7069 = vmatmul.mubr.f32.gmra.mrb[0].mxu0 %v6888
      %v7070 = vpop.f32.mrb[0].mxu0
      %v7071 = vadd.f32 0.0, %v7070
      %v7072 = vpop.f32.mrb[0].mxu0
      %v7073 = vadd.f32 0.0, %v7072
      %7074 = vmatprep.mubr.f32.mxu0 0.0
      %7075 = vmatmul.mubr.f32.gmra.mrb[0].mxu0 %v6891
      %v7076 = vpop.f32.mrb[0].mxu0
      %v7077 = vadd.f32 0.0, %v7076
      %v7078 = vpop.f32.mrb[0].mxu0
      %v7079 = vadd.f32 0.0, %v7078
      %7080 = vmatprep.mubr.f32.mxu0 0.0
      %7081 = vmatmul.mubr.f32.gmra.mrb[0].mxu0 %v6894
      %v7082 = vpop.f32.mrb[0].mxu0
      %v7083 = vadd.f32 0.0, %v7082
      %v7084 = vpop.f32.mrb[0].mxu0
      %v7085 = vadd.f32 0.0, %v7084
      %7086 = vmatprep.mubr.f32.mxu0 0.0
      %7087 = vmatmul.mubr.f32.gmra.mrb[0].mxu0 %v6897
      %v7088 = vpop.f32.mrb[0].mxu0
      %v7089 = vadd.f32 0.0, %v7088
      %v7090 = vpop.f32.mrb[0].mxu0
      %v7091 = vadd.f32 0.0, %v7090
      %7092 = vmatprep.mubr.f32.mxu0 0.0
      %7093 = vmatmul.mubr.f32.gmra.mrb[0].mxu0 %v6900
      %v7094 = vpop.f32.mrb[0].mxu0
      %v7095 = vadd.f32 0.0, %v7094
      %v7096 = vpop.f32.mrb[0].mxu0
      %v7097 = vadd.f32 0.0, %v7096
      %7098 = vmatprep.mubr.f32.mxu0 0.0
      %7099 = vmatmul.mubr.f32.gmra.mrb[0].mxu0 %v6903
      %v7100 = vpop.f32.mrb[0].mxu0
      %v7101 = vadd.f32 0.0, %v7100
      %v7102 = vpop.f32.mrb[0].mxu0
      %v7103 = vadd.f32 0.0, %v7102
      %7104 = vmatprep.mubr.f32.mxu0 0.0
      %7105 = vmatmul.mubr.f32.gmra.mrb[0].mxu0 %v6906
      %v7106 = vpop.f32.mrb[0].mxu0
      %v7107 = vadd.f32 0.0, %v7106
      %v7108 = vpop.f32.mrb[0].mxu0
      %v7109 = vadd.f32 0.0, %v7108
      %7110 = vmatprep.mubr.f32.mxu0 0.0
      %7111 = vmatmul.mubr.f32.gmra.mrb[0].mxu0 %v6909
      %v7112 = vpop.f32.mrb[0].mxu0
      %v7113 = vadd.f32 0.0, %v7112
      %v7114 = vpop.f32.mrb[0].mxu0
      %v7115 = vadd.f32 0.0, %v7114
      %7116 = vmatprep.mubr.f32.mxu0 0.0
      %7117 = vmatmul.mubr.f32.gmra.mrb[0].mxu0 %v6912
      %v7118 = vpop.f32.mrb[0].mxu0
      %v7119 = vadd.f32 0.0, %v7118
      %v7120 = vpop.f32.mrb[0].mxu0
      %v7121 = vadd.f32 0.0, %v7120
      %7122 = vmatprep.mubr.f32.mxu0 0.0
      %7123 = vmatmul.mubr.f32.gmra.mrb[0].mxu0 %v6915
      %v7124 = vpop.f32.mrb[0].mxu0
      %v7125 = vadd.f32 0.0, %v7124
      %v7126 = vpop.f32.mrb[0].mxu0
      %v7127 = vadd.f32 0.0, %v7126
      %7128 = vmatprep.mubr.f32.mxu0 0.0
      %7129 = vmatmul.mubr.f32.gmra.mrb[0].mxu0 %v6918
      %v7130 = vpop.f32.mrb[0].mxu0
      %v7131 = vadd.f32 0.0, %v7130
      %v7132 = vpop.f32.mrb[0].mxu0
      %v7133 = vadd.f32 0.0, %v7132
      %7134 = vmatprep.mubr.f32.mxu0 0.0
      %7135 = vmatmul.mubr.f32.gmra.mrb[0].mxu0 %v6921
      %v7136 = vpop.f32.mrb[0].mxu0
      %v7137 = vadd.f32 0.0, %v7136
      %v7138 = vpop.f32.mrb[0].mxu0
      %v7139 = vadd.f32 0.0, %v7138
      %7140 = vmatprep.mubr.f32.mxu0 0.0
      %7141 = vmatmul.mubr.f32.gmra.mrb[0].mxu0 %v6924
      %v7142 = vpop.f32.mrb[0].mxu0
      %v7143 = vadd.f32 0.0, %v7142
      %v7144 = vpop.f32.mrb[0].mxu0
      %v7145 = vadd.f32 0.0, %v7144
      %7146 = vmatprep.mubr.f32.mxu0 0.0
      %7147 = vmatmul.mubr.f32.gmra.mrb[0].mxu0 %v6927
      %v7148 = vpop.f32.mrb[0].mxu0
      %v7149 = vadd.f32 0.0, %v7148
      %v7150 = vpop.f32.mrb[0].mxu0
      %v7151 = vadd.f32 0.0, %v7150
      %7152 = vmatprep.mubr.f32.mxu0 0.0
      %7153 = vmatmul.mubr.f32.gmra.mrb[0].mxu0 %v6930
      %v7154 = vpop.f32.mrb[0].mxu0
      %v7155 = vadd.f32 0.0, %v7154
      %v7156 = vpop.f32.mrb[0].mxu0
      %v7157 = vadd.f32 0.0, %v7156
      %7158 = vmatprep.mubr.f32.mxu0 0.0
      %7159 = vmatmul.mubr.f32.gmra.mrb[0].mxu0 %v6933
      %v7160 = vpop.f32.mrb[0].mxu0
      %v7161 = vadd.f32 0.0, %v7160
      %v7162 = vpop.f32.mrb[0].mxu0
      %v7163 = vadd.f32 0.0, %v7162
      %7164 = vmatprep.mubr.f32.mxu0 0.0
      %7165 = vmatmul.mubr.f32.gmra.mrb[0].mxu0 %v6936
      %v7166 = vpop.f32.mrb[0].mxu0
      %v7167 = vadd.f32 0.0, %v7166
      %v7168 = vpop.f32.mrb[0].mxu0
      %v7169 = vadd.f32 0.0, %v7168
      %7170 = vdwg.mxu0
      %v7171 = vadd.f32 %v6770, %v7005
      %v7172 = vadd.f32 %v6771, %v7007
      %v7173 = vadd.f32 %v6772, %v7011
      %v7174 = vadd.f32 %v6773, %v7013
      %v7175 = vadd.f32 %v6774, %v7017
      %v7176 = vadd.f32 %v6775, %v7019
      %v7177 = vadd.f32 %v6776, %v7023
      %v7178 = vadd.f32 %v6777, %v7025
      %v7179 = vadd.f32 %v6778, %v7029
      %v7180 = vadd.f32 %v6779, %v7031
      %v7181 = vadd.f32 %v6780, %v7035
      %v7182 = vadd.f32 %v6781, %v7037
      %v7183 = vadd.f32 %v6782, %v7041
      %v7184 = vadd.f32 %v6783, %v7043
      %v7185 = vadd.f32 %v6784, %v7047
      %v7186 = vadd.f32 %v6785, %v7049
      %v7187 = vadd.f32 %v6786, %v7053
      %v7188 = vadd.f32 %v6787, %v7055
      %v7189 = vadd.f32 %v6788, %v7059
      %v7190 = vadd.f32 %v6789, %v7061
      %v7191 = vadd.f32 %v6790, %v7065
      %v7192 = vadd.f32 %v6791, %v7067
      %v7193 = vadd.f32 %v6792, %v7071
      %v7194 = vadd.f32 %v6793, %v7073
      %v7195 = vadd.f32 %v6794, %v7077
      %v7196 = vadd.f32 %v6795, %v7079
      %v7197 = vadd.f32 %v6796, %v7083
      %v7198 = vadd.f32 %v6797, %v7085
      %v7199 = vadd.f32 %v6798, %v7089
      %v7200 = vadd.f32 %v6799, %v7091
      %v7201 = vadd.f32 %v6800, %v7095
      %v7202 = vadd.f32 %v6801, %v7097
      %v7203 = vadd.f32 %v6802, %v7101
      %v7204 = vadd.f32 %v6803, %v7103
      %v7205 = vadd.f32 %v6804, %v7107
      %v7206 = vadd.f32 %v6805, %v7109
      %v7207 = vadd.f32 %v6806, %v7113
      %v7208 = vadd.f32 %v6807, %v7115
      %v7209 = vadd.f32 %v6808, %v7119
      %v7210 = vadd.f32 %v6809, %v7121
      %v7211 = vadd.f32 %v6810, %v7125
      %v7212 = vadd.f32 %v6811, %v7127
      %v7213 = vadd.f32 %v6812, %v7131
      %v7214 = vadd.f32 %v6813, %v7133
      %v7215 = vadd.f32 %v6814, %v7137
      %v7216 = vadd.f32 %v6815, %v7139
      %v7217 = vadd.f32 %v6816, %v7143
      %v7218 = vadd.f32 %v6817, %v7145
      %v7219 = vadd.f32 %v6818, %v7149
      %v7220 = vadd.f32 %v6819, %v7151
      %v7221 = vadd.f32 %v6820, %v7155
      %v7222 = vadd.f32 %v6821, %v7157
      %v7223 = vadd.f32 %v6822, %v7161
      %v7224 = vadd.f32 %v6823, %v7163
      %v7225 = vadd.f32 %v6824, %v7167
      %v7226 = vadd.f32 %v6825, %v7169
      %v7227 = vmax.f32 %v7171, %v7172
      %v7228 = vmax.f32 %v7173, %v7174
      %v7229 = vmax.f32 %v7175, %v7176
      %v7230 = vmax.f32 %v7177, %v7178
      %v7231 = vmax.f32 %v7179, %v7180
      %v7232 = vmax.f32 %v7181, %v7182
      %v7233 = vmax.f32 %v7183, %v7184
      %v7234 = vmax.f32 %v7185, %v7186
      %v7235 = vmax.f32 %v7187, %v7188
      %v7236 = vmax.f32 %v7189, %v7190
      %v7237 = vmax.f32 %v7191, %v7192
      %v7238 = vmax.f32 %v7193, %v7194
      %v7239 = vmax.f32 %v7195, %v7196
      %v7240 = vmax.f32 %v7197, %v7198
      %v7241 = vmax.f32 %v7199, %v7200
      %v7242 = vmax.f32 %v7201, %v7202
      %v7243 = vmax.f32 %v7203, %v7204
      %v7244 = vmax.f32 %v7205, %v7206
      %v7245 = vmax.f32 %v7207, %v7208
      %v7246 = vmax.f32 %v7209, %v7210
      %v7247 = vmax.f32 %v7211, %v7212
      %v7248 = vmax.f32 %v7213, %v7214
      %v7249 = vmax.f32 %v7215, %v7216
      %v7250 = vmax.f32 %v7217, %v7218
      %v7251 = vmax.f32 %v7219, %v7220
      %v7252 = vmax.f32 %v7221, %v7222
      %v7253 = vmax.f32 %v7223, %v7224
      %v7254 = vmax.f32 %v7225, %v7226
      %v7255 = vmax.f32 %v5754, %v7227
      %v7256 = vmax.f32 %v5755, %v7228
      %v7257 = vmax.f32 %v5756, %v7229
      %v7258 = vmax.f32 %v5757, %v7230
      %v7259 = vmax.f32 %v5758, %v7231
      %v7260 = vmax.f32 %v5759, %v7232
      %v7261 = vmax.f32 %v5760, %v7233
      %v7262 = vmax.f32 %v5761, %v7234
      %v7263 = vmax.f32 %v5762, %v7235
      %v7264 = vmax.f32 %v5763, %v7236
      %v7265 = vmax.f32 %v5764, %v7237
      %v7266 = vmax.f32 %v5765, %v7238
      %v7267 = vmax.f32 %v5766, %v7239
      %v7268 = vmax.f32 %v5767, %v7240
      %v7269 = vmax.f32 %v5768, %v7241
      %v7270 = vmax.f32 %v5769, %v7242
      %v7271 = vmax.f32 %v5770, %v7243
      %v7272 = vmax.f32 %v5771, %v7244
      %v7273 = vmax.f32 %v5772, %v7245
      %v7274 = vmax.f32 %v5773, %v7246
      %v7275 = vmax.f32 %v5774, %v7247
      %v7276 = vmax.f32 %v5775, %v7248
      %v7277 = vmax.f32 %v5776, %v7249
      %v7278 = vmax.f32 %v5777, %v7250
      %v7279 = vmax.f32 %v5778, %v7251
      %v7280 = vmax.f32 %v5779, %v7252
      %v7281 = vmax.f32 %v5780, %v7253
      %v7282 = vmax.f32 %v5781, %v7254
      %v7283 = vadd.f32 %v7255, %v4111
      %v7284 = vadd.f32 %v7256, %v4111
      %v7285 = vadd.f32 %v7257, %v4111
      %v7286 = vadd.f32 %v7258, %v4111
      %v7287 = vadd.f32 %v7259, %v4111
      %v7288 = vadd.f32 %v7260, %v4111
      %v7289 = vadd.f32 %v7261, %v4111
      %v7290 = vadd.f32 %v7262, %v4111
      %v7291 = vadd.f32 %v7263, %v4111
      %v7292 = vadd.f32 %v7264, %v4111
      %v7293 = vadd.f32 %v7265, %v4111
      %v7294 = vadd.f32 %v7266, %v4111
      %v7295 = vadd.f32 %v7267, %v4111
      %v7296 = vadd.f32 %v7268, %v4111
      %v7297 = vadd.f32 %v7269, %v4111
      %v7298 = vadd.f32 %v7270, %v4111
      %v7299 = vadd.f32 %v7271, %v4111
      %v7300 = vadd.f32 %v7272, %v4111
      %v7301 = vadd.f32 %v7273, %v4111
      %v7302 = vadd.f32 %v7274, %v4111
      %v7303 = vadd.f32 %v7275, %v4111
      %v7304 = vadd.f32 %v7276, %v4111
      %v7305 = vadd.f32 %v7277, %v4111
      %v7306 = vadd.f32 %v7278, %v4111
      %v7307 = vadd.f32 %v7279, %v4111
      %v7308 = vadd.f32 %v7280, %v4111
      %v7309 = vadd.f32 %v7281, %v4111
      %v7310 = vadd.f32 %v7282, %v4111
      %v7311 = vxor.u32 %v7283, 2147483648
      %v7312 = vxor.u32 %v7284, 2147483648
      %v7313 = vxor.u32 %v7285, 2147483648
      %v7314 = vxor.u32 %v7286, 2147483648
      %v7315 = vxor.u32 %v7287, 2147483648
      %v7316 = vxor.u32 %v7288, 2147483648
      %v7317 = vxor.u32 %v7289, 2147483648
      %v7318 = vxor.u32 %v7290, 2147483648
      %v7319 = vxor.u32 %v7291, 2147483648
      %v7320 = vxor.u32 %v7292, 2147483648
      %v7321 = vxor.u32 %v7293, 2147483648
      %v7322 = vxor.u32 %v7294, 2147483648
      %v7323 = vxor.u32 %v7295, 2147483648
      %v7324 = vxor.u32 %v7296, 2147483648
      %v7325 = vxor.u32 %v7297, 2147483648
      %v7326 = vxor.u32 %v7298, 2147483648
      %v7327 = vxor.u32 %v7299, 2147483648
      %v7328 = vxor.u32 %v7300, 2147483648
      %v7329 = vxor.u32 %v7301, 2147483648
      %v7330 = vxor.u32 %v7302, 2147483648
      %v7331 = vxor.u32 %v7303, 2147483648
      %v7332 = vxor.u32 %v7304, 2147483648
      %v7333 = vxor.u32 %v7305, 2147483648
      %v7334 = vxor.u32 %v7306, 2147483648
      %v7335 = vxor.u32 %v7307, 2147483648
      %v7336 = vxor.u32 %v7308, 2147483648
      %v7337 = vxor.u32 %v7309, 2147483648
      %v7338 = vxor.u32 %v7310, 2147483648
      %v7339 = vmul.f32 %v7311, 1.442695
      %v7340 = vpow.pop %v7339
      %v7341 = vmul.f32 %v7312, 1.442695
      %v7342 = vpow.pop %v7341
      %v7343 = vmul.f32 %v7313, 1.442695
      %v7344 = vpow.pop %v7343
      %v7345 = vmul.f32 %v7314, 1.442695
      %v7346 = vpow.pop %v7345
      %v7347 = vmul.f32 %v7315, 1.442695
      %v7348 = vpow.pop %v7347
      %v7349 = vmul.f32 %v7316, 1.442695
      %v7350 = vpow.pop %v7349
      %v7351 = vmul.f32 %v7317, 1.442695
      %v7352 = vpow.pop %v7351
      %v7353 = vmul.f32 %v7318, 1.442695
      %v7354 = vpow.pop %v7353
      %v7355 = vmul.f32 %v7319, 1.442695
      %v7356 = vpow.pop %v7355
      %v7357 = vmul.f32 %v7320, 1.442695
      %v7358 = vpow.pop %v7357
      %v7359 = vmul.f32 %v7321, 1.442695
      %v7360 = vpow.pop %v7359
      %v7361 = vmul.f32 %v7322, 1.442695
      %v7362 = vpow.pop %v7361
      %v7363 = vmul.f32 %v7323, 1.442695
      %v7364 = vpow.pop %v7363
      %v7365 = vmul.f32 %v7324, 1.442695
      %v7366 = vpow.pop %v7365
      %v7367 = vmul.f32 %v7325, 1.442695
      %v7368 = vpow.pop %v7367
      %v7369 = vmul.f32 %v7326, 1.442695
      %v7370 = vpow.pop %v7369
      %v7371 = vmul.f32 %v7327, 1.442695
      %v7372 = vpow.pop %v7371
      %v7373 = vmul.f32 %v7328, 1.442695
      %v7374 = vpow.pop %v7373
      %v7375 = vmul.f32 %v7329, 1.442695
      %v7376 = vpow.pop %v7375
      %v7377 = vmul.f32 %v7330, 1.442695
      %v7378 = vpow.pop %v7377
      %v7379 = vmul.f32 %v7331, 1.442695
      %v7380 = vpow.pop %v7379
      %v7381 = vmul.f32 %v7332, 1.442695
      %v7382 = vpow.pop %v7381
      %v7383 = vmul.f32 %v7333, 1.442695
      %v7384 = vpow.pop %v7383
      %v7385 = vmul.f32 %v7334, 1.442695
      %v7386 = vpow.pop %v7385
      %v7387 = vmul.f32 %v7335, 1.442695
      %v7388 = vpow.pop %v7387
      %v7389 = vmul.f32 %v7336, 1.442695
      %v7390 = vpow.pop %v7389
      %v7391 = vmul.f32 %v7337, 1.442695
      %v7392 = vpow.pop %v7391
      %v7393 = vmul.f32 %v7338, 1.442695
      %v7394 = vpow.pop %v7393
      %v7395 = vadd.f32 %v7340, 1.0
      %v7396 = vadd.f32 %v7342, 1.0
      %v7397 = vadd.f32 %v7344, 1.0
      %v7398 = vadd.f32 %v7346, 1.0
      %v7399 = vadd.f32 %v7348, 1.0
      %v7400 = vadd.f32 %v7350, 1.0
      %v7401 = vadd.f32 %v7352, 1.0
      %v7402 = vadd.f32 %v7354, 1.0
      %v7403 = vadd.f32 %v7356, 1.0
      %v7404 = vadd.f32 %v7358, 1.0
      %v7405 = vadd.f32 %v7360, 1.0
      %v7406 = vadd.f32 %v7362, 1.0
      %v7407 = vadd.f32 %v7364, 1.0
      %v7408 = vadd.f32 %v7366, 1.0
      %v7409 = vadd.f32 %v7368, 1.0
      %v7410 = vadd.f32 %v7370, 1.0
      %v7411 = vadd.f32 %v7372, 1.0
      %v7412 = vadd.f32 %v7374, 1.0
      %v7413 = vadd.f32 %v7376, 1.0
      %v7414 = vadd.f32 %v7378, 1.0
      %v7415 = vadd.f32 %v7380, 1.0
      %v7416 = vadd.f32 %v7382, 1.0
      %v7417 = vadd.f32 %v7384, 1.0
      %v7418 = vadd.f32 %v7386, 1.0
      %v7419 = vadd.f32 %v7388, 1.0
      %v7420 = vadd.f32 %v7390, 1.0
      %v7421 = vadd.f32 %v7392, 1.0
      %v7422 = vadd.f32 %v7394, 1.0
      %v7423 = vrcp.pop %v7395
      %v7424 = vmul.f32 1.0, %v7423
      %v7425 = vrcp.pop %v7396
      %v7426 = vmul.f32 1.0, %v7425
      %v7427 = vrcp.pop %v7397
      %v7428 = vmul.f32 1.0, %v7427
      %v7429 = vrcp.pop %v7398
      %v7430 = vmul.f32 1.0, %v7429
      %v7431 = vrcp.pop %v7399
      %v7432 = vmul.f32 1.0, %v7431
      %v7433 = vrcp.pop %v7400
      %v7434 = vmul.f32 1.0, %v7433
      %v7435 = vrcp.pop %v7401
      %v7436 = vmul.f32 1.0, %v7435
      %v7437 = vrcp.pop %v7402
      %v7438 = vmul.f32 1.0, %v7437
      %v7439 = vrcp.pop %v7403
      %v7440 = vmul.f32 1.0, %v7439
      %v7441 = vrcp.pop %v7404
      %v7442 = vmul.f32 1.0, %v7441
      %v7443 = vrcp.pop %v7405
      %v7444 = vmul.f32 1.0, %v7443
      %v7445 = vrcp.pop %v7406
      %v7446 = vmul.f32 1.0, %v7445
      %v7447 = vrcp.pop %v7407
      %v7448 = vmul.f32 1.0, %v7447
      %v7449 = vrcp.pop %v7408
      %v7450 = vmul.f32 1.0, %v7449
      %v7451 = vrcp.pop %v7409
      %v7452 = vmul.f32 1.0, %v7451
      %v7453 = vrcp.pop %v7410
      %v7454 = vmul.f32 1.0, %v7453
      %v7455 = vrcp.pop %v7411
      %v7456 = vmul.f32 1.0, %v7455
      %v7457 = vrcp.pop %v7412
      %v7458 = vmul.f32 1.0, %v7457
      %v7459 = vrcp.pop %v7413
      %v7460 = vmul.f32 1.0, %v7459
      %v7461 = vrcp.pop %v7414
      %v7462 = vmul.f32 1.0, %v7461
      %v7463 = vrcp.pop %v7415
      %v7464 = vmul.f32 1.0, %v7463
      %v7465 = vrcp.pop %v7416
      %v7466 = vmul.f32 1.0, %v7465
      %v7467 = vrcp.pop %v7417
      %v7468 = vmul.f32 1.0, %v7467
      %v7469 = vrcp.pop %v7418
      %v7470 = vmul.f32 1.0, %v7469
      %v7471 = vrcp.pop %v7419
      %v7472 = vmul.f32 1.0, %v7471
      %v7473 = vrcp.pop %v7420
      %v7474 = vmul.f32 1.0, %v7473
      %v7475 = vrcp.pop %v7421
      %v7476 = vmul.f32 1.0, %v7475
      %v7477 = vrcp.pop %v7422
      %v7478 = vmul.f32 1.0, %v7477
      %7479 = vmatprep.subr.mxu0 %v465
      %7480 = vmatpush1.msra.mxu0 %v464
      %7481 = vmatprep.subr.mxu0 %v467
      %7482 = vmatpush1.msra.mxu0 %v466
      %7483 = vmatprep.subr.mxu0 %v469
      %7484 = vmatpush1.msra.mxu0 %v468
      %7485 = vmatprep.subr.mxu0 %v471
      %7486 = vmatpush1.msra.mxu0 %v470
      %7487 = vmatprep.subr.mxu0 %v473
      %7488 = vmatpush1.msra.mxu0 %v472
      %7489 = vmatprep.subr.mxu0 %v475
      %7490 = vmatpush1.msra.mxu0 %v474
      %7491 = vmatprep.subr.mxu0 %v477
      %7492 = vmatpush1.msra.mxu0 %v476
      %7493 = vmatprep.subr.mxu0 %v479
      %7494 = vmatpush1.msra.mxu0 %v478
      %7495 = vmatprep.subr.mxu0 %v481
      %7496 = vmatpush1.msra.mxu0 %v480
      %7497 = vmatprep.subr.mxu0 %v483
      %7498 = vmatpush1.msra.mxu0 %v482
      %7499 = vmatprep.subr.mxu0 %v485
      %7500 = vmatpush1.msra.mxu0 %v484
      %7501 = vmatprep.subr.mxu0 %v487
      %7502 = vmatpush1.msra.mxu0 %v486
      %7503 = vmatprep.subr.mxu0 %v489
      %7504 = vmatpush1.msra.mxu0 %v488
      %7505 = vmatprep.subr.mxu0 %v491
      %7506 = vmatpush1.msra.mxu0 %v490
      %7507 = vmatprep.subr.mxu0 %v493
      %7508 = vmatpush1.msra.mxu0 %v492
      %7509 = vmatprep.subr.mxu0 %v495
      %7510 = vmatpush1.msra.mxu0 %v494
      %7511 = vmatprep.subr.mxu0 0.0
      %7512 = vmatpush1.msra.mxu0 0.0
      %7513 = vmatprep.subr.mxu0 0.0
      %7514 = vmatpush1.msra.mxu0 0.0
      %7515 = vmatprep.subr.mxu0 0.0
      %7516 = vmatpush1.msra.mxu0 0.0
      %7517 = vmatprep.subr.mxu0 0.0
      %7518 = vmatpush1.msra.mxu0 0.0
      %7519 = vmatprep.subr.mxu0 0.0
      %7520 = vmatpush1.msra.mxu0 0.0
      %7521 = vmatprep.subr.mxu0 0.0
      %7522 = vmatpush1.msra.mxu0 0.0
      %7523 = vmatprep.subr.mxu0 0.0
      %7524 = vmatpush1.msra.mxu0 0.0
      %7525 = vmatprep.subr.mxu0 0.0
      %7526 = vmatpush1.msra.mxu0 0.0
      %7527 = vmatprep.subr.mxu0 0.0
      %7528 = vmatpush1.msra.mxu0 0.0
      %7529 = vmatprep.subr.mxu0 0.0
      %7530 = vmatpush1.msra.mxu0 0.0
      %7531 = vmatprep.subr.mxu0 0.0
      %7532 = vmatpush1.msra.mxu0 0.0
      %7533 = vmatprep.subr.mxu0 0.0
      %7534 = vmatpush1.msra.mxu0 0.0
      %7535 = vmatprep.subr.mxu0 0.0
      %7536 = vmatpush1.msra.mxu0 0.0
      %7537 = vmatprep.subr.mxu0 0.0
      %7538 = vmatpush1.msra.mxu0 0.0
      %7539 = vmatprep.subr.mxu0 0.0
      %7540 = vmatpush1.msra.mxu0 0.0
      %7541 = vmatprep.subr.mxu0 0.0
      %7542 = vmatpush1.msra.mxu0 0.0
      %7543 = vmatprep.mubr.f32.mxu0 0.0
      %7544 = vmatmul.mubr.f32.gmra.mrb[0].mxu0 %v7424
      %v7545 = vpop.f32.mrb[0].mxu0
      %v7546 = vadd.f32 0.0, %v7545
      %v7547 = vpop.f32.mrb[0].mxu0
      %v7548 = vadd.f32 0.0, %v7547
      %7549 = vmatprep.mubr.f32.mxu0 0.0
      %7550 = vmatmul.mubr.f32.gmra.mrb[0].mxu0 %v7426
      %v7551 = vpop.f32.mrb[0].mxu0
      %v7552 = vadd.f32 0.0, %v7551
      %v7553 = vpop.f32.mrb[0].mxu0
      %v7554 = vadd.f32 0.0, %v7553
      %7555 = vmatprep.mubr.f32.mxu0 0.0
      %7556 = vmatmul.mubr.f32.gmra.mrb[0].mxu0 %v7428
      %v7557 = vpop.f32.mrb[0].mxu0
      %v7558 = vadd.f32 0.0, %v7557
      %v7559 = vpop.f32.mrb[0].mxu0
      %v7560 = vadd.f32 0.0, %v7559
      %7561 = vmatprep.mubr.f32.mxu0 0.0
      %7562 = vmatmul.mubr.f32.gmra.mrb[0].mxu0 %v7430
      %v7563 = vpop.f32.mrb[0].mxu0
      %v7564 = vadd.f32 0.0, %v7563
      %v7565 = vpop.f32.mrb[0].mxu0
      %v7566 = vadd.f32 0.0, %v7565
      %7567 = vmatprep.mubr.f32.mxu0 0.0
      %7568 = vmatmul.mubr.f32.gmra.mrb[0].mxu0 %v7432
      %v7569 = vpop.f32.mrb[0].mxu0
      %v7570 = vadd.f32 0.0, %v7569
      %v7571 = vpop.f32.mrb[0].mxu0
      %v7572 = vadd.f32 0.0, %v7571
      %7573 = vmatprep.mubr.f32.mxu0 0.0
      %7574 = vmatmul.mubr.f32.gmra.mrb[0].mxu0 %v7434
      %v7575 = vpop.f32.mrb[0].mxu0
      %v7576 = vadd.f32 0.0, %v7575
      %v7577 = vpop.f32.mrb[0].mxu0
      %v7578 = vadd.f32 0.0, %v7577
      %7579 = vmatprep.mubr.f32.mxu0 0.0
      %7580 = vmatmul.mubr.f32.gmra.mrb[0].mxu0 %v7436
      %v7581 = vpop.f32.mrb[0].mxu0
      %v7582 = vadd.f32 0.0, %v7581
      %v7583 = vpop.f32.mrb[0].mxu0
      %v7584 = vadd.f32 0.0, %v7583
      %7585 = vmatprep.mubr.f32.mxu0 0.0
      %7586 = vmatmul.mubr.f32.gmra.mrb[0].mxu0 %v7438
      %v7587 = vpop.f32.mrb[0].mxu0
      %v7588 = vadd.f32 0.0, %v7587
      %v7589 = vpop.f32.mrb[0].mxu0
      %v7590 = vadd.f32 0.0, %v7589
      %7591 = vmatprep.mubr.f32.mxu0 0.0
      %7592 = vmatmul.mubr.f32.gmra.mrb[0].mxu0 %v7440
      %v7593 = vpop.f32.mrb[0].mxu0
      %v7594 = vadd.f32 0.0, %v7593
      %v7595 = vpop.f32.mrb[0].mxu0
      %v7596 = vadd.f32 0.0, %v7595
      %7597 = vmatprep.mubr.f32.mxu0 0.0
      %7598 = vmatmul.mubr.f32.gmra.mrb[0].mxu0 %v7442
      %v7599 = vpop.f32.mrb[0].mxu0
      %v7600 = vadd.f32 0.0, %v7599
      %v7601 = vpop.f32.mrb[0].mxu0
      %v7602 = vadd.f32 0.0, %v7601
      %7603 = vmatprep.mubr.f32.mxu0 0.0
      %7604 = vmatmul.mubr.f32.gmra.mrb[0].mxu0 %v7444
      %v7605 = vpop.f32.mrb[0].mxu0
      %v7606 = vadd.f32 0.0, %v7605
      %v7607 = vpop.f32.mrb[0].mxu0
      %v7608 = vadd.f32 0.0, %v7607
      %7609 = vmatprep.mubr.f32.mxu0 0.0
      %7610 = vmatmul.mubr.f32.gmra.mrb[0].mxu0 %v7446
      %v7611 = vpop.f32.mrb[0].mxu0
      %v7612 = vadd.f32 0.0, %v7611
      %v7613 = vpop.f32.mrb[0].mxu0
      %v7614 = vadd.f32 0.0, %v7613
      %7615 = vmatprep.mubr.f32.mxu0 0.0
      %7616 = vmatmul.mubr.f32.gmra.mrb[0].mxu0 %v7448
      %v7617 = vpop.f32.mrb[0].mxu0
      %v7618 = vadd.f32 0.0, %v7617
      %v7619 = vpop.f32.mrb[0].mxu0
      %v7620 = vadd.f32 0.0, %v7619
      %7621 = vmatprep.mubr.f32.mxu0 0.0
      %7622 = vmatmul.mubr.f32.gmra.mrb[0].mxu0 %v7450
      %v7623 = vpop.f32.mrb[0].mxu0
      %v7624 = vadd.f32 0.0, %v7623
      %v7625 = vpop.f32.mrb[0].mxu0
      %v7626 = vadd.f32 0.0, %v7625
      %7627 = vmatprep.mubr.f32.mxu0 0.0
      %7628 = vmatmul.mubr.f32.gmra.mrb[0].mxu0 %v7452
      %v7629 = vpop.f32.mrb[0].mxu0
      %v7630 = vadd.f32 0.0, %v7629
      %v7631 = vpop.f32.mrb[0].mxu0
      %v7632 = vadd.f32 0.0, %v7631
      %7633 = vmatprep.mubr.f32.mxu0 0.0
      %7634 = vmatmul.mubr.f32.gmra.mrb[0].mxu0 %v7454
      %v7635 = vpop.f32.mrb[0].mxu0
      %v7636 = vadd.f32 0.0, %v7635
      %v7637 = vpop.f32.mrb[0].mxu0
      %v7638 = vadd.f32 0.0, %v7637
      %7639 = vmatprep.mubr.f32.mxu0 0.0
      %7640 = vmatmul.mubr.f32.gmra.mrb[0].mxu0 %v7456
      %v7641 = vpop.f32.mrb[0].mxu0
      %v7642 = vadd.f32 0.0, %v7641
      %v7643 = vpop.f32.mrb[0].mxu0
      %v7644 = vadd.f32 0.0, %v7643
      %7645 = vmatprep.mubr.f32.mxu0 0.0
      %7646 = vmatmul.mubr.f32.gmra.mrb[0].mxu0 %v7458
      %v7647 = vpop.f32.mrb[0].mxu0
      %v7648 = vadd.f32 0.0, %v7647
      %v7649 = vpop.f32.mrb[0].mxu0
      %v7650 = vadd.f32 0.0, %v7649
      %7651 = vmatprep.mubr.f32.mxu0 0.0
      %7652 = vmatmul.mubr.f32.gmra.mrb[0].mxu0 %v7460
      %v7653 = vpop.f32.mrb[0].mxu0
      %v7654 = vadd.f32 0.0, %v7653
      %v7655 = vpop.f32.mrb[0].mxu0
      %v7656 = vadd.f32 0.0, %v7655
      %7657 = vmatprep.mubr.f32.mxu0 0.0
      %7658 = vmatmul.mubr.f32.gmra.mrb[0].mxu0 %v7462
      %v7659 = vpop.f32.mrb[0].mxu0
      %v7660 = vadd.f32 0.0, %v7659
      %v7661 = vpop.f32.mrb[0].mxu0
      %v7662 = vadd.f32 0.0, %v7661
      %7663 = vdwg.mxu0
      %7664 = vmatprep.subr.mxu0 %v432
      %7665 = vmatpush1.msra.mxu0 %v431
      %7666 = vmatprep.subr.mxu0 %v434
      %7667 = vmatpush1.msra.mxu0 %v433
      %7668 = vmatprep.subr.mxu0 %v436
      %7669 = vmatpush1.msra.mxu0 %v435
      %7670 = vmatprep.subr.mxu0 %v438
      %7671 = vmatpush1.msra.mxu0 %v437
      %7672 = vmatprep.subr.mxu0 %v440
      %7673 = vmatpush1.msra.mxu0 %v439
      %7674 = vmatprep.subr.mxu0 %v442
      %7675 = vmatpush1.msra.mxu0 %v441
      %7676 = vmatprep.subr.mxu0 %v444
      %7677 = vmatpush1.msra.mxu0 %v443
      %7678 = vmatprep.subr.mxu0 %v446
      %7679 = vmatpush1.msra.mxu0 %v445
      %7680 = vmatprep.subr.mxu0 %v448
      %7681 = vmatpush1.msra.mxu0 %v447
      %7682 = vmatprep.subr.mxu0 %v450
      %7683 = vmatpush1.msra.mxu0 %v449
      %7684 = vmatprep.subr.mxu0 %v452
      %7685 = vmatpush1.msra.mxu0 %v451
      %7686 = vmatprep.subr.mxu0 %v454
      %7687 = vmatpush1.msra.mxu0 %v453
      %7688 = vmatprep.subr.mxu0 %v456
      %7689 = vmatpush1.msra.mxu0 %v455
      %7690 = vmatprep.subr.mxu0 %v458
      %7691 = vmatpush1.msra.mxu0 %v457
      %7692 = vmatprep.subr.mxu0 %v460
      %7693 = vmatpush1.msra.mxu0 %v459
      %7694 = vmatprep.subr.mxu0 %v462
      %7695 = vmatpush1.msra.mxu0 %v461
      %7696 = vmatprep.subr.mxu0 0.0
      %7697 = vmatpush1.msra.mxu0 0.0
      %7698 = vmatprep.subr.mxu0 0.0
      %7699 = vmatpush1.msra.mxu0 0.0
      %7700 = vmatprep.subr.mxu0 0.0
      %7701 = vmatpush1.msra.mxu0 0.0
      %7702 = vmatprep.subr.mxu0 0.0
      %7703 = vmatpush1.msra.mxu0 0.0
      %7704 = vmatprep.subr.mxu0 0.0
      %7705 = vmatpush1.msra.mxu0 0.0
      %7706 = vmatprep.subr.mxu0 0.0
      %7707 = vmatpush1.msra.mxu0 0.0
      %7708 = vmatprep.subr.mxu0 0.0
      %7709 = vmatpush1.msra.mxu0 0.0
      %7710 = vmatprep.subr.mxu0 0.0
      %7711 = vmatpush1.msra.mxu0 0.0
      %7712 = vmatprep.subr.mxu0 0.0
      %7713 = vmatpush1.msra.mxu0 0.0
      %7714 = vmatprep.subr.mxu0 0.0
      %7715 = vmatpush1.msra.mxu0 0.0
      %7716 = vmatprep.subr.mxu0 0.0
      %7717 = vmatpush1.msra.mxu0 0.0
      %7718 = vmatprep.subr.mxu0 0.0
      %7719 = vmatpush1.msra.mxu0 0.0
      %7720 = vmatprep.subr.mxu0 0.0
      %7721 = vmatpush1.msra.mxu0 0.0
      %7722 = vmatprep.subr.mxu0 0.0
      %7723 = vmatpush1.msra.mxu0 0.0
      %7724 = vmatprep.subr.mxu0 0.0
      %7725 = vmatpush1.msra.mxu0 0.0
      %7726 = vmatprep.subr.mxu0 0.0
      %7727 = vmatpush1.msra.mxu0 0.0
      %7728 = vmatprep.mubr.f32.mxu0 0.0
      %7729 = vmatmul.mubr.f32.gmra.mrb[0].mxu0 %v4254
      %v7730 = vpop.f32.mrb[0].mxu0
      %v7731 = vadd.f32 %v7546, %v7730
      %v7732 = vpop.f32.mrb[0].mxu0
      %v7733 = vadd.f32 %v7548, %v7732
      %7734 = vmatprep.mubr.f32.mxu0 0.0
      %7735 = vmatmul.mubr.f32.gmra.mrb[0].mxu0 %v4256
      %v7736 = vpop.f32.mrb[0].mxu0
      %v7737 = vadd.f32 %v7552, %v7736
      %v7738 = vpop.f32.mrb[0].mxu0
      %v7739 = vadd.f32 %v7554, %v7738
      %7740 = vmatprep.mubr.f32.mxu0 0.0
      %7741 = vmatmul.mubr.f32.gmra.mrb[0].mxu0 %v4258
      %v7742 = vpop.f32.mrb[0].mxu0
      %v7743 = vadd.f32 %v7558, %v7742
      %v7744 = vpop.f32.mrb[0].mxu0
      %v7745 = vadd.f32 %v7560, %v7744
      %7746 = vmatprep.mubr.f32.mxu0 0.0
      %7747 = vmatmul.mubr.f32.gmra.mrb[0].mxu0 %v4260
      %v7748 = vpop.f32.mrb[0].mxu0
      %v7749 = vadd.f32 %v7564, %v7748
      %v7750 = vpop.f32.mrb[0].mxu0
      %v7751 = vadd.f32 %v7566, %v7750
      %7752 = vmatprep.mubr.f32.mxu0 0.0
      %7753 = vmatmul.mubr.f32.gmra.mrb[0].mxu0 %v4262
      %v7754 = vpop.f32.mrb[0].mxu0
      %v7755 = vadd.f32 %v7570, %v7754
      %v7756 = vpop.f32.mrb[0].mxu0
      %v7757 = vadd.f32 %v7572, %v7756
      %7758 = vmatprep.mubr.f32.mxu0 0.0
      %7759 = vmatmul.mubr.f32.gmra.mrb[0].mxu0 %v4264
      %v7760 = vpop.f32.mrb[0].mxu0
      %v7761 = vadd.f32 %v7576, %v7760
      %v7762 = vpop.f32.mrb[0].mxu0
      %v7763 = vadd.f32 %v7578, %v7762
      %7764 = vmatprep.mubr.f32.mxu0 0.0
      %7765 = vmatmul.mubr.f32.gmra.mrb[0].mxu0 %v4266
      %v7766 = vpop.f32.mrb[0].mxu0
      %v7767 = vadd.f32 %v7582, %v7766
      %v7768 = vpop.f32.mrb[0].mxu0
      %v7769 = vadd.f32 %v7584, %v7768
      %7770 = vmatprep.mubr.f32.mxu0 0.0
      %7771 = vmatmul.mubr.f32.gmra.mrb[0].mxu0 %v4268
      %v7772 = vpop.f32.mrb[0].mxu0
      %v7773 = vadd.f32 %v7588, %v7772
      %v7774 = vpop.f32.mrb[0].mxu0
      %v7775 = vadd.f32 %v7590, %v7774
      %7776 = vmatprep.mubr.f32.mxu0 0.0
      %7777 = vmatmul.mubr.f32.gmra.mrb[0].mxu0 %v4270
      %v7778 = vpop.f32.mrb[0].mxu0
      %v7779 = vadd.f32 %v7594, %v7778
      %v7780 = vpop.f32.mrb[0].mxu0
      %v7781 = vadd.f32 %v7596, %v7780
      %7782 = vmatprep.mubr.f32.mxu0 0.0
      %7783 = vmatmul.mubr.f32.gmra.mrb[0].mxu0 %v4272
      %v7784 = vpop.f32.mrb[0].mxu0
      %v7785 = vadd.f32 %v7600, %v7784
      %v7786 = vpop.f32.mrb[0].mxu0
      %v7787 = vadd.f32 %v7602, %v7786
      %7788 = vmatprep.mubr.f32.mxu0 0.0
      %7789 = vmatmul.mubr.f32.gmra.mrb[0].mxu0 %v4274
      %v7790 = vpop.f32.mrb[0].mxu0
      %v7791 = vadd.f32 %v7606, %v7790
      %v7792 = vpop.f32.mrb[0].mxu0
      %v7793 = vadd.f32 %v7608, %v7792
      %7794 = vmatprep.mubr.f32.mxu0 0.0
      %7795 = vmatmul.mubr.f32.gmra.mrb[0].mxu0 %v4276
      %v7796 = vpop.f32.mrb[0].mxu0
      %v7797 = vadd.f32 %v7612, %v7796
      %v7798 = vpop.f32.mrb[0].mxu0
      %v7799 = vadd.f32 %v7614, %v7798
      %7800 = vmatprep.mubr.f32.mxu0 0.0
      %7801 = vmatmul.mubr.f32.gmra.mrb[0].mxu0 %v4278
      %v7802 = vpop.f32.mrb[0].mxu0
      %v7803 = vadd.f32 %v7618, %v7802
      %v7804 = vpop.f32.mrb[0].mxu0
      %v7805 = vadd.f32 %v7620, %v7804
      %7806 = vmatprep.mubr.f32.mxu0 0.0
      %7807 = vmatmul.mubr.f32.gmra.mrb[0].mxu0 %v4280
      %v7808 = vpop.f32.mrb[0].mxu0
      %v7809 = vadd.f32 %v7624, %v7808
      %v7810 = vpop.f32.mrb[0].mxu0
      %v7811 = vadd.f32 %v7626, %v7810
      %7812 = vmatprep.mubr.f32.mxu0 0.0
      %7813 = vmatmul.mubr.f32.gmra.mrb[0].mxu0 %v4282
      %v7814 = vpop.f32.mrb[0].mxu0
      %v7815 = vadd.f32 %v7630, %v7814
      %v7816 = vpop.f32.mrb[0].mxu0
      %v7817 = vadd.f32 %v7632, %v7816
      %7818 = vmatprep.mubr.f32.mxu0 0.0
      %7819 = vmatmul.mubr.f32.gmra.mrb[0].mxu0 %v4284
      %v7820 = vpop.f32.mrb[0].mxu0
      %v7821 = vadd.f32 %v7636, %v7820
      %v7822 = vpop.f32.mrb[0].mxu0
      %v7823 = vadd.f32 %v7638, %v7822
      %7824 = vmatprep.mubr.f32.mxu0 0.0
      %7825 = vmatmul.mubr.f32.gmra.mrb[0].mxu0 %v4286
      %v7826 = vpop.f32.mrb[0].mxu0
      %v7827 = vadd.f32 %v7642, %v7826
      %v7828 = vpop.f32.mrb[0].mxu0
      %v7829 = vadd.f32 %v7644, %v7828
      %7830 = vmatprep.mubr.f32.mxu0 0.0
      %7831 = vmatmul.mubr.f32.gmra.mrb[0].mxu0 %v4288
      %v7832 = vpop.f32.mrb[0].mxu0
      %v7833 = vadd.f32 %v7648, %v7832
      %v7834 = vpop.f32.mrb[0].mxu0
      %v7835 = vadd.f32 %v7650, %v7834
      %7836 = vmatprep.mubr.f32.mxu0 0.0
      %7837 = vmatmul.mubr.f32.gmra.mrb[0].mxu0 %v4290
      %v7838 = vpop.f32.mrb[0].mxu0
      %v7839 = vadd.f32 %v7654, %v7838
      %v7840 = vpop.f32.mrb[0].mxu0
      %v7841 = vadd.f32 %v7656, %v7840
      %7842 = vmatprep.mubr.f32.mxu0 0.0
      %7843 = vmatmul.mubr.f32.gmra.mrb[0].mxu0 %v4292
      %v7844 = vpop.f32.mrb[0].mxu0
      %v7845 = vadd.f32 %v7660, %v7844
      %v7846 = vpop.f32.mrb[0].mxu0
      %v7847 = vadd.f32 %v7662, %v7846
      %7848 = vdwg.mxu0
      %7849 = vmatprep.subr.mxu0 %v498
      %7850 = vmatpush1.msra.mxu0 %v497
      %7851 = vmatprep.subr.mxu0 %v500
      %7852 = vmatpush1.msra.mxu0 %v499
      %7853 = vmatprep.subr.mxu0 %v502
      %7854 = vmatpush1.msra.mxu0 %v501
      %7855 = vmatprep.subr.mxu0 %v504
      %7856 = vmatpush1.msra.mxu0 %v503
      %7857 = vmatprep.subr.mxu0 %v506
      %7858 = vmatpush1.msra.mxu0 %v505
      %7859 = vmatprep.subr.mxu0 %v508
      %7860 = vmatpush1.msra.mxu0 %v507
      %7861 = vmatprep.subr.mxu0 %v510
      %7862 = vmatpush1.msra.mxu0 %v509
      %7863 = vmatprep.subr.mxu0 %v512
      %7864 = vmatpush1.msra.mxu0 %v511
      %7865 = vmatprep.subr.mxu0 %v514
      %7866 = vmatpush1.msra.mxu0 %v513
      %7867 = vmatprep.subr.mxu0 %v516
      %7868 = vmatpush1.msra.mxu0 %v515
      %7869 = vmatprep.subr.mxu0 %v518
      %7870 = vmatpush1.msra.mxu0 %v517
      %7871 = vmatprep.subr.mxu0 %v520
      %7872 = vmatpush1.msra.mxu0 %v519
      %7873 = vmatprep.subr.mxu0 %v522
      %7874 = vmatpush1.msra.mxu0 %v521
      %7875 = vmatprep.subr.mxu0 %v524
      %7876 = vmatpush1.msra.mxu0 %v523
      %7877 = vmatprep.subr.mxu0 %v526
      %7878 = vmatpush1.msra.mxu0 %v525
      %7879 = vmatprep.subr.mxu0 %v528
      %7880 = vmatpush1.msra.mxu0 %v527
      %7881 = vmatprep.subr.mxu0 0.0
      %7882 = vmatpush1.msra.mxu0 0.0
      %7883 = vmatprep.subr.mxu0 0.0
      %7884 = vmatpush1.msra.mxu0 0.0
      %7885 = vmatprep.subr.mxu0 0.0
      %7886 = vmatpush1.msra.mxu0 0.0
      %7887 = vmatprep.subr.mxu0 0.0
      %7888 = vmatpush1.msra.mxu0 0.0
      %7889 = vmatprep.subr.mxu0 0.0
      %7890 = vmatpush1.msra.mxu0 0.0
      %7891 = vmatprep.subr.mxu0 0.0
      %7892 = vmatpush1.msra.mxu0 0.0
      %7893 = vmatprep.subr.mxu0 0.0
      %7894 = vmatpush1.msra.mxu0 0.0
      %7895 = vmatprep.subr.mxu0 0.0
      %7896 = vmatpush1.msra.mxu0 0.0
      %7897 = vmatprep.subr.mxu0 0.0
      %7898 = vmatpush1.msra.mxu0 0.0
      %7899 = vmatprep.subr.mxu0 0.0
      %7900 = vmatpush1.msra.mxu0 0.0
      %7901 = vmatprep.subr.mxu0 0.0
      %7902 = vmatpush1.msra.mxu0 0.0
      %7903 = vmatprep.subr.mxu0 0.0
      %7904 = vmatpush1.msra.mxu0 0.0
      %7905 = vmatprep.subr.mxu0 0.0
      %7906 = vmatpush1.msra.mxu0 0.0
      %7907 = vmatprep.subr.mxu0 0.0
      %7908 = vmatpush1.msra.mxu0 0.0
      %7909 = vmatprep.subr.mxu0 0.0
      %7910 = vmatpush1.msra.mxu0 0.0
      %7911 = vmatprep.subr.mxu0 0.0
      %7912 = vmatpush1.msra.mxu0 0.0
      %7913 = vmatprep.mubr.f32.mxu0 0.0
      %7914 = vmatmul.mubr.f32.gmra.mrb[0].mxu0 %v4262
      %v7915 = vpop.f32.mrb[0].mxu0
      %v7916 = vadd.f32 0.0, %v7915
      %v7917 = vpop.f32.mrb[0].mxu0
      %v7918 = vadd.f32 0.0, %v7917
      %7919 = vmatprep.mubr.f32.mxu0 0.0
      %7920 = vmatmul.mubr.f32.gmra.mrb[0].mxu0 %v4264
      %v7921 = vpop.f32.mrb[0].mxu0
      %v7922 = vadd.f32 0.0, %v7921
      %v7923 = vpop.f32.mrb[0].mxu0
      %v7924 = vadd.f32 0.0, %v7923
      %7925 = vmatprep.mubr.f32.mxu0 0.0
      %7926 = vmatmul.mubr.f32.gmra.mrb[0].mxu0 %v4266
      %v7927 = vpop.f32.mrb[0].mxu0
      %v7928 = vadd.f32 0.0, %v7927
      %v7929 = vpop.f32.mrb[0].mxu0
      %v7930 = vadd.f32 0.0, %v7929
      %7931 = vmatprep.mubr.f32.mxu0 0.0
      %7932 = vmatmul.mubr.f32.gmra.mrb[0].mxu0 %v4268
      %v7933 = vpop.f32.mrb[0].mxu0
      %v7934 = vadd.f32 0.0, %v7933
      %v7935 = vpop.f32.mrb[0].mxu0
      %v7936 = vadd.f32 0.0, %v7935
      %7937 = vmatprep.mubr.f32.mxu0 0.0
      %7938 = vmatmul.mubr.f32.gmra.mrb[0].mxu0 %v4270
      %v7939 = vpop.f32.mrb[0].mxu0
      %v7940 = vadd.f32 0.0, %v7939
      %v7941 = vpop.f32.mrb[0].mxu0
      %v7942 = vadd.f32 0.0, %v7941
      %7943 = vmatprep.mubr.f32.mxu0 0.0
      %7944 = vmatmul.mubr.f32.gmra.mrb[0].mxu0 %v4272
      %v7945 = vpop.f32.mrb[0].mxu0
      %v7946 = vadd.f32 0.0, %v7945
      %v7947 = vpop.f32.mrb[0].mxu0
      %v7948 = vadd.f32 0.0, %v7947
      %7949 = vmatprep.mubr.f32.mxu0 0.0
      %7950 = vmatmul.mubr.f32.gmra.mrb[0].mxu0 %v4274
      %v7951 = vpop.f32.mrb[0].mxu0
      %v7952 = vadd.f32 0.0, %v7951
      %v7953 = vpop.f32.mrb[0].mxu0
      %v7954 = vadd.f32 0.0, %v7953
      %7955 = vmatprep.mubr.f32.mxu0 0.0
      %7956 = vmatmul.mubr.f32.gmra.mrb[0].mxu0 %v4276
      %v7957 = vpop.f32.mrb[0].mxu0
      %v7958 = vadd.f32 0.0, %v7957
      %v7959 = vpop.f32.mrb[0].mxu0
      %v7960 = vadd.f32 0.0, %v7959
      %7961 = vmatprep.mubr.f32.mxu0 0.0
      %7962 = vmatmul.mubr.f32.gmra.mrb[0].mxu0 %v4278
      %v7963 = vpop.f32.mrb[0].mxu0
      %v7964 = vadd.f32 0.0, %v7963
      %v7965 = vpop.f32.mrb[0].mxu0
      %v7966 = vadd.f32 0.0, %v7965
      %7967 = vmatprep.mubr.f32.mxu0 0.0
      %7968 = vmatmul.mubr.f32.gmra.mrb[0].mxu0 %v4280
      %v7969 = vpop.f32.mrb[0].mxu0
      %v7970 = vadd.f32 0.0, %v7969
      %v7971 = vpop.f32.mrb[0].mxu0
      %v7972 = vadd.f32 0.0, %v7971
      %7973 = vmatprep.mubr.f32.mxu0 0.0
      %7974 = vmatmul.mubr.f32.gmra.mrb[0].mxu0 %v4282
      %v7975 = vpop.f32.mrb[0].mxu0
      %v7976 = vadd.f32 0.0, %v7975
      %v7977 = vpop.f32.mrb[0].mxu0
      %v7978 = vadd.f32 0.0, %v7977
      %7979 = vmatprep.mubr.f32.mxu0 0.0
      %7980 = vmatmul.mubr.f32.gmra.mrb[0].mxu0 %v4284
      %v7981 = vpop.f32.mrb[0].mxu0
      %v7982 = vadd.f32 0.0, %v7981
      %v7983 = vpop.f32.mrb[0].mxu0
      %v7984 = vadd.f32 0.0, %v7983
      %7985 = vmatprep.mubr.f32.mxu0 0.0
      %7986 = vmatmul.mubr.f32.gmra.mrb[0].mxu0 %v4286
      %v7987 = vpop.f32.mrb[0].mxu0
      %v7988 = vadd.f32 0.0, %v7987
      %v7989 = vpop.f32.mrb[0].mxu0
      %v7990 = vadd.f32 0.0, %v7989
      %7991 = vmatprep.mubr.f32.mxu0 0.0
      %7992 = vmatmul.mubr.f32.gmra.mrb[0].mxu0 %v4288
      %v7993 = vpop.f32.mrb[0].mxu0
      %v7994 = vadd.f32 0.0, %v7993
      %v7995 = vpop.f32.mrb[0].mxu0
      %v7996 = vadd.f32 0.0, %v7995
      %7997 = vmatprep.mubr.f32.mxu0 0.0
      %7998 = vmatmul.mubr.f32.gmra.mrb[0].mxu0 %v4290
      %v7999 = vpop.f32.mrb[0].mxu0
      %v8000 = vadd.f32 0.0, %v7999
      %v8001 = vpop.f32.mrb[0].mxu0
      %v8002 = vadd.f32 0.0, %v8001
      %8003 = vmatprep.mubr.f32.mxu0 0.0
      %8004 = vmatmul.mubr.f32.gmra.mrb[0].mxu0 %v4292
      %v8005 = vpop.f32.mrb[0].mxu0
      %v8006 = vadd.f32 0.0, %v8005
      %v8007 = vpop.f32.mrb[0].mxu0
      %v8008 = vadd.f32 0.0, %v8007
      %8009 = vmatprep.mubr.f32.mxu0 0.0
      %8010 = vmatmul.mubr.f32.gmra.mrb[0].mxu0 %v4294
      %v8011 = vpop.f32.mrb[0].mxu0
      %v8012 = vadd.f32 0.0, %v8011
      %v8013 = vpop.f32.mrb[0].mxu0
      %v8014 = vadd.f32 0.0, %v8013
      %8015 = vmatprep.mubr.f32.mxu0 0.0
      %8016 = vmatmul.mubr.f32.gmra.mrb[0].mxu0 %v4296
      %v8017 = vpop.f32.mrb[0].mxu0
      %v8018 = vadd.f32 0.0, %v8017
      %v8019 = vpop.f32.mrb[0].mxu0
      %v8020 = vadd.f32 0.0, %v8019
      %8021 = vmatprep.mubr.f32.mxu0 0.0
      %8022 = vmatmul.mubr.f32.gmra.mrb[0].mxu0 %v4298
      %v8023 = vpop.f32.mrb[0].mxu0
      %v8024 = vadd.f32 0.0, %v8023
      %v8025 = vpop.f32.mrb[0].mxu0
      %v8026 = vadd.f32 0.0, %v8025
      %8027 = vmatprep.mubr.f32.mxu0 0.0
      %8028 = vmatmul.mubr.f32.gmra.mrb[0].mxu0 %v4300
      %v8029 = vpop.f32.mrb[0].mxu0
      %v8030 = vadd.f32 0.0, %v8029
      %v8031 = vpop.f32.mrb[0].mxu0
      %v8032 = vadd.f32 0.0, %v8031
      %8033 = vdwg.mxu0
      %v8034 = vadd.f32 %v7731, %v7916
      %v8035 = vadd.f32 %v7733, %v7918
      %v8036 = vadd.f32 %v7737, %v7922
      %v8037 = vadd.f32 %v7739, %v7924
      %v8038 = vadd.f32 %v7743, %v7928
      %v8039 = vadd.f32 %v7745, %v7930
      %v8040 = vadd.f32 %v7749, %v7934
      %v8041 = vadd.f32 %v7751, %v7936
      %v8042 = vadd.f32 %v7755, %v7940
      %v8043 = vadd.f32 %v7757, %v7942
      %v8044 = vadd.f32 %v7761, %v7946
      %v8045 = vadd.f32 %v7763, %v7948
      %v8046 = vadd.f32 %v7767, %v7952
      %v8047 = vadd.f32 %v7769, %v7954
      %v8048 = vadd.f32 %v7773, %v7958
      %v8049 = vadd.f32 %v7775, %v7960
      %v8050 = vadd.f32 %v7779, %v7964
      %v8051 = vadd.f32 %v7781, %v7966
      %v8052 = vadd.f32 %v7785, %v7970
      %v8053 = vadd.f32 %v7787, %v7972
      %v8054 = vadd.f32 %v7791, %v7976
      %v8055 = vadd.f32 %v7793, %v7978
      %v8056 = vadd.f32 %v7797, %v7982
      %v8057 = vadd.f32 %v7799, %v7984
      %v8058 = vadd.f32 %v7803, %v7988
      %v8059 = vadd.f32 %v7805, %v7990
      %v8060 = vadd.f32 %v7809, %v7994
      %v8061 = vadd.f32 %v7811, %v7996
      %v8062 = vadd.f32 %v7815, %v8000
      %v8063 = vadd.f32 %v7817, %v8002
      %v8064 = vadd.f32 %v7821, %v8006
      %v8065 = vadd.f32 %v7823, %v8008
      %v8066 = vadd.f32 %v7827, %v8012
      %v8067 = vadd.f32 %v7829, %v8014
      %v8068 = vadd.f32 %v7833, %v8018
      %v8069 = vadd.f32 %v7835, %v8020
      %v8070 = vadd.f32 %v7839, %v8024
      %v8071 = vadd.f32 %v7841, %v8026
      %v8072 = vadd.f32 %v7845, %v8030
      %v8073 = vadd.f32 %v7847, %v8032
      %8074 = vmatprep.subr.mxu0 %v531
      %8075 = vmatpush1.msra.mxu0 %v530
      %8076 = vmatprep.subr.mxu0 %v533
      %8077 = vmatpush1.msra.mxu0 %v532
      %8078 = vmatprep.subr.mxu0 %v535
      %8079 = vmatpush1.msra.mxu0 %v534
      %8080 = vmatprep.subr.mxu0 %v537
      %8081 = vmatpush1.msra.mxu0 %v536
      %8082 = vmatprep.subr.mxu0 %v539
      %8083 = vmatpush1.msra.mxu0 %v538
      %8084 = vmatprep.subr.mxu0 %v541
      %8085 = vmatpush1.msra.mxu0 %v540
      %8086 = vmatprep.subr.mxu0 %v543
      %8087 = vmatpush1.msra.mxu0 %v542
      %8088 = vmatprep.subr.mxu0 %v545
      %8089 = vmatpush1.msra.mxu0 %v544
      %8090 = vmatprep.subr.mxu0 %v547
      %8091 = vmatpush1.msra.mxu0 %v546
      %8092 = vmatprep.subr.mxu0 %v549
      %8093 = vmatpush1.msra.mxu0 %v548
      %8094 = vmatprep.subr.mxu0 %v551
      %8095 = vmatpush1.msra.mxu0 %v550
      %8096 = vmatprep.subr.mxu0 %v553
      %8097 = vmatpush1.msra.mxu0 %v552
      %8098 = vmatprep.subr.mxu0 %v555
      %8099 = vmatpush1.msra.mxu0 %v554
      %8100 = vmatprep.subr.mxu0 %v557
      %8101 = vmatpush1.msra.mxu0 %v556
      %8102 = vmatprep.subr.mxu0 %v559
      %8103 = vmatpush1.msra.mxu0 %v558
      %8104 = vmatprep.subr.mxu0 %v561
      %8105 = vmatpush1.msra.mxu0 %v560
      %8106 = vmatprep.subr.mxu0 0.0
      %8107 = vmatpush1.msra.mxu0 0.0
      %8108 = vmatprep.subr.mxu0 0.0
      %8109 = vmatpush1.msra.mxu0 0.0
      %8110 = vmatprep.subr.mxu0 0.0
      %8111 = vmatpush1.msra.mxu0 0.0
      %8112 = vmatprep.subr.mxu0 0.0
      %8113 = vmatpush1.msra.mxu0 0.0
      %8114 = vmatprep.subr.mxu0 0.0
      %8115 = vmatpush1.msra.mxu0 0.0
      %8116 = vmatprep.subr.mxu0 0.0
      %8117 = vmatpush1.msra.mxu0 0.0
      %8118 = vmatprep.subr.mxu0 0.0
      %8119 = vmatpush1.msra.mxu0 0.0
      %8120 = vmatprep.subr.mxu0 0.0
      %8121 = vmatpush1.msra.mxu0 0.0
      %8122 = vmatprep.subr.mxu0 0.0
      %8123 = vmatpush1.msra.mxu0 0.0
      %8124 = vmatprep.subr.mxu0 0.0
      %8125 = vmatpush1.msra.mxu0 0.0
      %8126 = vmatprep.subr.mxu0 0.0
      %8127 = vmatpush1.msra.mxu0 0.0
      %8128 = vmatprep.subr.mxu0 0.0
      %8129 = vmatpush1.msra.mxu0 0.0
      %8130 = vmatprep.subr.mxu0 0.0
      %8131 = vmatpush1.msra.mxu0 0.0
      %8132 = vmatprep.subr.mxu0 0.0
      %8133 = vmatpush1.msra.mxu0 0.0
      %8134 = vmatprep.subr.mxu0 0.0
      %8135 = vmatpush1.msra.mxu0 0.0
      %8136 = vmatprep.subr.mxu0 0.0
      %8137 = vmatpush1.msra.mxu0 0.0
      %8138 = vmatprep.mubr.f32.mxu0 0.0
      %8139 = vmatmul.mubr.f32.gmra.mrb[0].mxu0 %v7432
      %v8140 = vpop.f32.mrb[0].mxu0
      %v8141 = vadd.f32 0.0, %v8140
      %v8142 = vpop.f32.mrb[0].mxu0
      %v8143 = vadd.f32 0.0, %v8142
      %8144 = vmatprep.mubr.f32.mxu0 0.0
      %8145 = vmatmul.mubr.f32.gmra.mrb[0].mxu0 %v7434
      %v8146 = vpop.f32.mrb[0].mxu0
      %v8147 = vadd.f32 0.0, %v8146
      %v8148 = vpop.f32.mrb[0].mxu0
      %v8149 = vadd.f32 0.0, %v8148
      %8150 = vmatprep.mubr.f32.mxu0 0.0
      %8151 = vmatmul.mubr.f32.gmra.mrb[0].mxu0 %v7436
      %v8152 = vpop.f32.mrb[0].mxu0
      %v8153 = vadd.f32 0.0, %v8152
      %v8154 = vpop.f32.mrb[0].mxu0
      %v8155 = vadd.f32 0.0, %v8154
      %8156 = vmatprep.mubr.f32.mxu0 0.0
      %8157 = vmatmul.mubr.f32.gmra.mrb[0].mxu0 %v7438
      %v8158 = vpop.f32.mrb[0].mxu0
      %v8159 = vadd.f32 0.0, %v8158
      %v8160 = vpop.f32.mrb[0].mxu0
      %v8161 = vadd.f32 0.0, %v8160
      %8162 = vmatprep.mubr.f32.mxu0 0.0
      %8163 = vmatmul.mubr.f32.gmra.mrb[0].mxu0 %v7440
      %v8164 = vpop.f32.mrb[0].mxu0
      %v8165 = vadd.f32 0.0, %v8164
      %v8166 = vpop.f32.mrb[0].mxu0
      %v8167 = vadd.f32 0.0, %v8166
      %8168 = vmatprep.mubr.f32.mxu0 0.0
      %8169 = vmatmul.mubr.f32.gmra.mrb[0].mxu0 %v7442
      %v8170 = vpop.f32.mrb[0].mxu0
      %v8171 = vadd.f32 0.0, %v8170
      %v8172 = vpop.f32.mrb[0].mxu0
      %v8173 = vadd.f32 0.0, %v8172
      %8174 = vmatprep.mubr.f32.mxu0 0.0
      %8175 = vmatmul.mubr.f32.gmra.mrb[0].mxu0 %v7444
      %v8176 = vpop.f32.mrb[0].mxu0
      %v8177 = vadd.f32 0.0, %v8176
      %v8178 = vpop.f32.mrb[0].mxu0
      %v8179 = vadd.f32 0.0, %v8178
      %8180 = vmatprep.mubr.f32.mxu0 0.0
      %8181 = vmatmul.mubr.f32.gmra.mrb[0].mxu0 %v7446
      %v8182 = vpop.f32.mrb[0].mxu0
      %v8183 = vadd.f32 0.0, %v8182
      %v8184 = vpop.f32.mrb[0].mxu0
      %v8185 = vadd.f32 0.0, %v8184
      %8186 = vmatprep.mubr.f32.mxu0 0.0
      %8187 = vmatmul.mubr.f32.gmra.mrb[0].mxu0 %v7448
      %v8188 = vpop.f32.mrb[0].mxu0
      %v8189 = vadd.f32 0.0, %v8188
      %v8190 = vpop.f32.mrb[0].mxu0
      %v8191 = vadd.f32 0.0, %v8190
      %8192 = vmatprep.mubr.f32.mxu0 0.0
      %8193 = vmatmul.mubr.f32.gmra.mrb[0].mxu0 %v7450
      %v8194 = vpop.f32.mrb[0].mxu0
      %v8195 = vadd.f32 0.0, %v8194
      %v8196 = vpop.f32.mrb[0].mxu0
      %v8197 = vadd.f32 0.0, %v8196
      %8198 = vmatprep.mubr.f32.mxu0 0.0
      %8199 = vmatmul.mubr.f32.gmra.mrb[0].mxu0 %v7452
      %v8200 = vpop.f32.mrb[0].mxu0
      %v8201 = vadd.f32 0.0, %v8200
      %v8202 = vpop.f32.mrb[0].mxu0
      %v8203 = vadd.f32 0.0, %v8202
      %8204 = vmatprep.mubr.f32.mxu0 0.0
      %8205 = vmatmul.mubr.f32.gmra.mrb[0].mxu0 %v7454
      %v8206 = vpop.f32.mrb[0].mxu0
      %v8207 = vadd.f32 0.0, %v8206
      %v8208 = vpop.f32.mrb[0].mxu0
      %v8209 = vadd.f32 0.0, %v8208
      %8210 = vmatprep.mubr.f32.mxu0 0.0
      %8211 = vmatmul.mubr.f32.gmra.mrb[0].mxu0 %v7456
      %v8212 = vpop.f32.mrb[0].mxu0
      %v8213 = vadd.f32 0.0, %v8212
      %v8214 = vpop.f32.mrb[0].mxu0
      %v8215 = vadd.f32 0.0, %v8214
      %8216 = vmatprep.mubr.f32.mxu0 0.0
      %8217 = vmatmul.mubr.f32.gmra.mrb[0].mxu0 %v7458
      %v8218 = vpop.f32.mrb[0].mxu0
      %v8219 = vadd.f32 0.0, %v8218
      %v8220 = vpop.f32.mrb[0].mxu0
      %v8221 = vadd.f32 0.0, %v8220
      %8222 = vmatprep.mubr.f32.mxu0 0.0
      %8223 = vmatmul.mubr.f32.gmra.mrb[0].mxu0 %v7460
      %v8224 = vpop.f32.mrb[0].mxu0
      %v8225 = vadd.f32 0.0, %v8224
      %v8226 = vpop.f32.mrb[0].mxu0
      %v8227 = vadd.f32 0.0, %v8226
      %8228 = vmatprep.mubr.f32.mxu0 0.0
      %8229 = vmatmul.mubr.f32.gmra.mrb[0].mxu0 %v7462
      %v8230 = vpop.f32.mrb[0].mxu0
      %v8231 = vadd.f32 0.0, %v8230
      %v8232 = vpop.f32.mrb[0].mxu0
      %v8233 = vadd.f32 0.0, %v8232
      %8234 = vmatprep.mubr.f32.mxu0 0.0
      %8235 = vmatmul.mubr.f32.gmra.mrb[0].mxu0 %v7464
      %v8236 = vpop.f32.mrb[0].mxu0
      %v8237 = vadd.f32 0.0, %v8236
      %v8238 = vpop.f32.mrb[0].mxu0
      %v8239 = vadd.f32 0.0, %v8238
      %8240 = vmatprep.mubr.f32.mxu0 0.0
      %8241 = vmatmul.mubr.f32.gmra.mrb[0].mxu0 %v7466
      %v8242 = vpop.f32.mrb[0].mxu0
      %v8243 = vadd.f32 0.0, %v8242
      %v8244 = vpop.f32.mrb[0].mxu0
      %v8245 = vadd.f32 0.0, %v8244
      %8246 = vmatprep.mubr.f32.mxu0 0.0
      %8247 = vmatmul.mubr.f32.gmra.mrb[0].mxu0 %v7468
      %v8248 = vpop.f32.mrb[0].mxu0
      %v8249 = vadd.f32 0.0, %v8248
      %v8250 = vpop.f32.mrb[0].mxu0
      %v8251 = vadd.f32 0.0, %v8250
      %8252 = vmatprep.mubr.f32.mxu0 0.0
      %8253 = vmatmul.mubr.f32.gmra.mrb[0].mxu0 %v7470
      %v8254 = vpop.f32.mrb[0].mxu0
      %v8255 = vadd.f32 0.0, %v8254
      %v8256 = vpop.f32.mrb[0].mxu0
      %v8257 = vadd.f32 0.0, %v8256
      %8258 = vdwg.mxu0
      %v8259 = vadd.f32 %v8034, %v8141
      %v8260 = vadd.f32 %v8035, %v8143
      %v8261 = vadd.f32 %v8036, %v8147
      %v8262 = vadd.f32 %v8037, %v8149
      %v8263 = vadd.f32 %v8038, %v8153
      %v8264 = vadd.f32 %v8039, %v8155
      %v8265 = vadd.f32 %v8040, %v8159
      %v8266 = vadd.f32 %v8041, %v8161
      %v8267 = vadd.f32 %v8042, %v8165
      %v8268 = vadd.f32 %v8043, %v8167
      %v8269 = vadd.f32 %v8044, %v8171
      %v8270 = vadd.f32 %v8045, %v8173
      %v8271 = vadd.f32 %v8046, %v8177
      %v8272 = vadd.f32 %v8047, %v8179
      %v8273 = vadd.f32 %v8048, %v8183
      %v8274 = vadd.f32 %v8049, %v8185
      %v8275 = vadd.f32 %v8050, %v8189
      %v8276 = vadd.f32 %v8051, %v8191
      %v8277 = vadd.f32 %v8052, %v8195
      %v8278 = vadd.f32 %v8053, %v8197
      %v8279 = vadd.f32 %v8054, %v8201
      %v8280 = vadd.f32 %v8055, %v8203
      %v8281 = vadd.f32 %v8056, %v8207
      %v8282 = vadd.f32 %v8057, %v8209
      %v8283 = vadd.f32 %v8058, %v8213
      %v8284 = vadd.f32 %v8059, %v8215
      %v8285 = vadd.f32 %v8060, %v8219
      %v8286 = vadd.f32 %v8061, %v8221
      %v8287 = vadd.f32 %v8062, %v8225
      %v8288 = vadd.f32 %v8063, %v8227
      %v8289 = vadd.f32 %v8064, %v8231
      %v8290 = vadd.f32 %v8065, %v8233
      %v8291 = vadd.f32 %v8066, %v8237
      %v8292 = vadd.f32 %v8067, %v8239
      %v8293 = vadd.f32 %v8068, %v8243
      %v8294 = vadd.f32 %v8069, %v8245
      %v8295 = vadd.f32 %v8070, %v8249
      %v8296 = vadd.f32 %v8071, %v8251
      %v8297 = vadd.f32 %v8072, %v8255
      %v8298 = vadd.f32 %v8073, %v8257
      %8299 = vmatprep.subr.mxu0 %v564
      %8300 = vmatpush1.msra.mxu0 %v563
      %8301 = vmatprep.subr.mxu0 %v566
      %8302 = vmatpush1.msra.mxu0 %v565
      %8303 = vmatprep.subr.mxu0 %v568
      %8304 = vmatpush1.msra.mxu0 %v567
      %8305 = vmatprep.subr.mxu0 %v570
      %8306 = vmatpush1.msra.mxu0 %v569
      %8307 = vmatprep.subr.mxu0 %v572
      %8308 = vmatpush1.msra.mxu0 %v571
      %8309 = vmatprep.subr.mxu0 %v574
      %8310 = vmatpush1.msra.mxu0 %v573
      %8311 = vmatprep.subr.mxu0 %v576
      %8312 = vmatpush1.msra.mxu0 %v575
      %8313 = vmatprep.subr.mxu0 %v578
      %8314 = vmatpush1.msra.mxu0 %v577
      %8315 = vmatprep.subr.mxu0 %v580
      %8316 = vmatpush1.msra.mxu0 %v579
      %8317 = vmatprep.subr.mxu0 %v582
      %8318 = vmatpush1.msra.mxu0 %v581
      %8319 = vmatprep.subr.mxu0 %v584
      %8320 = vmatpush1.msra.mxu0 %v583
      %8321 = vmatprep.subr.mxu0 %v586
      %8322 = vmatpush1.msra.mxu0 %v585
      %8323 = vmatprep.subr.mxu0 %v588
      %8324 = vmatpush1.msra.mxu0 %v587
      %8325 = vmatprep.subr.mxu0 %v590
      %8326 = vmatpush1.msra.mxu0 %v589
      %8327 = vmatprep.subr.mxu0 %v592
      %8328 = vmatpush1.msra.mxu0 %v591
      %8329 = vmatprep.subr.mxu0 %v594
      %8330 = vmatpush1.msra.mxu0 %v593
      %8331 = vmatprep.subr.mxu0 0.0
      %8332 = vmatpush1.msra.mxu0 0.0
      %8333 = vmatprep.subr.mxu0 0.0
      %8334 = vmatpush1.msra.mxu0 0.0
      %8335 = vmatprep.subr.mxu0 0.0
      %8336 = vmatpush1.msra.mxu0 0.0
      %8337 = vmatprep.subr.mxu0 0.0
      %8338 = vmatpush1.msra.mxu0 0.0
      %8339 = vmatprep.subr.mxu0 0.0
      %8340 = vmatpush1.msra.mxu0 0.0
      %8341 = vmatprep.subr.mxu0 0.0
      %8342 = vmatpush1.msra.mxu0 0.0
      %8343 = vmatprep.subr.mxu0 0.0
      %8344 = vmatpush1.msra.mxu0 0.0
      %8345 = vmatprep.subr.mxu0 0.0
      %8346 = vmatpush1.msra.mxu0 0.0
      %8347 = vmatprep.subr.mxu0 0.0
      %8348 = vmatpush1.msra.mxu0 0.0
      %8349 = vmatprep.subr.mxu0 0.0
      %8350 = vmatpush1.msra.mxu0 0.0
      %8351 = vmatprep.subr.mxu0 0.0
      %8352 = vmatpush1.msra.mxu0 0.0
      %8353 = vmatprep.subr.mxu0 0.0
      %8354 = vmatpush1.msra.mxu0 0.0
      %8355 = vmatprep.subr.mxu0 0.0
      %8356 = vmatpush1.msra.mxu0 0.0
      %8357 = vmatprep.subr.mxu0 0.0
      %8358 = vmatpush1.msra.mxu0 0.0
      %8359 = vmatprep.subr.mxu0 0.0
      %8360 = vmatpush1.msra.mxu0 0.0
      %8361 = vmatprep.subr.mxu0 0.0
      %8362 = vmatpush1.msra.mxu0 0.0
      %8363 = vmatprep.mubr.f32.mxu0 0.0
      %8364 = vmatmul.mubr.f32.gmra.mrb[0].mxu0 %v4270
      %v8365 = vpop.f32.mrb[0].mxu0
      %v8366 = vadd.f32 0.0, %v8365
      %v8367 = vpop.f32.mrb[0].mxu0
      %v8368 = vadd.f32 0.0, %v8367
      %8369 = vmatprep.mubr.f32.mxu0 0.0
      %8370 = vmatmul.mubr.f32.gmra.mrb[0].mxu0 %v4272
      %v8371 = vpop.f32.mrb[0].mxu0
      %v8372 = vadd.f32 0.0, %v8371
      %v8373 = vpop.f32.mrb[0].mxu0
      %v8374 = vadd.f32 0.0, %v8373
      %8375 = vmatprep.mubr.f32.mxu0 0.0
      %8376 = vmatmul.mubr.f32.gmra.mrb[0].mxu0 %v4274
      %v8377 = vpop.f32.mrb[0].mxu0
      %v8378 = vadd.f32 0.0, %v8377
      %v8379 = vpop.f32.mrb[0].mxu0
      %v8380 = vadd.f32 0.0, %v8379
      %8381 = vmatprep.mubr.f32.mxu0 0.0
      %8382 = vmatmul.mubr.f32.gmra.mrb[0].mxu0 %v4276
      %v8383 = vpop.f32.mrb[0].mxu0
      %v8384 = vadd.f32 0.0, %v8383
      %v8385 = vpop.f32.mrb[0].mxu0
      %v8386 = vadd.f32 0.0, %v8385
      %8387 = vmatprep.mubr.f32.mxu0 0.0
      %8388 = vmatmul.mubr.f32.gmra.mrb[0].mxu0 %v4278
      %v8389 = vpop.f32.mrb[0].mxu0
      %v8390 = vadd.f32 0.0, %v8389
      %v8391 = vpop.f32.mrb[0].mxu0
      %v8392 = vadd.f32 0.0, %v8391
      %8393 = vmatprep.mubr.f32.mxu0 0.0
      %8394 = vmatmul.mubr.f32.gmra.mrb[0].mxu0 %v4280
      %v8395 = vpop.f32.mrb[0].mxu0
      %v8396 = vadd.f32 0.0, %v8395
      %v8397 = vpop.f32.mrb[0].mxu0
      %v8398 = vadd.f32 0.0, %v8397
      %8399 = vmatprep.mubr.f32.mxu0 0.0
      %8400 = vmatmul.mubr.f32.gmra.mrb[0].mxu0 %v4282
      %v8401 = vpop.f32.mrb[0].mxu0
      %v8402 = vadd.f32 0.0, %v8401
      %v8403 = vpop.f32.mrb[0].mxu0
      %v8404 = vadd.f32 0.0, %v8403
      %8405 = vmatprep.mubr.f32.mxu0 0.0
      %8406 = vmatmul.mubr.f32.gmra.mrb[0].mxu0 %v4284
      %v8407 = vpop.f32.mrb[0].mxu0
      %v8408 = vadd.f32 0.0, %v8407
      %v8409 = vpop.f32.mrb[0].mxu0
      %v8410 = vadd.f32 0.0, %v8409
      %8411 = vmatprep.mubr.f32.mxu0 0.0
      %8412 = vmatmul.mubr.f32.gmra.mrb[0].mxu0 %v4286
      %v8413 = vpop.f32.mrb[0].mxu0
      %v8414 = vadd.f32 0.0, %v8413
      %v8415 = vpop.f32.mrb[0].mxu0
      %v8416 = vadd.f32 0.0, %v8415
      %8417 = vmatprep.mubr.f32.mxu0 0.0
      %8418 = vmatmul.mubr.f32.gmra.mrb[0].mxu0 %v4288
      %v8419 = vpop.f32.mrb[0].mxu0
      %v8420 = vadd.f32 0.0, %v8419
      %v8421 = vpop.f32.mrb[0].mxu0
      %v8422 = vadd.f32 0.0, %v8421
      %8423 = vmatprep.mubr.f32.mxu0 0.0
      %8424 = vmatmul.mubr.f32.gmra.mrb[0].mxu0 %v4290
      %v8425 = vpop.f32.mrb[0].mxu0
      %v8426 = vadd.f32 0.0, %v8425
      %v8427 = vpop.f32.mrb[0].mxu0
      %v8428 = vadd.f32 0.0, %v8427
      %8429 = vmatprep.mubr.f32.mxu0 0.0
      %8430 = vmatmul.mubr.f32.gmra.mrb[0].mxu0 %v4292
      %v8431 = vpop.f32.mrb[0].mxu0
      %v8432 = vadd.f32 0.0, %v8431
      %v8433 = vpop.f32.mrb[0].mxu0
      %v8434 = vadd.f32 0.0, %v8433
      %8435 = vmatprep.mubr.f32.mxu0 0.0
      %8436 = vmatmul.mubr.f32.gmra.mrb[0].mxu0 %v4294
      %v8437 = vpop.f32.mrb[0].mxu0
      %v8438 = vadd.f32 0.0, %v8437
      %v8439 = vpop.f32.mrb[0].mxu0
      %v8440 = vadd.f32 0.0, %v8439
      %8441 = vmatprep.mubr.f32.mxu0 0.0
      %8442 = vmatmul.mubr.f32.gmra.mrb[0].mxu0 %v4296
      %v8443 = vpop.f32.mrb[0].mxu0
      %v8444 = vadd.f32 0.0, %v8443
      %v8445 = vpop.f32.mrb[0].mxu0
      %v8446 = vadd.f32 0.0, %v8445
      %8447 = vmatprep.mubr.f32.mxu0 0.0
      %8448 = vmatmul.mubr.f32.gmra.mrb[0].mxu0 %v4298
      %v8449 = vpop.f32.mrb[0].mxu0
      %v8450 = vadd.f32 0.0, %v8449
      %v8451 = vpop.f32.mrb[0].mxu0
      %v8452 = vadd.f32 0.0, %v8451
      %8453 = vmatprep.mubr.f32.mxu0 0.0
      %8454 = vmatmul.mubr.f32.gmra.mrb[0].mxu0 %v4300
      %v8455 = vpop.f32.mrb[0].mxu0
      %v8456 = vadd.f32 0.0, %v8455
      %v8457 = vpop.f32.mrb[0].mxu0
      %v8458 = vadd.f32 0.0, %v8457
      %8459 = vmatprep.mubr.f32.mxu0 0.0
      %8460 = vmatmul.mubr.f32.gmra.mrb[0].mxu0 %v4302
      %v8461 = vpop.f32.mrb[0].mxu0
      %v8462 = vadd.f32 0.0, %v8461
      %v8463 = vpop.f32.mrb[0].mxu0
      %v8464 = vadd.f32 0.0, %v8463
      %8465 = vmatprep.mubr.f32.mxu0 0.0
      %8466 = vmatmul.mubr.f32.gmra.mrb[0].mxu0 %v4304
      %v8467 = vpop.f32.mrb[0].mxu0
      %v8468 = vadd.f32 0.0, %v8467
      %v8469 = vpop.f32.mrb[0].mxu0
      %v8470 = vadd.f32 0.0, %v8469
      %8471 = vmatprep.mubr.f32.mxu0 0.0
      %8472 = vmatmul.mubr.f32.gmra.mrb[0].mxu0 %v4306
      %v8473 = vpop.f32.mrb[0].mxu0
      %v8474 = vadd.f32 0.0, %v8473
      %v8475 = vpop.f32.mrb[0].mxu0
      %v8476 = vadd.f32 0.0, %v8475
      %8477 = vmatprep.mubr.f32.mxu0 0.0
      %8478 = vmatmul.mubr.f32.gmra.mrb[0].mxu0 %v4308
      %v8479 = vpop.f32.mrb[0].mxu0
      %v8480 = vadd.f32 0.0, %v8479
      %v8481 = vpop.f32.mrb[0].mxu0
      %v8482 = vadd.f32 0.0, %v8481
      %8483 = vdwg.mxu0
      %v8484 = vadd.f32 %v8259, %v8366
      %v8485 = vadd.f32 %v8260, %v8368
      %v8486 = vadd.f32 %v8261, %v8372
      %v8487 = vadd.f32 %v8262, %v8374
      %v8488 = vadd.f32 %v8263, %v8378
      %v8489 = vadd.f32 %v8264, %v8380
      %v8490 = vadd.f32 %v8265, %v8384
      %v8491 = vadd.f32 %v8266, %v8386
      %v8492 = vadd.f32 %v8267, %v8390
      %v8493 = vadd.f32 %v8268, %v8392
      %v8494 = vadd.f32 %v8269, %v8396
      %v8495 = vadd.f32 %v8270, %v8398
      %v8496 = vadd.f32 %v8271, %v8402
      %v8497 = vadd.f32 %v8272, %v8404
      %v8498 = vadd.f32 %v8273, %v8408
      %v8499 = vadd.f32 %v8274, %v8410
      %v8500 = vadd.f32 %v8275, %v8414
      %v8501 = vadd.f32 %v8276, %v8416
      %v8502 = vadd.f32 %v8277, %v8420
      %v8503 = vadd.f32 %v8278, %v8422
      %v8504 = vadd.f32 %v8279, %v8426
      %v8505 = vadd.f32 %v8280, %v8428
      %v8506 = vadd.f32 %v8281, %v8432
      %v8507 = vadd.f32 %v8282, %v8434
      %v8508 = vadd.f32 %v8283, %v8438
      %v8509 = vadd.f32 %v8284, %v8440
      %v8510 = vadd.f32 %v8285, %v8444
      %v8511 = vadd.f32 %v8286, %v8446
      %v8512 = vadd.f32 %v8287, %v8450
      %v8513 = vadd.f32 %v8288, %v8452
      %v8514 = vadd.f32 %v8289, %v8456
      %v8515 = vadd.f32 %v8290, %v8458
      %v8516 = vadd.f32 %v8291, %v8462
      %v8517 = vadd.f32 %v8292, %v8464
      %v8518 = vadd.f32 %v8293, %v8468
      %v8519 = vadd.f32 %v8294, %v8470
      %v8520 = vadd.f32 %v8295, %v8474
      %v8521 = vadd.f32 %v8296, %v8476
      %v8522 = vadd.f32 %v8297, %v8480
      %v8523 = vadd.f32 %v8298, %v8482
      %v8524 = vmax.f32 %v8484, %v8485
      %v8525 = vmax.f32 %v8486, %v8487
      %v8526 = vmax.f32 %v8488, %v8489
      %v8527 = vmax.f32 %v8490, %v8491
      %v8528 = vmax.f32 %v8492, %v8493
      %v8529 = vmax.f32 %v8494, %v8495
      %v8530 = vmax.f32 %v8496, %v8497
      %v8531 = vmax.f32 %v8498, %v8499
      %v8532 = vmax.f32 %v8500, %v8501
      %v8533 = vmax.f32 %v8502, %v8503
      %v8534 = vmax.f32 %v8504, %v8505
      %v8535 = vmax.f32 %v8506, %v8507
      %v8536 = vmax.f32 %v8508, %v8509
      %v8537 = vmax.f32 %v8510, %v8511
      %v8538 = vmax.f32 %v8512, %v8513
      %v8539 = vmax.f32 %v8514, %v8515
      %v8540 = vmax.f32 %v8516, %v8517
      %v8541 = vmax.f32 %v8518, %v8519
      %v8542 = vmax.f32 %v8520, %v8521
      %v8543 = vmax.f32 %v8522, %v8523
      %8544 = vmatprep.subr.mxu0 %v465
      %8545 = vmatpush1.msra.mxu0 %v464
      %8546 = vmatprep.subr.mxu0 %v467
      %8547 = vmatpush1.msra.mxu0 %v466
      %8548 = vmatprep.subr.mxu0 %v469
      %8549 = vmatpush1.msra.mxu0 %v468
      %8550 = vmatprep.subr.mxu0 %v471
      %8551 = vmatpush1.msra.mxu0 %v470
      %8552 = vmatprep.subr.mxu0 %v473
      %8553 = vmatpush1.msra.mxu0 %v472
      %8554 = vmatprep.subr.mxu0 %v475
      %8555 = vmatpush1.msra.mxu0 %v474
      %8556 = vmatprep.subr.mxu0 %v477
      %8557 = vmatpush1.msra.mxu0 %v476
      %8558 = vmatprep.subr.mxu0 %v479
      %8559 = vmatpush1.msra.mxu0 %v478
      %8560 = vmatprep.subr.mxu0 %v481
      %8561 = vmatpush1.msra.mxu0 %v480
      %8562 = vmatprep.subr.mxu0 %v483
      %8563 = vmatpush1.msra.mxu0 %v482
      %8564 = vmatprep.subr.mxu0 %v485
      %8565 = vmatpush1.msra.mxu0 %v484
      %8566 = vmatprep.subr.mxu0 %v487
      %8567 = vmatpush1.msra.mxu0 %v486
      %8568 = vmatprep.subr.mxu0 %v489
      %8569 = vmatpush1.msra.mxu0 %v488
      %8570 = vmatprep.subr.mxu0 %v491
      %8571 = vmatpush1.msra.mxu0 %v490
      %8572 = vmatprep.subr.mxu0 %v493
      %8573 = vmatpush1.msra.mxu0 %v492
      %8574 = vmatprep.subr.mxu0 %v495
      %8575 = vmatpush1.msra.mxu0 %v494
      %8576 = vmatprep.subr.mxu0 0.0
      %8577 = vmatpush1.msra.mxu0 0.0
      %8578 = vmatprep.subr.mxu0 0.0
      %8579 = vmatpush1.msra.mxu0 0.0
      %8580 = vmatprep.subr.mxu0 0.0
      %8581 = vmatpush1.msra.mxu0 0.0
      %8582 = vmatprep.subr.mxu0 0.0
      %8583 = vmatpush1.msra.mxu0 0.0
      %8584 = vmatprep.subr.mxu0 0.0
      %8585 = vmatpush1.msra.mxu0 0.0
      %8586 = vmatprep.subr.mxu0 0.0
      %8587 = vmatpush1.msra.mxu0 0.0
      %8588 = vmatprep.subr.mxu0 0.0
      %8589 = vmatpush1.msra.mxu0 0.0
      %8590 = vmatprep.subr.mxu0 0.0
      %8591 = vmatpush1.msra.mxu0 0.0
      %8592 = vmatprep.subr.mxu0 0.0
      %8593 = vmatpush1.msra.mxu0 0.0
      %8594 = vmatprep.subr.mxu0 0.0
      %8595 = vmatpush1.msra.mxu0 0.0
      %8596 = vmatprep.subr.mxu0 0.0
      %8597 = vmatpush1.msra.mxu0 0.0
      %8598 = vmatprep.subr.mxu0 0.0
      %8599 = vmatpush1.msra.mxu0 0.0
      %8600 = vmatprep.subr.mxu0 0.0
      %8601 = vmatpush1.msra.mxu0 0.0
      %8602 = vmatprep.subr.mxu0 0.0
      %8603 = vmatpush1.msra.mxu0 0.0
      %8604 = vmatprep.subr.mxu0 0.0
      %8605 = vmatpush1.msra.mxu0 0.0
      %8606 = vmatprep.subr.mxu0 0.0
      %8607 = vmatpush1.msra.mxu0 0.0
      %8608 = vmatprep.mubr.f32.mxu0 0.0
      %8609 = vmatmul.mubr.f32.gmra.mrb[0].mxu0 %v4262
      %v8610 = vpop.f32.mrb[0].mxu0
      %v8611 = vadd.f32 0.0, %v8610
      %v8612 = vpop.f32.mrb[0].mxu0
      %v8613 = vadd.f32 0.0, %v8612
      %8614 = vmatprep.mubr.f32.mxu0 0.0
      %8615 = vmatmul.mubr.f32.gmra.mrb[0].mxu0 %v4264
      %v8616 = vpop.f32.mrb[0].mxu0
      %v8617 = vadd.f32 0.0, %v8616
      %v8618 = vpop.f32.mrb[0].mxu0
      %v8619 = vadd.f32 0.0, %v8618
      %8620 = vmatprep.mubr.f32.mxu0 0.0
      %8621 = vmatmul.mubr.f32.gmra.mrb[0].mxu0 %v4266
      %v8622 = vpop.f32.mrb[0].mxu0
      %v8623 = vadd.f32 0.0, %v8622
      %v8624 = vpop.f32.mrb[0].mxu0
      %v8625 = vadd.f32 0.0, %v8624
      %8626 = vmatprep.mubr.f32.mxu0 0.0
      %8627 = vmatmul.mubr.f32.gmra.mrb[0].mxu0 %v4268
      %v8628 = vpop.f32.mrb[0].mxu0
      %v8629 = vadd.f32 0.0, %v8628
      %v8630 = vpop.f32.mrb[0].mxu0
      %v8631 = vadd.f32 0.0, %v8630
      %8632 = vmatprep.mubr.f32.mxu0 0.0
      %8633 = vmatmul.mubr.f32.gmra.mrb[0].mxu0 %v4270
      %v8634 = vpop.f32.mrb[0].mxu0
      %v8635 = vadd.f32 0.0, %v8634
      %v8636 = vpop.f32.mrb[0].mxu0
      %v8637 = vadd.f32 0.0, %v8636
      %8638 = vmatprep.mubr.f32.mxu0 0.0
      %8639 = vmatmul.mubr.f32.gmra.mrb[0].mxu0 %v4272
      %v8640 = vpop.f32.mrb[0].mxu0
      %v8641 = vadd.f32 0.0, %v8640
      %v8642 = vpop.f32.mrb[0].mxu0
      %v8643 = vadd.f32 0.0, %v8642
      %8644 = vmatprep.mubr.f32.mxu0 0.0
      %8645 = vmatmul.mubr.f32.gmra.mrb[0].mxu0 %v4274
      %v8646 = vpop.f32.mrb[0].mxu0
      %v8647 = vadd.f32 0.0, %v8646
      %v8648 = vpop.f32.mrb[0].mxu0
      %v8649 = vadd.f32 0.0, %v8648
      %8650 = vmatprep.mubr.f32.mxu0 0.0
      %8651 = vmatmul.mubr.f32.gmra.mrb[0].mxu0 %v4276
      %v8652 = vpop.f32.mrb[0].mxu0
      %v8653 = vadd.f32 0.0, %v8652
      %v8654 = vpop.f32.mrb[0].mxu0
      %v8655 = vadd.f32 0.0, %v8654
      %8656 = vmatprep.mubr.f32.mxu0 0.0
      %8657 = vmatmul.mubr.f32.gmra.mrb[0].mxu0 %v4278
      %v8658 = vpop.f32.mrb[0].mxu0
      %v8659 = vadd.f32 0.0, %v8658
      %v8660 = vpop.f32.mrb[0].mxu0
      %v8661 = vadd.f32 0.0, %v8660
      %8662 = vmatprep.mubr.f32.mxu0 0.0
      %8663 = vmatmul.mubr.f32.gmra.mrb[0].mxu0 %v4280
      %v8664 = vpop.f32.mrb[0].mxu0
      %v8665 = vadd.f32 0.0, %v8664
      %v8666 = vpop.f32.mrb[0].mxu0
      %v8667 = vadd.f32 0.0, %v8666
      %8668 = vmatprep.mubr.f32.mxu0 0.0
      %8669 = vmatmul.mubr.f32.gmra.mrb[0].mxu0 %v4282
      %v8670 = vpop.f32.mrb[0].mxu0
      %v8671 = vadd.f32 0.0, %v8670
      %v8672 = vpop.f32.mrb[0].mxu0
      %v8673 = vadd.f32 0.0, %v8672
      %8674 = vmatprep.mubr.f32.mxu0 0.0
      %8675 = vmatmul.mubr.f32.gmra.mrb[0].mxu0 %v4284
      %v8676 = vpop.f32.mrb[0].mxu0
      %v8677 = vadd.f32 0.0, %v8676
      %v8678 = vpop.f32.mrb[0].mxu0
      %v8679 = vadd.f32 0.0, %v8678
      %8680 = vmatprep.mubr.f32.mxu0 0.0
      %8681 = vmatmul.mubr.f32.gmra.mrb[0].mxu0 %v4286
      %v8682 = vpop.f32.mrb[0].mxu0
      %v8683 = vadd.f32 0.0, %v8682
      %v8684 = vpop.f32.mrb[0].mxu0
      %v8685 = vadd.f32 0.0, %v8684
      %8686 = vmatprep.mubr.f32.mxu0 0.0
      %8687 = vmatmul.mubr.f32.gmra.mrb[0].mxu0 %v4288
      %v8688 = vpop.f32.mrb[0].mxu0
      %v8689 = vadd.f32 0.0, %v8688
      %v8690 = vpop.f32.mrb[0].mxu0
      %v8691 = vadd.f32 0.0, %v8690
      %8692 = vmatprep.mubr.f32.mxu0 0.0
      %8693 = vmatmul.mubr.f32.gmra.mrb[0].mxu0 %v4290
      %v8694 = vpop.f32.mrb[0].mxu0
      %v8695 = vadd.f32 0.0, %v8694
      %v8696 = vpop.f32.mrb[0].mxu0
      %v8697 = vadd.f32 0.0, %v8696
      %8698 = vmatprep.mubr.f32.mxu0 0.0
      %8699 = vmatmul.mubr.f32.gmra.mrb[0].mxu0 %v4292
      %v8700 = vpop.f32.mrb[0].mxu0
      %v8701 = vadd.f32 0.0, %v8700
      %v8702 = vpop.f32.mrb[0].mxu0
      %v8703 = vadd.f32 0.0, %v8702
      %8704 = vmatprep.mubr.f32.mxu0 0.0
      %8705 = vmatmul.mubr.f32.gmra.mrb[0].mxu0 %v4294
      %v8706 = vpop.f32.mrb[0].mxu0
      %v8707 = vadd.f32 0.0, %v8706
      %v8708 = vpop.f32.mrb[0].mxu0
      %v8709 = vadd.f32 0.0, %v8708
      %8710 = vmatprep.mubr.f32.mxu0 0.0
      %8711 = vmatmul.mubr.f32.gmra.mrb[0].mxu0 %v4296
      %v8712 = vpop.f32.mrb[0].mxu0
      %v8713 = vadd.f32 0.0, %v8712
      %v8714 = vpop.f32.mrb[0].mxu0
      %v8715 = vadd.f32 0.0, %v8714
      %8716 = vmatprep.mubr.f32.mxu0 0.0
      %8717 = vmatmul.mubr.f32.gmra.mrb[0].mxu0 %v4298
      %v8718 = vpop.f32.mrb[0].mxu0
      %v8719 = vadd.f32 0.0, %v8718
      %v8720 = vpop.f32.mrb[0].mxu0
      %v8721 = vadd.f32 0.0, %v8720
      %8722 = vmatprep.mubr.f32.mxu0 0.0
      %8723 = vmatmul.mubr.f32.gmra.mrb[0].mxu0 %v4300
      %v8724 = vpop.f32.mrb[0].mxu0
      %v8725 = vadd.f32 0.0, %v8724
      %v8726 = vpop.f32.mrb[0].mxu0
      %v8727 = vadd.f32 0.0, %v8726
      %8728 = vdwg.mxu0
      %8729 = vmatprep.subr.mxu0 %v432
      %8730 = vmatpush1.msra.mxu0 %v431
      %8731 = vmatprep.subr.mxu0 %v434
      %8732 = vmatpush1.msra.mxu0 %v433
      %8733 = vmatprep.subr.mxu0 %v436
      %8734 = vmatpush1.msra.mxu0 %v435
      %8735 = vmatprep.subr.mxu0 %v438
      %8736 = vmatpush1.msra.mxu0 %v437
      %8737 = vmatprep.subr.mxu0 %v440
      %8738 = vmatpush1.msra.mxu0 %v439
      %8739 = vmatprep.subr.mxu0 %v442
      %8740 = vmatpush1.msra.mxu0 %v441
      %8741 = vmatprep.subr.mxu0 %v444
      %8742 = vmatpush1.msra.mxu0 %v443
      %8743 = vmatprep.subr.mxu0 %v446
      %8744 = vmatpush1.msra.mxu0 %v445
      %8745 = vmatprep.subr.mxu0 %v448
      %8746 = vmatpush1.msra.mxu0 %v447
      %8747 = vmatprep.subr.mxu0 %v450
      %8748 = vmatpush1.msra.mxu0 %v449
      %8749 = vmatprep.subr.mxu0 %v452
      %8750 = vmatpush1.msra.mxu0 %v451
      %8751 = vmatprep.subr.mxu0 %v454
      %8752 = vmatpush1.msra.mxu0 %v453
      %8753 = vmatprep.subr.mxu0 %v456
      %8754 = vmatpush1.msra.mxu0 %v455
      %8755 = vmatprep.subr.mxu0 %v458
      %8756 = vmatpush1.msra.mxu0 %v457
      %8757 = vmatprep.subr.mxu0 %v460
      %8758 = vmatpush1.msra.mxu0 %v459
      %8759 = vmatprep.subr.mxu0 %v462
      %8760 = vmatpush1.msra.mxu0 %v461
      %8761 = vmatprep.subr.mxu0 0.0
      %8762 = vmatpush1.msra.mxu0 0.0
      %8763 = vmatprep.subr.mxu0 0.0
      %8764 = vmatpush1.msra.mxu0 0.0
      %8765 = vmatprep.subr.mxu0 0.0
      %8766 = vmatpush1.msra.mxu0 0.0
      %8767 = vmatprep.subr.mxu0 0.0
      %8768 = vmatpush1.msra.mxu0 0.0
      %8769 = vmatprep.subr.mxu0 0.0
      %8770 = vmatpush1.msra.mxu0 0.0
      %8771 = vmatprep.subr.mxu0 0.0
      %8772 = vmatpush1.msra.mxu0 0.0
      %8773 = vmatprep.subr.mxu0 0.0
      %8774 = vmatpush1.msra.mxu0 0.0
      %8775 = vmatprep.subr.mxu0 0.0
      %8776 = vmatpush1.msra.mxu0 0.0
      %8777 = vmatprep.subr.mxu0 0.0
      %8778 = vmatpush1.msra.mxu0 0.0
      %8779 = vmatprep.subr.mxu0 0.0
      %8780 = vmatpush1.msra.mxu0 0.0
      %8781 = vmatprep.subr.mxu0 0.0
      %8782 = vmatpush1.msra.mxu0 0.0
      %8783 = vmatprep.subr.mxu0 0.0
      %8784 = vmatpush1.msra.mxu0 0.0
      %8785 = vmatprep.subr.mxu0 0.0
      %8786 = vmatpush1.msra.mxu0 0.0
      %8787 = vmatprep.subr.mxu0 0.0
      %8788 = vmatpush1.msra.mxu0 0.0
      %8789 = vmatprep.subr.mxu0 0.0
      %8790 = vmatpush1.msra.mxu0 0.0
      %8791 = vmatprep.subr.mxu0 0.0
      %8792 = vmatpush1.msra.mxu0 0.0
      %8793 = vmatprep.mubr.f32.mxu0 0.0
      %8794 = vmatmul.mubr.f32.gmra.mrb[0].mxu0 %v7424
      %v8795 = vpop.f32.mrb[0].mxu0
      %v8796 = vadd.f32 %v8611, %v8795
      %v8797 = vpop.f32.mrb[0].mxu0
      %v8798 = vadd.f32 %v8613, %v8797
      %8799 = vmatprep.mubr.f32.mxu0 0.0
      %8800 = vmatmul.mubr.f32.gmra.mrb[0].mxu0 %v7426
      %v8801 = vpop.f32.mrb[0].mxu0
      %v8802 = vadd.f32 %v8617, %v8801
      %v8803 = vpop.f32.mrb[0].mxu0
      %v8804 = vadd.f32 %v8619, %v8803
      %8805 = vmatprep.mubr.f32.mxu0 0.0
      %8806 = vmatmul.mubr.f32.gmra.mrb[0].mxu0 %v7428
      %v8807 = vpop.f32.mrb[0].mxu0
      %v8808 = vadd.f32 %v8623, %v8807
      %v8809 = vpop.f32.mrb[0].mxu0
      %v8810 = vadd.f32 %v8625, %v8809
      %8811 = vmatprep.mubr.f32.mxu0 0.0
      %8812 = vmatmul.mubr.f32.gmra.mrb[0].mxu0 %v7430
      %v8813 = vpop.f32.mrb[0].mxu0
      %v8814 = vadd.f32 %v8629, %v8813
      %v8815 = vpop.f32.mrb[0].mxu0
      %v8816 = vadd.f32 %v8631, %v8815
      %8817 = vmatprep.mubr.f32.mxu0 0.0
      %8818 = vmatmul.mubr.f32.gmra.mrb[0].mxu0 %v7432
      %v8819 = vpop.f32.mrb[0].mxu0
      %v8820 = vadd.f32 %v8635, %v8819
      %v8821 = vpop.f32.mrb[0].mxu0
      %v8822 = vadd.f32 %v8637, %v8821
      %8823 = vmatprep.mubr.f32.mxu0 0.0
      %8824 = vmatmul.mubr.f32.gmra.mrb[0].mxu0 %v7434
      %v8825 = vpop.f32.mrb[0].mxu0
      %v8826 = vadd.f32 %v8641, %v8825
      %v8827 = vpop.f32.mrb[0].mxu0
      %v8828 = vadd.f32 %v8643, %v8827
      %8829 = vmatprep.mubr.f32.mxu0 0.0
      %8830 = vmatmul.mubr.f32.gmra.mrb[0].mxu0 %v7436
      %v8831 = vpop.f32.mrb[0].mxu0
      %v8832 = vadd.f32 %v8647, %v8831
      %v8833 = vpop.f32.mrb[0].mxu0
      %v8834 = vadd.f32 %v8649, %v8833
      %8835 = vmatprep.mubr.f32.mxu0 0.0
      %8836 = vmatmul.mubr.f32.gmra.mrb[0].mxu0 %v7438
      %v8837 = vpop.f32.mrb[0].mxu0
      %v8838 = vadd.f32 %v8653, %v8837
      %v8839 = vpop.f32.mrb[0].mxu0
      %v8840 = vadd.f32 %v8655, %v8839
      %8841 = vmatprep.mubr.f32.mxu0 0.0
      %8842 = vmatmul.mubr.f32.gmra.mrb[0].mxu0 %v7440
      %v8843 = vpop.f32.mrb[0].mxu0
      %v8844 = vadd.f32 %v8659, %v8843
      %v8845 = vpop.f32.mrb[0].mxu0
      %v8846 = vadd.f32 %v8661, %v8845
      %8847 = vmatprep.mubr.f32.mxu0 0.0
      %8848 = vmatmul.mubr.f32.gmra.mrb[0].mxu0 %v7442
      %v8849 = vpop.f32.mrb[0].mxu0
      %v8850 = vadd.f32 %v8665, %v8849
      %v8851 = vpop.f32.mrb[0].mxu0
      %v8852 = vadd.f32 %v8667, %v8851
      %8853 = vmatprep.mubr.f32.mxu0 0.0
      %8854 = vmatmul.mubr.f32.gmra.mrb[0].mxu0 %v7444
      %v8855 = vpop.f32.mrb[0].mxu0
      %v8856 = vadd.f32 %v8671, %v8855
      %v8857 = vpop.f32.mrb[0].mxu0
      %v8858 = vadd.f32 %v8673, %v8857
      %8859 = vmatprep.mubr.f32.mxu0 0.0
      %8860 = vmatmul.mubr.f32.gmra.mrb[0].mxu0 %v7446
      %v8861 = vpop.f32.mrb[0].mxu0
      %v8862 = vadd.f32 %v8677, %v8861
      %v8863 = vpop.f32.mrb[0].mxu0
      %v8864 = vadd.f32 %v8679, %v8863
      %8865 = vmatprep.mubr.f32.mxu0 0.0
      %8866 = vmatmul.mubr.f32.gmra.mrb[0].mxu0 %v7448
      %v8867 = vpop.f32.mrb[0].mxu0
      %v8868 = vadd.f32 %v8683, %v8867
      %v8869 = vpop.f32.mrb[0].mxu0
      %v8870 = vadd.f32 %v8685, %v8869
      %8871 = vmatprep.mubr.f32.mxu0 0.0
      %8872 = vmatmul.mubr.f32.gmra.mrb[0].mxu0 %v7450
      %v8873 = vpop.f32.mrb[0].mxu0
      %v8874 = vadd.f32 %v8689, %v8873
      %v8875 = vpop.f32.mrb[0].mxu0
      %v8876 = vadd.f32 %v8691, %v8875
      %8877 = vmatprep.mubr.f32.mxu0 0.0
      %8878 = vmatmul.mubr.f32.gmra.mrb[0].mxu0 %v7452
      %v8879 = vpop.f32.mrb[0].mxu0
      %v8880 = vadd.f32 %v8695, %v8879
      %v8881 = vpop.f32.mrb[0].mxu0
      %v8882 = vadd.f32 %v8697, %v8881
      %8883 = vmatprep.mubr.f32.mxu0 0.0
      %8884 = vmatmul.mubr.f32.gmra.mrb[0].mxu0 %v7454
      %v8885 = vpop.f32.mrb[0].mxu0
      %v8886 = vadd.f32 %v8701, %v8885
      %v8887 = vpop.f32.mrb[0].mxu0
      %v8888 = vadd.f32 %v8703, %v8887
      %8889 = vmatprep.mubr.f32.mxu0 0.0
      %8890 = vmatmul.mubr.f32.gmra.mrb[0].mxu0 %v7456
      %v8891 = vpop.f32.mrb[0].mxu0
      %v8892 = vadd.f32 %v8707, %v8891
      %v8893 = vpop.f32.mrb[0].mxu0
      %v8894 = vadd.f32 %v8709, %v8893
      %8895 = vmatprep.mubr.f32.mxu0 0.0
      %8896 = vmatmul.mubr.f32.gmra.mrb[0].mxu0 %v7458
      %v8897 = vpop.f32.mrb[0].mxu0
      %v8898 = vadd.f32 %v8713, %v8897
      %v8899 = vpop.f32.mrb[0].mxu0
      %v8900 = vadd.f32 %v8715, %v8899
      %8901 = vmatprep.mubr.f32.mxu0 0.0
      %8902 = vmatmul.mubr.f32.gmra.mrb[0].mxu0 %v7460
      %v8903 = vpop.f32.mrb[0].mxu0
      %v8904 = vadd.f32 %v8719, %v8903
      %v8905 = vpop.f32.mrb[0].mxu0
      %v8906 = vadd.f32 %v8721, %v8905
      %8907 = vmatprep.mubr.f32.mxu0 0.0
      %8908 = vmatmul.mubr.f32.gmra.mrb[0].mxu0 %v7462
      %v8909 = vpop.f32.mrb[0].mxu0
      %v8910 = vadd.f32 %v8725, %v8909
      %v8911 = vpop.f32.mrb[0].mxu0
      %v8912 = vadd.f32 %v8727, %v8911
      %8913 = vdwg.mxu0
      %8914 = vmatprep.subr.mxu0 %v498
      %8915 = vmatpush1.msra.mxu0 %v497
      %8916 = vmatprep.subr.mxu0 %v500
      %8917 = vmatpush1.msra.mxu0 %v499
      %8918 = vmatprep.subr.mxu0 %v502
      %8919 = vmatpush1.msra.mxu0 %v501
      %8920 = vmatprep.subr.mxu0 %v504
      %8921 = vmatpush1.msra.mxu0 %v503
      %8922 = vmatprep.subr.mxu0 %v506
      %8923 = vmatpush1.msra.mxu0 %v505
      %8924 = vmatprep.subr.mxu0 %v508
      %8925 = vmatpush1.msra.mxu0 %v507
      %8926 = vmatprep.subr.mxu0 %v510
      %8927 = vmatpush1.msra.mxu0 %v509
      %8928 = vmatprep.subr.mxu0 %v512
      %8929 = vmatpush1.msra.mxu0 %v511
      %8930 = vmatprep.subr.mxu0 %v514
      %8931 = vmatpush1.msra.mxu0 %v513
      %8932 = vmatprep.subr.mxu0 %v516
      %8933 = vmatpush1.msra.mxu0 %v515
      %8934 = vmatprep.subr.mxu0 %v518
      %8935 = vmatpush1.msra.mxu0 %v517
      %8936 = vmatprep.subr.mxu0 %v520
      %8937 = vmatpush1.msra.mxu0 %v519
      %8938 = vmatprep.subr.mxu0 %v522
      %8939 = vmatpush1.msra.mxu0 %v521
      %8940 = vmatprep.subr.mxu0 %v524
      %8941 = vmatpush1.msra.mxu0 %v523
      %8942 = vmatprep.subr.mxu0 %v526
      %8943 = vmatpush1.msra.mxu0 %v525
      %8944 = vmatprep.subr.mxu0 %v528
      %8945 = vmatpush1.msra.mxu0 %v527
      %8946 = vmatprep.subr.mxu0 0.0
      %8947 = vmatpush1.msra.mxu0 0.0
      %8948 = vmatprep.subr.mxu0 0.0
      %8949 = vmatpush1.msra.mxu0 0.0
      %8950 = vmatprep.subr.mxu0 0.0
      %8951 = vmatpush1.msra.mxu0 0.0
      %8952 = vmatprep.subr.mxu0 0.0
      %8953 = vmatpush1.msra.mxu0 0.0
      %8954 = vmatprep.subr.mxu0 0.0
      %8955 = vmatpush1.msra.mxu0 0.0
      %8956 = vmatprep.subr.mxu0 0.0
      %8957 = vmatpush1.msra.mxu0 0.0
      %8958 = vmatprep.subr.mxu0 0.0
      %8959 = vmatpush1.msra.mxu0 0.0
      %8960 = vmatprep.subr.mxu0 0.0
      %8961 = vmatpush1.msra.mxu0 0.0
      %8962 = vmatprep.subr.mxu0 0.0
      %8963 = vmatpush1.msra.mxu0 0.0
      %8964 = vmatprep.subr.mxu0 0.0
      %8965 = vmatpush1.msra.mxu0 0.0
      %8966 = vmatprep.subr.mxu0 0.0
      %8967 = vmatpush1.msra.mxu0 0.0
      %8968 = vmatprep.subr.mxu0 0.0
      %8969 = vmatpush1.msra.mxu0 0.0
      %8970 = vmatprep.subr.mxu0 0.0
      %8971 = vmatpush1.msra.mxu0 0.0
      %8972 = vmatprep.subr.mxu0 0.0
      %8973 = vmatpush1.msra.mxu0 0.0
      %8974 = vmatprep.subr.mxu0 0.0
      %8975 = vmatpush1.msra.mxu0 0.0
      %8976 = vmatprep.subr.mxu0 0.0
      %8977 = vmatpush1.msra.mxu0 0.0
      %8978 = vmatprep.mubr.f32.mxu0 0.0
      %8979 = vmatmul.mubr.f32.gmra.mrb[0].mxu0 %v7432
      %v8980 = vpop.f32.mrb[0].mxu0
      %v8981 = vadd.f32 0.0, %v8980
      %v8982 = vpop.f32.mrb[0].mxu0
      %v8983 = vadd.f32 0.0, %v8982
      %8984 = vmatprep.mubr.f32.mxu0 0.0
      %8985 = vmatmul.mubr.f32.gmra.mrb[0].mxu0 %v7434
      %v8986 = vpop.f32.mrb[0].mxu0
      %v8987 = vadd.f32 0.0, %v8986
      %v8988 = vpop.f32.mrb[0].mxu0
      %v8989 = vadd.f32 0.0, %v8988
      %8990 = vmatprep.mubr.f32.mxu0 0.0
      %8991 = vmatmul.mubr.f32.gmra.mrb[0].mxu0 %v7436
      %v8992 = vpop.f32.mrb[0].mxu0
      %v8993 = vadd.f32 0.0, %v8992
      %v8994 = vpop.f32.mrb[0].mxu0
      %v8995 = vadd.f32 0.0, %v8994
      %8996 = vmatprep.mubr.f32.mxu0 0.0
      %8997 = vmatmul.mubr.f32.gmra.mrb[0].mxu0 %v7438
      %v8998 = vpop.f32.mrb[0].mxu0
      %v8999 = vadd.f32 0.0, %v8998
      %v9000 = vpop.f32.mrb[0].mxu0
      %v9001 = vadd.f32 0.0, %v9000
      %9002 = vmatprep.mubr.f32.mxu0 0.0
      %9003 = vmatmul.mubr.f32.gmra.mrb[0].mxu0 %v7440
      %v9004 = vpop.f32.mrb[0].mxu0
      %v9005 = vadd.f32 0.0, %v9004
      %v9006 = vpop.f32.mrb[0].mxu0
      %v9007 = vadd.f32 0.0, %v9006
      %9008 = vmatprep.mubr.f32.mxu0 0.0
      %9009 = vmatmul.mubr.f32.gmra.mrb[0].mxu0 %v7442
      %v9010 = vpop.f32.mrb[0].mxu0
      %v9011 = vadd.f32 0.0, %v9010
      %v9012 = vpop.f32.mrb[0].mxu0
      %v9013 = vadd.f32 0.0, %v9012
      %9014 = vmatprep.mubr.f32.mxu0 0.0
      %9015 = vmatmul.mubr.f32.gmra.mrb[0].mxu0 %v7444
      %v9016 = vpop.f32.mrb[0].mxu0
      %v9017 = vadd.f32 0.0, %v9016
      %v9018 = vpop.f32.mrb[0].mxu0
      %v9019 = vadd.f32 0.0, %v9018
      %9020 = vmatprep.mubr.f32.mxu0 0.0
      %9021 = vmatmul.mubr.f32.gmra.mrb[0].mxu0 %v7446
      %v9022 = vpop.f32.mrb[0].mxu0
      %v9023 = vadd.f32 0.0, %v9022
      %v9024 = vpop.f32.mrb[0].mxu0
      %v9025 = vadd.f32 0.0, %v9024
      %9026 = vmatprep.mubr.f32.mxu0 0.0
      %9027 = vmatmul.mubr.f32.gmra.mrb[0].mxu0 %v7448
      %v9028 = vpop.f32.mrb[0].mxu0
      %v9029 = vadd.f32 0.0, %v9028
      %v9030 = vpop.f32.mrb[0].mxu0
      %v9031 = vadd.f32 0.0, %v9030
      %9032 = vmatprep.mubr.f32.mxu0 0.0
      %9033 = vmatmul.mubr.f32.gmra.mrb[0].mxu0 %v7450
      %v9034 = vpop.f32.mrb[0].mxu0
      %v9035 = vadd.f32 0.0, %v9034
      %v9036 = vpop.f32.mrb[0].mxu0
      %v9037 = vadd.f32 0.0, %v9036
      %9038 = vmatprep.mubr.f32.mxu0 0.0
      %9039 = vmatmul.mubr.f32.gmra.mrb[0].mxu0 %v7452
      %v9040 = vpop.f32.mrb[0].mxu0
      %v9041 = vadd.f32 0.0, %v9040
      %v9042 = vpop.f32.mrb[0].mxu0
      %v9043 = vadd.f32 0.0, %v9042
      %9044 = vmatprep.mubr.f32.mxu0 0.0
      %9045 = vmatmul.mubr.f32.gmra.mrb[0].mxu0 %v7454
      %v9046 = vpop.f32.mrb[0].mxu0
      %v9047 = vadd.f32 0.0, %v9046
      %v9048 = vpop.f32.mrb[0].mxu0
      %v9049 = vadd.f32 0.0, %v9048
      %9050 = vmatprep.mubr.f32.mxu0 0.0
      %9051 = vmatmul.mubr.f32.gmra.mrb[0].mxu0 %v7456
      %v9052 = vpop.f32.mrb[0].mxu0
      %v9053 = vadd.f32 0.0, %v9052
      %v9054 = vpop.f32.mrb[0].mxu0
      %v9055 = vadd.f32 0.0, %v9054
      %9056 = vmatprep.mubr.f32.mxu0 0.0
      %9057 = vmatmul.mubr.f32.gmra.mrb[0].mxu0 %v7458
      %v9058 = vpop.f32.mrb[0].mxu0
      %v9059 = vadd.f32 0.0, %v9058
      %v9060 = vpop.f32.mrb[0].mxu0
      %v9061 = vadd.f32 0.0, %v9060
      %9062 = vmatprep.mubr.f32.mxu0 0.0
      %9063 = vmatmul.mubr.f32.gmra.mrb[0].mxu0 %v7460
      %v9064 = vpop.f32.mrb[0].mxu0
      %v9065 = vadd.f32 0.0, %v9064
      %v9066 = vpop.f32.mrb[0].mxu0
      %v9067 = vadd.f32 0.0, %v9066
      %9068 = vmatprep.mubr.f32.mxu0 0.0
      %9069 = vmatmul.mubr.f32.gmra.mrb[0].mxu0 %v7462
      %v9070 = vpop.f32.mrb[0].mxu0
      %v9071 = vadd.f32 0.0, %v9070
      %v9072 = vpop.f32.mrb[0].mxu0
      %v9073 = vadd.f32 0.0, %v9072
      %9074 = vmatprep.mubr.f32.mxu0 0.0
      %9075 = vmatmul.mubr.f32.gmra.mrb[0].mxu0 %v7464
      %v9076 = vpop.f32.mrb[0].mxu0
      %v9077 = vadd.f32 0.0, %v9076
      %v9078 = vpop.f32.mrb[0].mxu0
      %v9079 = vadd.f32 0.0, %v9078
      %9080 = vmatprep.mubr.f32.mxu0 0.0
      %9081 = vmatmul.mubr.f32.gmra.mrb[0].mxu0 %v7466
      %v9082 = vpop.f32.mrb[0].mxu0
      %v9083 = vadd.f32 0.0, %v9082
      %v9084 = vpop.f32.mrb[0].mxu0
      %v9085 = vadd.f32 0.0, %v9084
      %9086 = vmatprep.mubr.f32.mxu0 0.0
      %9087 = vmatmul.mubr.f32.gmra.mrb[0].mxu0 %v7468
      %v9088 = vpop.f32.mrb[0].mxu0
      %v9089 = vadd.f32 0.0, %v9088
      %v9090 = vpop.f32.mrb[0].mxu0
      %v9091 = vadd.f32 0.0, %v9090
      %9092 = vmatprep.mubr.f32.mxu0 0.0
      %9093 = vmatmul.mubr.f32.gmra.mrb[0].mxu0 %v7470
      %v9094 = vpop.f32.mrb[0].mxu0
      %v9095 = vadd.f32 0.0, %v9094
      %v9096 = vpop.f32.mrb[0].mxu0
      %v9097 = vadd.f32 0.0, %v9096
      %9098 = vdwg.mxu0
      %v9099 = vadd.f32 %v8796, %v8981
      %v9100 = vadd.f32 %v8798, %v8983
      %v9101 = vadd.f32 %v8802, %v8987
      %v9102 = vadd.f32 %v8804, %v8989
      %v9103 = vadd.f32 %v8808, %v8993
      %v9104 = vadd.f32 %v8810, %v8995
      %v9105 = vadd.f32 %v8814, %v8999
      %v9106 = vadd.f32 %v8816, %v9001
      %v9107 = vadd.f32 %v8820, %v9005
      %v9108 = vadd.f32 %v8822, %v9007
      %v9109 = vadd.f32 %v8826, %v9011
      %v9110 = vadd.f32 %v8828, %v9013
      %v9111 = vadd.f32 %v8832, %v9017
      %v9112 = vadd.f32 %v8834, %v9019
      %v9113 = vadd.f32 %v8838, %v9023
      %v9114 = vadd.f32 %v8840, %v9025
      %v9115 = vadd.f32 %v8844, %v9029
      %v9116 = vadd.f32 %v8846, %v9031
      %v9117 = vadd.f32 %v8850, %v9035
      %v9118 = vadd.f32 %v8852, %v9037
      %v9119 = vadd.f32 %v8856, %v9041
      %v9120 = vadd.f32 %v8858, %v9043
      %v9121 = vadd.f32 %v8862, %v9047
      %v9122 = vadd.f32 %v8864, %v9049
      %v9123 = vadd.f32 %v8868, %v9053
      %v9124 = vadd.f32 %v8870, %v9055
      %v9125 = vadd.f32 %v8874, %v9059
      %v9126 = vadd.f32 %v8876, %v9061
      %v9127 = vadd.f32 %v8880, %v9065
      %v9128 = vadd.f32 %v8882, %v9067
      %v9129 = vadd.f32 %v8886, %v9071
      %v9130 = vadd.f32 %v8888, %v9073
      %v9131 = vadd.f32 %v8892, %v9077
      %v9132 = vadd.f32 %v8894, %v9079
      %v9133 = vadd.f32 %v8898, %v9083
      %v9134 = vadd.f32 %v8900, %v9085
      %v9135 = vadd.f32 %v8904, %v9089
      %v9136 = vadd.f32 %v8906, %v9091
      %v9137 = vadd.f32 %v8910, %v9095
      %v9138 = vadd.f32 %v8912, %v9097
      %9139 = vmatprep.subr.mxu0 %v531
      %9140 = vmatpush1.msra.mxu0 %v530
      %9141 = vmatprep.subr.mxu0 %v533
      %9142 = vmatpush1.msra.mxu0 %v532
      %9143 = vmatprep.subr.mxu0 %v535
      %9144 = vmatpush1.msra.mxu0 %v534
      %9145 = vmatprep.subr.mxu0 %v537
      %9146 = vmatpush1.msra.mxu0 %v536
      %9147 = vmatprep.subr.mxu0 %v539
      %9148 = vmatpush1.msra.mxu0 %v538
      %9149 = vmatprep.subr.mxu0 %v541
      %9150 = vmatpush1.msra.mxu0 %v540
      %9151 = vmatprep.subr.mxu0 %v543
      %9152 = vmatpush1.msra.mxu0 %v542
      %9153 = vmatprep.subr.mxu0 %v545
      %9154 = vmatpush1.msra.mxu0 %v544
      %9155 = vmatprep.subr.mxu0 %v547
      %9156 = vmatpush1.msra.mxu0 %v546
      %9157 = vmatprep.subr.mxu0 %v549
      %9158 = vmatpush1.msra.mxu0 %v548
      %9159 = vmatprep.subr.mxu0 %v551
      %9160 = vmatpush1.msra.mxu0 %v550
      %9161 = vmatprep.subr.mxu0 %v553
      %9162 = vmatpush1.msra.mxu0 %v552
      %9163 = vmatprep.subr.mxu0 %v555
      %9164 = vmatpush1.msra.mxu0 %v554
      %9165 = vmatprep.subr.mxu0 %v557
      %9166 = vmatpush1.msra.mxu0 %v556
      %9167 = vmatprep.subr.mxu0 %v559
      %9168 = vmatpush1.msra.mxu0 %v558
      %9169 = vmatprep.subr.mxu0 %v561
      %9170 = vmatpush1.msra.mxu0 %v560
      %9171 = vmatprep.subr.mxu0 0.0
      %9172 = vmatpush1.msra.mxu0 0.0
      %9173 = vmatprep.subr.mxu0 0.0
      %9174 = vmatpush1.msra.mxu0 0.0
      %9175 = vmatprep.subr.mxu0 0.0
      %9176 = vmatpush1.msra.mxu0 0.0
      %9177 = vmatprep.subr.mxu0 0.0
      %9178 = vmatpush1.msra.mxu0 0.0
      %9179 = vmatprep.subr.mxu0 0.0
      %9180 = vmatpush1.msra.mxu0 0.0
      %9181 = vmatprep.subr.mxu0 0.0
      %9182 = vmatpush1.msra.mxu0 0.0
      %9183 = vmatprep.subr.mxu0 0.0
      %9184 = vmatpush1.msra.mxu0 0.0
      %9185 = vmatprep.subr.mxu0 0.0
      %9186 = vmatpush1.msra.mxu0 0.0
      %9187 = vmatprep.subr.mxu0 0.0
      %9188 = vmatpush1.msra.mxu0 0.0
      %9189 = vmatprep.subr.mxu0 0.0
      %9190 = vmatpush1.msra.mxu0 0.0
      %9191 = vmatprep.subr.mxu0 0.0
      %9192 = vmatpush1.msra.mxu0 0.0
      %9193 = vmatprep.subr.mxu0 0.0
      %9194 = vmatpush1.msra.mxu0 0.0
      %9195 = vmatprep.subr.mxu0 0.0
      %9196 = vmatpush1.msra.mxu0 0.0
      %9197 = vmatprep.subr.mxu0 0.0
      %9198 = vmatpush1.msra.mxu0 0.0
      %9199 = vmatprep.subr.mxu0 0.0
      %9200 = vmatpush1.msra.mxu0 0.0
      %9201 = vmatprep.subr.mxu0 0.0
      %9202 = vmatpush1.msra.mxu0 0.0
      %9203 = vmatprep.mubr.f32.mxu0 0.0
      %9204 = vmatmul.mubr.f32.gmra.mrb[0].mxu0 %v4270
      %v9205 = vpop.f32.mrb[0].mxu0
      %v9206 = vadd.f32 0.0, %v9205
      %v9207 = vpop.f32.mrb[0].mxu0
      %v9208 = vadd.f32 0.0, %v9207
      %9209 = vmatprep.mubr.f32.mxu0 0.0
      %9210 = vmatmul.mubr.f32.gmra.mrb[0].mxu0 %v4272
      %v9211 = vpop.f32.mrb[0].mxu0
      %v9212 = vadd.f32 0.0, %v9211
      %v9213 = vpop.f32.mrb[0].mxu0
      %v9214 = vadd.f32 0.0, %v9213
      %9215 = vmatprep.mubr.f32.mxu0 0.0
      %9216 = vmatmul.mubr.f32.gmra.mrb[0].mxu0 %v4274
      %v9217 = vpop.f32.mrb[0].mxu0
      %v9218 = vadd.f32 0.0, %v9217
      %v9219 = vpop.f32.mrb[0].mxu0
      %v9220 = vadd.f32 0.0, %v9219
      %9221 = vmatprep.mubr.f32.mxu0 0.0
      %9222 = vmatmul.mubr.f32.gmra.mrb[0].mxu0 %v4276
      %v9223 = vpop.f32.mrb[0].mxu0
      %v9224 = vadd.f32 0.0, %v9223
      %v9225 = vpop.f32.mrb[0].mxu0
      %v9226 = vadd.f32 0.0, %v9225
      %9227 = vmatprep.mubr.f32.mxu0 0.0
      %9228 = vmatmul.mubr.f32.gmra.mrb[0].mxu0 %v4278
      %v9229 = vpop.f32.mrb[0].mxu0
      %v9230 = vadd.f32 0.0, %v9229
      %v9231 = vpop.f32.mrb[0].mxu0
      %v9232 = vadd.f32 0.0, %v9231
      %9233 = vmatprep.mubr.f32.mxu0 0.0
      %9234 = vmatmul.mubr.f32.gmra.mrb[0].mxu0 %v4280
      %v9235 = vpop.f32.mrb[0].mxu0
      %v9236 = vadd.f32 0.0, %v9235
      %v9237 = vpop.f32.mrb[0].mxu0
      %v9238 = vadd.f32 0.0, %v9237
      %9239 = vmatprep.mubr.f32.mxu0 0.0
      %9240 = vmatmul.mubr.f32.gmra.mrb[0].mxu0 %v4282
      %v9241 = vpop.f32.mrb[0].mxu0
      %v9242 = vadd.f32 0.0, %v9241
      %v9243 = vpop.f32.mrb[0].mxu0
      %v9244 = vadd.f32 0.0, %v9243
      %9245 = vmatprep.mubr.f32.mxu0 0.0
      %9246 = vmatmul.mubr.f32.gmra.mrb[0].mxu0 %v4284
      %v9247 = vpop.f32.mrb[0].mxu0
      %v9248 = vadd.f32 0.0, %v9247
      %v9249 = vpop.f32.mrb[0].mxu0
      %v9250 = vadd.f32 0.0, %v9249
      %9251 = vmatprep.mubr.f32.mxu0 0.0
      %9252 = vmatmul.mubr.f32.gmra.mrb[0].mxu0 %v4286
      %v9253 = vpop.f32.mrb[0].mxu0
      %v9254 = vadd.f32 0.0, %v9253
      %v9255 = vpop.f32.mrb[0].mxu0
      %v9256 = vadd.f32 0.0, %v9255
      %9257 = vmatprep.mubr.f32.mxu0 0.0
      %9258 = vmatmul.mubr.f32.gmra.mrb[0].mxu0 %v4288
      %v9259 = vpop.f32.mrb[0].mxu0
      %v9260 = vadd.f32 0.0, %v9259
      %v9261 = vpop.f32.mrb[0].mxu0
      %v9262 = vadd.f32 0.0, %v9261
      %9263 = vmatprep.mubr.f32.mxu0 0.0
      %9264 = vmatmul.mubr.f32.gmra.mrb[0].mxu0 %v4290
      %v9265 = vpop.f32.mrb[0].mxu0
      %v9266 = vadd.f32 0.0, %v9265
      %v9267 = vpop.f32.mrb[0].mxu0
      %v9268 = vadd.f32 0.0, %v9267
      %9269 = vmatprep.mubr.f32.mxu0 0.0
      %9270 = vmatmul.mubr.f32.gmra.mrb[0].mxu0 %v4292
      %v9271 = vpop.f32.mrb[0].mxu0
      %v9272 = vadd.f32 0.0, %v9271
      %v9273 = vpop.f32.mrb[0].mxu0
      %v9274 = vadd.f32 0.0, %v9273
      %9275 = vmatprep.mubr.f32.mxu0 0.0
      %9276 = vmatmul.mubr.f32.gmra.mrb[0].mxu0 %v4294
      %v9277 = vpop.f32.mrb[0].mxu0
      %v9278 = vadd.f32 0.0, %v9277
      %v9279 = vpop.f32.mrb[0].mxu0
      %v9280 = vadd.f32 0.0, %v9279
      %9281 = vmatprep.mubr.f32.mxu0 0.0
      %9282 = vmatmul.mubr.f32.gmra.mrb[0].mxu0 %v4296
      %v9283 = vpop.f32.mrb[0].mxu0
      %v9284 = vadd.f32 0.0, %v9283
      %v9285 = vpop.f32.mrb[0].mxu0
      %v9286 = vadd.f32 0.0, %v9285
      %9287 = vmatprep.mubr.f32.mxu0 0.0
      %9288 = vmatmul.mubr.f32.gmra.mrb[0].mxu0 %v4298
      %v9289 = vpop.f32.mrb[0].mxu0
      %v9290 = vadd.f32 0.0, %v9289
      %v9291 = vpop.f32.mrb[0].mxu0
      %v9292 = vadd.f32 0.0, %v9291
      %9293 = vmatprep.mubr.f32.mxu0 0.0
      %9294 = vmatmul.mubr.f32.gmra.mrb[0].mxu0 %v4300
      %v9295 = vpop.f32.mrb[0].mxu0
      %v9296 = vadd.f32 0.0, %v9295
      %v9297 = vpop.f32.mrb[0].mxu0
      %v9298 = vadd.f32 0.0, %v9297
      %9299 = vmatprep.mubr.f32.mxu0 0.0
      %9300 = vmatmul.mubr.f32.gmra.mrb[0].mxu0 %v4302
      %v9301 = vpop.f32.mrb[0].mxu0
      %v9302 = vadd.f32 0.0, %v9301
      %v9303 = vpop.f32.mrb[0].mxu0
      %v9304 = vadd.f32 0.0, %v9303
      %9305 = vmatprep.mubr.f32.mxu0 0.0
      %9306 = vmatmul.mubr.f32.gmra.mrb[0].mxu0 %v4304
      %v9307 = vpop.f32.mrb[0].mxu0
      %v9308 = vadd.f32 0.0, %v9307
      %v9309 = vpop.f32.mrb[0].mxu0
      %v9310 = vadd.f32 0.0, %v9309
      %9311 = vmatprep.mubr.f32.mxu0 0.0
      %9312 = vmatmul.mubr.f32.gmra.mrb[0].mxu0 %v4306
      %v9313 = vpop.f32.mrb[0].mxu0
      %v9314 = vadd.f32 0.0, %v9313
      %v9315 = vpop.f32.mrb[0].mxu0
      %v9316 = vadd.f32 0.0, %v9315
      %9317 = vmatprep.mubr.f32.mxu0 0.0
      %9318 = vmatmul.mubr.f32.gmra.mrb[0].mxu0 %v4308
      %v9319 = vpop.f32.mrb[0].mxu0
      %v9320 = vadd.f32 0.0, %v9319
      %v9321 = vpop.f32.mrb[0].mxu0
      %v9322 = vadd.f32 0.0, %v9321
      %9323 = vdwg.mxu0
      %v9324 = vadd.f32 %v9099, %v9206
      %v9325 = vadd.f32 %v9100, %v9208
      %v9326 = vadd.f32 %v9101, %v9212
      %v9327 = vadd.f32 %v9102, %v9214
      %v9328 = vadd.f32 %v9103, %v9218
      %v9329 = vadd.f32 %v9104, %v9220
      %v9330 = vadd.f32 %v9105, %v9224
      %v9331 = vadd.f32 %v9106, %v9226
      %v9332 = vadd.f32 %v9107, %v9230
      %v9333 = vadd.f32 %v9108, %v9232
      %v9334 = vadd.f32 %v9109, %v9236
      %v9335 = vadd.f32 %v9110, %v9238
      %v9336 = vadd.f32 %v9111, %v9242
      %v9337 = vadd.f32 %v9112, %v9244
      %v9338 = vadd.f32 %v9113, %v9248
      %v9339 = vadd.f32 %v9114, %v9250
      %v9340 = vadd.f32 %v9115, %v9254
      %v9341 = vadd.f32 %v9116, %v9256
      %v9342 = vadd.f32 %v9117, %v9260
      %v9343 = vadd.f32 %v9118, %v9262
      %v9344 = vadd.f32 %v9119, %v9266
      %v9345 = vadd.f32 %v9120, %v9268
      %v9346 = vadd.f32 %v9121, %v9272
      %v9347 = vadd.f32 %v9122, %v9274
      %v9348 = vadd.f32 %v9123, %v9278
      %v9349 = vadd.f32 %v9124, %v9280
      %v9350 = vadd.f32 %v9125, %v9284
      %v9351 = vadd.f32 %v9126, %v9286
      %v9352 = vadd.f32 %v9127, %v9290
      %v9353 = vadd.f32 %v9128, %v9292
      %v9354 = vadd.f32 %v9129, %v9296
      %v9355 = vadd.f32 %v9130, %v9298
      %v9356 = vadd.f32 %v9131, %v9302
      %v9357 = vadd.f32 %v9132, %v9304
      %v9358 = vadd.f32 %v9133, %v9308
      %v9359 = vadd.f32 %v9134, %v9310
      %v9360 = vadd.f32 %v9135, %v9314
      %v9361 = vadd.f32 %v9136, %v9316
      %v9362 = vadd.f32 %v9137, %v9320
      %v9363 = vadd.f32 %v9138, %v9322
      %9364 = vmatprep.subr.mxu0 %v564
      %9365 = vmatpush1.msra.mxu0 %v563
      %9366 = vmatprep.subr.mxu0 %v566
      %9367 = vmatpush1.msra.mxu0 %v565
      %9368 = vmatprep.subr.mxu0 %v568
      %9369 = vmatpush1.msra.mxu0 %v567
      %9370 = vmatprep.subr.mxu0 %v570
      %9371 = vmatpush1.msra.mxu0 %v569
      %9372 = vmatprep.subr.mxu0 %v572
      %9373 = vmatpush1.msra.mxu0 %v571
      %9374 = vmatprep.subr.mxu0 %v574
      %9375 = vmatpush1.msra.mxu0 %v573
      %9376 = vmatprep.subr.mxu0 %v576
      %9377 = vmatpush1.msra.mxu0 %v575
      %9378 = vmatprep.subr.mxu0 %v578
      %9379 = vmatpush1.msra.mxu0 %v577
      %9380 = vmatprep.subr.mxu0 %v580
      %9381 = vmatpush1.msra.mxu0 %v579
      %9382 = vmatprep.subr.mxu0 %v582
      %9383 = vmatpush1.msra.mxu0 %v581
      %9384 = vmatprep.subr.mxu0 %v584
      %9385 = vmatpush1.msra.mxu0 %v583
      %9386 = vmatprep.subr.mxu0 %v586
      %9387 = vmatpush1.msra.mxu0 %v585
      %9388 = vmatprep.subr.mxu0 %v588
      %9389 = vmatpush1.msra.mxu0 %v587
      %9390 = vmatprep.subr.mxu0 %v590
      %9391 = vmatpush1.msra.mxu0 %v589
      %9392 = vmatprep.subr.mxu0 %v592
      %9393 = vmatpush1.msra.mxu0 %v591
      %9394 = vmatprep.subr.mxu0 %v594
      %9395 = vmatpush1.msra.mxu0 %v593
      %9396 = vmatprep.subr.mxu0 0.0
      %9397 = vmatpush1.msra.mxu0 0.0
      %9398 = vmatprep.subr.mxu0 0.0
      %9399 = vmatpush1.msra.mxu0 0.0
      %9400 = vmatprep.subr.mxu0 0.0
      %9401 = vmatpush1.msra.mxu0 0.0
      %9402 = vmatprep.subr.mxu0 0.0
      %9403 = vmatpush1.msra.mxu0 0.0
      %9404 = vmatprep.subr.mxu0 0.0
      %9405 = vmatpush1.msra.mxu0 0.0
      %9406 = vmatprep.subr.mxu0 0.0
      %9407 = vmatpush1.msra.mxu0 0.0
      %9408 = vmatprep.subr.mxu0 0.0
      %9409 = vmatpush1.msra.mxu0 0.0
      %9410 = vmatprep.subr.mxu0 0.0
      %9411 = vmatpush1.msra.mxu0 0.0
      %9412 = vmatprep.subr.mxu0 0.0
      %9413 = vmatpush1.msra.mxu0 0.0
      %9414 = vmatprep.subr.mxu0 0.0
      %9415 = vmatpush1.msra.mxu0 0.0
      %9416 = vmatprep.subr.mxu0 0.0
      %9417 = vmatpush1.msra.mxu0 0.0
      %9418 = vmatprep.subr.mxu0 0.0
      %9419 = vmatpush1.msra.mxu0 0.0
      %9420 = vmatprep.subr.mxu0 0.0
      %9421 = vmatpush1.msra.mxu0 0.0
      %9422 = vmatprep.subr.mxu0 0.0
      %9423 = vmatpush1.msra.mxu0 0.0
      %9424 = vmatprep.subr.mxu0 0.0
      %9425 = vmatpush1.msra.mxu0 0.0
      %9426 = vmatprep.subr.mxu0 0.0
      %9427 = vmatpush1.msra.mxu0 0.0
      %9428 = vmatprep.mubr.f32.mxu0 0.0
      %9429 = vmatmul.mubr.f32.gmra.mrb[0].mxu0 %v7440
      %v9430 = vpop.f32.mrb[0].mxu0
      %v9431 = vadd.f32 0.0, %v9430
      %v9432 = vpop.f32.mrb[0].mxu0
      %v9433 = vadd.f32 0.0, %v9432
      %9434 = vmatprep.mubr.f32.mxu0 0.0
      %9435 = vmatmul.mubr.f32.gmra.mrb[0].mxu0 %v7442
      %v9436 = vpop.f32.mrb[0].mxu0
      %v9437 = vadd.f32 0.0, %v9436
      %v9438 = vpop.f32.mrb[0].mxu0
      %v9439 = vadd.f32 0.0, %v9438
      %9440 = vmatprep.mubr.f32.mxu0 0.0
      %9441 = vmatmul.mubr.f32.gmra.mrb[0].mxu0 %v7444
      %v9442 = vpop.f32.mrb[0].mxu0
      %v9443 = vadd.f32 0.0, %v9442
      %v9444 = vpop.f32.mrb[0].mxu0
      %v9445 = vadd.f32 0.0, %v9444
      %9446 = vmatprep.mubr.f32.mxu0 0.0
      %9447 = vmatmul.mubr.f32.gmra.mrb[0].mxu0 %v7446
      %v9448 = vpop.f32.mrb[0].mxu0
      %v9449 = vadd.f32 0.0, %v9448
      %v9450 = vpop.f32.mrb[0].mxu0
      %v9451 = vadd.f32 0.0, %v9450
      %9452 = vmatprep.mubr.f32.mxu0 0.0
      %9453 = vmatmul.mubr.f32.gmra.mrb[0].mxu0 %v7448
      %v9454 = vpop.f32.mrb[0].mxu0
      %v9455 = vadd.f32 0.0, %v9454
      %v9456 = vpop.f32.mrb[0].mxu0
      %v9457 = vadd.f32 0.0, %v9456
      %9458 = vmatprep.mubr.f32.mxu0 0.0
      %9459 = vmatmul.mubr.f32.gmra.mrb[0].mxu0 %v7450
      %v9460 = vpop.f32.mrb[0].mxu0
      %v9461 = vadd.f32 0.0, %v9460
      %v9462 = vpop.f32.mrb[0].mxu0
      %v9463 = vadd.f32 0.0, %v9462
      %9464 = vmatprep.mubr.f32.mxu0 0.0
      %9465 = vmatmul.mubr.f32.gmra.mrb[0].mxu0 %v7452
      %v9466 = vpop.f32.mrb[0].mxu0
      %v9467 = vadd.f32 0.0, %v9466
      %v9468 = vpop.f32.mrb[0].mxu0
      %v9469 = vadd.f32 0.0, %v9468
      %9470 = vmatprep.mubr.f32.mxu0 0.0
      %9471 = vmatmul.mubr.f32.gmra.mrb[0].mxu0 %v7454
      %v9472 = vpop.f32.mrb[0].mxu0
      %v9473 = vadd.f32 0.0, %v9472
      %v9474 = vpop.f32.mrb[0].mxu0
      %v9475 = vadd.f32 0.0, %v9474
      %9476 = vmatprep.mubr.f32.mxu0 0.0
      %9477 = vmatmul.mubr.f32.gmra.mrb[0].mxu0 %v7456
      %v9478 = vpop.f32.mrb[0].mxu0
      %v9479 = vadd.f32 0.0, %v9478
      %v9480 = vpop.f32.mrb[0].mxu0
      %v9481 = vadd.f32 0.0, %v9480
      %9482 = vmatprep.mubr.f32.mxu0 0.0
      %9483 = vmatmul.mubr.f32.gmra.mrb[0].mxu0 %v7458
      %v9484 = vpop.f32.mrb[0].mxu0
      %v9485 = vadd.f32 0.0, %v9484
      %v9486 = vpop.f32.mrb[0].mxu0
      %v9487 = vadd.f32 0.0, %v9486
      %9488 = vmatprep.mubr.f32.mxu0 0.0
      %9489 = vmatmul.mubr.f32.gmra.mrb[0].mxu0 %v7460
      %v9490 = vpop.f32.mrb[0].mxu0
      %v9491 = vadd.f32 0.0, %v9490
      %v9492 = vpop.f32.mrb[0].mxu0
      %v9493 = vadd.f32 0.0, %v9492
      %9494 = vmatprep.mubr.f32.mxu0 0.0
      %9495 = vmatmul.mubr.f32.gmra.mrb[0].mxu0 %v7462
      %v9496 = vpop.f32.mrb[0].mxu0
      %v9497 = vadd.f32 0.0, %v9496
      %v9498 = vpop.f32.mrb[0].mxu0
      %v9499 = vadd.f32 0.0, %v9498
      %9500 = vmatprep.mubr.f32.mxu0 0.0
      %9501 = vmatmul.mubr.f32.gmra.mrb[0].mxu0 %v7464
      %v9502 = vpop.f32.mrb[0].mxu0
      %v9503 = vadd.f32 0.0, %v9502
      %v9504 = vpop.f32.mrb[0].mxu0
      %v9505 = vadd.f32 0.0, %v9504
      %9506 = vmatprep.mubr.f32.mxu0 0.0
      %9507 = vmatmul.mubr.f32.gmra.mrb[0].mxu0 %v7466
      %v9508 = vpop.f32.mrb[0].mxu0
      %v9509 = vadd.f32 0.0, %v9508
      %v9510 = vpop.f32.mrb[0].mxu0
      %v9511 = vadd.f32 0.0, %v9510
      %9512 = vmatprep.mubr.f32.mxu0 0.0
      %9513 = vmatmul.mubr.f32.gmra.mrb[0].mxu0 %v7468
      %v9514 = vpop.f32.mrb[0].mxu0
      %v9515 = vadd.f32 0.0, %v9514
      %v9516 = vpop.f32.mrb[0].mxu0
      %v9517 = vadd.f32 0.0, %v9516
      %9518 = vmatprep.mubr.f32.mxu0 0.0
      %9519 = vmatmul.mubr.f32.gmra.mrb[0].mxu0 %v7470
      %v9520 = vpop.f32.mrb[0].mxu0
      %v9521 = vadd.f32 0.0, %v9520
      %v9522 = vpop.f32.mrb[0].mxu0
      %v9523 = vadd.f32 0.0, %v9522
      %9524 = vmatprep.mubr.f32.mxu0 0.0
      %9525 = vmatmul.mubr.f32.gmra.mrb[0].mxu0 %v7472
      %v9526 = vpop.f32.mrb[0].mxu0
      %v9527 = vadd.f32 0.0, %v9526
      %v9528 = vpop.f32.mrb[0].mxu0
      %v9529 = vadd.f32 0.0, %v9528
      %9530 = vmatprep.mubr.f32.mxu0 0.0
      %9531 = vmatmul.mubr.f32.gmra.mrb[0].mxu0 %v7474
      %v9532 = vpop.f32.mrb[0].mxu0
      %v9533 = vadd.f32 0.0, %v9532
      %v9534 = vpop.f32.mrb[0].mxu0
      %v9535 = vadd.f32 0.0, %v9534
      %9536 = vmatprep.mubr.f32.mxu0 0.0
      %9537 = vmatmul.mubr.f32.gmra.mrb[0].mxu0 %v7476
      %v9538 = vpop.f32.mrb[0].mxu0
      %v9539 = vadd.f32 0.0, %v9538
      %v9540 = vpop.f32.mrb[0].mxu0
      %v9541 = vadd.f32 0.0, %v9540
      %9542 = vmatprep.mubr.f32.mxu0 0.0
      %9543 = vmatmul.mubr.f32.gmra.mrb[0].mxu0 %v7478
      %v9544 = vpop.f32.mrb[0].mxu0
      %v9545 = vadd.f32 0.0, %v9544
      %v9546 = vpop.f32.mrb[0].mxu0
      %v9547 = vadd.f32 0.0, %v9546
      %9548 = vdwg.mxu0
      %v9549 = vadd.f32 %v9324, %v9431
      %v9550 = vadd.f32 %v9325, %v9433
      %v9551 = vadd.f32 %v9326, %v9437
      %v9552 = vadd.f32 %v9327, %v9439
      %v9553 = vadd.f32 %v9328, %v9443
      %v9554 = vadd.f32 %v9329, %v9445
      %v9555 = vadd.f32 %v9330, %v9449
      %v9556 = vadd.f32 %v9331, %v9451
      %v9557 = vadd.f32 %v9332, %v9455
      %v9558 = vadd.f32 %v9333, %v9457
      %v9559 = vadd.f32 %v9334, %v9461
      %v9560 = vadd.f32 %v9335, %v9463
      %v9561 = vadd.f32 %v9336, %v9467
      %v9562 = vadd.f32 %v9337, %v9469
      %v9563 = vadd.f32 %v9338, %v9473
      %v9564 = vadd.f32 %v9339, %v9475
      %v9565 = vadd.f32 %v9340, %v9479
      %v9566 = vadd.f32 %v9341, %v9481
      %v9567 = vadd.f32 %v9342, %v9485
      %v9568 = vadd.f32 %v9343, %v9487
      %v9569 = vadd.f32 %v9344, %v9491
      %v9570 = vadd.f32 %v9345, %v9493
      %v9571 = vadd.f32 %v9346, %v9497
      %v9572 = vadd.f32 %v9347, %v9499
      %v9573 = vadd.f32 %v9348, %v9503
      %v9574 = vadd.f32 %v9349, %v9505
      %v9575 = vadd.f32 %v9350, %v9509
      %v9576 = vadd.f32 %v9351, %v9511
      %v9577 = vadd.f32 %v9352, %v9515
      %v9578 = vadd.f32 %v9353, %v9517
      %v9579 = vadd.f32 %v9354, %v9521
      %v9580 = vadd.f32 %v9355, %v9523
      %v9581 = vadd.f32 %v9356, %v9527
      %v9582 = vadd.f32 %v9357, %v9529
      %v9583 = vadd.f32 %v9358, %v9533
      %v9584 = vadd.f32 %v9359, %v9535
      %v9585 = vadd.f32 %v9360, %v9539
      %v9586 = vadd.f32 %v9361, %v9541
      %v9587 = vadd.f32 %v9362, %v9545
      %v9588 = vadd.f32 %v9363, %v9547
      %v9589 = vmax.f32 %v9549, %v9550
      %v9590 = vmax.f32 %v9551, %v9552
      %v9591 = vmax.f32 %v9553, %v9554
      %v9592 = vmax.f32 %v9555, %v9556
      %v9593 = vmax.f32 %v9557, %v9558
      %v9594 = vmax.f32 %v9559, %v9560
      %v9595 = vmax.f32 %v9561, %v9562
      %v9596 = vmax.f32 %v9563, %v9564
      %v9597 = vmax.f32 %v9565, %v9566
      %v9598 = vmax.f32 %v9567, %v9568
      %v9599 = vmax.f32 %v9569, %v9570
      %v9600 = vmax.f32 %v9571, %v9572
      %v9601 = vmax.f32 %v9573, %v9574
      %v9602 = vmax.f32 %v9575, %v9576
      %v9603 = vmax.f32 %v9577, %v9578
      %v9604 = vmax.f32 %v9579, %v9580
      %v9605 = vmax.f32 %v9581, %v9582
      %v9606 = vmax.f32 %v9583, %v9584
      %v9607 = vmax.f32 %v9585, %v9586
      %v9608 = vmax.f32 %v9587, %v9588
      %v9609 = vmax.f32 %v8524, %v9589
      %v9610 = vmax.f32 %v8525, %v9590
      %v9611 = vmax.f32 %v8526, %v9591
      %v9612 = vmax.f32 %v8527, %v9592
      %v9613 = vmax.f32 %v8528, %v9593
      %v9614 = vmax.f32 %v8529, %v9594
      %v9615 = vmax.f32 %v8530, %v9595
      %v9616 = vmax.f32 %v8531, %v9596
      %v9617 = vmax.f32 %v8532, %v9597
      %v9618 = vmax.f32 %v8533, %v9598
      %v9619 = vmax.f32 %v8534, %v9599
      %v9620 = vmax.f32 %v8535, %v9600
      %v9621 = vmax.f32 %v8536, %v9601
      %v9622 = vmax.f32 %v8537, %v9602
      %v9623 = vmax.f32 %v8538, %v9603
      %v9624 = vmax.f32 %v8539, %v9604
      %v9625 = vmax.f32 %v8540, %v9605
      %v9626 = vmax.f32 %v8541, %v9606
      %v9627 = vmax.f32 %v8542, %v9607
      %v9628 = vmax.f32 %v8543, %v9608
      %v9630 = vlaneseq
      %v9631 = vshrl.u32 %v9630, 7
      %v9632 = vsub.s32 0, %v9631
      %v9633 = vrot.slane %v680, %v9632
      %v9635 = vadd.f32 %v9609, %v9633
      %v9636 = vadd.f32 %v9610, %v9633
      %v9637 = vadd.f32 %v9611, %v9633
      %v9638 = vadd.f32 %v9612, %v9633
      %v9639 = vadd.f32 %v9613, %v9633
      %v9640 = vadd.f32 %v9614, %v9633
      %v9641 = vadd.f32 %v9615, %v9633
      %v9642 = vadd.f32 %v9616, %v9633
      %v9643 = vadd.f32 %v9617, %v9633
      %v9644 = vadd.f32 %v9618, %v9633
      %v9645 = vadd.f32 %v9619, %v9633
      %v9646 = vadd.f32 %v9620, %v9633
      %v9647 = vadd.f32 %v9621, %v9633
      %v9648 = vadd.f32 %v9622, %v9633
      %v9649 = vadd.f32 %v9623, %v9633
      %v9650 = vadd.f32 %v9624, %v9633
      %v9651 = vadd.f32 %v9625, %v9633
      %v9652 = vadd.f32 %v9626, %v9633
      %v9653 = vadd.f32 %v9627, %v9633
      %v9654 = vadd.f32 %v9628, %v9633
      %v9655 = vxor.u32 %v9635, 2147483648
      %v9656 = vxor.u32 %v9636, 2147483648
      %v9657 = vxor.u32 %v9637, 2147483648
      %v9658 = vxor.u32 %v9638, 2147483648
      %v9659 = vxor.u32 %v9639, 2147483648
      %v9660 = vxor.u32 %v9640, 2147483648
      %v9661 = vxor.u32 %v9641, 2147483648
      %v9662 = vxor.u32 %v9642, 2147483648
      %v9663 = vxor.u32 %v9643, 2147483648
      %v9664 = vxor.u32 %v9644, 2147483648
      %v9665 = vxor.u32 %v9645, 2147483648
      %v9666 = vxor.u32 %v9646, 2147483648
      %v9667 = vxor.u32 %v9647, 2147483648
      %v9668 = vxor.u32 %v9648, 2147483648
      %v9669 = vxor.u32 %v9649, 2147483648
      %v9670 = vxor.u32 %v9650, 2147483648
      %v9671 = vxor.u32 %v9651, 2147483648
      %v9672 = vxor.u32 %v9652, 2147483648
      %v9673 = vxor.u32 %v9653, 2147483648
      %v9674 = vxor.u32 %v9654, 2147483648
      %v9675 = vmul.f32 %v9655, 1.442695
      %v9676 = vpow.pop %v9675
      %v9677 = vmul.f32 %v9656, 1.442695
      %v9678 = vpow.pop %v9677
      %v9679 = vmul.f32 %v9657, 1.442695
      %v9680 = vpow.pop %v9679
      %v9681 = vmul.f32 %v9658, 1.442695
      %v9682 = vpow.pop %v9681
      %v9683 = vmul.f32 %v9659, 1.442695
      %v9684 = vpow.pop %v9683
      %v9685 = vmul.f32 %v9660, 1.442695
      %v9686 = vpow.pop %v9685
      %v9687 = vmul.f32 %v9661, 1.442695
      %v9688 = vpow.pop %v9687
      %v9689 = vmul.f32 %v9662, 1.442695
      %v9690 = vpow.pop %v9689
      %v9691 = vmul.f32 %v9663, 1.442695
      %v9692 = vpow.pop %v9691
      %v9693 = vmul.f32 %v9664, 1.442695
      %v9694 = vpow.pop %v9693
      %v9695 = vmul.f32 %v9665, 1.442695
      %v9696 = vpow.pop %v9695
      %v9697 = vmul.f32 %v9666, 1.442695
      %v9698 = vpow.pop %v9697
      %v9699 = vmul.f32 %v9667, 1.442695
      %v9700 = vpow.pop %v9699
      %v9701 = vmul.f32 %v9668, 1.442695
      %v9702 = vpow.pop %v9701
      %v9703 = vmul.f32 %v9669, 1.442695
      %v9704 = vpow.pop %v9703
      %v9705 = vmul.f32 %v9670, 1.442695
      %v9706 = vpow.pop %v9705
      %v9707 = vmul.f32 %v9671, 1.442695
      %v9708 = vpow.pop %v9707
      %v9709 = vmul.f32 %v9672, 1.442695
      %v9710 = vpow.pop %v9709
      %v9711 = vmul.f32 %v9673, 1.442695
      %v9712 = vpow.pop %v9711
      %v9713 = vmul.f32 %v9674, 1.442695
      %v9714 = vpow.pop %v9713
      %v9715 = vadd.f32 %v9676, 1.0
      %v9716 = vadd.f32 %v9678, 1.0
      %v9717 = vadd.f32 %v9680, 1.0
      %v9718 = vadd.f32 %v9682, 1.0
      %v9719 = vadd.f32 %v9684, 1.0
      %v9720 = vadd.f32 %v9686, 1.0
      %v9721 = vadd.f32 %v9688, 1.0
      %v9722 = vadd.f32 %v9690, 1.0
      %v9723 = vadd.f32 %v9692, 1.0
      %v9724 = vadd.f32 %v9694, 1.0
      %v9725 = vadd.f32 %v9696, 1.0
      %v9726 = vadd.f32 %v9698, 1.0
      %v9727 = vadd.f32 %v9700, 1.0
      %v9728 = vadd.f32 %v9702, 1.0
      %v9729 = vadd.f32 %v9704, 1.0
      %v9730 = vadd.f32 %v9706, 1.0
      %v9731 = vadd.f32 %v9708, 1.0
      %v9732 = vadd.f32 %v9710, 1.0
      %v9733 = vadd.f32 %v9712, 1.0
      %v9734 = vadd.f32 %v9714, 1.0
      %v9735 = vrcp.pop %v9715
      %v9736 = vmul.f32 1.0, %v9735
      %v9737 = vrcp.pop %v9716
      %v9738 = vmul.f32 1.0, %v9737
      %v9739 = vrcp.pop %v9717
      %v9740 = vmul.f32 1.0, %v9739
      %v9741 = vrcp.pop %v9718
      %v9742 = vmul.f32 1.0, %v9741
      %v9743 = vrcp.pop %v9719
      %v9744 = vmul.f32 1.0, %v9743
      %v9745 = vrcp.pop %v9720
      %v9746 = vmul.f32 1.0, %v9745
      %v9747 = vrcp.pop %v9721
      %v9748 = vmul.f32 1.0, %v9747
      %v9749 = vrcp.pop %v9722
      %v9750 = vmul.f32 1.0, %v9749
      %v9751 = vrcp.pop %v9723
      %v9752 = vmul.f32 1.0, %v9751
      %v9753 = vrcp.pop %v9724
      %v9754 = vmul.f32 1.0, %v9753
      %v9755 = vrcp.pop %v9725
      %v9756 = vmul.f32 1.0, %v9755
      %v9757 = vrcp.pop %v9726
      %v9758 = vmul.f32 1.0, %v9757
      %v9759 = vrcp.pop %v9727
      %v9760 = vmul.f32 1.0, %v9759
      %v9761 = vrcp.pop %v9728
      %v9762 = vmul.f32 1.0, %v9761
      %v9763 = vrcp.pop %v9729
      %v9764 = vmul.f32 1.0, %v9763
      %v9765 = vrcp.pop %v9730
      %v9766 = vmul.f32 1.0, %v9765
      %v9767 = vrcp.pop %v9731
      %v9768 = vmul.f32 1.0, %v9767
      %v9769 = vrcp.pop %v9732
      %v9770 = vmul.f32 1.0, %v9769
      %v9771 = vrcp.pop %v9733
      %v9772 = vmul.f32 1.0, %v9771
      %v9773 = vrcp.pop %v9734
      %v9774 = vmul.f32 1.0, %v9773
      %9775 = vmatprep.subr.mxu0 0.0
      %9776 = vmatpush1.msra.mxu0 %v612
      %9777 = vmatprep.subr.mxu0 0.0
      %9778 = vmatpush1.msra.mxu0 %v613
      %9779 = vmatprep.subr.mxu0 0.0
      %9780 = vmatpush1.msra.mxu0 %v614
      %9781 = vmatprep.subr.mxu0 0.0
      %9782 = vmatpush1.msra.mxu0 %v615
      %9783 = vmatprep.subr.mxu0 0.0
      %9784 = vmatpush1.msra.mxu0 %v616
      %9785 = vmatprep.subr.mxu0 0.0
      %9786 = vmatpush1.msra.mxu0 %v617
      %9787 = vmatprep.subr.mxu0 0.0
      %9788 = vmatpush1.msra.mxu0 %v618
      %9789 = vmatprep.subr.mxu0 0.0
      %9790 = vmatpush1.msra.mxu0 %v619
      %9791 = vmatprep.subr.mxu0 0.0
      %9792 = vmatpush1.msra.mxu0 %v620
      %9793 = vmatprep.subr.mxu0 0.0
      %9794 = vmatpush1.msra.mxu0 %v621
      %9795 = vmatprep.subr.mxu0 0.0
      %9796 = vmatpush1.msra.mxu0 %v622
      %9797 = vmatprep.subr.mxu0 0.0
      %9798 = vmatpush1.msra.mxu0 %v623
      %9799 = vmatprep.subr.mxu0 0.0
      %9800 = vmatpush1.msra.mxu0 %v624
      %9801 = vmatprep.subr.mxu0 0.0
      %9802 = vmatpush1.msra.mxu0 %v625
      %9803 = vmatprep.subr.mxu0 0.0
      %9804 = vmatpush1.msra.mxu0 %v626
      %9805 = vmatprep.subr.mxu0 0.0
      %9806 = vmatpush1.msra.mxu0 %v627
      %9807 = vmatprep.subr.mxu0 0.0
      %9808 = vmatpush1.msra.mxu0 0.0
      %9809 = vmatprep.subr.mxu0 0.0
      %9810 = vmatpush1.msra.mxu0 0.0
      %9811 = vmatprep.subr.mxu0 0.0
      %9812 = vmatpush1.msra.mxu0 0.0
      %9813 = vmatprep.subr.mxu0 0.0
      %9814 = vmatpush1.msra.mxu0 0.0
      %9815 = vmatprep.subr.mxu0 0.0
      %9816 = vmatpush1.msra.mxu0 0.0
      %9817 = vmatprep.subr.mxu0 0.0
      %9818 = vmatpush1.msra.mxu0 0.0
      %9819 = vmatprep.subr.mxu0 0.0
      %9820 = vmatpush1.msra.mxu0 0.0
      %9821 = vmatprep.subr.mxu0 0.0
      %9822 = vmatpush1.msra.mxu0 0.0
      %9823 = vmatprep.subr.mxu0 0.0
      %9824 = vmatpush1.msra.mxu0 0.0
      %9825 = vmatprep.subr.mxu0 0.0
      %9826 = vmatpush1.msra.mxu0 0.0
      %9827 = vmatprep.subr.mxu0 0.0
      %9828 = vmatpush1.msra.mxu0 0.0
      %9829 = vmatprep.subr.mxu0 0.0
      %9830 = vmatpush1.msra.mxu0 0.0
      %9831 = vmatprep.subr.mxu0 0.0
      %9832 = vmatpush1.msra.mxu0 0.0
      %9833 = vmatprep.subr.mxu0 0.0
      %9834 = vmatpush1.msra.mxu0 0.0
      %9835 = vmatprep.subr.mxu0 0.0
      %9836 = vmatpush1.msra.mxu0 0.0
      %9837 = vmatprep.subr.mxu0 0.0
      %9838 = vmatpush1.msra.mxu0 0.0
      %9839 = vmatprep.mubr.f32.mxu0 0.0
      %9840 = vmatmul.mubr.f32.gmra.mrb[0].mxu0 %v9744
      %v9841 = vpop.f32.mrb[0].mxu0
      %v9842 = vadd.f32 0.0, %v9841
      %v9843 = vpop.f32.mrb[0].mxu0
      %9844 = vmatprep.mubr.f32.mxu0 0.0
      %9845 = vmatmul.mubr.f32.gmra.mrb[0].mxu0 %v9746
      %v9846 = vpop.f32.mrb[0].mxu0
      %v9847 = vadd.f32 0.0, %v9846
      %v9848 = vpop.f32.mrb[0].mxu0
      %9849 = vmatprep.mubr.f32.mxu0 0.0
      %9850 = vmatmul.mubr.f32.gmra.mrb[0].mxu0 %v9748
      %v9851 = vpop.f32.mrb[0].mxu0
      %v9852 = vadd.f32 0.0, %v9851
      %v9853 = vpop.f32.mrb[0].mxu0
      %9854 = vmatprep.mubr.f32.mxu0 0.0
      %9855 = vmatmul.mubr.f32.gmra.mrb[0].mxu0 %v9750
      %v9856 = vpop.f32.mrb[0].mxu0
      %v9857 = vadd.f32 0.0, %v9856
      %v9858 = vpop.f32.mrb[0].mxu0
      %9859 = vdwg.mxu0
      %9860 = vmatprep.subr.mxu0 0.0
      %9861 = vmatpush1.msra.mxu0 %v595
      %9862 = vmatprep.subr.mxu0 0.0
      %9863 = vmatpush1.msra.mxu0 %v596
      %9864 = vmatprep.subr.mxu0 0.0
      %9865 = vmatpush1.msra.mxu0 %v597
      %9866 = vmatprep.subr.mxu0 0.0
      %9867 = vmatpush1.msra.mxu0 %v598
      %9868 = vmatprep.subr.mxu0 0.0
      %9869 = vmatpush1.msra.mxu0 %v599
      %9870 = vmatprep.subr.mxu0 0.0
      %9871 = vmatpush1.msra.mxu0 %v600
      %9872 = vmatprep.subr.mxu0 0.0
      %9873 = vmatpush1.msra.mxu0 %v601
      %9874 = vmatprep.subr.mxu0 0.0
      %9875 = vmatpush1.msra.mxu0 %v602
      %9876 = vmatprep.subr.mxu0 0.0
      %9877 = vmatpush1.msra.mxu0 %v603
      %9878 = vmatprep.subr.mxu0 0.0
      %9879 = vmatpush1.msra.mxu0 %v604
      %9880 = vmatprep.subr.mxu0 0.0
      %9881 = vmatpush1.msra.mxu0 %v605
      %9882 = vmatprep.subr.mxu0 0.0
      %9883 = vmatpush1.msra.mxu0 %v606
      %9884 = vmatprep.subr.mxu0 0.0
      %9885 = vmatpush1.msra.mxu0 %v607
      %9886 = vmatprep.subr.mxu0 0.0
      %9887 = vmatpush1.msra.mxu0 %v608
      %9888 = vmatprep.subr.mxu0 0.0
      %9889 = vmatpush1.msra.mxu0 %v609
      %9890 = vmatprep.subr.mxu0 0.0
      %9891 = vmatpush1.msra.mxu0 %v610
      %9892 = vmatprep.subr.mxu0 0.0
      %9893 = vmatpush1.msra.mxu0 0.0
      %9894 = vmatprep.subr.mxu0 0.0
      %9895 = vmatpush1.msra.mxu0 0.0
      %9896 = vmatprep.subr.mxu0 0.0
      %9897 = vmatpush1.msra.mxu0 0.0
      %9898 = vmatprep.subr.mxu0 0.0
      %9899 = vmatpush1.msra.mxu0 0.0
      %9900 = vmatprep.subr.mxu0 0.0
      %9901 = vmatpush1.msra.mxu0 0.0
      %9902 = vmatprep.subr.mxu0 0.0
      %9903 = vmatpush1.msra.mxu0 0.0
      %9904 = vmatprep.subr.mxu0 0.0
      %9905 = vmatpush1.msra.mxu0 0.0
      %9906 = vmatprep.subr.mxu0 0.0
      %9907 = vmatpush1.msra.mxu0 0.0
      %9908 = vmatprep.subr.mxu0 0.0
      %9909 = vmatpush1.msra.mxu0 0.0
      %9910 = vmatprep.subr.mxu0 0.0
      %9911 = vmatpush1.msra.mxu0 0.0
      %9912 = vmatprep.subr.mxu0 0.0
      %9913 = vmatpush1.msra.mxu0 0.0
      %9914 = vmatprep.subr.mxu0 0.0
      %9915 = vmatpush1.msra.mxu0 0.0
      %9916 = vmatprep.subr.mxu0 0.0
      %9917 = vmatpush1.msra.mxu0 0.0
      %9918 = vmatprep.subr.mxu0 0.0
      %9919 = vmatpush1.msra.mxu0 0.0
      %9920 = vmatprep.subr.mxu0 0.0
      %9921 = vmatpush1.msra.mxu0 0.0
      %9922 = vmatprep.subr.mxu0 0.0
      %9923 = vmatpush1.msra.mxu0 0.0
      %9924 = vmatprep.mubr.f32.mxu0 0.0
      %9925 = vmatmul.mubr.f32.gmra.mrb[0].mxu0 %v9736
      %v9926 = vpop.f32.mrb[0].mxu0
      %v9927 = vadd.f32 %v9842, %v9926
      %v9928 = vpop.f32.mrb[0].mxu0
      %9929 = vmatprep.mubr.f32.mxu0 0.0
      %9930 = vmatmul.mubr.f32.gmra.mrb[0].mxu0 %v9738
      %v9931 = vpop.f32.mrb[0].mxu0
      %v9932 = vadd.f32 %v9847, %v9931
      %v9933 = vpop.f32.mrb[0].mxu0
      %9934 = vmatprep.mubr.f32.mxu0 0.0
      %9935 = vmatmul.mubr.f32.gmra.mrb[0].mxu0 %v9740
      %v9936 = vpop.f32.mrb[0].mxu0
      %v9937 = vadd.f32 %v9852, %v9936
      %v9938 = vpop.f32.mrb[0].mxu0
      %9939 = vmatprep.mubr.f32.mxu0 0.0
      %9940 = vmatmul.mubr.f32.gmra.mrb[0].mxu0 %v9742
      %v9941 = vpop.f32.mrb[0].mxu0
      %v9942 = vadd.f32 %v9857, %v9941
      %v9943 = vpop.f32.mrb[0].mxu0
      %9944 = vdwg.mxu0
      %9945 = vmatprep.subr.mxu0 0.0
      %9946 = vmatpush1.msra.mxu0 %v629
      %9947 = vmatprep.subr.mxu0 0.0
      %9948 = vmatpush1.msra.mxu0 %v630
      %9949 = vmatprep.subr.mxu0 0.0
      %9950 = vmatpush1.msra.mxu0 %v631
      %9951 = vmatprep.subr.mxu0 0.0
      %9952 = vmatpush1.msra.mxu0 %v632
      %9953 = vmatprep.subr.mxu0 0.0
      %9954 = vmatpush1.msra.mxu0 %v633
      %9955 = vmatprep.subr.mxu0 0.0
      %9956 = vmatpush1.msra.mxu0 %v634
      %9957 = vmatprep.subr.mxu0 0.0
      %9958 = vmatpush1.msra.mxu0 %v635
      %9959 = vmatprep.subr.mxu0 0.0
      %9960 = vmatpush1.msra.mxu0 %v636
      %9961 = vmatprep.subr.mxu0 0.0
      %9962 = vmatpush1.msra.mxu0 %v637
      %9963 = vmatprep.subr.mxu0 0.0
      %9964 = vmatpush1.msra.mxu0 %v638
      %9965 = vmatprep.subr.mxu0 0.0
      %9966 = vmatpush1.msra.mxu0 %v639
      %9967 = vmatprep.subr.mxu0 0.0
      %9968 = vmatpush1.msra.mxu0 %v640
      %9969 = vmatprep.subr.mxu0 0.0
      %9970 = vmatpush1.msra.mxu0 %v641
      %9971 = vmatprep.subr.mxu0 0.0
      %9972 = vmatpush1.msra.mxu0 %v642
      %9973 = vmatprep.subr.mxu0 0.0
      %9974 = vmatpush1.msra.mxu0 %v643
      %9975 = vmatprep.subr.mxu0 0.0
      %9976 = vmatpush1.msra.mxu0 %v644
      %9977 = vmatprep.subr.mxu0 0.0
      %9978 = vmatpush1.msra.mxu0 0.0
      %9979 = vmatprep.subr.mxu0 0.0
      %9980 = vmatpush1.msra.mxu0 0.0
      %9981 = vmatprep.subr.mxu0 0.0
      %9982 = vmatpush1.msra.mxu0 0.0
      %9983 = vmatprep.subr.mxu0 0.0
      %9984 = vmatpush1.msra.mxu0 0.0
      %9985 = vmatprep.subr.mxu0 0.0
      %9986 = vmatpush1.msra.mxu0 0.0
      %9987 = vmatprep.subr.mxu0 0.0
      %9988 = vmatpush1.msra.mxu0 0.0
      %9989 = vmatprep.subr.mxu0 0.0
      %9990 = vmatpush1.msra.mxu0 0.0
      %9991 = vmatprep.subr.mxu0 0.0
      %9992 = vmatpush1.msra.mxu0 0.0
      %9993 = vmatprep.subr.mxu0 0.0
      %9994 = vmatpush1.msra.mxu0 0.0
      %9995 = vmatprep.subr.mxu0 0.0
      %9996 = vmatpush1.msra.mxu0 0.0
      %9997 = vmatprep.subr.mxu0 0.0
      %9998 = vmatpush1.msra.mxu0 0.0
      %9999 = vmatprep.subr.mxu0 0.0
      %10000 = vmatpush1.msra.mxu0 0.0
      %10001 = vmatprep.subr.mxu0 0.0
      %10002 = vmatpush1.msra.mxu0 0.0
      %10003 = vmatprep.subr.mxu0 0.0
      %10004 = vmatpush1.msra.mxu0 0.0
      %10005 = vmatprep.subr.mxu0 0.0
      %10006 = vmatpush1.msra.mxu0 0.0
      %10007 = vmatprep.subr.mxu0 0.0
      %10008 = vmatpush1.msra.mxu0 0.0
      %10009 = vmatprep.mubr.f32.mxu0 0.0
      %10010 = vmatmul.mubr.f32.gmra.mrb[0].mxu0 %v9752
      %v10011 = vpop.f32.mrb[0].mxu0
      %v10012 = vadd.f32 0.0, %v10011
      %v10013 = vpop.f32.mrb[0].mxu0
      %10014 = vmatprep.mubr.f32.mxu0 0.0
      %10015 = vmatmul.mubr.f32.gmra.mrb[0].mxu0 %v9754
      %v10016 = vpop.f32.mrb[0].mxu0
      %v10017 = vadd.f32 0.0, %v10016
      %v10018 = vpop.f32.mrb[0].mxu0
      %10019 = vmatprep.mubr.f32.mxu0 0.0
      %10020 = vmatmul.mubr.f32.gmra.mrb[0].mxu0 %v9756
      %v10021 = vpop.f32.mrb[0].mxu0
      %v10022 = vadd.f32 0.0, %v10021
      %v10023 = vpop.f32.mrb[0].mxu0
      %10024 = vmatprep.mubr.f32.mxu0 0.0
      %10025 = vmatmul.mubr.f32.gmra.mrb[0].mxu0 %v9758
      %v10026 = vpop.f32.mrb[0].mxu0
      %v10027 = vadd.f32 0.0, %v10026
      %v10028 = vpop.f32.mrb[0].mxu0
      %10029 = vdwg.mxu0
      %v10030 = vadd.f32 %v9927, %v10012
      %v10031 = vadd.f32 %v9932, %v10017
      %v10032 = vadd.f32 %v9937, %v10022
      %v10033 = vadd.f32 %v9942, %v10027
      %10034 = vmatprep.subr.mxu0 0.0
      %10035 = vmatpush1.msra.mxu0 %v646
      %10036 = vmatprep.subr.mxu0 0.0
      %10037 = vmatpush1.msra.mxu0 %v647
      %10038 = vmatprep.subr.mxu0 0.0
      %10039 = vmatpush1.msra.mxu0 %v648
      %10040 = vmatprep.subr.mxu0 0.0
      %10041 = vmatpush1.msra.mxu0 %v649
      %10042 = vmatprep.subr.mxu0 0.0
      %10043 = vmatpush1.msra.mxu0 %v650
      %10044 = vmatprep.subr.mxu0 0.0
      %10045 = vmatpush1.msra.mxu0 %v651
      %10046 = vmatprep.subr.mxu0 0.0
      %10047 = vmatpush1.msra.mxu0 %v652
      %10048 = vmatprep.subr.mxu0 0.0
      %10049 = vmatpush1.msra.mxu0 %v653
      %10050 = vmatprep.subr.mxu0 0.0
      %10051 = vmatpush1.msra.mxu0 %v654
      %10052 = vmatprep.subr.mxu0 0.0
      %10053 = vmatpush1.msra.mxu0 %v655
      %10054 = vmatprep.subr.mxu0 0.0
      %10055 = vmatpush1.msra.mxu0 %v656
      %10056 = vmatprep.subr.mxu0 0.0
      %10057 = vmatpush1.msra.mxu0 %v657
      %10058 = vmatprep.subr.mxu0 0.0
      %10059 = vmatpush1.msra.mxu0 %v658
      %10060 = vmatprep.subr.mxu0 0.0
      %10061 = vmatpush1.msra.mxu0 %v659
      %10062 = vmatprep.subr.mxu0 0.0
      %10063 = vmatpush1.msra.mxu0 %v660
      %10064 = vmatprep.subr.mxu0 0.0
      %10065 = vmatpush1.msra.mxu0 %v661
      %10066 = vmatprep.subr.mxu0 0.0
      %10067 = vmatpush1.msra.mxu0 0.0
      %10068 = vmatprep.subr.mxu0 0.0
      %10069 = vmatpush1.msra.mxu0 0.0
      %10070 = vmatprep.subr.mxu0 0.0
      %10071 = vmatpush1.msra.mxu0 0.0
      %10072 = vmatprep.subr.mxu0 0.0
      %10073 = vmatpush1.msra.mxu0 0.0
      %10074 = vmatprep.subr.mxu0 0.0
      %10075 = vmatpush1.msra.mxu0 0.0
      %10076 = vmatprep.subr.mxu0 0.0
      %10077 = vmatpush1.msra.mxu0 0.0
      %10078 = vmatprep.subr.mxu0 0.0
      %10079 = vmatpush1.msra.mxu0 0.0
      %10080 = vmatprep.subr.mxu0 0.0
      %10081 = vmatpush1.msra.mxu0 0.0
      %10082 = vmatprep.subr.mxu0 0.0
      %10083 = vmatpush1.msra.mxu0 0.0
      %10084 = vmatprep.subr.mxu0 0.0
      %10085 = vmatpush1.msra.mxu0 0.0
      %10086 = vmatprep.subr.mxu0 0.0
      %10087 = vmatpush1.msra.mxu0 0.0
      %10088 = vmatprep.subr.mxu0 0.0
      %10089 = vmatpush1.msra.mxu0 0.0
      %10090 = vmatprep.subr.mxu0 0.0
      %10091 = vmatpush1.msra.mxu0 0.0
      %10092 = vmatprep.subr.mxu0 0.0
      %10093 = vmatpush1.msra.mxu0 0.0
      %10094 = vmatprep.subr.mxu0 0.0
      %10095 = vmatpush1.msra.mxu0 0.0
      %10096 = vmatprep.subr.mxu0 0.0
      %10097 = vmatpush1.msra.mxu0 0.0
      %10098 = vmatprep.mubr.f32.mxu0 0.0
      %10099 = vmatmul.mubr.f32.gmra.mrb[0].mxu0 %v9760
      %v10100 = vpop.f32.mrb[0].mxu0
      %v10101 = vadd.f32 0.0, %v10100
      %v10102 = vpop.f32.mrb[0].mxu0
      %10103 = vmatprep.mubr.f32.mxu0 0.0
      %10104 = vmatmul.mubr.f32.gmra.mrb[0].mxu0 %v9762
      %v10105 = vpop.f32.mrb[0].mxu0
      %v10106 = vadd.f32 0.0, %v10105
      %v10107 = vpop.f32.mrb[0].mxu0
      %10108 = vmatprep.mubr.f32.mxu0 0.0
      %10109 = vmatmul.mubr.f32.gmra.mrb[0].mxu0 %v9764
      %v10110 = vpop.f32.mrb[0].mxu0
      %v10111 = vadd.f32 0.0, %v10110
      %v10112 = vpop.f32.mrb[0].mxu0
      %10113 = vmatprep.mubr.f32.mxu0 0.0
      %10114 = vmatmul.mubr.f32.gmra.mrb[0].mxu0 %v9766
      %v10115 = vpop.f32.mrb[0].mxu0
      %v10116 = vadd.f32 0.0, %v10115
      %v10117 = vpop.f32.mrb[0].mxu0
      %10118 = vdwg.mxu0
      %v10119 = vadd.f32 %v10030, %v10101
      %v10120 = vadd.f32 %v10031, %v10106
      %v10121 = vadd.f32 %v10032, %v10111
      %v10122 = vadd.f32 %v10033, %v10116
      %10123 = vmatprep.subr.mxu0 0.0
      %10124 = vmatpush1.msra.mxu0 %v663
      %10125 = vmatprep.subr.mxu0 0.0
      %10126 = vmatpush1.msra.mxu0 %v664
      %10127 = vmatprep.subr.mxu0 0.0
      %10128 = vmatpush1.msra.mxu0 %v665
      %10129 = vmatprep.subr.mxu0 0.0
      %10130 = vmatpush1.msra.mxu0 %v666
      %10131 = vmatprep.subr.mxu0 0.0
      %10132 = vmatpush1.msra.mxu0 %v667
      %10133 = vmatprep.subr.mxu0 0.0
      %10134 = vmatpush1.msra.mxu0 %v668
      %10135 = vmatprep.subr.mxu0 0.0
      %10136 = vmatpush1.msra.mxu0 %v669
      %10137 = vmatprep.subr.mxu0 0.0
      %10138 = vmatpush1.msra.mxu0 %v670
      %10139 = vmatprep.subr.mxu0 0.0
      %10140 = vmatpush1.msra.mxu0 %v671
      %10141 = vmatprep.subr.mxu0 0.0
      %10142 = vmatpush1.msra.mxu0 %v672
      %10143 = vmatprep.subr.mxu0 0.0
      %10144 = vmatpush1.msra.mxu0 %v673
      %10145 = vmatprep.subr.mxu0 0.0
      %10146 = vmatpush1.msra.mxu0 %v674
      %10147 = vmatprep.subr.mxu0 0.0
      %10148 = vmatpush1.msra.mxu0 %v675
      %10149 = vmatprep.subr.mxu0 0.0
      %10150 = vmatpush1.msra.mxu0 %v676
      %10151 = vmatprep.subr.mxu0 0.0
      %10152 = vmatpush1.msra.mxu0 %v677
      %10153 = vmatprep.subr.mxu0 0.0
      %10154 = vmatpush1.msra.mxu0 %v678
      %10155 = vmatprep.subr.mxu0 0.0
      %10156 = vmatpush1.msra.mxu0 0.0
      %10157 = vmatprep.subr.mxu0 0.0
      %10158 = vmatpush1.msra.mxu0 0.0
      %10159 = vmatprep.subr.mxu0 0.0
      %10160 = vmatpush1.msra.mxu0 0.0
      %10161 = vmatprep.subr.mxu0 0.0
      %10162 = vmatpush1.msra.mxu0 0.0
      %10163 = vmatprep.subr.mxu0 0.0
      %10164 = vmatpush1.msra.mxu0 0.0
      %10165 = vmatprep.subr.mxu0 0.0
      %10166 = vmatpush1.msra.mxu0 0.0
      %10167 = vmatprep.subr.mxu0 0.0
      %10168 = vmatpush1.msra.mxu0 0.0
      %10169 = vmatprep.subr.mxu0 0.0
      %10170 = vmatpush1.msra.mxu0 0.0
      %10171 = vmatprep.subr.mxu0 0.0
      %10172 = vmatpush1.msra.mxu0 0.0
      %10173 = vmatprep.subr.mxu0 0.0
      %10174 = vmatpush1.msra.mxu0 0.0
      %10175 = vmatprep.subr.mxu0 0.0
      %10176 = vmatpush1.msra.mxu0 0.0
      %10177 = vmatprep.subr.mxu0 0.0
      %10178 = vmatpush1.msra.mxu0 0.0
      %10179 = vmatprep.subr.mxu0 0.0
      %10180 = vmatpush1.msra.mxu0 0.0
      %10181 = vmatprep.subr.mxu0 0.0
      %10182 = vmatpush1.msra.mxu0 0.0
      %10183 = vmatprep.subr.mxu0 0.0
      %10184 = vmatpush1.msra.mxu0 0.0
      %10185 = vmatprep.subr.mxu0 0.0
      %10186 = vmatpush1.msra.mxu0 0.0
      %10187 = vmatprep.mubr.f32.mxu0 0.0
      %10188 = vmatmul.mubr.f32.gmra.mrb[0].mxu0 %v9768
      %v10189 = vpop.f32.mrb[0].mxu0
      %v10190 = vadd.f32 0.0, %v10189
      %v10191 = vpop.f32.mrb[0].mxu0
      %10192 = vmatprep.mubr.f32.mxu0 0.0
      %10193 = vmatmul.mubr.f32.gmra.mrb[0].mxu0 %v9770
      %v10194 = vpop.f32.mrb[0].mxu0
      %v10195 = vadd.f32 0.0, %v10194
      %v10196 = vpop.f32.mrb[0].mxu0
      %10197 = vmatprep.mubr.f32.mxu0 0.0
      %10198 = vmatmul.mubr.f32.gmra.mrb[0].mxu0 %v9772
      %v10199 = vpop.f32.mrb[0].mxu0
      %v10200 = vadd.f32 0.0, %v10199
      %v10201 = vpop.f32.mrb[0].mxu0
      %10202 = vmatprep.mubr.f32.mxu0 0.0
      %10203 = vmatmul.mubr.f32.gmra.mrb[0].mxu0 %v9774
      %v10204 = vpop.f32.mrb[0].mxu0
      %v10205 = vadd.f32 0.0, %v10204
      %v10206 = vpop.f32.mrb[0].mxu0
      %10207 = vdwg.mxu0
      %v10208 = vadd.f32 %v10119, %v10190
      %v10209 = vadd.f32 %v10120, %v10195
      %v10210 = vadd.f32 %v10121, %v10200
      %v10211 = vadd.f32 %v10122, %v10205
      %v10212 = vld [vmem:[%s6] sm:$0x1]
      %v10214 = vlaneseq
      %v10215 = vshrl.u32 %v10214, 7
      %v10216 = vsub.s32 0, %v10215
      %v10217 = vrot.slane %v10212, %v10216
      %v10219 = vadd.f32 %v10208, %v10217
      %v10220 = vadd.f32 %v10209, %v10217
      %v10221 = vadd.f32 %v10210, %v10217
      %v10222 = vadd.f32 %v10211, %v10217
      %v10223 = vxor.u32 %v10219, 2147483648
      %v10224 = vxor.u32 %v10220, 2147483648
      %v10225 = vxor.u32 %v10221, 2147483648
      %v10226 = vxor.u32 %v10222, 2147483648
      %v10227 = vmul.f32 %v10223, 1.442695
      %v10228 = vpow.pop %v10227
      %v10229 = vmul.f32 %v10224, 1.442695
      %v10230 = vpow.pop %v10229
      %v10231 = vmul.f32 %v10225, 1.442695
      %v10232 = vpow.pop %v10231
      %v10233 = vmul.f32 %v10226, 1.442695
      %v10234 = vpow.pop %v10233
      %v10235 = vadd.f32 %v10228, 1.0
      %v10236 = vadd.f32 %v10230, 1.0
      %v10237 = vadd.f32 %v10232, 1.0
      %v10238 = vadd.f32 %v10234, 1.0
      %v10239 = vrcp.pop %v10235
      %v10240 = vmul.f32 1.0, %v10239
      %v10241 = vrcp.pop %v10236
      %v10242 = vmul.f32 1.0, %v10241
      %v10243 = vrcp.pop %v10237
      %v10244 = vmul.f32 1.0, %v10243
      %v10245 = vrcp.pop %v10238
      %v10246 = vmul.f32 1.0, %v10245
      %v10247 = vld [vmem:[%s7] sm:$0xff]
      %v10248 = vld [vmem:[%s7 + $0x8] sm:$0xff]
      %v10249 = vld [vmem:[%s7 + $0x10] sm:$0xff]
      %v10250 = vld [vmem:[%s7 + $0x18] sm:$0xff]
      %v10251 = vld [vmem:[%s7 + $0x20] sm:$0xff]
      %v10252 = vld [vmem:[%s7 + $0x28] sm:$0xff]
      %v10253 = vld [vmem:[%s7 + $0x30] sm:$0xff]
      %v10254 = vld [vmem:[%s7 + $0x38] sm:$0xff]
      %v10255 = vld [vmem:[%s7 + $0x40] sm:$0xff]
      %v10256 = vld [vmem:[%s7 + $0x48] sm:$0xff]
      %v10257 = vld [vmem:[%s7 + $0x50] sm:$0xff]
      %v10258 = vld [vmem:[%s7 + $0x58] sm:$0xff]
      %v10259 = vld [vmem:[%s7 + $0x60] sm:$0xff]
      %v10260 = vld [vmem:[%s7 + $0x68] sm:$0xff]
      %v10261 = vld [vmem:[%s7 + $0x70] sm:$0xff]
      %v10262 = vld [vmem:[%s7 + $0x78] sm:$0xff]
      %v10263 = vld [vmem:[%s8] sm:$0x1]
      %v10265 = vlaneseq
      %v10266 = vshrl.u32 %v10265, 7
      %v10267 = vsub.s32 0, %v10266
      %v10268 = vrot.slane %v10263, %v10267
      %10270 = vmatprep.subr.mxu0 0.0
      %10271 = vmatpush1.msra.mxu0 %v10247
      %10272 = vmatprep.subr.mxu0 0.0
      %10273 = vmatpush1.msra.mxu0 %v10248
      %10274 = vmatprep.subr.mxu0 0.0
      %10275 = vmatpush1.msra.mxu0 %v10249
      %10276 = vmatprep.subr.mxu0 0.0
      %10277 = vmatpush1.msra.mxu0 %v10250
      %10278 = vmatprep.subr.mxu0 0.0
      %10279 = vmatpush1.msra.mxu0 %v10251
      %10280 = vmatprep.subr.mxu0 0.0
      %10281 = vmatpush1.msra.mxu0 %v10252
      %10282 = vmatprep.subr.mxu0 0.0
      %10283 = vmatpush1.msra.mxu0 %v10253
      %10284 = vmatprep.subr.mxu0 0.0
      %10285 = vmatpush1.msra.mxu0 %v10254
      %10286 = vmatprep.subr.mxu0 0.0
      %10287 = vmatpush1.msra.mxu0 %v10255
      %10288 = vmatprep.subr.mxu0 0.0
      %10289 = vmatpush1.msra.mxu0 %v10256
      %10290 = vmatprep.subr.mxu0 0.0
      %10291 = vmatpush1.msra.mxu0 %v10257
      %10292 = vmatprep.subr.mxu0 0.0
      %10293 = vmatpush1.msra.mxu0 %v10258
      %10294 = vmatprep.subr.mxu0 0.0
      %10295 = vmatpush1.msra.mxu0 %v10259
      %10296 = vmatprep.subr.mxu0 0.0
      %10297 = vmatpush1.msra.mxu0 %v10260
      %10298 = vmatprep.subr.mxu0 0.0
      %10299 = vmatpush1.msra.mxu0 %v10261
      %10300 = vmatprep.subr.mxu0 0.0
      %10301 = vmatpush1.msra.mxu0 %v10262
      %10302 = vmatprep.subr.mxu0 0.0
      %10303 = vmatpush1.msra.mxu0 0.0
      %10304 = vmatprep.subr.mxu0 0.0
      %10305 = vmatpush1.msra.mxu0 0.0
      %10306 = vmatprep.subr.mxu0 0.0
      %10307 = vmatpush1.msra.mxu0 0.0
      %10308 = vmatprep.subr.mxu0 0.0
      %10309 = vmatpush1.msra.mxu0 0.0
      %10310 = vmatprep.subr.mxu0 0.0
      %10311 = vmatpush1.msra.mxu0 0.0
      %10312 = vmatprep.subr.mxu0 0.0
      %10313 = vmatpush1.msra.mxu0 0.0
      %10314 = vmatprep.subr.mxu0 0.0
      %10315 = vmatpush1.msra.mxu0 0.0
      %10316 = vmatprep.subr.mxu0 0.0
      %10317 = vmatpush1.msra.mxu0 0.0
      %10318 = vmatprep.subr.mxu0 0.0
      %10319 = vmatpush1.msra.mxu0 0.0
      %10320 = vmatprep.subr.mxu0 0.0
      %10321 = vmatpush1.msra.mxu0 0.0
      %10322 = vmatprep.subr.mxu0 0.0
      %10323 = vmatpush1.msra.mxu0 0.0
      %10324 = vmatprep.subr.mxu0 0.0
      %10325 = vmatpush1.msra.mxu0 0.0
      %10326 = vmatprep.subr.mxu0 0.0
      %10327 = vmatpush1.msra.mxu0 0.0
      %10328 = vmatprep.subr.mxu0 0.0
      %10329 = vmatpush1.msra.mxu0 0.0
      %10330 = vmatprep.subr.mxu0 0.0
      %10331 = vmatpush1.msra.mxu0 0.0
      %10332 = vmatprep.subr.mxu0 0.0
      %10333 = vmatpush1.msra.mxu0 0.0
      %10334 = vmatprep.mubr.f32.mxu0 0.0
      %10335 = vmatmul.mubr.f32.gmra.mrb[0].mxu0 %v10240
      %v10336 = vpop.f32.mrb[0].mxu0
      %v10337 = vadd.f32 %v10268, %v10336
      %v10338 = vpop.f32.mrb[0].mxu0
      %10339 = vmatprep.mubr.f32.mxu0 0.0
      %10340 = vmatmul.mubr.f32.gmra.mrb[0].mxu0 %v10242
      %v10341 = vpop.f32.mrb[0].mxu0
      %v10342 = vadd.f32 %v10268, %v10341
      %v10343 = vpop.f32.mrb[0].mxu0
      %10344 = vmatprep.mubr.f32.mxu0 0.0
      %10345 = vmatmul.mubr.f32.gmra.mrb[0].mxu0 %v10244
      %v10346 = vpop.f32.mrb[0].mxu0
      %v10347 = vadd.f32 %v10268, %v10346
      %v10348 = vpop.f32.mrb[0].mxu0
      %10349 = vmatprep.mubr.f32.mxu0 0.0
      %10350 = vmatmul.mubr.f32.gmra.mrb[0].mxu0 %v10246
      %v10351 = vpop.f32.mrb[0].mxu0
      %v10352 = vadd.f32 %v10268, %v10351
      %v10353 = vpop.f32.mrb[0].mxu0
      %10354 = vdwg.mxu0
      %v10355 = vxor.u32 %v10337, 2147483648
      %v10356 = vxor.u32 %v10342, 2147483648
      %v10357 = vxor.u32 %v10347, 2147483648
      %v10358 = vxor.u32 %v10352, 2147483648
      %v10359 = vmul.f32 %v10355, 1.442695
      %v10360 = vpow.pop %v10359
      %v10361 = vmul.f32 %v10356, 1.442695
      %v10362 = vpow.pop %v10361
      %v10363 = vmul.f32 %v10357, 1.442695
      %v10364 = vpow.pop %v10363
      %v10365 = vmul.f32 %v10358, 1.442695
      %v10366 = vpow.pop %v10365
      %v10367 = vadd.f32 %v10360, 1.0
      %v10368 = vadd.f32 %v10362, 1.0
      %v10369 = vadd.f32 %v10364, 1.0
      %v10370 = vadd.f32 %v10366, 1.0
      %v10371 = vrcp.pop %v10367
      %v10372 = vmul.f32 1.0, %v10371
      %v10373 = vrcp.pop %v10368
      %v10374 = vmul.f32 1.0, %v10373
      %v10375 = vrcp.pop %v10369
      %v10376 = vmul.f32 1.0, %v10375
      %v10377 = vrcp.pop %v10370
      %v10378 = vmul.f32 1.0, %v10377
      %v10379 = vld [vmem:[%s9] sm:$0xff]
      %v10380 = vld [vmem:[%s9 + $0x8] sm:$0xff]
      %v10381 = vld [vmem:[%s9 + $0x10] sm:$0xff]
      %v10382 = vld [vmem:[%s9 + $0x18] sm:$0xff]
      %v10383 = vld [vmem:[%s9 + $0x20] sm:$0xff]
      %v10384 = vld [vmem:[%s9 + $0x28] sm:$0xff]
      %v10385 = vld [vmem:[%s9 + $0x30] sm:$0xff]
      %v10386 = vld [vmem:[%s9 + $0x38] sm:$0xff]
      %v10387 = vld [vmem:[%s9 + $0x40] sm:$0xff]
      %v10388 = vld [vmem:[%s9 + $0x48] sm:$0xff]
      %v10389 = vld [vmem:[%s9 + $0x50] sm:$0xff]
      %v10390 = vld [vmem:[%s9 + $0x58] sm:$0xff]
      %v10391 = vld [vmem:[%s9 + $0x60] sm:$0xff]
      %v10392 = vld [vmem:[%s9 + $0x68] sm:$0xff]
      %v10393 = vld [vmem:[%s9 + $0x70] sm:$0xff]
      %v10394 = vld [vmem:[%s9 + $0x78] sm:$0xff]
      %v10395 = vld [vmem:[%s10] sm:$0x1]
      %v10397 = vlaneseq
      %v10398 = vshrl.u32 %v10397, 7
      %v10399 = vsub.s32 0, %v10398
      %v10400 = vrot.slane %v10395, %v10399
      %10402 = vmatprep.subr.mxu0 0.0
      %10403 = vmatpush1.msra.mxu0 %v10379
      %10404 = vmatprep.subr.mxu0 0.0
      %10405 = vmatpush1.msra.mxu0 %v10380
      %10406 = vmatprep.subr.mxu0 0.0
      %10407 = vmatpush1.msra.mxu0 %v10381
      %10408 = vmatprep.subr.mxu0 0.0
      %10409 = vmatpush1.msra.mxu0 %v10382
      %10410 = vmatprep.subr.mxu0 0.0
      %10411 = vmatpush1.msra.mxu0 %v10383
      %10412 = vmatprep.subr.mxu0 0.0
      %10413 = vmatpush1.msra.mxu0 %v10384
      %10414 = vmatprep.subr.mxu0 0.0
      %10415 = vmatpush1.msra.mxu0 %v10385
      %10416 = vmatprep.subr.mxu0 0.0
      %10417 = vmatpush1.msra.mxu0 %v10386
      %10418 = vmatprep.subr.mxu0 0.0
      %10419 = vmatpush1.msra.mxu0 %v10387
      %10420 = vmatprep.subr.mxu0 0.0
      %10421 = vmatpush1.msra.mxu0 %v10388
      %10422 = vmatprep.subr.mxu0 0.0
      %10423 = vmatpush1.msra.mxu0 %v10389
      %10424 = vmatprep.subr.mxu0 0.0
      %10425 = vmatpush1.msra.mxu0 %v10390
      %10426 = vmatprep.subr.mxu0 0.0
      %10427 = vmatpush1.msra.mxu0 %v10391
      %10428 = vmatprep.subr.mxu0 0.0
      %10429 = vmatpush1.msra.mxu0 %v10392
      %10430 = vmatprep.subr.mxu0 0.0
      %10431 = vmatpush1.msra.mxu0 %v10393
      %10432 = vmatprep.subr.mxu0 0.0
      %10433 = vmatpush1.msra.mxu0 %v10394
      %10434 = vmatprep.subr.mxu0 0.0
      %10435 = vmatpush1.msra.mxu0 0.0
      %10436 = vmatprep.subr.mxu0 0.0
      %10437 = vmatpush1.msra.mxu0 0.0
      %10438 = vmatprep.subr.mxu0 0.0
      %10439 = vmatpush1.msra.mxu0 0.0
      %10440 = vmatprep.subr.mxu0 0.0
      %10441 = vmatpush1.msra.mxu0 0.0
      %10442 = vmatprep.subr.mxu0 0.0
      %10443 = vmatpush1.msra.mxu0 0.0
      %10444 = vmatprep.subr.mxu0 0.0
      %10445 = vmatpush1.msra.mxu0 0.0
      %10446 = vmatprep.subr.mxu0 0.0
      %10447 = vmatpush1.msra.mxu0 0.0
      %10448 = vmatprep.subr.mxu0 0.0
      %10449 = vmatpush1.msra.mxu0 0.0
      %10450 = vmatprep.subr.mxu0 0.0
      %10451 = vmatpush1.msra.mxu0 0.0
      %10452 = vmatprep.subr.mxu0 0.0
      %10453 = vmatpush1.msra.mxu0 0.0
      %10454 = vmatprep.subr.mxu0 0.0
      %10455 = vmatpush1.msra.mxu0 0.0
      %10456 = vmatprep.subr.mxu0 0.0
      %10457 = vmatpush1.msra.mxu0 0.0
      %10458 = vmatprep.subr.mxu0 0.0
      %10459 = vmatpush1.msra.mxu0 0.0
      %10460 = vmatprep.subr.mxu0 0.0
      %10461 = vmatpush1.msra.mxu0 0.0
      %10462 = vmatprep.subr.mxu0 0.0
      %10463 = vmatpush1.msra.mxu0 0.0
      %10464 = vmatprep.subr.mxu0 0.0
      %10465 = vmatpush1.msra.mxu0 0.0
      %10466 = vmatprep.mubr.f32.mxu0 0.0
      %10467 = vmatmul.mubr.f32.gmra.mrb[0].mxu0 %v10372
      %v10468 = vpop.f32.mrb[0].mxu0
      %v10469 = vadd.f32 %v10400, %v10468
      %v10470 = vpop.f32.mrb[0].mxu0
      %10471 = vmatprep.mubr.f32.mxu0 0.0
      %10472 = vmatmul.mubr.f32.gmra.mrb[0].mxu0 %v10374
      %v10473 = vpop.f32.mrb[0].mxu0
      %v10474 = vadd.f32 %v10400, %v10473
      %v10475 = vpop.f32.mrb[0].mxu0
      %10476 = vmatprep.mubr.f32.mxu0 0.0
      %10477 = vmatmul.mubr.f32.gmra.mrb[0].mxu0 %v10376
      %v10478 = vpop.f32.mrb[0].mxu0
      %v10479 = vadd.f32 %v10400, %v10478
      %v10480 = vpop.f32.mrb[0].mxu0
      %10481 = vmatprep.mubr.f32.mxu0 0.0
      %10482 = vmatmul.mubr.f32.gmra.mrb[0].mxu0 %v10378
      %v10483 = vpop.f32.mrb[0].mxu0
      %v10484 = vadd.f32 %v10400, %v10483
      %v10485 = vpop.f32.mrb[0].mxu0
      %10486 = vdwg.mxu0
      %10487 = vst [vmem:[%s386] sm:$0xff] %v10469
      %10488 = vst [vmem:[%s386 + $0x8] sm:$0xff] %v10474
      %10489 = vst [vmem:[%s386 + $0x10] sm:$0xff] %v10479
      %10490 = vst [vmem:[%s386 + $0x18] sm:$0xff] %v10484
      %p10491 = scmp.lt.s32.totalorder %s22, 1
      %s10492 = scalar_select %p10491, %s22, 1
      %s10493 = smul.addr %s10492, 4
      %s10494 = smul.addr %s10493, 8
      %s10495 = scalar_lea.vmem %s11, %s10494
      // Predicated region
      $region65: #{_lambda_.1} parent=63 // pred_check
        %p10496 = pneg %p276
      $region66: #{_lambda_.1} parent=63 // pred_check_branch
        %10498 = sbr.rel (%p10496) target = $region68
      $region67: #{_lambda_.1} parent=63 // pred_region
        _
      $region68: #{_lambda_.1} parent=63 // pred_fallthru
        _
    $region64: #{_lambda_.1} parent=5 // pred_fallthru
      _
    %p10499 = scmp.le.s32.totalorder 2, %s17
    // Predicated region
    $region69: #{_lambda_.1} parent=5 // pred_check
      %p10500 = pneg %p10499
    $region70: #{_lambda_.1} parent=5 // pred_check_branch
      %10502 = sbr.rel (%p10500) target = $region72
    $region71: #{_lambda_.1} parent=5 // pred_region
      %s10503 = ssub.s32 %s17, 2
      // Predicated region
      $region73: #{_lambda_.1} parent=71 // pred_check
        %p10504 = pneg %p282
      $region74: #{_lambda_.1} parent=71 // pred_check_branch
        %10506 = sbr.rel (%p10504) target = $region76
      $region75: #{_lambda_.1} parent=71 // pred_region
        %p10507 = scmp.lt.s32.totalorder %s23, 1
        %s10508 = scalar_select %p10507, %s23, 1
        %s10509 = smul.addr %s10508, 4
        %s10510 = smul.addr %s10509, 8
        %s10511 = scalar_lea.vmem %s11, %s10510
      $region76: #{_lambda_.1} parent=71 // pred_fallthru
        _
    $region72: #{_lambda_.1} parent=5 // pred_fallthru
      _
  $region6: #{_lambda_.1} parent=0 // loop_footer
    %s21 = sadd.s32 1, %s17
  $region7: #{_lambda_.1} parent=0 // loop_footer_branch
    %16 = sbr.rel target = $region3
  $region8: #{_lambda_.1} parent=0 // loop_exit
    _

</llo_original>
